<compile_context>
chip_gen: v7x
topology: tpu7x:2x2x1
jax: 0.10.0
libtpu: 0.0.40
codegen_flags: <defaults>
</compile_context>

<pallas_src>
import math
import functools

import jax
import jax.numpy as jnp
from jax.experimental import pallas as pl
from jax.experimental.pallas import tpu as pltpu


def _layernorm_fm(x, gamma, beta, eps=1e-5):
    """LayerNorm over the feature (sublane) axis 0; x is (D, S)."""
    mu = jnp.mean(x, axis=0, keepdims=True)
    var = jnp.mean((x - mu) ** 2, axis=0, keepdims=True)
    return (x - mu) * jax.lax.rsqrt(var + eps) * gamma + beta


def mha_kernel(x_ref,                       # (C, S)   channels-first tokens
               wfc_ref, bfc_ref,            # (D, C), (D, 1)
               wq_ref, bq_ref,              # (D, D), (D, 1)   (scale pre-folded)
               wk_ref, bk_ref,
               wv_ref, bv_ref,
               wo_ref, bo_ref,
               g1_ref, be1_ref,             # (D, 1)
               wr_ref, br_ref,
               g2_ref, be2_ref,
               out_ref,                     # (D, S)
               *, nhead):
    x = x_ref[...]                          # (C, S)
    D, S = out_ref.shape
    hd = D // nhead

    # --- input projection fc:  t = W_fc @ x + b_fc   -> (D, S) ---
    t = jnp.dot(wfc_ref[...], x, preferred_element_type=jnp.float32) + bfc_ref[...]

    # --- self attention in_proj (1/sqrt(hd) already folded into wq/bq) ---
    q = jnp.dot(wq_ref[...], t, preferred_element_type=jnp.float32) + bq_ref[...]
    k = jnp.dot(wk_ref[...], t, preferred_element_type=jnp.float32) + bk_ref[...]
    v = jnp.dot(wv_ref[...], t, preferred_element_type=jnp.float32) + bv_ref[...]

    # --- split heads along the sublane (feature) axis: free, no lane movement ---
    q3 = q.reshape(nhead, hd, S)            # (H, hd, S)
    k3 = k.reshape(nhead, hd, S)
    v3 = v.reshape(nhead, hd, S)

    # --- scores[h, i, j] = sum_d q3[h,d,i] * k3[h,d,j]  (single batched MXU op) ---
    s = jax.lax.dot_general(q3, k3, (((1,), (1,)), ((0,), (0,))),
                            preferred_element_type=jnp.float32)       # (H, S, S)
    s = s - jnp.max(s, axis=-1, keepdims=True)
    p = jnp.exp(s)
    p = p * pl.reciprocal(jnp.sum(p, axis=-1, keepdims=True), approx=True)

    # --- ctx[h, d, i] = sum_j v3[h,d,j] * p[h,i,j] ---
    ctx = jax.lax.dot_general(v3, p, (((2,), (2,)), ((0,), (0,))),
                              preferred_element_type=jnp.float32)     # (H, hd, S)
    attn = ctx.reshape(D, S)                # merge heads back along sublanes (free)

    # --- out projection ---
    attn = jnp.dot(wo_ref[...], attn, preferred_element_type=jnp.float32) + bo_ref[...]

    # --- residual + norm1 ---
    t1 = _layernorm_fm(t + attn, g1_ref[...], be1_ref[...])

    # --- residual fc + norm2 ---
    res = jnp.dot(wr_ref[...], t1, preferred_element_type=jnp.float32) + br_ref[...]
    t2 = _layernorm_fm(t1 + res, g2_ref[...], be2_ref[...])

    out_ref[...] = t2.astype(out_ref.dtype)


def multihead_attention_forward(x_nchw, params, nhead):
    B, C, H, W = x_nchw.shape
    S = H * W
    D = params["w_fc"].shape[0]
    hd = D // nhead
    scale = 1.0 / math.sqrt(hd)

    # NCHW -> (B, C, S): pure reshape, no transpose (kernel is channels-first).
    x_cs = x_nchw.reshape(B, C, S)

    col = lambda v: v.reshape(-1, 1)        # biases / gains as (D, 1) columns
    weight_args = [
        params["w_fc"], col(params["b_fc"]),
        params["w_q"] * scale, col(params["b_q"] * scale),   # fold 1/sqrt(hd)
        params["w_k"], col(params["b_k"]),
        params["w_v"], col(params["b_v"]),
        params["w_o"], col(params["b_o"]),
        col(params["g1"]), col(params["be1"]),
        params["w_r"], col(params["b_r"]),
        col(params["g2"]), col(params["be2"]),
    ]

    in_specs = [pl.BlockSpec((pl.Squeezed(), C, S), lambda b: (b, 0, 0))]
    in_specs += [pl.BlockSpec(w.shape, lambda b: (0, 0)) for w in weight_args]

    out = pl.pallas_call(
        functools.partial(mha_kernel, nhead=nhead),
        out_shape=jax.ShapeDtypeStruct((B, D, S), jnp.float32),
        grid=(B,),
        in_specs=in_specs,
        out_specs=pl.BlockSpec((pl.Squeezed(), D, S), lambda b: (b, 0, 0)),
        compiler_params=pltpu.CompilerParams(
            dimension_semantics=("parallel",)),
    )(x_cs, *weight_args)

    # (B, D, S) -> (B, D, H, W): pure reshape, no transpose.
    return out.reshape(B, D, H, W)


def ref_forward(x_nchw, p, nhead):
    """Pure-JAX reference of the PyTorch forward (eval mode).

    Weights are stored PyTorch-style as (out_features, in_features)."""
    B, C, H, W = x_nchw.shape
    S = H * W
    tok = jnp.transpose(x_nchw.reshape(B, C, S), (0, 2, 1))      # (B, S, C)
    t = tok @ p["w_fc"].T + p["b_fc"]
    D = t.shape[-1]
    hd = D // nhead
    q = (t @ p["w_q"].T + p["b_q"]).reshape(B, S, nhead, hd).transpose(0, 2, 1, 3)
    k = (t @ p["w_k"].T + p["b_k"]).reshape(B, S, nhead, hd).transpose(0, 2, 1, 3)
    v = (t @ p["w_v"].T + p["b_v"]).reshape(B, S, nhead, hd).transpose(0, 2, 1, 3)
    s = jnp.einsum("bhqd,bhkd->bhqk", q, k) / jnp.sqrt(hd)
    a = jax.nn.softmax(s, axis=-1)
    o = jnp.einsum("bhqk,bhkd->bhqd", a, v).transpose(0, 2, 1, 3).reshape(B, S, D)
    o = o @ p["w_o"].T + p["b_o"]

    def ln(x, g, b):
        mu = x.mean(-1, keepdims=True)
        var = ((x - mu) ** 2).mean(-1, keepdims=True)
        return (x - mu) / jnp.sqrt(var + 1e-5) * g + b

    t1 = ln(t + o, p["g1"], p["be1"])
    t2 = ln(t1 + (t1 @ p["w_r"].T + p["b_r"]), p["g2"], p["be2"])
    return jnp.transpose(t2, (0, 2, 1)).reshape(B, D, H, W)


def make_params(key, input_dim, d_model):
    # Note: res_fc is applied to a d_model-wide tensor in the PyTorch forward,
    # so the module only runs when input_dim == d_model.
    assert input_dim == d_model
    ks = jax.random.split(key, 14)
    sd = 0.05

    def w(k, shape):
        return jax.random.normal(k, shape, jnp.float32) * sd

    return {
        "w_fc": w(ks[0], (d_model, input_dim)), "b_fc": w(ks[1], (d_model,)),
        "w_q": w(ks[2], (d_model, d_model)),    "b_q": w(ks[3], (d_model,)),
        "w_k": w(ks[4], (d_model, d_model)),    "b_k": jnp.zeros((d_model,), jnp.float32),
        "w_v": w(ks[5], (d_model, d_model)),    "b_v": w(ks[6], (d_model,)),
        "w_o": w(ks[7], (d_model, d_model)),    "b_o": jnp.zeros((d_model,), jnp.float32),
        "g1": 1.0 + w(ks[8], (d_model,)),       "be1": w(ks[9], (d_model,)),
        "w_r": w(ks[10], (d_model, d_model)),   "b_r": w(ks[11], (d_model,)),
        "g2": 1.0 + w(ks[12], (d_model,)),      "be2": w(ks[13], (d_model,)),
    }


if __name__ == "__main__":
    # Small but TPU-friendly shapes: input_dim = d_model = 128 (lane-dense
    # features), S = 16*16 = 256 tokens on the lane axis.
    B, C, H, W = 2, 128, 16, 16
    d_model, nhead = 128, 4

    key = jax.random.PRNGKey(0)
    kx, kp = jax.random.split(key)
    x = jax.random.normal(kx, (B, C, H, W), jnp.float32)
    params = make_params(kp, C, d_model)

    out = jax.block_until_ready(multihead_attention_forward(x, params, nhead))
    ref = jax.block_until_ready(ref_forward(x, params, nhead))

    assert out.shape == (B, d_model, H, W)
    max_err = jnp.max(jnp.abs(out - ref))
    assert jnp.allclose(out, ref, rtol=2e-3, atol=2e-3), f"max err {max_err}"

    print("KERNEL_OK")
</pallas_src>

<mosaic_0001>
module attributes {stable_mosaic.version = 11 : i64} {
  func.func @mha_kernel(%arg0: i32, %arg1: memref<1x128x256xf32, #tpu.memory_space<vmem>>, %arg2: memref<128x128xf32, #tpu.memory_space<vmem>>, %arg3: memref<128x1xf32, #tpu.memory_space<vmem>>, %arg4: memref<128x128xf32, #tpu.memory_space<vmem>>, %arg5: memref<128x1xf32, #tpu.memory_space<vmem>>, %arg6: memref<128x128xf32, #tpu.memory_space<vmem>>, %arg7: memref<128x1xf32, #tpu.memory_space<vmem>>, %arg8: memref<128x128xf32, #tpu.memory_space<vmem>>, %arg9: memref<128x1xf32, #tpu.memory_space<vmem>>, %arg10: memref<128x128xf32, #tpu.memory_space<vmem>>, %arg11: memref<128x1xf32, #tpu.memory_space<vmem>>, %arg12: memref<128x1xf32, #tpu.memory_space<vmem>>, %arg13: memref<128x1xf32, #tpu.memory_space<vmem>>, %arg14: memref<128x128xf32, #tpu.memory_space<vmem>>, %arg15: memref<128x1xf32, #tpu.memory_space<vmem>>, %arg16: memref<128x1xf32, #tpu.memory_space<vmem>>, %arg17: memref<128x1xf32, #tpu.memory_space<vmem>>, %arg18: memref<1x128x256xf32, #tpu.memory_space<vmem>>) attributes {dimension_semantics = [#tpu.dimension_semantics<parallel>], iteration_bounds = array<i64: 2>, scalar_prefetch = 0 : i64, scratch_operands = 0 : i64, tpu.core_type = #tpu.core_type<tc>, window_params = [{transform_indices = @transform_0, window_bounds = array<i64: 1, 128, 256>}, {pipeline_mode = #tpu.pipeline_mode<synchronous>, transform_indices = @transform_1, window_bounds = array<i64: 128, 128>}, {pipeline_mode = #tpu.pipeline_mode<synchronous>, transform_indices = @transform_2, window_bounds = array<i64: 128, 1>}, {pipeline_mode = #tpu.pipeline_mode<synchronous>, transform_indices = @transform_3, window_bounds = array<i64: 128, 128>}, {pipeline_mode = #tpu.pipeline_mode<synchronous>, transform_indices = @transform_4, window_bounds = array<i64: 128, 1>}, {pipeline_mode = #tpu.pipeline_mode<synchronous>, transform_indices = @transform_5, window_bounds = array<i64: 128, 128>}, {pipeline_mode = #tpu.pipeline_mode<synchronous>, transform_indices = @transform_6, window_bounds = array<i64: 128, 1>}, {pipeline_mode = #tpu.pipeline_mode<synchronous>, transform_indices = @transform_7, window_bounds = array<i64: 128, 128>}, {pipeline_mode = #tpu.pipeline_mode<synchronous>, transform_indices = @transform_8, window_bounds = array<i64: 128, 1>}, {pipeline_mode = #tpu.pipeline_mode<synchronous>, transform_indices = @transform_9, window_bounds = array<i64: 128, 128>}, {pipeline_mode = #tpu.pipeline_mode<synchronous>, transform_indices = @transform_10, window_bounds = array<i64: 128, 1>}, {pipeline_mode = #tpu.pipeline_mode<synchronous>, transform_indices = @transform_11, window_bounds = array<i64: 128, 1>}, {pipeline_mode = #tpu.pipeline_mode<synchronous>, transform_indices = @transform_12, window_bounds = array<i64: 128, 1>}, {pipeline_mode = #tpu.pipeline_mode<synchronous>, transform_indices = @transform_13, window_bounds = array<i64: 128, 128>}, {pipeline_mode = #tpu.pipeline_mode<synchronous>, transform_indices = @transform_14, window_bounds = array<i64: 128, 1>}, {pipeline_mode = #tpu.pipeline_mode<synchronous>, transform_indices = @transform_15, window_bounds = array<i64: 128, 1>}, {pipeline_mode = #tpu.pipeline_mode<synchronous>, transform_indices = @transform_16, window_bounds = array<i64: 128, 1>}, {transform_indices = @transform_17, window_bounds = array<i64: 1, 128, 256>}]} {
    %c0 = arith.constant 0 : index
    %c0_0 = arith.constant 0 : index
    %c0_1 = arith.constant 0 : index
    %0 = vector.load %arg1[%c0, %c0_0, %c0_1] : memref<1x128x256xf32, #tpu.memory_space<vmem>>, vector<1x128x256xf32>
    %1 = vector.shape_cast %0 : vector<1x128x256xf32> to vector<128x256xf32>
    %c0_2 = arith.constant 0 : index
    %c0_3 = arith.constant 0 : index
    %2 = vector.load %arg2[%c0_2, %c0_3] : memref<128x128xf32, #tpu.memory_space<vmem>>, vector<128x128xf32>
    %cst = arith.constant dense<0.000000e+00> : vector<128x256xf32>
    %3 = tpu.matmul %2, %1, %cst {dimension_numbers = #tpu.dot_dimension_numbers<[1], [0], [0], [1], [0, 0, 1, 1], [], []>} : vector<128x128xf32>, vector<128x256xf32>, vector<128x256xf32> -> vector<128x256xf32>
    %c0_4 = arith.constant 0 : index
    %c0_5 = arith.constant 0 : index
    %4 = vector.load %arg3[%c0_4, %c0_5] : memref<128x1xf32, #tpu.memory_space<vmem>>, vector<128x1xf32>
    %5 = vector.broadcast %4 : vector<128x1xf32> to vector<128x256xf32>
    %6 = arith.addf %3, %5 : vector<128x256xf32>
    %c0_6 = arith.constant 0 : index
    %c0_7 = arith.constant 0 : index
    %7 = vector.load %arg4[%c0_6, %c0_7] : memref<128x128xf32, #tpu.memory_space<vmem>>, vector<128x128xf32>
    %cst_8 = arith.constant dense<0.000000e+00> : vector<128x256xf32>
    %8 = tpu.matmul %7, %6, %cst_8 {dimension_numbers = #tpu.dot_dimension_numbers<[1], [0], [0], [1], [0, 0, 1, 1], [], []>} : vector<128x128xf32>, vector<128x256xf32>, vector<128x256xf32> -> vector<128x256xf32>
    %c0_9 = arith.constant 0 : index
    %c0_10 = arith.constant 0 : index
    %9 = vector.load %arg5[%c0_9, %c0_10] : memref<128x1xf32, #tpu.memory_space<vmem>>, vector<128x1xf32>
    %10 = vector.broadcast %9 : vector<128x1xf32> to vector<128x256xf32>
    %11 = arith.addf %8, %10 : vector<128x256xf32>
    %c0_11 = arith.constant 0 : index
    %c0_12 = arith.constant 0 : index
    %12 = vector.load %arg6[%c0_11, %c0_12] : memref<128x128xf32, #tpu.memory_space<vmem>>, vector<128x128xf32>
    %cst_13 = arith.constant dense<0.000000e+00> : vector<128x256xf32>
    %13 = tpu.matmul %12, %6, %cst_13 {dimension_numbers = #tpu.dot_dimension_numbers<[1], [0], [0], [1], [0, 0, 1, 1], [], []>} : vector<128x128xf32>, vector<128x256xf32>, vector<128x256xf32> -> vector<128x256xf32>
    %c0_14 = arith.constant 0 : index
    %c0_15 = arith.constant 0 : index
    %14 = vector.load %arg7[%c0_14, %c0_15] : memref<128x1xf32, #tpu.memory_space<vmem>>, vector<128x1xf32>
    %15 = vector.broadcast %14 : vector<128x1xf32> to vector<128x256xf32>
    %16 = arith.addf %13, %15 : vector<128x256xf32>
    %c0_16 = arith.constant 0 : index
    %c0_17 = arith.constant 0 : index
    %17 = vector.load %arg8[%c0_16, %c0_17] : memref<128x128xf32, #tpu.memory_space<vmem>>, vector<128x128xf32>
    %cst_18 = arith.constant dense<0.000000e+00> : vector<128x256xf32>
    %18 = tpu.matmul %17, %6, %cst_18 {dimension_numbers = #tpu.dot_dimension_numbers<[1], [0], [0], [1], [0, 0, 1, 1], [], []>} : vector<128x128xf32>, vector<128x256xf32>, vector<128x256xf32> -> vector<128x256xf32>
    %c0_19 = arith.constant 0 : index
    %c0_20 = arith.constant 0 : index
    %19 = vector.load %arg9[%c0_19, %c0_20] : memref<128x1xf32, #tpu.memory_space<vmem>>, vector<128x1xf32>
    %20 = vector.broadcast %19 : vector<128x1xf32> to vector<128x256xf32>
    %21 = arith.addf %18, %20 : vector<128x256xf32>
    %22 = vector.shape_cast %11 : vector<128x256xf32> to vector<4x32x256xf32>
    %23 = vector.shape_cast %16 : vector<128x256xf32> to vector<4x32x256xf32>
    %24 = vector.shape_cast %21 : vector<128x256xf32> to vector<4x32x256xf32>
    %cst_21 = arith.constant dense<0.000000e+00> : vector<4x256x256xf32>
    %25 = tpu.matmul %22, %23, %cst_21 {dimension_numbers = #tpu.dot_dimension_numbers<[1], [1], [2], [2], [0, 0, 0, 2, 1, 2], [0], [0]>} : vector<4x32x256xf32>, vector<4x32x256xf32>, vector<4x256x256xf32> -> vector<4x256x256xf32>
    %cst_22 = arith.constant dense<0xFF800000> : vector<4x256xf32>
    %26 = vector.multi_reduction <maximumf>, %25, %cst_22 [2] : vector<4x256x256xf32> to vector<4x256xf32>
    %27 = vector.shape_cast %26 : vector<4x256xf32> to vector<4x256x1xf32>
    %28 = vector.broadcast %27 : vector<4x256x1xf32> to vector<4x256x256xf32>
    %29 = arith.subf %25, %28 : vector<4x256x256xf32>
    %30 = math.exp %29 : vector<4x256x256xf32>
    %cst_23 = arith.constant dense<0.000000e+00> : vector<4x256xf32>
    %31 = vector.multi_reduction <add>, %30, %cst_23 [2] : vector<4x256x256xf32> to vector<4x256xf32>
    %32 = vector.shape_cast %31 : vector<4x256xf32> to vector<4x256x1xf32>
    %33 = tpu.reciprocal %32 {approx = true} : vector<4x256x1xf32> -> vector<4x256x1xf32>
    %34 = vector.broadcast %33 : vector<4x256x1xf32> to vector<4x256x256xf32>
    %35 = arith.mulf %30, %34 : vector<4x256x256xf32>
    %cst_24 = arith.constant dense<0.000000e+00> : vector<4x32x256xf32>
    %36 = tpu.matmul %24, %35, %cst_24 {dimension_numbers = #tpu.dot_dimension_numbers<[2], [2], [1], [1], [0, 0, 0, 1, 1, 1], [0], [0]>} : vector<4x32x256xf32>, vector<4x256x256xf32>, vector<4x32x256xf32> -> vector<4x32x256xf32>
    %37 = vector.shape_cast %36 : vector<4x32x256xf32> to vector<128x256xf32>
    %c0_25 = arith.constant 0 : index
    %c0_26 = arith.constant 0 : index
    %38 = vector.load %arg10[%c0_25, %c0_26] : memref<128x128xf32, #tpu.memory_space<vmem>>, vector<128x128xf32>
    %cst_27 = arith.constant dense<0.000000e+00> : vector<128x256xf32>
    %39 = tpu.matmul %38, %37, %cst_27 {dimension_numbers = #tpu.dot_dimension_numbers<[1], [0], [0], [1], [0, 0, 1, 1], [], []>} : vector<128x128xf32>, vector<128x256xf32>, vector<128x256xf32> -> vector<128x256xf32>
    %c0_28 = arith.constant 0 : index
    %c0_29 = arith.constant 0 : index
    %40 = vector.load %arg11[%c0_28, %c0_29] : memref<128x1xf32, #tpu.memory_space<vmem>>, vector<128x1xf32>
    %41 = vector.broadcast %40 : vector<128x1xf32> to vector<128x256xf32>
    %42 = arith.addf %39, %41 : vector<128x256xf32>
    %43 = arith.addf %6, %42 : vector<128x256xf32>
    %c0_30 = arith.constant 0 : index
    %c0_31 = arith.constant 0 : index
    %44 = vector.load %arg12[%c0_30, %c0_31] : memref<128x1xf32, #tpu.memory_space<vmem>>, vector<128x1xf32>
    %c0_32 = arith.constant 0 : index
    %c0_33 = arith.constant 0 : index
    %45 = vector.load %arg13[%c0_32, %c0_33] : memref<128x1xf32, #tpu.memory_space<vmem>>, vector<128x1xf32>
    %cst_34 = arith.constant dense<0.000000e+00> : vector<256xf32>
    %46 = vector.multi_reduction <add>, %43, %cst_34 [0] : vector<128x256xf32> to vector<256xf32>
    %47 = vector.shape_cast %46 : vector<256xf32> to vector<1x256xf32>
    %cst_35 = arith.constant 1.280000e+02 : f32
    %48 = vector.broadcast %cst_35 : f32 to vector<1x256xf32>
    %49 = arith.divf %47, %48 : vector<1x256xf32>
    %50 = vector.broadcast %49 : vector<1x256xf32> to vector<128x256xf32>
    %51 = arith.subf %43, %50 : vector<128x256xf32>
    %52 = arith.mulf %51, %51 : vector<128x256xf32>
    %cst_36 = arith.constant dense<0.000000e+00> : vector<256xf32>
    %53 = vector.multi_reduction <add>, %52, %cst_36 [0] : vector<128x256xf32> to vector<256xf32>
    %54 = vector.shape_cast %53 : vector<256xf32> to vector<1x256xf32>
    %cst_37 = arith.constant 1.280000e+02 : f32
    %55 = vector.broadcast %cst_37 : f32 to vector<1x256xf32>
    %56 = arith.divf %54, %55 : vector<1x256xf32>
    %57 = vector.broadcast %49 : vector<1x256xf32> to vector<128x256xf32>
    %58 = arith.subf %43, %57 : vector<128x256xf32>
    %cst_38 = arith.constant 9.99999974E-6 : f32
    %59 = vector.broadcast %cst_38 : f32 to vector<1x256xf32>
    %60 = arith.addf %56, %59 : vector<1x256xf32>
    %61 = math.rsqrt %60 : vector<1x256xf32>
    %62 = vector.broadcast %61 : vector<1x256xf32> to vector<128x256xf32>
    %63 = arith.mulf %58, %62 : vector<128x256xf32>
    %64 = vector.broadcast %44 : vector<128x1xf32> to vector<128x256xf32>
    %65 = arith.mulf %63, %64 : vector<128x256xf32>
    %66 = vector.broadcast %45 : vector<128x1xf32> to vector<128x256xf32>
    %67 = arith.addf %65, %66 : vector<128x256xf32>
    %c0_39 = arith.constant 0 : index
    %c0_40 = arith.constant 0 : index
    %68 = vector.load %arg14[%c0_39, %c0_40] : memref<128x128xf32, #tpu.memory_space<vmem>>, vector<128x128xf32>
    %cst_41 = arith.constant dense<0.000000e+00> : vector<128x256xf32>
    %69 = tpu.matmul %68, %67, %cst_41 {dimension_numbers = #tpu.dot_dimension_numbers<[1], [0], [0], [1], [0, 0, 1, 1], [], []>} : vector<128x128xf32>, vector<128x256xf32>, vector<128x256xf32> -> vector<128x256xf32>
    %c0_42 = arith.constant 0 : index
    %c0_43 = arith.constant 0 : index
    %70 = vector.load %arg15[%c0_42, %c0_43] : memref<128x1xf32, #tpu.memory_space<vmem>>, vector<128x1xf32>
    %71 = vector.broadcast %70 : vector<128x1xf32> to vector<128x256xf32>
    %72 = arith.addf %69, %71 : vector<128x256xf32>
    %73 = arith.addf %67, %72 : vector<128x256xf32>
    %c0_44 = arith.constant 0 : index
    %c0_45 = arith.constant 0 : index
    %74 = vector.load %arg16[%c0_44, %c0_45] : memref<128x1xf32, #tpu.memory_space<vmem>>, vector<128x1xf32>
    %c0_46 = arith.constant 0 : index
    %c0_47 = arith.constant 0 : index
    %75 = vector.load %arg17[%c0_46, %c0_47] : memref<128x1xf32, #tpu.memory_space<vmem>>, vector<128x1xf32>
    %cst_48 = arith.constant dense<0.000000e+00> : vector<256xf32>
    %76 = vector.multi_reduction <add>, %73, %cst_48 [0] : vector<128x256xf32> to vector<256xf32>
    %77 = vector.shape_cast %76 : vector<256xf32> to vector<1x256xf32>
    %cst_49 = arith.constant 1.280000e+02 : f32
    %78 = vector.broadcast %cst_49 : f32 to vector<1x256xf32>
    %79 = arith.divf %77, %78 : vector<1x256xf32>
    %80 = vector.broadcast %79 : vector<1x256xf32> to vector<128x256xf32>
    %81 = arith.subf %73, %80 : vector<128x256xf32>
    %82 = arith.mulf %81, %81 : vector<128x256xf32>
    %cst_50 = arith.constant dense<0.000000e+00> : vector<256xf32>
    %83 = vector.multi_reduction <add>, %82, %cst_50 [0] : vector<128x256xf32> to vector<256xf32>
    %84 = vector.shape_cast %83 : vector<256xf32> to vector<1x256xf32>
    %cst_51 = arith.constant 1.280000e+02 : f32
    %85 = vector.broadcast %cst_51 : f32 to vector<1x256xf32>
    %86 = arith.divf %84, %85 : vector<1x256xf32>
    %87 = vector.broadcast %79 : vector<1x256xf32> to vector<128x256xf32>
    %88 = arith.subf %73, %87 : vector<128x256xf32>
    %cst_52 = arith.constant 9.99999974E-6 : f32
    %89 = vector.broadcast %cst_52 : f32 to vector<1x256xf32>
    %90 = arith.addf %86, %89 : vector<1x256xf32>
    %91 = math.rsqrt %90 : vector<1x256xf32>
    %92 = vector.broadcast %91 : vector<1x256xf32> to vector<128x256xf32>
    %93 = arith.mulf %88, %92 : vector<128x256xf32>
    %94 = vector.broadcast %74 : vector<128x1xf32> to vector<128x256xf32>
    %95 = arith.mulf %93, %94 : vector<128x256xf32>
    %96 = vector.broadcast %75 : vector<128x1xf32> to vector<128x256xf32>
    %97 = arith.addf %95, %96 : vector<128x256xf32>
    %c0_53 = arith.constant 0 : index
    %c0_54 = arith.constant 0 : index
    %c0_55 = arith.constant 0 : index
    %98 = vector.load %arg18[%c0_53, %c0_54, %c0_55] : memref<1x128x256xf32, #tpu.memory_space<vmem>>, vector<1x128x256xf32>
    %99 = vector.shape_cast %98 : vector<1x128x256xf32> to vector<128x256xf32>
    %100 = vector.shape_cast %97 : vector<128x256xf32> to vector<1x128x256xf32>
    tpu.vector_store %arg18[%c0_53, %c0_54, %c0_55], %100 {strides = array<i32>} : memref<1x128x256xf32, #tpu.memory_space<vmem>>, vector<1x128x256xf32>,
    return
  }
  func.func @transform_0(%arg0: i32) -> (i32, i32, i32) {
    %c0_i32 = arith.constant 0 : i32
    %c0_i32_0 = arith.constant 0 : i32
    %c0_i32_1 = arith.constant 0 : i32
    return %arg0, %c0_i32, %c0_i32_0 : i32, i32, i32
  }
  func.func @transform_1(%arg0: i32) -> (i32, i32) {
    %c0_i32 = arith.constant 0 : i32
    %c0_i32_0 = arith.constant 0 : i32
    %c0_i32_1 = arith.constant 0 : i32
    return %c0_i32, %c0_i32_0 : i32, i32
  }
  func.func @transform_2(%arg0: i32) -> (i32, i32) {
    %c0_i32 = arith.constant 0 : i32
    %c0_i32_0 = arith.constant 0 : i32
    %c0_i32_1 = arith.constant 0 : i32
    return %c0_i32, %c0_i32_0 : i32, i32
  }
  func.func @transform_3(%arg0: i32) -> (i32, i32) {
    %c0_i32 = arith.constant 0 : i32
    %c0_i32_0 = arith.constant 0 : i32
    %c0_i32_1 = arith.constant 0 : i32
    return %c0_i32, %c0_i32_0 : i32, i32
  }
  func.func @transform_4(%arg0: i32) -> (i32, i32) {
    %c0_i32 = arith.constant 0 : i32
    %c0_i32_0 = arith.constant 0 : i32
    %c0_i32_1 = arith.constant 0 : i32
    return %c0_i32, %c0_i32_0 : i32, i32
  }
  func.func @transform_5(%arg0: i32) -> (i32, i32) {
    %c0_i32 = arith.constant 0 : i32
    %c0_i32_0 = arith.constant 0 : i32
    %c0_i32_1 = arith.constant 0 : i32
    return %c0_i32, %c0_i32_0 : i32, i32
  }
  func.func @transform_6(%arg0: i32) -> (i32, i32) {
    %c0_i32 = arith.constant 0 : i32
    %c0_i32_0 = arith.constant 0 : i32
    %c0_i32_1 = arith.constant 0 : i32
    return %c0_i32, %c0_i32_0 : i32, i32
  }
  func.func @transform_7(%arg0: i32) -> (i32, i32) {
    %c0_i32 = arith.constant 0 : i32
    %c0_i32_0 = arith.constant 0 : i32
    %c0_i32_1 = arith.constant 0 : i32
    return %c0_i32, %c0_i32_0 : i32, i32
  }
  func.func @transform_8(%arg0: i32) -> (i32, i32) {
    %c0_i32 = arith.constant 0 : i32
    %c0_i32_0 = arith.constant 0 : i32
    %c0_i32_1 = arith.constant 0 : i32
    return %c0_i32, %c0_i32_0 : i32, i32
  }
  func.func @transform_9(%arg0: i32) -> (i32, i32) {
    %c0_i32 = arith.constant 0 : i32
    %c0_i32_0 = arith.constant 0 : i32
    %c0_i32_1 = arith.constant 0 : i32
    return %c0_i32, %c0_i32_0 : i32, i32
  }
  func.func @transform_10(%arg0: i32) -> (i32, i32) {
    %c0_i32 = arith.constant 0 : i32
    %c0_i32_0 = arith.constant 0 : i32
    %c0_i32_1 = arith.constant 0 : i32
    return %c0_i32, %c0_i32_0 : i32, i32
  }
  func.func @transform_11(%arg0: i32) -> (i32, i32) {
    %c0_i32 = arith.constant 0 : i32
    %c0_i32_0 = arith.constant 0 : i32
    %c0_i32_1 = arith.constant 0 : i32
    return %c0_i32, %c0_i32_0 : i32, i32
  }
  func.func @transform_12(%arg0: i32) -> (i32, i32) {
    %c0_i32 = arith.constant 0 : i32
    %c0_i32_0 = arith.constant 0 : i32
    %c0_i32_1 = arith.constant 0 : i32
    return %c0_i32, %c0_i32_0 : i32, i32
  }
  func.func @transform_13(%arg0: i32) -> (i32, i32) {
    %c0_i32 = arith.constant 0 : i32
    %c0_i32_0 = arith.constant 0 : i32
    %c0_i32_1 = arith.constant 0 : i32
    return %c0_i32, %c0_i32_0 : i32, i32
  }
  func.func @transform_14(%arg0: i32) -> (i32, i32) {
    %c0_i32 = arith.constant 0 : i32
    %c0_i32_0 = arith.constant 0 : i32
    %c0_i32_1 = arith.constant 0 : i32
    return %c0_i32, %c0_i32_0 : i32, i32
  }
  func.func @transform_15(%arg0: i32) -> (i32, i32) {
    %c0_i32 = arith.constant 0 : i32
    %c0_i32_0 = arith.constant 0 : i32
    %c0_i32_1 = arith.constant 0 : i32
    return %c0_i32, %c0_i32_0 : i32, i32
  }
  func.func @transform_16(%arg0: i32) -> (i32, i32) {
    %c0_i32 = arith.constant 0 : i32
    %c0_i32_0 = arith.constant 0 : i32
    %c0_i32_1 = arith.constant 0 : i32
    return %c0_i32, %c0_i32_0 : i32, i32
  }
  func.func @transform_17(%arg0: i32) -> (i32, i32, i32) {
    %c0_i32 = arith.constant 0 : i32
    %c0_i32_0 = arith.constant 0 : i32
    %c0_i32_1 = arith.constant 0 : i32
    return %arg0, %c0_i32, %c0_i32_0 : i32, i32, i32
  }
}

</mosaic_0001>

<llo_original>
// kernel: tpu_custom_call.1
$region0: #{tpu_custom_call.1}
  #allocation0 [shape = 'u32[]', space=smem, size = 0x4, offset = 0x4, fixed_abs, tag = 'smem constant byte address 0x4 - core index']
  #allocation1 [shape = 'u32[144,128]{1,0:T(1,128)}', space=vmem, size = 0x12000, scoped, tag = 'internal scratch']
  %s0 = inlined_call_operand.vmem [shape: f32[2,128,256], index: 0, kind: input, shape index: {}]
  %s1 = inlined_call_operand.vmem [shape: f32[128,128], index: 1, kind: input, shape index: {}]
  %s2 = inlined_call_operand.vmem [shape: f32[128,1], index: 2, kind: input, shape index: {}]
  %s3 = inlined_call_operand.vmem [shape: f32[128,128], index: 3, kind: input, shape index: {}]
  %s4 = inlined_call_operand.vmem [shape: f32[128,1], index: 4, kind: input, shape index: {}]
  %s5 = inlined_call_operand.vmem [shape: f32[128,128], index: 5, kind: input, shape index: {}]
  %s6 = inlined_call_operand.vmem [shape: f32[128,1], index: 6, kind: input, shape index: {}]
  %s7 = inlined_call_operand.vmem [shape: f32[128,128], index: 7, kind: input, shape index: {}]
  %s8 = inlined_call_operand.vmem [shape: f32[128,1], index: 8, kind: input, shape index: {}]
  %s9 = inlined_call_operand.vmem [shape: f32[128,128], index: 9, kind: input, shape index: {}]
  %s10 = inlined_call_operand.vmem [shape: f32[128,1], index: 10, kind: input, shape index: {}]
  %s11 = inlined_call_operand.vmem [shape: f32[128,1], index: 11, kind: input, shape index: {}]
  %s12 = inlined_call_operand.vmem [shape: f32[128,1], index: 12, kind: input, shape index: {}]
  %s13 = inlined_call_operand.vmem [shape: f32[128,128], index: 13, kind: input, shape index: {}]
  %s14 = inlined_call_operand.vmem [shape: f32[128,1], index: 14, kind: input, shape index: {}]
  %s15 = inlined_call_operand.vmem [shape: f32[128,1], index: 15, kind: input, shape index: {}]
  %s16 = inlined_call_operand.vmem [shape: f32[128,1], index: 16, kind: input, shape index: {}]
  %s17 = inlined_call_operand.hbm [shape: f32[2,128,256], index: 17, kind: output, shape index: {}]
  %s18 = sld [smem:[#allocation0]]
  $region101: #{tpu_custom_call.1} parent=0
    _
  %s20 = ssub.s32 1, %s18
  %s21 = scalar_select 0, %s20, %s18
  $region1: #{tpu_custom_call.1} parent=0
    #allocation2 [shape = 'u8[262144]{0}', space=vmem, size = 0x40000, scoped, tag = 'output window, operand 0']
    #allocation3 [shape = 's32[2]{0}', space=sflag, size = 0x8, scoped, tag = 'scoped memory for tpu_custom_call.1']
    %22 = vsyncpa [#allocation3], 0
    %s23 = scalar_lea.sflag [#allocation3], 1
    %24 = vsyncpa %s23, 0
    loop: start=0, step=1, limit=4
    $region2: #{tpu_custom_call.1} parent=1 // loop_pre_header
      _
    $region3: #{tpu_custom_call.1} parent=1 // loop_header
      %s26 = sphi 0, %s30
      %p27 = scmp.ge.s32.totalorder %s26, 4
      %s36 = sphi 0, %s38
      %s39 = sphi 0, %s36
      %s40 = sphi 0, %s39
      %s56 = sphi 0, %s40
      %s60 = sphi 0, %s60
      %s62 = sphi 0, %s60
      %s63 = sphi 0, %s62
      %s77 = sphi 0, %s63
      %s81 = sphi 0, %s81
      %s83 = sphi 0, %s81
      %s84 = sphi 0, %s83
      %s98 = sphi 0, %s84
      %s102 = sphi 0, %s102
      %s104 = sphi 0, %s102
      %s105 = sphi 0, %s104
      %s119 = sphi 0, %s105
      %s123 = sphi 0, %s123
      %s125 = sphi 0, %s123
      %s126 = sphi 0, %s125
      %s140 = sphi 0, %s126
      %s144 = sphi 0, %s144
      %s146 = sphi 0, %s144
      %s147 = sphi 0, %s146
      %s161 = sphi 0, %s147
      %s165 = sphi 0, %s165
      %s167 = sphi 0, %s165
      %s168 = sphi 0, %s167
      %s182 = sphi 0, %s168
      %s186 = sphi 0, %s186
      %s188 = sphi 0, %s186
      %s189 = sphi 0, %s188
      %s203 = sphi 0, %s189
      %s207 = sphi 0, %s207
      %s209 = sphi 0, %s207
      %s210 = sphi 0, %s209
      %s224 = sphi 0, %s210
      %s228 = sphi 0, %s228
      %s230 = sphi 0, %s228
      %s231 = sphi 0, %s230
      %s245 = sphi 0, %s231
      %s249 = sphi 0, %s249
      %s251 = sphi 0, %s249
      %s252 = sphi 0, %s251
      %s266 = sphi 0, %s252
      %s270 = sphi 0, %s270
      %s272 = sphi 0, %s270
      %s273 = sphi 0, %s272
      %s287 = sphi 0, %s273
      %s291 = sphi 0, %s291
      %s293 = sphi 0, %s291
      %s294 = sphi 0, %s293
      %s308 = sphi 0, %s294
      %s312 = sphi 0, %s312
      %s314 = sphi 0, %s312
      %s315 = sphi 0, %s314
      %s329 = sphi 0, %s315
      %s333 = sphi 0, %s333
      %s335 = sphi 0, %s333
      %s336 = sphi 0, %s335
      %s350 = sphi 0, %s336
      %s354 = sphi 0, %s354
      %s356 = sphi 0, %s354
      %s357 = sphi 0, %s356
      %s371 = sphi 0, %s357
      %s375 = sphi 0, %s375
      %s377 = sphi 0, %s375
      %s378 = sphi 0, %s377
      %s392 = sphi 0, %s378
      %s398 = sphi 0, %s400
      %s401 = sphi 0, %s398
      %s402 = sphi 0, %s401
      %s418 = sphi 0, %s402
    $region4: #{tpu_custom_call.1} parent=1 // loop_header_branch
      %29 = sbr.rel (%p27) target = $region8
    $region5: #{tpu_custom_call.1} parent=1 // loop_body
      %s31 = ssub.s32 %s26, 1
      %s32 = ssub.s32 %s26, 2
      %s33 = sadd.s32 %s26, 1
      %s34 = ssub.s32 %s26, %s33
      %p35 = scmp.eq.s32.totalorder %s34, 0
      %s37 = sadd.s32 %s36, 1
      %s38 = scalar_select %p35, %s36, %s37
      %p41 = pneg %p35
      %p42 = scmp.eq.s32.totalorder %s26, 1
      %p43 = por %p41, %p42
      %p44 = scmp.ne.s32.totalorder %s36, %s39
      %p45 = scmp.eq.s32.totalorder %s26, 0
      %p46 = por %p44, %p45
      %p47 = scmp.ne.s32.totalorder %s36, %s39
      %p48 = scmp.eq.s32.totalorder %s31, 1
      %p49 = por %p47, %p48
      %p50 = scmp.ne.s32.totalorder %s39, %s40
      %p51 = scmp.eq.s32.totalorder %s31, 0
      %p52 = por %p50, %p51
      %p53 = scmp.ne.s32.totalorder %s39, %s40
      %p54 = scmp.eq.s32.totalorder %s32, 1
      %p55 = por %p53, %p54
      %p57 = scmp.ne.s32.totalorder %s40, %s56
      %p58 = scmp.eq.s32.totalorder %s32, 0
      %p59 = por %p57, %p58
      %s61 = sadd.s32 %s60, 1
      %p64 = scmp.eq.s32.totalorder %s26, 1
      %p65 = scmp.ne.s32.totalorder %s60, %s62
      %p66 = scmp.eq.s32.totalorder %s26, 0
      %p67 = por %p65, %p66
      %p68 = scmp.ne.s32.totalorder %s60, %s62
      %p69 = scmp.eq.s32.totalorder %s31, 1
      %p70 = por %p68, %p69
      %p71 = scmp.ne.s32.totalorder %s62, %s63
      %p72 = scmp.eq.s32.totalorder %s31, 0
      %p73 = por %p71, %p72
      %p74 = scmp.ne.s32.totalorder %s62, %s63
      %p75 = scmp.eq.s32.totalorder %s32, 1
      %p76 = por %p74, %p75
      %p78 = scmp.ne.s32.totalorder %s63, %s77
      %p79 = scmp.eq.s32.totalorder %s32, 0
      %p80 = por %p78, %p79
      %s82 = sadd.s32 %s81, 1
      %p85 = scmp.eq.s32.totalorder %s26, 1
      %p86 = scmp.ne.s32.totalorder %s81, %s83
      %p87 = scmp.eq.s32.totalorder %s26, 0
      %p88 = por %p86, %p87
      %p89 = scmp.ne.s32.totalorder %s81, %s83
      %p90 = scmp.eq.s32.totalorder %s31, 1
      %p91 = por %p89, %p90
      %p92 = scmp.ne.s32.totalorder %s83, %s84
      %p93 = scmp.eq.s32.totalorder %s31, 0
      %p94 = por %p92, %p93
      %p95 = scmp.ne.s32.totalorder %s83, %s84
      %p96 = scmp.eq.s32.totalorder %s32, 1
      %p97 = por %p95, %p96
      %p99 = scmp.ne.s32.totalorder %s84, %s98
      %p100 = scmp.eq.s32.totalorder %s32, 0
      %p101 = por %p99, %p100
      %s103 = sadd.s32 %s102, 1
      %p106 = scmp.eq.s32.totalorder %s26, 1
      %p107 = scmp.ne.s32.totalorder %s102, %s104
      %p108 = scmp.eq.s32.totalorder %s26, 0
      %p109 = por %p107, %p108
      %p110 = scmp.ne.s32.totalorder %s102, %s104
      %p111 = scmp.eq.s32.totalorder %s31, 1
      %p112 = por %p110, %p111
      %p113 = scmp.ne.s32.totalorder %s104, %s105
      %p114 = scmp.eq.s32.totalorder %s31, 0
      %p115 = por %p113, %p114
      %p116 = scmp.ne.s32.totalorder %s104, %s105
      %p117 = scmp.eq.s32.totalorder %s32, 1
      %p118 = por %p116, %p117
      %p120 = scmp.ne.s32.totalorder %s105, %s119
      %p121 = scmp.eq.s32.totalorder %s32, 0
      %p122 = por %p120, %p121
      %s124 = sadd.s32 %s123, 1
      %p127 = scmp.eq.s32.totalorder %s26, 1
      %p128 = scmp.ne.s32.totalorder %s123, %s125
      %p129 = scmp.eq.s32.totalorder %s26, 0
      %p130 = por %p128, %p129
      %p131 = scmp.ne.s32.totalorder %s123, %s125
      %p132 = scmp.eq.s32.totalorder %s31, 1
      %p133 = por %p131, %p132
      %p134 = scmp.ne.s32.totalorder %s125, %s126
      %p135 = scmp.eq.s32.totalorder %s31, 0
      %p136 = por %p134, %p135
      %p137 = scmp.ne.s32.totalorder %s125, %s126
      %p138 = scmp.eq.s32.totalorder %s32, 1
      %p139 = por %p137, %p138
      %p141 = scmp.ne.s32.totalorder %s126, %s140
      %p142 = scmp.eq.s32.totalorder %s32, 0
      %p143 = por %p141, %p142
      %s145 = sadd.s32 %s144, 1
      %p148 = scmp.eq.s32.totalorder %s26, 1
      %p149 = scmp.ne.s32.totalorder %s144, %s146
      %p150 = scmp.eq.s32.totalorder %s26, 0
      %p151 = por %p149, %p150
      %p152 = scmp.ne.s32.totalorder %s144, %s146
      %p153 = scmp.eq.s32.totalorder %s31, 1
      %p154 = por %p152, %p153
      %p155 = scmp.ne.s32.totalorder %s146, %s147
      %p156 = scmp.eq.s32.totalorder %s31, 0
      %p157 = por %p155, %p156
      %p158 = scmp.ne.s32.totalorder %s146, %s147
      %p159 = scmp.eq.s32.totalorder %s32, 1
      %p160 = por %p158, %p159
      %p162 = scmp.ne.s32.totalorder %s147, %s161
      %p163 = scmp.eq.s32.totalorder %s32, 0
      %p164 = por %p162, %p163
      %s166 = sadd.s32 %s165, 1
      %p169 = scmp.eq.s32.totalorder %s26, 1
      %p170 = scmp.ne.s32.totalorder %s165, %s167
      %p171 = scmp.eq.s32.totalorder %s26, 0
      %p172 = por %p170, %p171
      %p173 = scmp.ne.s32.totalorder %s165, %s167
      %p174 = scmp.eq.s32.totalorder %s31, 1
      %p175 = por %p173, %p174
      %p176 = scmp.ne.s32.totalorder %s167, %s168
      %p177 = scmp.eq.s32.totalorder %s31, 0
      %p178 = por %p176, %p177
      %p179 = scmp.ne.s32.totalorder %s167, %s168
      %p180 = scmp.eq.s32.totalorder %s32, 1
      %p181 = por %p179, %p180
      %p183 = scmp.ne.s32.totalorder %s168, %s182
      %p184 = scmp.eq.s32.totalorder %s32, 0
      %p185 = por %p183, %p184
      %s187 = sadd.s32 %s186, 1
      %p190 = scmp.eq.s32.totalorder %s26, 1
      %p191 = scmp.ne.s32.totalorder %s186, %s188
      %p192 = scmp.eq.s32.totalorder %s26, 0
      %p193 = por %p191, %p192
      %p194 = scmp.ne.s32.totalorder %s186, %s188
      %p195 = scmp.eq.s32.totalorder %s31, 1
      %p196 = por %p194, %p195
      %p197 = scmp.ne.s32.totalorder %s188, %s189
      %p198 = scmp.eq.s32.totalorder %s31, 0
      %p199 = por %p197, %p198
      %p200 = scmp.ne.s32.totalorder %s188, %s189
      %p201 = scmp.eq.s32.totalorder %s32, 1
      %p202 = por %p200, %p201
      %p204 = scmp.ne.s32.totalorder %s189, %s203
      %p205 = scmp.eq.s32.totalorder %s32, 0
      %p206 = por %p204, %p205
      %s208 = sadd.s32 %s207, 1
      %p211 = scmp.eq.s32.totalorder %s26, 1
      %p212 = scmp.ne.s32.totalorder %s207, %s209
      %p213 = scmp.eq.s32.totalorder %s26, 0
      %p214 = por %p212, %p213
      %p215 = scmp.ne.s32.totalorder %s207, %s209
      %p216 = scmp.eq.s32.totalorder %s31, 1
      %p217 = por %p215, %p216
      %p218 = scmp.ne.s32.totalorder %s209, %s210
      %p219 = scmp.eq.s32.totalorder %s31, 0
      %p220 = por %p218, %p219
      %p221 = scmp.ne.s32.totalorder %s209, %s210
      %p222 = scmp.eq.s32.totalorder %s32, 1
      %p223 = por %p221, %p222
      %p225 = scmp.ne.s32.totalorder %s210, %s224
      %p226 = scmp.eq.s32.totalorder %s32, 0
      %p227 = por %p225, %p226
      %s229 = sadd.s32 %s228, 1
      %p232 = scmp.eq.s32.totalorder %s26, 1
      %p233 = scmp.ne.s32.totalorder %s228, %s230
      %p234 = scmp.eq.s32.totalorder %s26, 0
      %p235 = por %p233, %p234
      %p236 = scmp.ne.s32.totalorder %s228, %s230
      %p237 = scmp.eq.s32.totalorder %s31, 1
      %p238 = por %p236, %p237
      %p239 = scmp.ne.s32.totalorder %s230, %s231
      %p240 = scmp.eq.s32.totalorder %s31, 0
      %p241 = por %p239, %p240
      %p242 = scmp.ne.s32.totalorder %s230, %s231
      %p243 = scmp.eq.s32.totalorder %s32, 1
      %p244 = por %p242, %p243
      %p246 = scmp.ne.s32.totalorder %s231, %s245
      %p247 = scmp.eq.s32.totalorder %s32, 0
      %p248 = por %p246, %p247
      %s250 = sadd.s32 %s249, 1
      %p253 = scmp.eq.s32.totalorder %s26, 1
      %p254 = scmp.ne.s32.totalorder %s249, %s251
      %p255 = scmp.eq.s32.totalorder %s26, 0
      %p256 = por %p254, %p255
      %p257 = scmp.ne.s32.totalorder %s249, %s251
      %p258 = scmp.eq.s32.totalorder %s31, 1
      %p259 = por %p257, %p258
      %p260 = scmp.ne.s32.totalorder %s251, %s252
      %p261 = scmp.eq.s32.totalorder %s31, 0
      %p262 = por %p260, %p261
      %p263 = scmp.ne.s32.totalorder %s251, %s252
      %p264 = scmp.eq.s32.totalorder %s32, 1
      %p265 = por %p263, %p264
      %p267 = scmp.ne.s32.totalorder %s252, %s266
      %p268 = scmp.eq.s32.totalorder %s32, 0
      %p269 = por %p267, %p268
      %s271 = sadd.s32 %s270, 1
      %p274 = scmp.eq.s32.totalorder %s26, 1
      %p275 = scmp.ne.s32.totalorder %s270, %s272
      %p276 = scmp.eq.s32.totalorder %s26, 0
      %p277 = por %p275, %p276
      %p278 = scmp.ne.s32.totalorder %s270, %s272
      %p279 = scmp.eq.s32.totalorder %s31, 1
      %p280 = por %p278, %p279
      %p281 = scmp.ne.s32.totalorder %s272, %s273
      %p282 = scmp.eq.s32.totalorder %s31, 0
      %p283 = por %p281, %p282
      %p284 = scmp.ne.s32.totalorder %s272, %s273
      %p285 = scmp.eq.s32.totalorder %s32, 1
      %p286 = por %p284, %p285
      %p288 = scmp.ne.s32.totalorder %s273, %s287
      %p289 = scmp.eq.s32.totalorder %s32, 0
      %p290 = por %p288, %p289
      %s292 = sadd.s32 %s291, 1
      %p295 = scmp.eq.s32.totalorder %s26, 1
      %p296 = scmp.ne.s32.totalorder %s291, %s293
      %p297 = scmp.eq.s32.totalorder %s26, 0
      %p298 = por %p296, %p297
      %p299 = scmp.ne.s32.totalorder %s291, %s293
      %p300 = scmp.eq.s32.totalorder %s31, 1
      %p301 = por %p299, %p300
      %p302 = scmp.ne.s32.totalorder %s293, %s294
      %p303 = scmp.eq.s32.totalorder %s31, 0
      %p304 = por %p302, %p303
      %p305 = scmp.ne.s32.totalorder %s293, %s294
      %p306 = scmp.eq.s32.totalorder %s32, 1
      %p307 = por %p305, %p306
      %p309 = scmp.ne.s32.totalorder %s294, %s308
      %p310 = scmp.eq.s32.totalorder %s32, 0
      %p311 = por %p309, %p310
      %s313 = sadd.s32 %s312, 1
      %p316 = scmp.eq.s32.totalorder %s26, 1
      %p317 = scmp.ne.s32.totalorder %s312, %s314
      %p318 = scmp.eq.s32.totalorder %s26, 0
      %p319 = por %p317, %p318
      %p320 = scmp.ne.s32.totalorder %s312, %s314
      %p321 = scmp.eq.s32.totalorder %s31, 1
      %p322 = por %p320, %p321
      %p323 = scmp.ne.s32.totalorder %s314, %s315
      %p324 = scmp.eq.s32.totalorder %s31, 0
      %p325 = por %p323, %p324
      %p326 = scmp.ne.s32.totalorder %s314, %s315
      %p327 = scmp.eq.s32.totalorder %s32, 1
      %p328 = por %p326, %p327
      %p330 = scmp.ne.s32.totalorder %s315, %s329
      %p331 = scmp.eq.s32.totalorder %s32, 0
      %p332 = por %p330, %p331
      %s334 = sadd.s32 %s333, 1
      %p337 = scmp.eq.s32.totalorder %s26, 1
      %p338 = scmp.ne.s32.totalorder %s333, %s335
      %p339 = scmp.eq.s32.totalorder %s26, 0
      %p340 = por %p338, %p339
      %p341 = scmp.ne.s32.totalorder %s333, %s335
      %p342 = scmp.eq.s32.totalorder %s31, 1
      %p343 = por %p341, %p342
      %p344 = scmp.ne.s32.totalorder %s335, %s336
      %p345 = scmp.eq.s32.totalorder %s31, 0
      %p346 = por %p344, %p345
      %p347 = scmp.ne.s32.totalorder %s335, %s336
      %p348 = scmp.eq.s32.totalorder %s32, 1
      %p349 = por %p347, %p348
      %p351 = scmp.ne.s32.totalorder %s336, %s350
      %p352 = scmp.eq.s32.totalorder %s32, 0
      %p353 = por %p351, %p352
      %s355 = sadd.s32 %s354, 1
      %p358 = scmp.eq.s32.totalorder %s26, 1
      %p359 = scmp.ne.s32.totalorder %s354, %s356
      %p360 = scmp.eq.s32.totalorder %s26, 0
      %p361 = por %p359, %p360
      %p362 = scmp.ne.s32.totalorder %s354, %s356
      %p363 = scmp.eq.s32.totalorder %s31, 1
      %p364 = por %p362, %p363
      %p365 = scmp.ne.s32.totalorder %s356, %s357
      %p366 = scmp.eq.s32.totalorder %s31, 0
      %p367 = por %p365, %p366
      %p368 = scmp.ne.s32.totalorder %s356, %s357
      %p369 = scmp.eq.s32.totalorder %s32, 1
      %p370 = por %p368, %p369
      %p372 = scmp.ne.s32.totalorder %s357, %s371
      %p373 = scmp.eq.s32.totalorder %s32, 0
      %p374 = por %p372, %p373
      %s376 = sadd.s32 %s375, 1
      %p379 = scmp.eq.s32.totalorder %s26, 1
      %p380 = scmp.ne.s32.totalorder %s375, %s377
      %p381 = scmp.eq.s32.totalorder %s26, 0
      %p382 = por %p380, %p381
      %p383 = scmp.ne.s32.totalorder %s375, %s377
      %p384 = scmp.eq.s32.totalorder %s31, 1
      %p385 = por %p383, %p384
      %p386 = scmp.ne.s32.totalorder %s377, %s378
      %p387 = scmp.eq.s32.totalorder %s31, 0
      %p388 = por %p386, %p387
      %p389 = scmp.ne.s32.totalorder %s377, %s378
      %p390 = scmp.eq.s32.totalorder %s32, 1
      %p391 = por %p389, %p390
      %p393 = scmp.ne.s32.totalorder %s378, %s392
      %p394 = scmp.eq.s32.totalorder %s32, 0
      %p395 = por %p393, %p394
      %s396 = ssub.s32 %s26, %s33
      %p397 = scmp.eq.s32.totalorder %s396, 0
      %s399 = sadd.s32 %s398, 1
      %s400 = scalar_select %p397, %s398, %s399
      %p403 = pneg %p397
      %p404 = scmp.eq.s32.totalorder %s26, 1
      %p405 = por %p403, %p404
      %p406 = scmp.ne.s32.totalorder %s398, %s401
      %p407 = scmp.eq.s32.totalorder %s26, 0
      %p408 = por %p406, %p407
      %p409 = scmp.ne.s32.totalorder %s398, %s401
      %p410 = scmp.eq.s32.totalorder %s31, 1
      %p411 = por %p409, %p410
      %p412 = scmp.ne.s32.totalorder %s401, %s402
      %p413 = scmp.eq.s32.totalorder %s31, 0
      %p414 = por %p412, %p413
      %p415 = scmp.ne.s32.totalorder %s401, %s402
      %p416 = scmp.eq.s32.totalorder %s32, 1
      %p417 = por %p415, %p416
      %p419 = scmp.ne.s32.totalorder %s402, %s418
      %p420 = scmp.eq.s32.totalorder %s32, 0
      %p421 = por %p419, %p420
      %p422 = scmp.le.s32.totalorder 1, %s26
      %p423 = scmp.lt.s32.totalorder %s26, 3
      %p424 = pnand %p422, %p423
      %p425 = pneg %p424
      // Predicated region
      $region9: #{tpu_custom_call.1} parent=5 // pred_check
        _
      $region10: #{tpu_custom_call.1} parent=5 // pred_check_branch
        %427 = sbr.rel (%p424) target = $region12
      $region11: #{tpu_custom_call.1} parent=5 // pred_region
        %s428 = ssub.s32 %s26, 1
        // Predicated region
        $region13: #{tpu_custom_call.1} parent=11 // pred_check
          %p429 = pneg %p73
        $region14: #{tpu_custom_call.1} parent=11 // pred_check_branch
          %431 = sbr.rel (%p429) target = $region16
        $region15: #{tpu_custom_call.1} parent=11 // pred_region
          _
        $region16: #{tpu_custom_call.1} parent=11 // pred_fallthru
          _
        // Predicated region
        $region17: #{tpu_custom_call.1} parent=11 // pred_check
          %p432 = pneg %p94
        $region18: #{tpu_custom_call.1} parent=11 // pred_check_branch
          %434 = sbr.rel (%p432) target = $region20
        $region19: #{tpu_custom_call.1} parent=11 // pred_region
          _
        $region20: #{tpu_custom_call.1} parent=11 // pred_fallthru
          _
        // Predicated region
        $region21: #{tpu_custom_call.1} parent=11 // pred_check
          %p435 = pneg %p115
        $region22: #{tpu_custom_call.1} parent=11 // pred_check_branch
          %437 = sbr.rel (%p435) target = $region24
        $region23: #{tpu_custom_call.1} parent=11 // pred_region
          _
        $region24: #{tpu_custom_call.1} parent=11 // pred_fallthru
          _
        // Predicated region
        $region25: #{tpu_custom_call.1} parent=11 // pred_check
          %p438 = pneg %p136
        $region26: #{tpu_custom_call.1} parent=11 // pred_check_branch
          %440 = sbr.rel (%p438) target = $region28
        $region27: #{tpu_custom_call.1} parent=11 // pred_region
          _
        $region28: #{tpu_custom_call.1} parent=11 // pred_fallthru
          _
        // Predicated region
        $region29: #{tpu_custom_call.1} parent=11 // pred_check
          %p441 = pneg %p157
        $region30: #{tpu_custom_call.1} parent=11 // pred_check_branch
          %443 = sbr.rel (%p441) target = $region32
        $region31: #{tpu_custom_call.1} parent=11 // pred_region
          _
        $region32: #{tpu_custom_call.1} parent=11 // pred_fallthru
          _
        // Predicated region
        $region33: #{tpu_custom_call.1} parent=11 // pred_check
          %p444 = pneg %p178
        $region34: #{tpu_custom_call.1} parent=11 // pred_check_branch
          %446 = sbr.rel (%p444) target = $region36
        $region35: #{tpu_custom_call.1} parent=11 // pred_region
          _
        $region36: #{tpu_custom_call.1} parent=11 // pred_fallthru
          _
        // Predicated region
        $region37: #{tpu_custom_call.1} parent=11 // pred_check
          %p447 = pneg %p199
        $region38: #{tpu_custom_call.1} parent=11 // pred_check_branch
          %449 = sbr.rel (%p447) target = $region40
        $region39: #{tpu_custom_call.1} parent=11 // pred_region
          _
        $region40: #{tpu_custom_call.1} parent=11 // pred_fallthru
          _
        // Predicated region
        $region41: #{tpu_custom_call.1} parent=11 // pred_check
          %p450 = pneg %p220
        $region42: #{tpu_custom_call.1} parent=11 // pred_check_branch
          %452 = sbr.rel (%p450) target = $region44
        $region43: #{tpu_custom_call.1} parent=11 // pred_region
          _
        $region44: #{tpu_custom_call.1} parent=11 // pred_fallthru
          _
        // Predicated region
        $region45: #{tpu_custom_call.1} parent=11 // pred_check
          %p453 = pneg %p241
        $region46: #{tpu_custom_call.1} parent=11 // pred_check_branch
          %455 = sbr.rel (%p453) target = $region48
        $region47: #{tpu_custom_call.1} parent=11 // pred_region
          _
        $region48: #{tpu_custom_call.1} parent=11 // pred_fallthru
          _
        // Predicated region
        $region49: #{tpu_custom_call.1} parent=11 // pred_check
          %p456 = pneg %p262
        $region50: #{tpu_custom_call.1} parent=11 // pred_check_branch
          %458 = sbr.rel (%p456) target = $region52
        $region51: #{tpu_custom_call.1} parent=11 // pred_region
          _
        $region52: #{tpu_custom_call.1} parent=11 // pred_fallthru
          _
        // Predicated region
        $region53: #{tpu_custom_call.1} parent=11 // pred_check
          %p459 = pneg %p283
        $region54: #{tpu_custom_call.1} parent=11 // pred_check_branch
          %461 = sbr.rel (%p459) target = $region56
        $region55: #{tpu_custom_call.1} parent=11 // pred_region
          _
        $region56: #{tpu_custom_call.1} parent=11 // pred_fallthru
          _
        // Predicated region
        $region57: #{tpu_custom_call.1} parent=11 // pred_check
          %p462 = pneg %p304
        $region58: #{tpu_custom_call.1} parent=11 // pred_check_branch
          %464 = sbr.rel (%p462) target = $region60
        $region59: #{tpu_custom_call.1} parent=11 // pred_region
          _
        $region60: #{tpu_custom_call.1} parent=11 // pred_fallthru
          _
        // Predicated region
        $region61: #{tpu_custom_call.1} parent=11 // pred_check
          %p465 = pneg %p325
        $region62: #{tpu_custom_call.1} parent=11 // pred_check_branch
          %467 = sbr.rel (%p465) target = $region64
        $region63: #{tpu_custom_call.1} parent=11 // pred_region
          _
        $region64: #{tpu_custom_call.1} parent=11 // pred_fallthru
          _
        // Predicated region
        $region65: #{tpu_custom_call.1} parent=11 // pred_check
          %p468 = pneg %p346
        $region66: #{tpu_custom_call.1} parent=11 // pred_check_branch
          %470 = sbr.rel (%p468) target = $region68
        $region67: #{tpu_custom_call.1} parent=11 // pred_region
          _
        $region68: #{tpu_custom_call.1} parent=11 // pred_fallthru
          _
        // Predicated region
        $region69: #{tpu_custom_call.1} parent=11 // pred_check
          %p471 = pneg %p367
        $region70: #{tpu_custom_call.1} parent=11 // pred_check_branch
          %473 = sbr.rel (%p471) target = $region72
        $region71: #{tpu_custom_call.1} parent=11 // pred_region
          _
        $region72: #{tpu_custom_call.1} parent=11 // pred_fallthru
          _
        // Predicated region
        $region73: #{tpu_custom_call.1} parent=11 // pred_check
          %p474 = pneg %p388
        $region74: #{tpu_custom_call.1} parent=11 // pred_check_branch
          %476 = sbr.rel (%p474) target = $region76
        $region75: #{tpu_custom_call.1} parent=11 // pred_region
          _
        $region76: #{tpu_custom_call.1} parent=11 // pred_fallthru
          _
      $region12: #{tpu_custom_call.1} parent=5 // pred_fallthru
        _
      %p477 = scmp.lt.s32.totalorder %s26, 2
      // Predicated region
      $region77: #{tpu_custom_call.1} parent=5 // pred_check
        %p478 = pneg %p477
      $region78: #{tpu_custom_call.1} parent=5 // pred_check_branch
        %480 = sbr.rel (%p478) target = $region80
      $region79: #{tpu_custom_call.1} parent=5 // pred_region
        // Predicated region
        $region81: #{tpu_custom_call.1} parent=79 // pred_check
          %p481 = pneg %p46
        $region82: #{tpu_custom_call.1} parent=79 // pred_check_branch
          %483 = sbr.rel (%p481) target = $region84
        $region83: #{tpu_custom_call.1} parent=79 // pred_region
          %p484 = scmp.lt.s32.totalorder %s26, 1
          %s485 = scalar_select %p484, %s26, 1
          %s486 = smul.addr %s485, 32
          %s487 = smul.addr %s486, 8
          %s488 = scalar_lea.vmem %s0, %s487
        $region84: #{tpu_custom_call.1} parent=79 // pred_fallthru
          _
      $region80: #{tpu_custom_call.1} parent=5 // pred_fallthru
        _
      %p489 = scmp.le.s32.totalorder 1, %s26
      %p490 = scmp.lt.s32.totalorder %s26, 3
      %p491 = pnand %p489, %p490
      %p492 = pneg %p491
      // Predicated region
      $region85: #{tpu_custom_call.1} parent=5 // pred_check
        _
      $region86: #{tpu_custom_call.1} parent=5 // pred_check_branch
        %494 = sbr.rel (%p491) target = $region88
      $region87: #{tpu_custom_call.1} parent=5 // pred_region
        %s495 = ssub.s32 %s26, 1
        %p496 = scmp.lt.s32.totalorder %s31, 1
        %s497 = scalar_select %p496, %s31, 1
        %s498 = smul.addr %s497, 32
        %s499 = smul.addr %s498, 8
        %s500 = scalar_lea.vmem %s0, %s499
        %p501 = pneg %p52
        %p502 = pneg %p49
        %p503 = pneg %p73
        %p504 = pneg %p70
        %p505 = pneg %p94
        %p506 = pneg %p91
        %p507 = pneg %p115
        %p508 = pneg %p112
        %p509 = pneg %p136
        %p510 = pneg %p133
        %p511 = pneg %p157
        %p512 = pneg %p154
        %p513 = pneg %p178
        %p514 = pneg %p175
        %p515 = pneg %p199
        %p516 = pneg %p196
        %p517 = pneg %p220
        %p518 = pneg %p217
        %p519 = pneg %p241
        %p520 = pneg %p238
        %p521 = pneg %p262
        %p522 = pneg %p259
        %p523 = pneg %p283
        %p524 = pneg %p280
        %p525 = pneg %p304
        %p526 = pneg %p301
        %p527 = pneg %p325
        %p528 = pneg %p322
        %p529 = pneg %p346
        %p530 = pneg %p343
        %p531 = pneg %p367
        %p532 = pneg %p364
        %p533 = pneg %p388
        %p534 = pneg %p385
        %p535 = pneg %p414
        %p536 = pneg %p411
        %s537 = sand.u32 %s401, 1
        %s538 = scalar_lea.sflag [#allocation3], %s537
        %s539 = sand.u32 %s401, 1
        %s540 = smul.addr %s539, 256
        %s541 = scalar_lea.vmem [#allocation2], %s540
        %p542 = scmp.lt.s32.totalorder %s31, 1
        %s543 = scalar_select %p542, %s31, 1
        %s544 = smul.addr %s543, 32
        %s545 = smul.addr %s544, 8
        %s546 = scalar_lea.vmem %s0, %s545
        %v547 = vld [vmem:[%s546] sm:$0xff]
        %v548 = vld [vmem:[%s546 + $0x8] sm:$0xff]
        %v549 = vld [vmem:[%s546 + $0x10] sm:$0xff]
        %v550 = vld [vmem:[%s546 + $0x18] sm:$0xff]
        %v551 = vld [vmem:[%s546 + $0x20] sm:$0xff]
        %v552 = vld [vmem:[%s546 + $0x28] sm:$0xff]
        %v553 = vld [vmem:[%s546 + $0x30] sm:$0xff]
        %v554 = vld [vmem:[%s546 + $0x38] sm:$0xff]
        %v555 = vld [vmem:[%s546 + $0x40] sm:$0xff]
        %v556 = vld [vmem:[%s546 + $0x48] sm:$0xff]
        %v557 = vld [vmem:[%s546 + $0x50] sm:$0xff]
        %v558 = vld [vmem:[%s546 + $0x58] sm:$0xff]
        %v559 = vld [vmem:[%s546 + $0x60] sm:$0xff]
        %v560 = vld [vmem:[%s546 + $0x68] sm:$0xff]
        %v561 = vld [vmem:[%s546 + $0x70] sm:$0xff]
        %v562 = vld [vmem:[%s546 + $0x78] sm:$0xff]
        %v563 = vld [vmem:[%s546 + $0x80] sm:$0xff]
        %v564 = vld [vmem:[%s546 + $0x88] sm:$0xff]
        %v565 = vld [vmem:[%s546 + $0x90] sm:$0xff]
        %v566 = vld [vmem:[%s546 + $0x98] sm:$0xff]
        %v567 = vld [vmem:[%s546 + $0xa0] sm:$0xff]
        %v568 = vld [vmem:[%s546 + $0xa8] sm:$0xff]
        %v569 = vld [vmem:[%s546 + $0xb0] sm:$0xff]
        %v570 = vld [vmem:[%s546 + $0xb8] sm:$0xff]
        %v571 = vld [vmem:[%s546 + $0xc0] sm:$0xff]
        %v572 = vld [vmem:[%s546 + $0xc8] sm:$0xff]
        %v573 = vld [vmem:[%s546 + $0xd0] sm:$0xff]
        %v574 = vld [vmem:[%s546 + $0xd8] sm:$0xff]
        %v575 = vld [vmem:[%s546 + $0xe0] sm:$0xff]
        %v576 = vld [vmem:[%s546 + $0xe8] sm:$0xff]
        %v577 = vld [vmem:[%s546 + $0xf0] sm:$0xff]
        %v578 = vld [vmem:[%s546 + $0xf8] sm:$0xff]
        %v579 = vld [vmem:[%s1] sm:$0xff]
        %v580 = vld [vmem:[%s1 + $0x8] sm:$0xff]
        %v581 = vld [vmem:[%s1 + $0x10] sm:$0xff]
        %v582 = vld [vmem:[%s1 + $0x18] sm:$0xff]
        %v583 = vld [vmem:[%s1 + $0x20] sm:$0xff]
        %v584 = vld [vmem:[%s1 + $0x28] sm:$0xff]
        %v585 = vld [vmem:[%s1 + $0x30] sm:$0xff]
        %v586 = vld [vmem:[%s1 + $0x38] sm:$0xff]
        %v587 = vld [vmem:[%s1 + $0x40] sm:$0xff]
        %v588 = vld [vmem:[%s1 + $0x48] sm:$0xff]
        %v589 = vld [vmem:[%s1 + $0x50] sm:$0xff]
        %v590 = vld [vmem:[%s1 + $0x58] sm:$0xff]
        %v591 = vld [vmem:[%s1 + $0x60] sm:$0xff]
        %v592 = vld [vmem:[%s1 + $0x68] sm:$0xff]
        %v593 = vld [vmem:[%s1 + $0x70] sm:$0xff]
        %v594 = vld [vmem:[%s1 + $0x78] sm:$0xff]
        %v595 = vld [vmem:[%s2] sm:$0xff]
        %v596 = vld [vmem:[%s2 + $0x8] sm:$0xff]
        %v597 = vld [vmem:[%s2 + $0x10] sm:$0xff]
        %v598 = vld [vmem:[%s2 + $0x18] sm:$0xff]
        %v599 = vld [vmem:[%s2 + $0x20] sm:$0xff]
        %v600 = vld [vmem:[%s2 + $0x28] sm:$0xff]
        %v601 = vld [vmem:[%s2 + $0x30] sm:$0xff]
        %v602 = vld [vmem:[%s2 + $0x38] sm:$0xff]
        %v603 = vld [vmem:[%s2 + $0x40] sm:$0xff]
        %v604 = vld [vmem:[%s2 + $0x48] sm:$0xff]
        %v605 = vld [vmem:[%s2 + $0x50] sm:$0xff]
        %v606 = vld [vmem:[%s2 + $0x58] sm:$0xff]
        %v607 = vld [vmem:[%s2 + $0x60] sm:$0xff]
        %v608 = vld [vmem:[%s2 + $0x68] sm:$0xff]
        %v609 = vld [vmem:[%s2 + $0x70] sm:$0xff]
        %v610 = vld [vmem:[%s2 + $0x78] sm:$0xff]
        %612 = vset.pattern.permute.xlu0 0
        %613 = vperm.xlu0 %612, %v595
        %v614 = vpop.permute.xlu0 %613
        %617 = vset.pattern.permute.xlu0 0
        %618 = vperm.xlu0 %617, %v596
        %v619 = vpop.permute.xlu0 %618
        %622 = vset.pattern.permute.xlu0 0
        %623 = vperm.xlu0 %622, %v597
        %v624 = vpop.permute.xlu0 %623
        %627 = vset.pattern.permute.xlu0 0
        %628 = vperm.xlu0 %627, %v598
        %v629 = vpop.permute.xlu0 %628
        %632 = vset.pattern.permute.xlu0 0
        %633 = vperm.xlu0 %632, %v599
        %v634 = vpop.permute.xlu0 %633
        %637 = vset.pattern.permute.xlu0 0
        %638 = vperm.xlu0 %637, %v600
        %v639 = vpop.permute.xlu0 %638
        %642 = vset.pattern.permute.xlu0 0
        %643 = vperm.xlu0 %642, %v601
        %v644 = vpop.permute.xlu0 %643
        %647 = vset.pattern.permute.xlu0 0
        %648 = vperm.xlu0 %647, %v602
        %v649 = vpop.permute.xlu0 %648
        %652 = vset.pattern.permute.xlu0 0
        %653 = vperm.xlu0 %652, %v603
        %v654 = vpop.permute.xlu0 %653
        %657 = vset.pattern.permute.xlu0 0
        %658 = vperm.xlu0 %657, %v604
        %v659 = vpop.permute.xlu0 %658
        %662 = vset.pattern.permute.xlu0 0
        %663 = vperm.xlu0 %662, %v605
        %v664 = vpop.permute.xlu0 %663
        %667 = vset.pattern.permute.xlu0 0
        %668 = vperm.xlu0 %667, %v606
        %v669 = vpop.permute.xlu0 %668
        %672 = vset.pattern.permute.xlu0 0
        %673 = vperm.xlu0 %672, %v607
        %v674 = vpop.permute.xlu0 %673
        %677 = vset.pattern.permute.xlu0 0
        %678 = vperm.xlu0 %677, %v608
        %v679 = vpop.permute.xlu0 %678
        %682 = vset.pattern.permute.xlu0 0
        %683 = vperm.xlu0 %682, %v609
        %v684 = vpop.permute.xlu0 %683
        %687 = vset.pattern.permute.xlu0 0
        %688 = vperm.xlu0 %687, %v610
        %v689 = vpop.permute.xlu0 %688
        %691 = vmatprep.subr.mxu0 %v548
        %692 = vmatpush1.msra.mxu0 %v547
        %693 = vmatprep.subr.mxu0 %v550
        %694 = vmatpush1.msra.mxu0 %v549
        %695 = vmatprep.subr.mxu0 %v552
        %696 = vmatpush1.msra.mxu0 %v551
        %697 = vmatprep.subr.mxu0 %v554
        %698 = vmatpush1.msra.mxu0 %v553
        %699 = vmatprep.subr.mxu0 %v556
        %700 = vmatpush1.msra.mxu0 %v555
        %701 = vmatprep.subr.mxu0 %v558
        %702 = vmatpush1.msra.mxu0 %v557
        %703 = vmatprep.subr.mxu0 %v560
        %704 = vmatpush1.msra.mxu0 %v559
        %705 = vmatprep.subr.mxu0 %v562
        %706 = vmatpush1.msra.mxu0 %v561
        %707 = vmatprep.subr.mxu0 %v564
        %708 = vmatpush1.msra.mxu0 %v563
        %709 = vmatprep.subr.mxu0 %v566
        %710 = vmatpush1.msra.mxu0 %v565
        %711 = vmatprep.subr.mxu0 %v568
        %712 = vmatpush1.msra.mxu0 %v567
        %713 = vmatprep.subr.mxu0 %v570
        %714 = vmatpush1.msra.mxu0 %v569
        %715 = vmatprep.subr.mxu0 %v572
        %716 = vmatpush1.msra.mxu0 %v571
        %717 = vmatprep.subr.mxu0 %v574
        %718 = vmatpush1.msra.mxu0 %v573
        %719 = vmatprep.subr.mxu0 %v576
        %720 = vmatpush1.msra.mxu0 %v575
        %721 = vmatprep.subr.mxu0 %v578
        %722 = vmatpush1.msra.mxu0 %v577
        %723 = vmatprep.subr.mxu0 0.0
        %724 = vmatpush1.msra.mxu0 0.0
        %725 = vmatprep.subr.mxu0 0.0
        %726 = vmatpush1.msra.mxu0 0.0
        %727 = vmatprep.subr.mxu0 0.0
        %728 = vmatpush1.msra.mxu0 0.0
        %729 = vmatprep.subr.mxu0 0.0
        %730 = vmatpush1.msra.mxu0 0.0
        %731 = vmatprep.subr.mxu0 0.0
        %732 = vmatpush1.msra.mxu0 0.0
        %733 = vmatprep.subr.mxu0 0.0
        %734 = vmatpush1.msra.mxu0 0.0
        %735 = vmatprep.subr.mxu0 0.0
        %736 = vmatpush1.msra.mxu0 0.0
        %737 = vmatprep.subr.mxu0 0.0
        %738 = vmatpush1.msra.mxu0 0.0
        %739 = vmatprep.subr.mxu0 0.0
        %740 = vmatpush1.msra.mxu0 0.0
        %741 = vmatprep.subr.mxu0 0.0
        %742 = vmatpush1.msra.mxu0 0.0
        %743 = vmatprep.subr.mxu0 0.0
        %744 = vmatpush1.msra.mxu0 0.0
        %745 = vmatprep.subr.mxu0 0.0
        %746 = vmatpush1.msra.mxu0 0.0
        %747 = vmatprep.subr.mxu0 0.0
        %748 = vmatpush1.msra.mxu0 0.0
        %749 = vmatprep.subr.mxu0 0.0
        %750 = vmatpush1.msra.mxu0 0.0
        %751 = vmatprep.subr.mxu0 0.0
        %752 = vmatpush1.msra.mxu0 0.0
        %753 = vmatprep.subr.mxu0 0.0
        %754 = vmatpush1.msra.mxu0 0.0
        %755 = vmatprep.mubr.f32.mxu0 0.0
        %756 = vmatmul.mubr.f32.gmra.mrb[0].mxu0 %v579
        %v757 = vpop.f32.mrb[0].mxu0
        %v758 = vadd.f32 %v614, %v757
        %v759 = vpop.f32.mrb[0].mxu0
        %v760 = vadd.f32 %v614, %v759
        %761 = vmatprep.mubr.f32.mxu0 0.0
        %762 = vmatmul.mubr.f32.gmra.mrb[0].mxu0 %v580
        %v763 = vpop.f32.mrb[0].mxu0
        %v764 = vadd.f32 %v619, %v763
        %v765 = vpop.f32.mrb[0].mxu0
        %v766 = vadd.f32 %v619, %v765
        %767 = vmatprep.mubr.f32.mxu0 0.0
        %768 = vmatmul.mubr.f32.gmra.mrb[0].mxu0 %v581
        %v769 = vpop.f32.mrb[0].mxu0
        %v770 = vadd.f32 %v624, %v769
        %v771 = vpop.f32.mrb[0].mxu0
        %v772 = vadd.f32 %v624, %v771
        %773 = vmatprep.mubr.f32.mxu0 0.0
        %774 = vmatmul.mubr.f32.gmra.mrb[0].mxu0 %v582
        %v775 = vpop.f32.mrb[0].mxu0
        %v776 = vadd.f32 %v629, %v775
        %v777 = vpop.f32.mrb[0].mxu0
        %v778 = vadd.f32 %v629, %v777
        %779 = vmatprep.mubr.f32.mxu0 0.0
        %780 = vmatmul.mubr.f32.gmra.mrb[0].mxu0 %v583
        %v781 = vpop.f32.mrb[0].mxu0
        %v782 = vadd.f32 %v634, %v781
        %v783 = vpop.f32.mrb[0].mxu0
        %v784 = vadd.f32 %v634, %v783
        %785 = vmatprep.mubr.f32.mxu0 0.0
        %786 = vmatmul.mubr.f32.gmra.mrb[0].mxu0 %v584
        %v787 = vpop.f32.mrb[0].mxu0
        %v788 = vadd.f32 %v639, %v787
        %v789 = vpop.f32.mrb[0].mxu0
        %v790 = vadd.f32 %v639, %v789
        %791 = vmatprep.mubr.f32.mxu0 0.0
        %792 = vmatmul.mubr.f32.gmra.mrb[0].mxu0 %v585
        %v793 = vpop.f32.mrb[0].mxu0
        %v794 = vadd.f32 %v644, %v793
        %v795 = vpop.f32.mrb[0].mxu0
        %v796 = vadd.f32 %v644, %v795
        %797 = vmatprep.mubr.f32.mxu0 0.0
        %798 = vmatmul.mubr.f32.gmra.mrb[0].mxu0 %v586
        %v799 = vpop.f32.mrb[0].mxu0
        %v800 = vadd.f32 %v649, %v799
        %v801 = vpop.f32.mrb[0].mxu0
        %v802 = vadd.f32 %v649, %v801
        %803 = vmatprep.mubr.f32.mxu0 0.0
        %804 = vmatmul.mubr.f32.gmra.mrb[0].mxu0 %v587
        %v805 = vpop.f32.mrb[0].mxu0
        %v806 = vadd.f32 %v654, %v805
        %v807 = vpop.f32.mrb[0].mxu0
        %v808 = vadd.f32 %v654, %v807
        %809 = vmatprep.mubr.f32.mxu0 0.0
        %810 = vmatmul.mubr.f32.gmra.mrb[0].mxu0 %v588
        %v811 = vpop.f32.mrb[0].mxu0
        %v812 = vadd.f32 %v659, %v811
        %v813 = vpop.f32.mrb[0].mxu0
        %v814 = vadd.f32 %v659, %v813
        %815 = vmatprep.mubr.f32.mxu0 0.0
        %816 = vmatmul.mubr.f32.gmra.mrb[0].mxu0 %v589
        %v817 = vpop.f32.mrb[0].mxu0
        %v818 = vadd.f32 %v664, %v817
        %v819 = vpop.f32.mrb[0].mxu0
        %v820 = vadd.f32 %v664, %v819
        %821 = vmatprep.mubr.f32.mxu0 0.0
        %822 = vmatmul.mubr.f32.gmra.mrb[0].mxu0 %v590
        %v823 = vpop.f32.mrb[0].mxu0
        %v824 = vadd.f32 %v669, %v823
        %v825 = vpop.f32.mrb[0].mxu0
        %v826 = vadd.f32 %v669, %v825
        %827 = vmatprep.mubr.f32.mxu0 0.0
        %828 = vmatmul.mubr.f32.gmra.mrb[0].mxu0 %v591
        %v829 = vpop.f32.mrb[0].mxu0
        %v830 = vadd.f32 %v674, %v829
        %v831 = vpop.f32.mrb[0].mxu0
        %v832 = vadd.f32 %v674, %v831
        %833 = vmatprep.mubr.f32.mxu0 0.0
        %834 = vmatmul.mubr.f32.gmra.mrb[0].mxu0 %v592
        %v835 = vpop.f32.mrb[0].mxu0
        %v836 = vadd.f32 %v679, %v835
        %v837 = vpop.f32.mrb[0].mxu0
        %v838 = vadd.f32 %v679, %v837
        %839 = vmatprep.mubr.f32.mxu0 0.0
        %840 = vmatmul.mubr.f32.gmra.mrb[0].mxu0 %v593
        %v841 = vpop.f32.mrb[0].mxu0
        %v842 = vadd.f32 %v684, %v841
        %v843 = vpop.f32.mrb[0].mxu0
        %v844 = vadd.f32 %v684, %v843
        %845 = vmatprep.mubr.f32.mxu0 0.0
        %846 = vmatmul.mubr.f32.gmra.mrb[0].mxu0 %v594
        %v847 = vpop.f32.mrb[0].mxu0
        %v848 = vadd.f32 %v689, %v847
        %v849 = vpop.f32.mrb[0].mxu0
        %v850 = vadd.f32 %v689, %v849
        %851 = vdwg.mxu0
        %v852 = vld [vmem:[%s3] sm:$0xff]
        %v853 = vld [vmem:[%s3 + $0x8] sm:$0xff]
        %v854 = vld [vmem:[%s3 + $0x10] sm:$0xff]
        %v855 = vld [vmem:[%s3 + $0x18] sm:$0xff]
        %v856 = vld [vmem:[%s3 + $0x20] sm:$0xff]
        %v857 = vld [vmem:[%s3 + $0x28] sm:$0xff]
        %v858 = vld [vmem:[%s3 + $0x30] sm:$0xff]
        %v859 = vld [vmem:[%s3 + $0x38] sm:$0xff]
        %v860 = vld [vmem:[%s3 + $0x40] sm:$0xff]
        %v861 = vld [vmem:[%s3 + $0x48] sm:$0xff]
        %v862 = vld [vmem:[%s3 + $0x50] sm:$0xff]
        %v863 = vld [vmem:[%s3 + $0x58] sm:$0xff]
        %v864 = vld [vmem:[%s3 + $0x60] sm:$0xff]
        %v865 = vld [vmem:[%s3 + $0x68] sm:$0xff]
        %v866 = vld [vmem:[%s3 + $0x70] sm:$0xff]
        %v867 = vld [vmem:[%s3 + $0x78] sm:$0xff]
        %v868 = vld [vmem:[%s4] sm:$0xff]
        %v869 = vld [vmem:[%s4 + $0x8] sm:$0xff]
        %v870 = vld [vmem:[%s4 + $0x10] sm:$0xff]
        %v871 = vld [vmem:[%s4 + $0x18] sm:$0xff]
        %v872 = vld [vmem:[%s4 + $0x20] sm:$0xff]
        %v873 = vld [vmem:[%s4 + $0x28] sm:$0xff]
        %v874 = vld [vmem:[%s4 + $0x30] sm:$0xff]
        %v875 = vld [vmem:[%s4 + $0x38] sm:$0xff]
        %v876 = vld [vmem:[%s4 + $0x40] sm:$0xff]
        %v877 = vld [vmem:[%s4 + $0x48] sm:$0xff]
        %v878 = vld [vmem:[%s4 + $0x50] sm:$0xff]
        %v879 = vld [vmem:[%s4 + $0x58] sm:$0xff]
        %v880 = vld [vmem:[%s4 + $0x60] sm:$0xff]
        %v881 = vld [vmem:[%s4 + $0x68] sm:$0xff]
        %v882 = vld [vmem:[%s4 + $0x70] sm:$0xff]
        %v883 = vld [vmem:[%s4 + $0x78] sm:$0xff]
        %885 = vset.pattern.permute.xlu0 0
        %886 = vperm.xlu0 %885, %v868
        %v887 = vpop.permute.xlu0 %886
        %890 = vset.pattern.permute.xlu0 0
        %891 = vperm.xlu0 %890, %v869
        %v892 = vpop.permute.xlu0 %891
        %895 = vset.pattern.permute.xlu0 0
        %896 = vperm.xlu0 %895, %v870
        %v897 = vpop.permute.xlu0 %896
        %900 = vset.pattern.permute.xlu0 0
        %901 = vperm.xlu0 %900, %v871
        %v902 = vpop.permute.xlu0 %901
        %905 = vset.pattern.permute.xlu0 0
        %906 = vperm.xlu0 %905, %v872
        %v907 = vpop.permute.xlu0 %906
        %910 = vset.pattern.permute.xlu0 0
        %911 = vperm.xlu0 %910, %v873
        %v912 = vpop.permute.xlu0 %911
        %915 = vset.pattern.permute.xlu0 0
        %916 = vperm.xlu0 %915, %v874
        %v917 = vpop.permute.xlu0 %916
        %920 = vset.pattern.permute.xlu0 0
        %921 = vperm.xlu0 %920, %v875
        %v922 = vpop.permute.xlu0 %921
        %925 = vset.pattern.permute.xlu0 0
        %926 = vperm.xlu0 %925, %v876
        %v927 = vpop.permute.xlu0 %926
        %930 = vset.pattern.permute.xlu0 0
        %931 = vperm.xlu0 %930, %v877
        %v932 = vpop.permute.xlu0 %931
        %935 = vset.pattern.permute.xlu0 0
        %936 = vperm.xlu0 %935, %v878
        %v937 = vpop.permute.xlu0 %936
        %940 = vset.pattern.permute.xlu0 0
        %941 = vperm.xlu0 %940, %v879
        %v942 = vpop.permute.xlu0 %941
        %945 = vset.pattern.permute.xlu0 0
        %946 = vperm.xlu0 %945, %v880
        %v947 = vpop.permute.xlu0 %946
        %950 = vset.pattern.permute.xlu0 0
        %951 = vperm.xlu0 %950, %v881
        %v952 = vpop.permute.xlu0 %951
        %955 = vset.pattern.permute.xlu0 0
        %956 = vperm.xlu0 %955, %v882
        %v957 = vpop.permute.xlu0 %956
        %960 = vset.pattern.permute.xlu0 0
        %961 = vperm.xlu0 %960, %v883
        %v962 = vpop.permute.xlu0 %961
        %964 = vmatprep.subr.mxu0 %v760
        %965 = vmatpush1.msra.mxu0 %v758
        %966 = vmatprep.subr.mxu0 %v766
        %967 = vmatpush1.msra.mxu0 %v764
        %968 = vmatprep.subr.mxu0 %v772
        %969 = vmatpush1.msra.mxu0 %v770
        %970 = vmatprep.subr.mxu0 %v778
        %971 = vmatpush1.msra.mxu0 %v776
        %972 = vmatprep.subr.mxu0 %v784
        %973 = vmatpush1.msra.mxu0 %v782
        %974 = vmatprep.subr.mxu0 %v790
        %975 = vmatpush1.msra.mxu0 %v788
        %976 = vmatprep.subr.mxu0 %v796
        %977 = vmatpush1.msra.mxu0 %v794
        %978 = vmatprep.subr.mxu0 %v802
        %979 = vmatpush1.msra.mxu0 %v800
        %980 = vmatprep.subr.mxu0 %v808
        %981 = vmatpush1.msra.mxu0 %v806
        %982 = vmatprep.subr.mxu0 %v814
        %983 = vmatpush1.msra.mxu0 %v812
        %984 = vmatprep.subr.mxu0 %v820
        %985 = vmatpush1.msra.mxu0 %v818
        %986 = vmatprep.subr.mxu0 %v826
        %987 = vmatpush1.msra.mxu0 %v824
        %988 = vmatprep.subr.mxu0 %v832
        %989 = vmatpush1.msra.mxu0 %v830
        %990 = vmatprep.subr.mxu0 %v838
        %991 = vmatpush1.msra.mxu0 %v836
        %992 = vmatprep.subr.mxu0 %v844
        %993 = vmatpush1.msra.mxu0 %v842
        %994 = vmatprep.subr.mxu0 %v850
        %995 = vmatpush1.msra.mxu0 %v848
        %996 = vmatprep.subr.mxu0 0.0
        %997 = vmatpush1.msra.mxu0 0.0
        %998 = vmatprep.subr.mxu0 0.0
        %999 = vmatpush1.msra.mxu0 0.0
        %1000 = vmatprep.subr.mxu0 0.0
        %1001 = vmatpush1.msra.mxu0 0.0
        %1002 = vmatprep.subr.mxu0 0.0
        %1003 = vmatpush1.msra.mxu0 0.0
        %1004 = vmatprep.subr.mxu0 0.0
        %1005 = vmatpush1.msra.mxu0 0.0
        %1006 = vmatprep.subr.mxu0 0.0
        %1007 = vmatpush1.msra.mxu0 0.0
        %1008 = vmatprep.subr.mxu0 0.0
        %1009 = vmatpush1.msra.mxu0 0.0
        %1010 = vmatprep.subr.mxu0 0.0
        %1011 = vmatpush1.msra.mxu0 0.0
        %1012 = vmatprep.subr.mxu0 0.0
        %1013 = vmatpush1.msra.mxu0 0.0
        %1014 = vmatprep.subr.mxu0 0.0
        %1015 = vmatpush1.msra.mxu0 0.0
        %1016 = vmatprep.subr.mxu0 0.0
        %1017 = vmatpush1.msra.mxu0 0.0
        %1018 = vmatprep.subr.mxu0 0.0
        %1019 = vmatpush1.msra.mxu0 0.0
        %1020 = vmatprep.subr.mxu0 0.0
        %1021 = vmatpush1.msra.mxu0 0.0
        %1022 = vmatprep.subr.mxu0 0.0
        %1023 = vmatpush1.msra.mxu0 0.0
        %1024 = vmatprep.subr.mxu0 0.0
        %1025 = vmatpush1.msra.mxu0 0.0
        %1026 = vmatprep.subr.mxu0 0.0
        %1027 = vmatpush1.msra.mxu0 0.0
        %1028 = vmatprep.mubr.f32.mxu0 0.0
        %1029 = vmatmul.mubr.f32.gmra.mrb[0].mxu0 %v852
        %v1030 = vpop.f32.mrb[0].mxu0
        %v1031 = vadd.f32 %v887, %v1030
        %v1032 = vpop.f32.mrb[0].mxu0
        %v1033 = vadd.f32 %v887, %v1032
        %1034 = vmatprep.mubr.f32.mxu0 0.0
        %1035 = vmatmul.mubr.f32.gmra.mrb[0].mxu0 %v853
        %v1036 = vpop.f32.mrb[0].mxu0
        %v1037 = vadd.f32 %v892, %v1036
        %v1038 = vpop.f32.mrb[0].mxu0
        %v1039 = vadd.f32 %v892, %v1038
        %1040 = vmatprep.mubr.f32.mxu0 0.0
        %1041 = vmatmul.mubr.f32.gmra.mrb[0].mxu0 %v854
        %v1042 = vpop.f32.mrb[0].mxu0
        %v1043 = vadd.f32 %v897, %v1042
        %v1044 = vpop.f32.mrb[0].mxu0
        %v1045 = vadd.f32 %v897, %v1044
        %1046 = vmatprep.mubr.f32.mxu0 0.0
        %1047 = vmatmul.mubr.f32.gmra.mrb[0].mxu0 %v855
        %v1048 = vpop.f32.mrb[0].mxu0
        %v1049 = vadd.f32 %v902, %v1048
        %v1050 = vpop.f32.mrb[0].mxu0
        %v1051 = vadd.f32 %v902, %v1050
        %1052 = vmatprep.mubr.f32.mxu0 0.0
        %1053 = vmatmul.mubr.f32.gmra.mrb[0].mxu0 %v856
        %v1054 = vpop.f32.mrb[0].mxu0
        %v1055 = vadd.f32 %v907, %v1054
        %v1056 = vpop.f32.mrb[0].mxu0
        %v1057 = vadd.f32 %v907, %v1056
        %1058 = vmatprep.mubr.f32.mxu0 0.0
        %1059 = vmatmul.mubr.f32.gmra.mrb[0].mxu0 %v857
        %v1060 = vpop.f32.mrb[0].mxu0
        %v1061 = vadd.f32 %v912, %v1060
        %v1062 = vpop.f32.mrb[0].mxu0
        %v1063 = vadd.f32 %v912, %v1062
        %1064 = vmatprep.mubr.f32.mxu0 0.0
        %1065 = vmatmul.mubr.f32.gmra.mrb[0].mxu0 %v858
        %v1066 = vpop.f32.mrb[0].mxu0
        %v1067 = vadd.f32 %v917, %v1066
        %v1068 = vpop.f32.mrb[0].mxu0
        %v1069 = vadd.f32 %v917, %v1068
        %1070 = vmatprep.mubr.f32.mxu0 0.0
        %1071 = vmatmul.mubr.f32.gmra.mrb[0].mxu0 %v859
        %v1072 = vpop.f32.mrb[0].mxu0
        %v1073 = vadd.f32 %v922, %v1072
        %v1074 = vpop.f32.mrb[0].mxu0
        %v1075 = vadd.f32 %v922, %v1074
        %1076 = vmatprep.mubr.f32.mxu0 0.0
        %1077 = vmatmul.mubr.f32.gmra.mrb[0].mxu0 %v860
        %v1078 = vpop.f32.mrb[0].mxu0
        %v1079 = vadd.f32 %v927, %v1078
        %v1080 = vpop.f32.mrb[0].mxu0
        %v1081 = vadd.f32 %v927, %v1080
        %1082 = vmatprep.mubr.f32.mxu0 0.0
        %1083 = vmatmul.mubr.f32.gmra.mrb[0].mxu0 %v861
        %v1084 = vpop.f32.mrb[0].mxu0
        %v1085 = vadd.f32 %v932, %v1084
        %v1086 = vpop.f32.mrb[0].mxu0
        %v1087 = vadd.f32 %v932, %v1086
        %1088 = vmatprep.mubr.f32.mxu0 0.0
        %1089 = vmatmul.mubr.f32.gmra.mrb[0].mxu0 %v862
        %v1090 = vpop.f32.mrb[0].mxu0
        %v1091 = vadd.f32 %v937, %v1090
        %v1092 = vpop.f32.mrb[0].mxu0
        %v1093 = vadd.f32 %v937, %v1092
        %1094 = vmatprep.mubr.f32.mxu0 0.0
        %1095 = vmatmul.mubr.f32.gmra.mrb[0].mxu0 %v863
        %v1096 = vpop.f32.mrb[0].mxu0
        %v1097 = vadd.f32 %v942, %v1096
        %v1098 = vpop.f32.mrb[0].mxu0
        %v1099 = vadd.f32 %v942, %v1098
        %1100 = vmatprep.mubr.f32.mxu0 0.0
        %1101 = vmatmul.mubr.f32.gmra.mrb[0].mxu0 %v864
        %v1102 = vpop.f32.mrb[0].mxu0
        %v1103 = vadd.f32 %v947, %v1102
        %v1104 = vpop.f32.mrb[0].mxu0
        %v1105 = vadd.f32 %v947, %v1104
        %1106 = vmatprep.mubr.f32.mxu0 0.0
        %1107 = vmatmul.mubr.f32.gmra.mrb[0].mxu0 %v865
        %v1108 = vpop.f32.mrb[0].mxu0
        %v1109 = vadd.f32 %v952, %v1108
        %v1110 = vpop.f32.mrb[0].mxu0
        %v1111 = vadd.f32 %v952, %v1110
        %1112 = vmatprep.mubr.f32.mxu0 0.0
        %1113 = vmatmul.mubr.f32.gmra.mrb[0].mxu0 %v866
        %v1114 = vpop.f32.mrb[0].mxu0
        %v1115 = vadd.f32 %v957, %v1114
        %v1116 = vpop.f32.mrb[0].mxu0
        %v1117 = vadd.f32 %v957, %v1116
        %1118 = vmatprep.mubr.f32.mxu0 0.0
        %1119 = vmatmul.mubr.f32.gmra.mrb[0].mxu0 %v867
        %v1120 = vpop.f32.mrb[0].mxu0
        %v1121 = vadd.f32 %v962, %v1120
        %v1122 = vpop.f32.mrb[0].mxu0
        %v1123 = vadd.f32 %v962, %v1122
        %1124 = vdwg.mxu0
        %v1125 = vld [vmem:[%s5] sm:$0xff]
        %v1126 = vld [vmem:[%s5 + $0x8] sm:$0xff]
        %v1127 = vld [vmem:[%s5 + $0x10] sm:$0xff]
        %v1128 = vld [vmem:[%s5 + $0x18] sm:$0xff]
        %v1129 = vld [vmem:[%s5 + $0x20] sm:$0xff]
        %v1130 = vld [vmem:[%s5 + $0x28] sm:$0xff]
        %v1131 = vld [vmem:[%s5 + $0x30] sm:$0xff]
        %v1132 = vld [vmem:[%s5 + $0x38] sm:$0xff]
        %v1133 = vld [vmem:[%s5 + $0x40] sm:$0xff]
        %v1134 = vld [vmem:[%s5 + $0x48] sm:$0xff]
        %v1135 = vld [vmem:[%s5 + $0x50] sm:$0xff]
        %v1136 = vld [vmem:[%s5 + $0x58] sm:$0xff]
        %v1137 = vld [vmem:[%s5 + $0x60] sm:$0xff]
        %v1138 = vld [vmem:[%s5 + $0x68] sm:$0xff]
        %v1139 = vld [vmem:[%s5 + $0x70] sm:$0xff]
        %v1140 = vld [vmem:[%s5 + $0x78] sm:$0xff]
        %v1141 = vld [vmem:[%s6] sm:$0xff]
        %v1142 = vld [vmem:[%s6 + $0x8] sm:$0xff]
        %v1143 = vld [vmem:[%s6 + $0x10] sm:$0xff]
        %v1144 = vld [vmem:[%s6 + $0x18] sm:$0xff]
        %v1145 = vld [vmem:[%s6 + $0x20] sm:$0xff]
        %v1146 = vld [vmem:[%s6 + $0x28] sm:$0xff]
        %v1147 = vld [vmem:[%s6 + $0x30] sm:$0xff]
        %v1148 = vld [vmem:[%s6 + $0x38] sm:$0xff]
        %v1149 = vld [vmem:[%s6 + $0x40] sm:$0xff]
        %v1150 = vld [vmem:[%s6 + $0x48] sm:$0xff]
        %v1151 = vld [vmem:[%s6 + $0x50] sm:$0xff]
        %v1152 = vld [vmem:[%s6 + $0x58] sm:$0xff]
        %v1153 = vld [vmem:[%s6 + $0x60] sm:$0xff]
        %v1154 = vld [vmem:[%s6 + $0x68] sm:$0xff]
        %v1155 = vld [vmem:[%s6 + $0x70] sm:$0xff]
        %v1156 = vld [vmem:[%s6 + $0x78] sm:$0xff]
        %1158 = vset.pattern.permute.xlu0 0
        %1159 = vperm.xlu0 %1158, %v1141
        %v1160 = vpop.permute.xlu0 %1159
        %1163 = vset.pattern.permute.xlu0 0
        %1164 = vperm.xlu0 %1163, %v1142
        %v1165 = vpop.permute.xlu0 %1164
        %1168 = vset.pattern.permute.xlu0 0
        %1169 = vperm.xlu0 %1168, %v1143
        %v1170 = vpop.permute.xlu0 %1169
        %1173 = vset.pattern.permute.xlu0 0
        %1174 = vperm.xlu0 %1173, %v1144
        %v1175 = vpop.permute.xlu0 %1174
        %1178 = vset.pattern.permute.xlu0 0
        %1179 = vperm.xlu0 %1178, %v1145
        %v1180 = vpop.permute.xlu0 %1179
        %1183 = vset.pattern.permute.xlu0 0
        %1184 = vperm.xlu0 %1183, %v1146
        %v1185 = vpop.permute.xlu0 %1184
        %1188 = vset.pattern.permute.xlu0 0
        %1189 = vperm.xlu0 %1188, %v1147
        %v1190 = vpop.permute.xlu0 %1189
        %1193 = vset.pattern.permute.xlu0 0
        %1194 = vperm.xlu0 %1193, %v1148
        %v1195 = vpop.permute.xlu0 %1194
        %1198 = vset.pattern.permute.xlu0 0
        %1199 = vperm.xlu0 %1198, %v1149
        %v1200 = vpop.permute.xlu0 %1199
        %1203 = vset.pattern.permute.xlu0 0
        %1204 = vperm.xlu0 %1203, %v1150
        %v1205 = vpop.permute.xlu0 %1204
        %1208 = vset.pattern.permute.xlu0 0
        %1209 = vperm.xlu0 %1208, %v1151
        %v1210 = vpop.permute.xlu0 %1209
        %1213 = vset.pattern.permute.xlu0 0
        %1214 = vperm.xlu0 %1213, %v1152
        %v1215 = vpop.permute.xlu0 %1214
        %1218 = vset.pattern.permute.xlu0 0
        %1219 = vperm.xlu0 %1218, %v1153
        %v1220 = vpop.permute.xlu0 %1219
        %1223 = vset.pattern.permute.xlu0 0
        %1224 = vperm.xlu0 %1223, %v1154
        %v1225 = vpop.permute.xlu0 %1224
        %1228 = vset.pattern.permute.xlu0 0
        %1229 = vperm.xlu0 %1228, %v1155
        %v1230 = vpop.permute.xlu0 %1229
        %1233 = vset.pattern.permute.xlu0 0
        %1234 = vperm.xlu0 %1233, %v1156
        %v1235 = vpop.permute.xlu0 %1234
        %1237 = vmatprep.subr.mxu0 %v760
        %1238 = vmatpush1.msra.mxu0 %v758
        %1239 = vmatprep.subr.mxu0 %v766
        %1240 = vmatpush1.msra.mxu0 %v764
        %1241 = vmatprep.subr.mxu0 %v772
        %1242 = vmatpush1.msra.mxu0 %v770
        %1243 = vmatprep.subr.mxu0 %v778
        %1244 = vmatpush1.msra.mxu0 %v776
        %1245 = vmatprep.subr.mxu0 %v784
        %1246 = vmatpush1.msra.mxu0 %v782
        %1247 = vmatprep.subr.mxu0 %v790
        %1248 = vmatpush1.msra.mxu0 %v788
        %1249 = vmatprep.subr.mxu0 %v796
        %1250 = vmatpush1.msra.mxu0 %v794
        %1251 = vmatprep.subr.mxu0 %v802
        %1252 = vmatpush1.msra.mxu0 %v800
        %1253 = vmatprep.subr.mxu0 %v808
        %1254 = vmatpush1.msra.mxu0 %v806
        %1255 = vmatprep.subr.mxu0 %v814
        %1256 = vmatpush1.msra.mxu0 %v812
        %1257 = vmatprep.subr.mxu0 %v820
        %1258 = vmatpush1.msra.mxu0 %v818
        %1259 = vmatprep.subr.mxu0 %v826
        %1260 = vmatpush1.msra.mxu0 %v824
        %1261 = vmatprep.subr.mxu0 %v832
        %1262 = vmatpush1.msra.mxu0 %v830
        %1263 = vmatprep.subr.mxu0 %v838
        %1264 = vmatpush1.msra.mxu0 %v836
        %1265 = vmatprep.subr.mxu0 %v844
        %1266 = vmatpush1.msra.mxu0 %v842
        %1267 = vmatprep.subr.mxu0 %v850
        %1268 = vmatpush1.msra.mxu0 %v848
        %1269 = vmatprep.subr.mxu0 0.0
        %1270 = vmatpush1.msra.mxu0 0.0
        %1271 = vmatprep.subr.mxu0 0.0
        %1272 = vmatpush1.msra.mxu0 0.0
        %1273 = vmatprep.subr.mxu0 0.0
        %1274 = vmatpush1.msra.mxu0 0.0
        %1275 = vmatprep.subr.mxu0 0.0
        %1276 = vmatpush1.msra.mxu0 0.0
        %1277 = vmatprep.subr.mxu0 0.0
        %1278 = vmatpush1.msra.mxu0 0.0
        %1279 = vmatprep.subr.mxu0 0.0
        %1280 = vmatpush1.msra.mxu0 0.0
        %1281 = vmatprep.subr.mxu0 0.0
        %1282 = vmatpush1.msra.mxu0 0.0
        %1283 = vmatprep.subr.mxu0 0.0
        %1284 = vmatpush1.msra.mxu0 0.0
        %1285 = vmatprep.subr.mxu0 0.0
        %1286 = vmatpush1.msra.mxu0 0.0
        %1287 = vmatprep.subr.mxu0 0.0
        %1288 = vmatpush1.msra.mxu0 0.0
        %1289 = vmatprep.subr.mxu0 0.0
        %1290 = vmatpush1.msra.mxu0 0.0
        %1291 = vmatprep.subr.mxu0 0.0
        %1292 = vmatpush1.msra.mxu0 0.0
        %1293 = vmatprep.subr.mxu0 0.0
        %1294 = vmatpush1.msra.mxu0 0.0
        %1295 = vmatprep.subr.mxu0 0.0
        %1296 = vmatpush1.msra.mxu0 0.0
        %1297 = vmatprep.subr.mxu0 0.0
        %1298 = vmatpush1.msra.mxu0 0.0
        %1299 = vmatprep.subr.mxu0 0.0
        %1300 = vmatpush1.msra.mxu0 0.0
        %1301 = vmatprep.mubr.f32.mxu0 0.0
        %1302 = vmatmul.mubr.f32.gmra.mrb[0].mxu0 %v1125
        %v1303 = vpop.f32.mrb[0].mxu0
        %v1304 = vadd.f32 %v1160, %v1303
        %v1305 = vpop.f32.mrb[0].mxu0
        %v1306 = vadd.f32 %v1160, %v1305
        %1307 = vmatprep.mubr.f32.mxu0 0.0
        %1308 = vmatmul.mubr.f32.gmra.mrb[0].mxu0 %v1126
        %v1309 = vpop.f32.mrb[0].mxu0
        %v1310 = vadd.f32 %v1165, %v1309
        %v1311 = vpop.f32.mrb[0].mxu0
        %v1312 = vadd.f32 %v1165, %v1311
        %1313 = vmatprep.mubr.f32.mxu0 0.0
        %1314 = vmatmul.mubr.f32.gmra.mrb[0].mxu0 %v1127
        %v1315 = vpop.f32.mrb[0].mxu0
        %v1316 = vadd.f32 %v1170, %v1315
        %v1317 = vpop.f32.mrb[0].mxu0
        %v1318 = vadd.f32 %v1170, %v1317
        %1319 = vmatprep.mubr.f32.mxu0 0.0
        %1320 = vmatmul.mubr.f32.gmra.mrb[0].mxu0 %v1128
        %v1321 = vpop.f32.mrb[0].mxu0
        %v1322 = vadd.f32 %v1175, %v1321
        %v1323 = vpop.f32.mrb[0].mxu0
        %v1324 = vadd.f32 %v1175, %v1323
        %1325 = vmatprep.mubr.f32.mxu0 0.0
        %1326 = vmatmul.mubr.f32.gmra.mrb[0].mxu0 %v1129
        %v1327 = vpop.f32.mrb[0].mxu0
        %v1328 = vadd.f32 %v1180, %v1327
        %v1329 = vpop.f32.mrb[0].mxu0
        %v1330 = vadd.f32 %v1180, %v1329
        %1331 = vmatprep.mubr.f32.mxu0 0.0
        %1332 = vmatmul.mubr.f32.gmra.mrb[0].mxu0 %v1130
        %v1333 = vpop.f32.mrb[0].mxu0
        %v1334 = vadd.f32 %v1185, %v1333
        %v1335 = vpop.f32.mrb[0].mxu0
        %v1336 = vadd.f32 %v1185, %v1335
        %1337 = vmatprep.mubr.f32.mxu0 0.0
        %1338 = vmatmul.mubr.f32.gmra.mrb[0].mxu0 %v1131
        %v1339 = vpop.f32.mrb[0].mxu0
        %v1340 = vadd.f32 %v1190, %v1339
        %v1341 = vpop.f32.mrb[0].mxu0
        %v1342 = vadd.f32 %v1190, %v1341
        %1343 = vmatprep.mubr.f32.mxu0 0.0
        %1344 = vmatmul.mubr.f32.gmra.mrb[0].mxu0 %v1132
        %v1345 = vpop.f32.mrb[0].mxu0
        %v1346 = vadd.f32 %v1195, %v1345
        %v1347 = vpop.f32.mrb[0].mxu0
        %v1348 = vadd.f32 %v1195, %v1347
        %1349 = vmatprep.mubr.f32.mxu0 0.0
        %1350 = vmatmul.mubr.f32.gmra.mrb[0].mxu0 %v1133
        %v1351 = vpop.f32.mrb[0].mxu0
        %v1352 = vadd.f32 %v1200, %v1351
        %v1353 = vpop.f32.mrb[0].mxu0
        %v1354 = vadd.f32 %v1200, %v1353
        %1355 = vmatprep.mubr.f32.mxu0 0.0
        %1356 = vmatmul.mubr.f32.gmra.mrb[0].mxu0 %v1134
        %v1357 = vpop.f32.mrb[0].mxu0
        %v1358 = vadd.f32 %v1205, %v1357
        %v1359 = vpop.f32.mrb[0].mxu0
        %v1360 = vadd.f32 %v1205, %v1359
        %1361 = vmatprep.mubr.f32.mxu0 0.0
        %1362 = vmatmul.mubr.f32.gmra.mrb[0].mxu0 %v1135
        %v1363 = vpop.f32.mrb[0].mxu0
        %v1364 = vadd.f32 %v1210, %v1363
        %v1365 = vpop.f32.mrb[0].mxu0
        %v1366 = vadd.f32 %v1210, %v1365
        %1367 = vmatprep.mubr.f32.mxu0 0.0
        %1368 = vmatmul.mubr.f32.gmra.mrb[0].mxu0 %v1136
        %v1369 = vpop.f32.mrb[0].mxu0
        %v1370 = vadd.f32 %v1215, %v1369
        %v1371 = vpop.f32.mrb[0].mxu0
        %v1372 = vadd.f32 %v1215, %v1371
        %1373 = vmatprep.mubr.f32.mxu0 0.0
        %1374 = vmatmul.mubr.f32.gmra.mrb[0].mxu0 %v1137
        %v1375 = vpop.f32.mrb[0].mxu0
        %v1376 = vadd.f32 %v1220, %v1375
        %v1377 = vpop.f32.mrb[0].mxu0
        %v1378 = vadd.f32 %v1220, %v1377
        %1379 = vmatprep.mubr.f32.mxu0 0.0
        %1380 = vmatmul.mubr.f32.gmra.mrb[0].mxu0 %v1138
        %v1381 = vpop.f32.mrb[0].mxu0
        %v1382 = vadd.f32 %v1225, %v1381
        %v1383 = vpop.f32.mrb[0].mxu0
        %v1384 = vadd.f32 %v1225, %v1383
        %1385 = vmatprep.mubr.f32.mxu0 0.0
        %1386 = vmatmul.mubr.f32.gmra.mrb[0].mxu0 %v1139
        %v1387 = vpop.f32.mrb[0].mxu0
        %v1388 = vadd.f32 %v1230, %v1387
        %v1389 = vpop.f32.mrb[0].mxu0
        %v1390 = vadd.f32 %v1230, %v1389
        %1391 = vmatprep.mubr.f32.mxu0 0.0
        %1392 = vmatmul.mubr.f32.gmra.mrb[0].mxu0 %v1140
        %v1393 = vpop.f32.mrb[0].mxu0
        %v1394 = vadd.f32 %v1235, %v1393
        %v1395 = vpop.f32.mrb[0].mxu0
        %v1396 = vadd.f32 %v1235, %v1395
        %1397 = vdwg.mxu0
        %v1398 = vld [vmem:[%s7] sm:$0xff]
        %v1399 = vld [vmem:[%s7 + $0x8] sm:$0xff]
        %v1400 = vld [vmem:[%s7 + $0x10] sm:$0xff]
        %v1401 = vld [vmem:[%s7 + $0x18] sm:$0xff]
        %v1402 = vld [vmem:[%s7 + $0x20] sm:$0xff]
        %v1403 = vld [vmem:[%s7 + $0x28] sm:$0xff]
        %v1404 = vld [vmem:[%s7 + $0x30] sm:$0xff]
        %v1405 = vld [vmem:[%s7 + $0x38] sm:$0xff]
        %v1406 = vld [vmem:[%s7 + $0x40] sm:$0xff]
        %v1407 = vld [vmem:[%s7 + $0x48] sm:$0xff]
        %v1408 = vld [vmem:[%s7 + $0x50] sm:$0xff]
        %v1409 = vld [vmem:[%s7 + $0x58] sm:$0xff]
        %v1410 = vld [vmem:[%s7 + $0x60] sm:$0xff]
        %v1411 = vld [vmem:[%s7 + $0x68] sm:$0xff]
        %v1412 = vld [vmem:[%s7 + $0x70] sm:$0xff]
        %v1413 = vld [vmem:[%s7 + $0x78] sm:$0xff]
        %v1414 = vld [vmem:[%s8] sm:$0xff]
        %v1415 = vld [vmem:[%s8 + $0x8] sm:$0xff]
        %v1416 = vld [vmem:[%s8 + $0x10] sm:$0xff]
        %v1417 = vld [vmem:[%s8 + $0x18] sm:$0xff]
        %v1418 = vld [vmem:[%s8 + $0x20] sm:$0xff]
        %v1419 = vld [vmem:[%s8 + $0x28] sm:$0xff]
        %v1420 = vld [vmem:[%s8 + $0x30] sm:$0xff]
        %v1421 = vld [vmem:[%s8 + $0x38] sm:$0xff]
        %v1422 = vld [vmem:[%s8 + $0x40] sm:$0xff]
        %v1423 = vld [vmem:[%s8 + $0x48] sm:$0xff]
        %v1424 = vld [vmem:[%s8 + $0x50] sm:$0xff]
        %v1425 = vld [vmem:[%s8 + $0x58] sm:$0xff]
        %v1426 = vld [vmem:[%s8 + $0x60] sm:$0xff]
        %v1427 = vld [vmem:[%s8 + $0x68] sm:$0xff]
        %v1428 = vld [vmem:[%s8 + $0x70] sm:$0xff]
        %v1429 = vld [vmem:[%s8 + $0x78] sm:$0xff]
        %1431 = vset.pattern.permute.xlu0 0
        %1432 = vperm.xlu0 %1431, %v1414
        %v1433 = vpop.permute.xlu0 %1432
        %1436 = vset.pattern.permute.xlu0 0
        %1437 = vperm.xlu0 %1436, %v1415
        %v1438 = vpop.permute.xlu0 %1437
        %1441 = vset.pattern.permute.xlu0 0
        %1442 = vperm.xlu0 %1441, %v1416
        %v1443 = vpop.permute.xlu0 %1442
        %1446 = vset.pattern.permute.xlu0 0
        %1447 = vperm.xlu0 %1446, %v1417
        %v1448 = vpop.permute.xlu0 %1447
        %1451 = vset.pattern.permute.xlu0 0
        %1452 = vperm.xlu0 %1451, %v1418
        %v1453 = vpop.permute.xlu0 %1452
        %1456 = vset.pattern.permute.xlu0 0
        %1457 = vperm.xlu0 %1456, %v1419
        %v1458 = vpop.permute.xlu0 %1457
        %1461 = vset.pattern.permute.xlu0 0
        %1462 = vperm.xlu0 %1461, %v1420
        %v1463 = vpop.permute.xlu0 %1462
        %1466 = vset.pattern.permute.xlu0 0
        %1467 = vperm.xlu0 %1466, %v1421
        %v1468 = vpop.permute.xlu0 %1467
        %1471 = vset.pattern.permute.xlu0 0
        %1472 = vperm.xlu0 %1471, %v1422
        %v1473 = vpop.permute.xlu0 %1472
        %1476 = vset.pattern.permute.xlu0 0
        %1477 = vperm.xlu0 %1476, %v1423
        %v1478 = vpop.permute.xlu0 %1477
        %1481 = vset.pattern.permute.xlu0 0
        %1482 = vperm.xlu0 %1481, %v1424
        %v1483 = vpop.permute.xlu0 %1482
        %1486 = vset.pattern.permute.xlu0 0
        %1487 = vperm.xlu0 %1486, %v1425
        %v1488 = vpop.permute.xlu0 %1487
        %1491 = vset.pattern.permute.xlu0 0
        %1492 = vperm.xlu0 %1491, %v1426
        %v1493 = vpop.permute.xlu0 %1492
        %1496 = vset.pattern.permute.xlu0 0
        %1497 = vperm.xlu0 %1496, %v1427
        %v1498 = vpop.permute.xlu0 %1497
        %1501 = vset.pattern.permute.xlu0 0
        %1502 = vperm.xlu0 %1501, %v1428
        %v1503 = vpop.permute.xlu0 %1502
        %1506 = vset.pattern.permute.xlu0 0
        %1507 = vperm.xlu0 %1506, %v1429
        %v1508 = vpop.permute.xlu0 %1507
        %1510 = vmatprep.subr.mxu0 %v760
        %1511 = vmatpush1.msra.mxu0 %v758
        %1512 = vmatprep.subr.mxu0 %v766
        %1513 = vmatpush1.msra.mxu0 %v764
        %1514 = vmatprep.subr.mxu0 %v772
        %1515 = vmatpush1.msra.mxu0 %v770
        %1516 = vmatprep.subr.mxu0 %v778
        %1517 = vmatpush1.msra.mxu0 %v776
        %1518 = vmatprep.subr.mxu0 %v784
        %1519 = vmatpush1.msra.mxu0 %v782
        %1520 = vmatprep.subr.mxu0 %v790
        %1521 = vmatpush1.msra.mxu0 %v788
        %1522 = vmatprep.subr.mxu0 %v796
        %1523 = vmatpush1.msra.mxu0 %v794
        %1524 = vmatprep.subr.mxu0 %v802
        %1525 = vmatpush1.msra.mxu0 %v800
        %1526 = vmatprep.subr.mxu0 %v808
        %1527 = vmatpush1.msra.mxu0 %v806
        %1528 = vmatprep.subr.mxu0 %v814
        %1529 = vmatpush1.msra.mxu0 %v812
        %1530 = vmatprep.subr.mxu0 %v820
        %1531 = vmatpush1.msra.mxu0 %v818
        %1532 = vmatprep.subr.mxu0 %v826
        %1533 = vmatpush1.msra.mxu0 %v824
        %1534 = vmatprep.subr.mxu0 %v832
        %1535 = vmatpush1.msra.mxu0 %v830
        %1536 = vmatprep.subr.mxu0 %v838
        %1537 = vmatpush1.msra.mxu0 %v836
        %1538 = vmatprep.subr.mxu0 %v844
        %1539 = vmatpush1.msra.mxu0 %v842
        %1540 = vmatprep.subr.mxu0 %v850
        %1541 = vmatpush1.msra.mxu0 %v848
        %1542 = vmatprep.subr.mxu0 0.0
        %1543 = vmatpush1.msra.mxu0 0.0
        %1544 = vmatprep.subr.mxu0 0.0
        %1545 = vmatpush1.msra.mxu0 0.0
        %1546 = vmatprep.subr.mxu0 0.0
        %1547 = vmatpush1.msra.mxu0 0.0
        %1548 = vmatprep.subr.mxu0 0.0
        %1549 = vmatpush1.msra.mxu0 0.0
        %1550 = vmatprep.subr.mxu0 0.0
        %1551 = vmatpush1.msra.mxu0 0.0
        %1552 = vmatprep.subr.mxu0 0.0
        %1553 = vmatpush1.msra.mxu0 0.0
        %1554 = vmatprep.subr.mxu0 0.0
        %1555 = vmatpush1.msra.mxu0 0.0
        %1556 = vmatprep.subr.mxu0 0.0
        %1557 = vmatpush1.msra.mxu0 0.0
        %1558 = vmatprep.subr.mxu0 0.0
        %1559 = vmatpush1.msra.mxu0 0.0
        %1560 = vmatprep.subr.mxu0 0.0
        %1561 = vmatpush1.msra.mxu0 0.0
        %1562 = vmatprep.subr.mxu0 0.0
        %1563 = vmatpush1.msra.mxu0 0.0
        %1564 = vmatprep.subr.mxu0 0.0
        %1565 = vmatpush1.msra.mxu0 0.0
        %1566 = vmatprep.subr.mxu0 0.0
        %1567 = vmatpush1.msra.mxu0 0.0
        %1568 = vmatprep.subr.mxu0 0.0
        %1569 = vmatpush1.msra.mxu0 0.0
        %1570 = vmatprep.subr.mxu0 0.0
        %1571 = vmatpush1.msra.mxu0 0.0
        %1572 = vmatprep.subr.mxu0 0.0
        %1573 = vmatpush1.msra.mxu0 0.0
        %1574 = vmatprep.mubr.f32.mxu0 0.0
        %1575 = vmatmul.mubr.f32.gmra.mrb[0].mxu0 %v1398
        %v1576 = vpop.f32.mrb[0].mxu0
        %v1577 = vadd.f32 %v1433, %v1576
        %v1578 = vpop.f32.mrb[0].mxu0
        %v1579 = vadd.f32 %v1433, %v1578
        %1580 = vmatprep.mubr.f32.mxu0 0.0
        %1581 = vmatmul.mubr.f32.gmra.mrb[0].mxu0 %v1399
        %v1582 = vpop.f32.mrb[0].mxu0
        %v1583 = vadd.f32 %v1438, %v1582
        %v1584 = vpop.f32.mrb[0].mxu0
        %v1585 = vadd.f32 %v1438, %v1584
        %1586 = vmatprep.mubr.f32.mxu0 0.0
        %1587 = vmatmul.mubr.f32.gmra.mrb[0].mxu0 %v1400
        %v1588 = vpop.f32.mrb[0].mxu0
        %v1589 = vadd.f32 %v1443, %v1588
        %v1590 = vpop.f32.mrb[0].mxu0
        %v1591 = vadd.f32 %v1443, %v1590
        %1592 = vmatprep.mubr.f32.mxu0 0.0
        %1593 = vmatmul.mubr.f32.gmra.mrb[0].mxu0 %v1401
        %v1594 = vpop.f32.mrb[0].mxu0
        %v1595 = vadd.f32 %v1448, %v1594
        %v1596 = vpop.f32.mrb[0].mxu0
        %v1597 = vadd.f32 %v1448, %v1596
        %1598 = vmatprep.mubr.f32.mxu0 0.0
        %1599 = vmatmul.mubr.f32.gmra.mrb[0].mxu0 %v1402
        %v1600 = vpop.f32.mrb[0].mxu0
        %v1601 = vadd.f32 %v1453, %v1600
        %v1602 = vpop.f32.mrb[0].mxu0
        %v1603 = vadd.f32 %v1453, %v1602
        %1604 = vmatprep.mubr.f32.mxu0 0.0
        %1605 = vmatmul.mubr.f32.gmra.mrb[0].mxu0 %v1403
        %v1606 = vpop.f32.mrb[0].mxu0
        %v1607 = vadd.f32 %v1458, %v1606
        %v1608 = vpop.f32.mrb[0].mxu0
        %v1609 = vadd.f32 %v1458, %v1608
        %1610 = vmatprep.mubr.f32.mxu0 0.0
        %1611 = vmatmul.mubr.f32.gmra.mrb[0].mxu0 %v1404
        %v1612 = vpop.f32.mrb[0].mxu0
        %v1613 = vadd.f32 %v1463, %v1612
        %v1614 = vpop.f32.mrb[0].mxu0
        %v1615 = vadd.f32 %v1463, %v1614
        %1616 = vmatprep.mubr.f32.mxu0 0.0
        %1617 = vmatmul.mubr.f32.gmra.mrb[0].mxu0 %v1405
        %v1618 = vpop.f32.mrb[0].mxu0
        %v1619 = vadd.f32 %v1468, %v1618
        %v1620 = vpop.f32.mrb[0].mxu0
        %v1621 = vadd.f32 %v1468, %v1620
        %1622 = vmatprep.mubr.f32.mxu0 0.0
        %1623 = vmatmul.mubr.f32.gmra.mrb[0].mxu0 %v1406
        %v1624 = vpop.f32.mrb[0].mxu0
        %v1625 = vadd.f32 %v1473, %v1624
        %v1626 = vpop.f32.mrb[0].mxu0
        %v1627 = vadd.f32 %v1473, %v1626
        %1628 = vmatprep.mubr.f32.mxu0 0.0
        %1629 = vmatmul.mubr.f32.gmra.mrb[0].mxu0 %v1407
        %v1630 = vpop.f32.mrb[0].mxu0
        %v1631 = vadd.f32 %v1478, %v1630
        %v1632 = vpop.f32.mrb[0].mxu0
        %v1633 = vadd.f32 %v1478, %v1632
        %1634 = vmatprep.mubr.f32.mxu0 0.0
        %1635 = vmatmul.mubr.f32.gmra.mrb[0].mxu0 %v1408
        %v1636 = vpop.f32.mrb[0].mxu0
        %v1637 = vadd.f32 %v1483, %v1636
        %v1638 = vpop.f32.mrb[0].mxu0
        %v1639 = vadd.f32 %v1483, %v1638
        %1640 = vmatprep.mubr.f32.mxu0 0.0
        %1641 = vmatmul.mubr.f32.gmra.mrb[0].mxu0 %v1409
        %v1642 = vpop.f32.mrb[0].mxu0
        %v1643 = vadd.f32 %v1488, %v1642
        %v1644 = vpop.f32.mrb[0].mxu0
        %v1645 = vadd.f32 %v1488, %v1644
        %1646 = vmatprep.mubr.f32.mxu0 0.0
        %1647 = vmatmul.mubr.f32.gmra.mrb[0].mxu0 %v1410
        %v1648 = vpop.f32.mrb[0].mxu0
        %v1649 = vadd.f32 %v1493, %v1648
        %v1650 = vpop.f32.mrb[0].mxu0
        %v1651 = vadd.f32 %v1493, %v1650
        %1652 = vmatprep.mubr.f32.mxu0 0.0
        %1653 = vmatmul.mubr.f32.gmra.mrb[0].mxu0 %v1411
        %v1654 = vpop.f32.mrb[0].mxu0
        %v1655 = vadd.f32 %v1498, %v1654
        %v1656 = vpop.f32.mrb[0].mxu0
        %v1657 = vadd.f32 %v1498, %v1656
        %1658 = vmatprep.mubr.f32.mxu0 0.0
        %1659 = vmatmul.mubr.f32.gmra.mrb[0].mxu0 %v1412
        %v1660 = vpop.f32.mrb[0].mxu0
        %v1661 = vadd.f32 %v1503, %v1660
        %v1662 = vpop.f32.mrb[0].mxu0
        %v1663 = vadd.f32 %v1503, %v1662
        %1664 = vmatprep.mubr.f32.mxu0 0.0
        %1665 = vmatmul.mubr.f32.gmra.mrb[0].mxu0 %v1413
        %v1666 = vpop.f32.mrb[0].mxu0
        %v1667 = vadd.f32 %v1508, %v1666
        %v1668 = vpop.f32.mrb[0].mxu0
        %v1669 = vadd.f32 %v1508, %v1668
        %1670 = vdwg.mxu0
        %1671 = vxpose.xlu0.b32.start [1/16] %v1031, 128
        %1672 = vxpose.xlu0.b32.cont [2/16] %v1037, 128
        %1673 = vxpose.xlu0.b32.cont [3/16] %v1043, 128
        %1674 = vxpose.xlu0.b32.cont [4/16] %v1049, 128
        %1675 = vxpose.xlu0.b32.cont [5/16] 0.0, 128
        %1676 = vxpose.xlu0.b32.cont [6/16] 0.0, 128
        %1677 = vxpose.xlu0.b32.cont [7/16] 0.0, 128
        %1678 = vxpose.xlu0.b32.cont [8/16] 0.0, 128
        %1679 = vxpose.xlu0.b32.cont [9/16] 0.0, 128
        %1680 = vxpose.xlu0.b32.cont [10/16] 0.0, 128
        %1681 = vxpose.xlu0.b32.cont [11/16] 0.0, 128
        %1682 = vxpose.xlu0.b32.cont [12/16] 0.0, 128
        %1683 = vxpose.xlu0.b32.cont [13/16] 0.0, 128
        %1684 = vxpose.xlu0.b32.cont [14/16] 0.0, 128
        %1685 = vxpose.xlu0.b32.cont [15/16] 0.0, 128
        %1686 = vxpose.xlu0.b32.end [16/16] 0.0, 128
        %v1687 = vpop.trf.xlu0
        %v1688 = vpop.trf.xlu0
        %v1689 = vpop.trf.xlu0
        %v1690 = vpop.trf.xlu0
        %v1691 = vpop.trf.xlu0
        %v1692 = vpop.trf.xlu0
        %v1693 = vpop.trf.xlu0
        %v1694 = vpop.trf.xlu0
        %v1695 = vpop.trf.xlu0
        %v1696 = vpop.trf.xlu0
        %v1697 = vpop.trf.xlu0
        %v1698 = vpop.trf.xlu0
        %v1699 = vpop.trf.xlu0
        %v1700 = vpop.trf.xlu0
        %v1701 = vpop.trf.xlu0
        %v1702 = vpop.trf.xlu0
        %1703 = vxpose.xlu0.b32.start [1/16] %v1033, 128
        %1704 = vxpose.xlu0.b32.cont [2/16] %v1039, 128
        %1705 = vxpose.xlu0.b32.cont [3/16] %v1045, 128
        %1706 = vxpose.xlu0.b32.cont [4/16] %v1051, 128
        %1707 = vxpose.xlu0.b32.cont [5/16] 0.0, 128
        %1708 = vxpose.xlu0.b32.cont [6/16] 0.0, 128
        %1709 = vxpose.xlu0.b32.cont [7/16] 0.0, 128
        %1710 = vxpose.xlu0.b32.cont [8/16] 0.0, 128
        %1711 = vxpose.xlu0.b32.cont [9/16] 0.0, 128
        %1712 = vxpose.xlu0.b32.cont [10/16] 0.0, 128
        %1713 = vxpose.xlu0.b32.cont [11/16] 0.0, 128
        %1714 = vxpose.xlu0.b32.cont [12/16] 0.0, 128
        %1715 = vxpose.xlu0.b32.cont [13/16] 0.0, 128
        %1716 = vxpose.xlu0.b32.cont [14/16] 0.0, 128
        %1717 = vxpose.xlu0.b32.cont [15/16] 0.0, 128
        %1718 = vxpose.xlu0.b32.end [16/16] 0.0, 128
        %v1719 = vpop.trf.xlu0
        %v1720 = vpop.trf.xlu0
        %v1721 = vpop.trf.xlu0
        %v1722 = vpop.trf.xlu0
        %v1723 = vpop.trf.xlu0
        %v1724 = vpop.trf.xlu0
        %v1725 = vpop.trf.xlu0
        %v1726 = vpop.trf.xlu0
        %v1727 = vpop.trf.xlu0
        %v1728 = vpop.trf.xlu0
        %v1729 = vpop.trf.xlu0
        %v1730 = vpop.trf.xlu0
        %v1731 = vpop.trf.xlu0
        %v1732 = vpop.trf.xlu0
        %v1733 = vpop.trf.xlu0
        %v1734 = vpop.trf.xlu0
        %vm1735 = vcmask 261120
        %v1737 = vsel %vm1735, %v1687, 0
        %v1740 = vsel %vm1735, %v1688, 0
        %v1743 = vsel %vm1735, %v1689, 0
        %v1746 = vsel %vm1735, %v1690, 0
        %v1749 = vsel %vm1735, %v1691, 0
        %v1752 = vsel %vm1735, %v1692, 0
        %v1755 = vsel %vm1735, %v1693, 0
        %v1758 = vsel %vm1735, %v1694, 0
        %v1761 = vsel %vm1735, %v1695, 0
        %v1764 = vsel %vm1735, %v1696, 0
        %v1767 = vsel %vm1735, %v1697, 0
        %v1770 = vsel %vm1735, %v1698, 0
        %v1773 = vsel %vm1735, %v1699, 0
        %v1776 = vsel %vm1735, %v1700, 0
        %v1779 = vsel %vm1735, %v1701, 0
        %v1782 = vsel %vm1735, %v1702, 0
        %v1785 = vsel %vm1735, %v1719, 0
        %v1788 = vsel %vm1735, %v1720, 0
        %v1791 = vsel %vm1735, %v1721, 0
        %v1794 = vsel %vm1735, %v1722, 0
        %v1797 = vsel %vm1735, %v1723, 0
        %v1800 = vsel %vm1735, %v1724, 0
        %v1803 = vsel %vm1735, %v1725, 0
        %v1806 = vsel %vm1735, %v1726, 0
        %v1809 = vsel %vm1735, %v1727, 0
        %v1812 = vsel %vm1735, %v1728, 0
        %v1815 = vsel %vm1735, %v1729, 0
        %v1818 = vsel %vm1735, %v1730, 0
        %v1821 = vsel %vm1735, %v1731, 0
        %v1824 = vsel %vm1735, %v1732, 0
        %v1827 = vsel %vm1735, %v1733, 0
        %v1830 = vsel %vm1735, %v1734, 0
        %1832 = vmatprep.subr.mxu0 %v1306
        %1833 = vmatpush1.msra.mxu0 %v1304
        %1834 = vmatprep.subr.mxu0 %v1312
        %1835 = vmatpush1.msra.mxu0 %v1310
        %1836 = vmatprep.subr.mxu0 %v1318
        %1837 = vmatpush1.msra.mxu0 %v1316
        %1838 = vmatprep.subr.mxu0 %v1324
        %1839 = vmatpush1.msra.mxu0 %v1322
        %1840 = vmatprep.subr.mxu0 0.0
        %1841 = vmatpush1.msra.mxu0 0.0
        %1842 = vmatprep.subr.mxu0 0.0
        %1843 = vmatpush1.msra.mxu0 0.0
        %1844 = vmatprep.subr.mxu0 0.0
        %1845 = vmatpush1.msra.mxu0 0.0
        %1846 = vmatprep.subr.mxu0 0.0
        %1847 = vmatpush1.msra.mxu0 0.0
        %1848 = vmatprep.subr.mxu0 0.0
        %1849 = vmatpush1.msra.mxu0 0.0
        %1850 = vmatprep.subr.mxu0 0.0
        %1851 = vmatpush1.msra.mxu0 0.0
        %1852 = vmatprep.subr.mxu0 0.0
        %1853 = vmatpush1.msra.mxu0 0.0
        %1854 = vmatprep.subr.mxu0 0.0
        %1855 = vmatpush1.msra.mxu0 0.0
        %1856 = vmatprep.subr.mxu0 0.0
        %1857 = vmatpush1.msra.mxu0 0.0
        %1858 = vmatprep.subr.mxu0 0.0
        %1859 = vmatpush1.msra.mxu0 0.0
        %1860 = vmatprep.subr.mxu0 0.0
        %1861 = vmatpush1.msra.mxu0 0.0
        %1862 = vmatprep.subr.mxu0 0.0
        %1863 = vmatpush1.msra.mxu0 0.0
        %1864 = vmatprep.subr.mxu0 0.0
        %1865 = vmatpush1.msra.mxu0 0.0
        %1866 = vmatprep.subr.mxu0 0.0
        %1867 = vmatpush1.msra.mxu0 0.0
        %1868 = vmatprep.subr.mxu0 0.0
        %1869 = vmatpush1.msra.mxu0 0.0
        %1870 = vmatprep.subr.mxu0 0.0
        %1871 = vmatpush1.msra.mxu0 0.0
        %1872 = vmatprep.subr.mxu0 0.0
        %1873 = vmatpush1.msra.mxu0 0.0
        %1874 = vmatprep.subr.mxu0 0.0
        %1875 = vmatpush1.msra.mxu0 0.0
        %1876 = vmatprep.subr.mxu0 0.0
        %1877 = vmatpush1.msra.mxu0 0.0
        %1878 = vmatprep.subr.mxu0 0.0
        %1879 = vmatpush1.msra.mxu0 0.0
        %1880 = vmatprep.subr.mxu0 0.0
        %1881 = vmatpush1.msra.mxu0 0.0
        %1882 = vmatprep.subr.mxu0 0.0
        %1883 = vmatpush1.msra.mxu0 0.0
        %1884 = vmatprep.subr.mxu0 0.0
        %1885 = vmatpush1.msra.mxu0 0.0
        %1886 = vmatprep.subr.mxu0 0.0
        %1887 = vmatpush1.msra.mxu0 0.0
        %1888 = vmatprep.subr.mxu0 0.0
        %1889 = vmatpush1.msra.mxu0 0.0
        %1890 = vmatprep.subr.mxu0 0.0
        %1891 = vmatpush1.msra.mxu0 0.0
        %1892 = vmatprep.subr.mxu0 0.0
        %1893 = vmatpush1.msra.mxu0 0.0
        %1894 = vmatprep.subr.mxu0 0.0
        %1895 = vmatpush1.msra.mxu0 0.0
        %1896 = vmatprep.mubr.f32.mxu0 0.0
        %1897 = vmatmul.mubr.f32.gmra.mrb[0].mxu0 %v1737
        %v1898 = vpop.f32.mrb[0].mxu0
        %v1899 = vadd.f32 0.0, %v1898
        %v1900 = vpop.f32.mrb[0].mxu0
        %v1901 = vadd.f32 0.0, %v1900
        %1902 = vmatprep.mubr.f32.mxu0 0.0
        %1903 = vmatmul.mubr.f32.gmra.mrb[0].mxu0 %v1740
        %v1904 = vpop.f32.mrb[0].mxu0
        %v1905 = vadd.f32 0.0, %v1904
        %v1906 = vpop.f32.mrb[0].mxu0
        %v1907 = vadd.f32 0.0, %v1906
        %1908 = vmatprep.mubr.f32.mxu0 0.0
        %1909 = vmatmul.mubr.f32.gmra.mrb[0].mxu0 %v1743
        %v1910 = vpop.f32.mrb[0].mxu0
        %v1911 = vadd.f32 0.0, %v1910
        %v1912 = vpop.f32.mrb[0].mxu0
        %v1913 = vadd.f32 0.0, %v1912
        %1914 = vmatprep.mubr.f32.mxu0 0.0
        %1915 = vmatmul.mubr.f32.gmra.mrb[0].mxu0 %v1746
        %v1916 = vpop.f32.mrb[0].mxu0
        %v1917 = vadd.f32 0.0, %v1916
        %v1918 = vpop.f32.mrb[0].mxu0
        %v1919 = vadd.f32 0.0, %v1918
        %1920 = vmatprep.mubr.f32.mxu0 0.0
        %1921 = vmatmul.mubr.f32.gmra.mrb[0].mxu0 %v1749
        %v1922 = vpop.f32.mrb[0].mxu0
        %v1923 = vadd.f32 0.0, %v1922
        %v1924 = vpop.f32.mrb[0].mxu0
        %v1925 = vadd.f32 0.0, %v1924
        %1926 = vmatprep.mubr.f32.mxu0 0.0
        %1927 = vmatmul.mubr.f32.gmra.mrb[0].mxu0 %v1752
        %v1928 = vpop.f32.mrb[0].mxu0
        %v1929 = vadd.f32 0.0, %v1928
        %v1930 = vpop.f32.mrb[0].mxu0
        %v1931 = vadd.f32 0.0, %v1930
        %1932 = vmatprep.mubr.f32.mxu0 0.0
        %1933 = vmatmul.mubr.f32.gmra.mrb[0].mxu0 %v1755
        %v1934 = vpop.f32.mrb[0].mxu0
        %v1935 = vadd.f32 0.0, %v1934
        %v1936 = vpop.f32.mrb[0].mxu0
        %v1937 = vadd.f32 0.0, %v1936
        %1938 = vmatprep.mubr.f32.mxu0 0.0
        %1939 = vmatmul.mubr.f32.gmra.mrb[0].mxu0 %v1758
        %v1940 = vpop.f32.mrb[0].mxu0
        %v1941 = vadd.f32 0.0, %v1940
        %v1942 = vpop.f32.mrb[0].mxu0
        %v1943 = vadd.f32 0.0, %v1942
        %1944 = vmatprep.mubr.f32.mxu0 0.0
        %1945 = vmatmul.mubr.f32.gmra.mrb[0].mxu0 %v1761
        %v1946 = vpop.f32.mrb[0].mxu0
        %v1947 = vadd.f32 0.0, %v1946
        %v1948 = vpop.f32.mrb[0].mxu0
        %v1949 = vadd.f32 0.0, %v1948
        %1950 = vmatprep.mubr.f32.mxu0 0.0
        %1951 = vmatmul.mubr.f32.gmra.mrb[0].mxu0 %v1764
        %v1952 = vpop.f32.mrb[0].mxu0
        %v1953 = vadd.f32 0.0, %v1952
        %v1954 = vpop.f32.mrb[0].mxu0
        %v1955 = vadd.f32 0.0, %v1954
        %1956 = vmatprep.mubr.f32.mxu0 0.0
        %1957 = vmatmul.mubr.f32.gmra.mrb[0].mxu0 %v1767
        %v1958 = vpop.f32.mrb[0].mxu0
        %v1959 = vadd.f32 0.0, %v1958
        %v1960 = vpop.f32.mrb[0].mxu0
        %v1961 = vadd.f32 0.0, %v1960
        %1962 = vmatprep.mubr.f32.mxu0 0.0
        %1963 = vmatmul.mubr.f32.gmra.mrb[0].mxu0 %v1770
        %v1964 = vpop.f32.mrb[0].mxu0
        %v1965 = vadd.f32 0.0, %v1964
        %v1966 = vpop.f32.mrb[0].mxu0
        %v1967 = vadd.f32 0.0, %v1966
        %1968 = vmatprep.mubr.f32.mxu0 0.0
        %1969 = vmatmul.mubr.f32.gmra.mrb[0].mxu0 %v1773
        %v1970 = vpop.f32.mrb[0].mxu0
        %v1971 = vadd.f32 0.0, %v1970
        %v1972 = vpop.f32.mrb[0].mxu0
        %v1973 = vadd.f32 0.0, %v1972
        %1974 = vmatprep.mubr.f32.mxu0 0.0
        %1975 = vmatmul.mubr.f32.gmra.mrb[0].mxu0 %v1776
        %v1976 = vpop.f32.mrb[0].mxu0
        %v1977 = vadd.f32 0.0, %v1976
        %v1978 = vpop.f32.mrb[0].mxu0
        %v1979 = vadd.f32 0.0, %v1978
        %1980 = vmatprep.mubr.f32.mxu0 0.0
        %1981 = vmatmul.mubr.f32.gmra.mrb[0].mxu0 %v1779
        %v1982 = vpop.f32.mrb[0].mxu0
        %v1983 = vadd.f32 0.0, %v1982
        %v1984 = vpop.f32.mrb[0].mxu0
        %v1985 = vadd.f32 0.0, %v1984
        %1986 = vmatprep.mubr.f32.mxu0 0.0
        %1987 = vmatmul.mubr.f32.gmra.mrb[0].mxu0 %v1782
        %v1988 = vpop.f32.mrb[0].mxu0
        %v1989 = vadd.f32 0.0, %v1988
        %v1990 = vpop.f32.mrb[0].mxu0
        %v1991 = vadd.f32 0.0, %v1990
        %1992 = vmatprep.mubr.f32.mxu0 0.0
        %1993 = vmatmul.mubr.f32.gmra.mrb[0].mxu0 %v1785
        %v1994 = vpop.f32.mrb[0].mxu0
        %v1995 = vadd.f32 0.0, %v1994
        %v1996 = vpop.f32.mrb[0].mxu0
        %v1997 = vadd.f32 0.0, %v1996
        %1998 = vmatprep.mubr.f32.mxu0 0.0
        %1999 = vmatmul.mubr.f32.gmra.mrb[0].mxu0 %v1788
        %v2000 = vpop.f32.mrb[0].mxu0
        %v2001 = vadd.f32 0.0, %v2000
        %v2002 = vpop.f32.mrb[0].mxu0
        %v2003 = vadd.f32 0.0, %v2002
        %2004 = vmatprep.mubr.f32.mxu0 0.0
        %2005 = vmatmul.mubr.f32.gmra.mrb[0].mxu0 %v1791
        %v2006 = vpop.f32.mrb[0].mxu0
        %v2007 = vadd.f32 0.0, %v2006
        %v2008 = vpop.f32.mrb[0].mxu0
        %v2009 = vadd.f32 0.0, %v2008
        %2010 = vmatprep.mubr.f32.mxu0 0.0
        %2011 = vmatmul.mubr.f32.gmra.mrb[0].mxu0 %v1794
        %v2012 = vpop.f32.mrb[0].mxu0
        %v2013 = vadd.f32 0.0, %v2012
        %v2014 = vpop.f32.mrb[0].mxu0
        %v2015 = vadd.f32 0.0, %v2014
        %2016 = vmatprep.mubr.f32.mxu0 0.0
        %2017 = vmatmul.mubr.f32.gmra.mrb[0].mxu0 %v1797
        %v2018 = vpop.f32.mrb[0].mxu0
        %v2019 = vadd.f32 0.0, %v2018
        %v2020 = vpop.f32.mrb[0].mxu0
        %v2021 = vadd.f32 0.0, %v2020
        %2022 = vmatprep.mubr.f32.mxu0 0.0
        %2023 = vmatmul.mubr.f32.gmra.mrb[0].mxu0 %v1800
        %v2024 = vpop.f32.mrb[0].mxu0
        %v2025 = vadd.f32 0.0, %v2024
        %v2026 = vpop.f32.mrb[0].mxu0
        %v2027 = vadd.f32 0.0, %v2026
        %2028 = vmatprep.mubr.f32.mxu0 0.0
        %2029 = vmatmul.mubr.f32.gmra.mrb[0].mxu0 %v1803
        %v2030 = vpop.f32.mrb[0].mxu0
        %v2031 = vadd.f32 0.0, %v2030
        %v2032 = vpop.f32.mrb[0].mxu0
        %v2033 = vadd.f32 0.0, %v2032
        %2034 = vmatprep.mubr.f32.mxu0 0.0
        %2035 = vmatmul.mubr.f32.gmra.mrb[0].mxu0 %v1806
        %v2036 = vpop.f32.mrb[0].mxu0
        %v2037 = vadd.f32 0.0, %v2036
        %v2038 = vpop.f32.mrb[0].mxu0
        %v2039 = vadd.f32 0.0, %v2038
        %2040 = vmatprep.mubr.f32.mxu0 0.0
        %2041 = vmatmul.mubr.f32.gmra.mrb[0].mxu0 %v1809
        %v2042 = vpop.f32.mrb[0].mxu0
        %v2043 = vadd.f32 0.0, %v2042
        %v2044 = vpop.f32.mrb[0].mxu0
        %v2045 = vadd.f32 0.0, %v2044
        %2046 = vmatprep.mubr.f32.mxu0 0.0
        %2047 = vmatmul.mubr.f32.gmra.mrb[0].mxu0 %v1812
        %v2048 = vpop.f32.mrb[0].mxu0
        %v2049 = vadd.f32 0.0, %v2048
        %v2050 = vpop.f32.mrb[0].mxu0
        %v2051 = vadd.f32 0.0, %v2050
        %2052 = vmatprep.mubr.f32.mxu0 0.0
        %2053 = vmatmul.mubr.f32.gmra.mrb[0].mxu0 %v1815
        %v2054 = vpop.f32.mrb[0].mxu0
        %v2055 = vadd.f32 0.0, %v2054
        %v2056 = vpop.f32.mrb[0].mxu0
        %v2057 = vadd.f32 0.0, %v2056
        %2058 = vmatprep.mubr.f32.mxu0 0.0
        %2059 = vmatmul.mubr.f32.gmra.mrb[0].mxu0 %v1818
        %v2060 = vpop.f32.mrb[0].mxu0
        %v2061 = vadd.f32 0.0, %v2060
        %v2062 = vpop.f32.mrb[0].mxu0
        %v2063 = vadd.f32 0.0, %v2062
        %2064 = vmatprep.mubr.f32.mxu0 0.0
        %2065 = vmatmul.mubr.f32.gmra.mrb[0].mxu0 %v1821
        %v2066 = vpop.f32.mrb[0].mxu0
        %v2067 = vadd.f32 0.0, %v2066
        %v2068 = vpop.f32.mrb[0].mxu0
        %v2069 = vadd.f32 0.0, %v2068
        %2070 = vmatprep.mubr.f32.mxu0 0.0
        %2071 = vmatmul.mubr.f32.gmra.mrb[0].mxu0 %v1824
        %v2072 = vpop.f32.mrb[0].mxu0
        %v2073 = vadd.f32 0.0, %v2072
        %v2074 = vpop.f32.mrb[0].mxu0
        %v2075 = vadd.f32 0.0, %v2074
        %2076 = vmatprep.mubr.f32.mxu0 0.0
        %2077 = vmatmul.mubr.f32.gmra.mrb[0].mxu0 %v1827
        %v2078 = vpop.f32.mrb[0].mxu0
        %v2079 = vadd.f32 0.0, %v2078
        %v2080 = vpop.f32.mrb[0].mxu0
        %v2081 = vadd.f32 0.0, %v2080
        %2082 = vmatprep.mubr.f32.mxu0 0.0
        %2083 = vmatmul.mubr.f32.gmra.mrb[0].mxu0 %v1830
        %v2084 = vpop.f32.mrb[0].mxu0
        %v2085 = vadd.f32 0.0, %v2084
        %v2086 = vpop.f32.mrb[0].mxu0
        %v2087 = vadd.f32 0.0, %v2086
        %2088 = vdwg.mxu0
        %2089 = vxpose.xlu0.b32.start [1/16] %v1055, 128
        %2090 = vxpose.xlu0.b32.cont [2/16] %v1061, 128
        %2091 = vxpose.xlu0.b32.cont [3/16] %v1067, 128
        %2092 = vxpose.xlu0.b32.cont [4/16] %v1073, 128
        %2093 = vxpose.xlu0.b32.cont [5/16] 0.0, 128
        %2094 = vxpose.xlu0.b32.cont [6/16] 0.0, 128
        %2095 = vxpose.xlu0.b32.cont [7/16] 0.0, 128
        %2096 = vxpose.xlu0.b32.cont [8/16] 0.0, 128
        %2097 = vxpose.xlu0.b32.cont [9/16] 0.0, 128
        %2098 = vxpose.xlu0.b32.cont [10/16] 0.0, 128
        %2099 = vxpose.xlu0.b32.cont [11/16] 0.0, 128
        %2100 = vxpose.xlu0.b32.cont [12/16] 0.0, 128
        %2101 = vxpose.xlu0.b32.cont [13/16] 0.0, 128
        %2102 = vxpose.xlu0.b32.cont [14/16] 0.0, 128
        %2103 = vxpose.xlu0.b32.cont [15/16] 0.0, 128
        %2104 = vxpose.xlu0.b32.end [16/16] 0.0, 128
        %v2105 = vpop.trf.xlu0
        %v2106 = vpop.trf.xlu0
        %v2107 = vpop.trf.xlu0
        %v2108 = vpop.trf.xlu0
        %v2109 = vpop.trf.xlu0
        %v2110 = vpop.trf.xlu0
        %v2111 = vpop.trf.xlu0
        %v2112 = vpop.trf.xlu0
        %v2113 = vpop.trf.xlu0
        %v2114 = vpop.trf.xlu0
        %v2115 = vpop.trf.xlu0
        %v2116 = vpop.trf.xlu0
        %v2117 = vpop.trf.xlu0
        %v2118 = vpop.trf.xlu0
        %v2119 = vpop.trf.xlu0
        %v2120 = vpop.trf.xlu0
        %2121 = vxpose.xlu0.b32.start [1/16] %v1057, 128
        %2122 = vxpose.xlu0.b32.cont [2/16] %v1063, 128
        %2123 = vxpose.xlu0.b32.cont [3/16] %v1069, 128
        %2124 = vxpose.xlu0.b32.cont [4/16] %v1075, 128
        %2125 = vxpose.xlu0.b32.cont [5/16] 0.0, 128
        %2126 = vxpose.xlu0.b32.cont [6/16] 0.0, 128
        %2127 = vxpose.xlu0.b32.cont [7/16] 0.0, 128
        %2128 = vxpose.xlu0.b32.cont [8/16] 0.0, 128
        %2129 = vxpose.xlu0.b32.cont [9/16] 0.0, 128
        %2130 = vxpose.xlu0.b32.cont [10/16] 0.0, 128
        %2131 = vxpose.xlu0.b32.cont [11/16] 0.0, 128
        %2132 = vxpose.xlu0.b32.cont [12/16] 0.0, 128
        %2133 = vxpose.xlu0.b32.cont [13/16] 0.0, 128
        %2134 = vxpose.xlu0.b32.cont [14/16] 0.0, 128
        %2135 = vxpose.xlu0.b32.cont [15/16] 0.0, 128
        %2136 = vxpose.xlu0.b32.end [16/16] 0.0, 128
        %v2137 = vpop.trf.xlu0
        %v2138 = vpop.trf.xlu0
        %v2139 = vpop.trf.xlu0
        %v2140 = vpop.trf.xlu0
        %v2141 = vpop.trf.xlu0
        %v2142 = vpop.trf.xlu0
        %v2143 = vpop.trf.xlu0
        %v2144 = vpop.trf.xlu0
        %v2145 = vpop.trf.xlu0
        %v2146 = vpop.trf.xlu0
        %v2147 = vpop.trf.xlu0
        %v2148 = vpop.trf.xlu0
        %v2149 = vpop.trf.xlu0
        %v2150 = vpop.trf.xlu0
        %v2151 = vpop.trf.xlu0
        %v2152 = vpop.trf.xlu0
        %v2154 = vsel %vm1735, %v2105, 0
        %v2157 = vsel %vm1735, %v2106, 0
        %v2160 = vsel %vm1735, %v2107, 0
        %v2163 = vsel %vm1735, %v2108, 0
        %v2166 = vsel %vm1735, %v2109, 0
        %v2169 = vsel %vm1735, %v2110, 0
        %v2172 = vsel %vm1735, %v2111, 0
        %v2175 = vsel %vm1735, %v2112, 0
        %v2178 = vsel %vm1735, %v2113, 0
        %v2181 = vsel %vm1735, %v2114, 0
        %v2184 = vsel %vm1735, %v2115, 0
        %v2187 = vsel %vm1735, %v2116, 0
        %v2190 = vsel %vm1735, %v2117, 0
        %v2193 = vsel %vm1735, %v2118, 0
        %v2196 = vsel %vm1735, %v2119, 0
        %v2199 = vsel %vm1735, %v2120, 0
        %v2202 = vsel %vm1735, %v2137, 0
        %v2205 = vsel %vm1735, %v2138, 0
        %v2208 = vsel %vm1735, %v2139, 0
        %v2211 = vsel %vm1735, %v2140, 0
        %v2214 = vsel %vm1735, %v2141, 0
        %v2217 = vsel %vm1735, %v2142, 0
        %v2220 = vsel %vm1735, %v2143, 0
        %v2223 = vsel %vm1735, %v2144, 0
        %v2226 = vsel %vm1735, %v2145, 0
        %v2229 = vsel %vm1735, %v2146, 0
        %v2232 = vsel %vm1735, %v2147, 0
        %v2235 = vsel %vm1735, %v2148, 0
        %v2238 = vsel %vm1735, %v2149, 0
        %v2241 = vsel %vm1735, %v2150, 0
        %v2244 = vsel %vm1735, %v2151, 0
        %v2247 = vsel %vm1735, %v2152, 0
        %2249 = vmatprep.subr.mxu0 %v1330
        %2250 = vmatpush1.msra.mxu0 %v1328
        %2251 = vmatprep.subr.mxu0 %v1336
        %2252 = vmatpush1.msra.mxu0 %v1334
        %2253 = vmatprep.subr.mxu0 %v1342
        %2254 = vmatpush1.msra.mxu0 %v1340
        %2255 = vmatprep.subr.mxu0 %v1348
        %2256 = vmatpush1.msra.mxu0 %v1346
        %2257 = vmatprep.subr.mxu0 0.0
        %2258 = vmatpush1.msra.mxu0 0.0
        %2259 = vmatprep.subr.mxu0 0.0
        %2260 = vmatpush1.msra.mxu0 0.0
        %2261 = vmatprep.subr.mxu0 0.0
        %2262 = vmatpush1.msra.mxu0 0.0
        %2263 = vmatprep.subr.mxu0 0.0
        %2264 = vmatpush1.msra.mxu0 0.0
        %2265 = vmatprep.subr.mxu0 0.0
        %2266 = vmatpush1.msra.mxu0 0.0
        %2267 = vmatprep.subr.mxu0 0.0
        %2268 = vmatpush1.msra.mxu0 0.0
        %2269 = vmatprep.subr.mxu0 0.0
        %2270 = vmatpush1.msra.mxu0 0.0
        %2271 = vmatprep.subr.mxu0 0.0
        %2272 = vmatpush1.msra.mxu0 0.0
        %2273 = vmatprep.subr.mxu0 0.0
        %2274 = vmatpush1.msra.mxu0 0.0
        %2275 = vmatprep.subr.mxu0 0.0
        %2276 = vmatpush1.msra.mxu0 0.0
        %2277 = vmatprep.subr.mxu0 0.0
        %2278 = vmatpush1.msra.mxu0 0.0
        %2279 = vmatprep.subr.mxu0 0.0
        %2280 = vmatpush1.msra.mxu0 0.0
        %2281 = vmatprep.subr.mxu0 0.0
        %2282 = vmatpush1.msra.mxu0 0.0
        %2283 = vmatprep.subr.mxu0 0.0
        %2284 = vmatpush1.msra.mxu0 0.0
        %2285 = vmatprep.subr.mxu0 0.0
        %2286 = vmatpush1.msra.mxu0 0.0
        %2287 = vmatprep.subr.mxu0 0.0
        %2288 = vmatpush1.msra.mxu0 0.0
        %2289 = vmatprep.subr.mxu0 0.0
        %2290 = vmatpush1.msra.mxu0 0.0
        %2291 = vmatprep.subr.mxu0 0.0
        %2292 = vmatpush1.msra.mxu0 0.0
        %2293 = vmatprep.subr.mxu0 0.0
        %2294 = vmatpush1.msra.mxu0 0.0
        %2295 = vmatprep.subr.mxu0 0.0
        %2296 = vmatpush1.msra.mxu0 0.0
        %2297 = vmatprep.subr.mxu0 0.0
        %2298 = vmatpush1.msra.mxu0 0.0
        %2299 = vmatprep.subr.mxu0 0.0
        %2300 = vmatpush1.msra.mxu0 0.0
        %2301 = vmatprep.subr.mxu0 0.0
        %2302 = vmatpush1.msra.mxu0 0.0
        %2303 = vmatprep.subr.mxu0 0.0
        %2304 = vmatpush1.msra.mxu0 0.0
        %2305 = vmatprep.subr.mxu0 0.0
        %2306 = vmatpush1.msra.mxu0 0.0
        %2307 = vmatprep.subr.mxu0 0.0
        %2308 = vmatpush1.msra.mxu0 0.0
        %2309 = vmatprep.subr.mxu0 0.0
        %2310 = vmatpush1.msra.mxu0 0.0
        %2311 = vmatprep.subr.mxu0 0.0
        %2312 = vmatpush1.msra.mxu0 0.0
        %2313 = vmatprep.mubr.f32.mxu0 0.0
        %2314 = vmatmul.mubr.f32.gmra.mrb[0].mxu0 %v2154
        %v2315 = vpop.f32.mrb[0].mxu0
        %v2316 = vadd.f32 0.0, %v2315
        %v2317 = vpop.f32.mrb[0].mxu0
        %v2318 = vadd.f32 0.0, %v2317
        %2319 = vmatprep.mubr.f32.mxu0 0.0
        %2320 = vmatmul.mubr.f32.gmra.mrb[0].mxu0 %v2157
        %v2321 = vpop.f32.mrb[0].mxu0
        %v2322 = vadd.f32 0.0, %v2321
        %v2323 = vpop.f32.mrb[0].mxu0
        %v2324 = vadd.f32 0.0, %v2323
        %2325 = vmatprep.mubr.f32.mxu0 0.0
        %2326 = vmatmul.mubr.f32.gmra.mrb[0].mxu0 %v2160
        %v2327 = vpop.f32.mrb[0].mxu0
        %v2328 = vadd.f32 0.0, %v2327
        %v2329 = vpop.f32.mrb[0].mxu0
        %v2330 = vadd.f32 0.0, %v2329
        %2331 = vmatprep.mubr.f32.mxu0 0.0
        %2332 = vmatmul.mubr.f32.gmra.mrb[0].mxu0 %v2163
        %v2333 = vpop.f32.mrb[0].mxu0
        %v2334 = vadd.f32 0.0, %v2333
        %v2335 = vpop.f32.mrb[0].mxu0
        %v2336 = vadd.f32 0.0, %v2335
        %2337 = vmatprep.mubr.f32.mxu0 0.0
        %2338 = vmatmul.mubr.f32.gmra.mrb[0].mxu0 %v2166
        %v2339 = vpop.f32.mrb[0].mxu0
        %v2340 = vadd.f32 0.0, %v2339
        %v2341 = vpop.f32.mrb[0].mxu0
        %v2342 = vadd.f32 0.0, %v2341
        %2343 = vmatprep.mubr.f32.mxu0 0.0
        %2344 = vmatmul.mubr.f32.gmra.mrb[0].mxu0 %v2169
        %v2345 = vpop.f32.mrb[0].mxu0
        %v2346 = vadd.f32 0.0, %v2345
        %v2347 = vpop.f32.mrb[0].mxu0
        %v2348 = vadd.f32 0.0, %v2347
        %2349 = vmatprep.mubr.f32.mxu0 0.0
        %2350 = vmatmul.mubr.f32.gmra.mrb[0].mxu0 %v2172
        %v2351 = vpop.f32.mrb[0].mxu0
        %v2352 = vadd.f32 0.0, %v2351
        %v2353 = vpop.f32.mrb[0].mxu0
        %v2354 = vadd.f32 0.0, %v2353
        %2355 = vmatprep.mubr.f32.mxu0 0.0
        %2356 = vmatmul.mubr.f32.gmra.mrb[0].mxu0 %v2175
        %v2357 = vpop.f32.mrb[0].mxu0
        %v2358 = vadd.f32 0.0, %v2357
        %v2359 = vpop.f32.mrb[0].mxu0
        %v2360 = vadd.f32 0.0, %v2359
        %2361 = vmatprep.mubr.f32.mxu0 0.0
        %2362 = vmatmul.mubr.f32.gmra.mrb[0].mxu0 %v2178
        %v2363 = vpop.f32.mrb[0].mxu0
        %v2364 = vadd.f32 0.0, %v2363
        %v2365 = vpop.f32.mrb[0].mxu0
        %v2366 = vadd.f32 0.0, %v2365
        %2367 = vmatprep.mubr.f32.mxu0 0.0
        %2368 = vmatmul.mubr.f32.gmra.mrb[0].mxu0 %v2181
        %v2369 = vpop.f32.mrb[0].mxu0
        %v2370 = vadd.f32 0.0, %v2369
        %v2371 = vpop.f32.mrb[0].mxu0
        %v2372 = vadd.f32 0.0, %v2371
        %2373 = vmatprep.mubr.f32.mxu0 0.0
        %2374 = vmatmul.mubr.f32.gmra.mrb[0].mxu0 %v2184
        %v2375 = vpop.f32.mrb[0].mxu0
        %v2376 = vadd.f32 0.0, %v2375
        %v2377 = vpop.f32.mrb[0].mxu0
        %v2378 = vadd.f32 0.0, %v2377
        %2379 = vmatprep.mubr.f32.mxu0 0.0
        %2380 = vmatmul.mubr.f32.gmra.mrb[0].mxu0 %v2187
        %v2381 = vpop.f32.mrb[0].mxu0
        %v2382 = vadd.f32 0.0, %v2381
        %v2383 = vpop.f32.mrb[0].mxu0
        %v2384 = vadd.f32 0.0, %v2383
        %2385 = vmatprep.mubr.f32.mxu0 0.0
        %2386 = vmatmul.mubr.f32.gmra.mrb[0].mxu0 %v2190
        %v2387 = vpop.f32.mrb[0].mxu0
        %v2388 = vadd.f32 0.0, %v2387
        %v2389 = vpop.f32.mrb[0].mxu0
        %v2390 = vadd.f32 0.0, %v2389
        %2391 = vmatprep.mubr.f32.mxu0 0.0
        %2392 = vmatmul.mubr.f32.gmra.mrb[0].mxu0 %v2193
        %v2393 = vpop.f32.mrb[0].mxu0
        %v2394 = vadd.f32 0.0, %v2393
        %v2395 = vpop.f32.mrb[0].mxu0
        %v2396 = vadd.f32 0.0, %v2395
        %2397 = vmatprep.mubr.f32.mxu0 0.0
        %2398 = vmatmul.mubr.f32.gmra.mrb[0].mxu0 %v2196
        %v2399 = vpop.f32.mrb[0].mxu0
        %v2400 = vadd.f32 0.0, %v2399
        %v2401 = vpop.f32.mrb[0].mxu0
        %v2402 = vadd.f32 0.0, %v2401
        %2403 = vmatprep.mubr.f32.mxu0 0.0
        %2404 = vmatmul.mubr.f32.gmra.mrb[0].mxu0 %v2199
        %v2405 = vpop.f32.mrb[0].mxu0
        %v2406 = vadd.f32 0.0, %v2405
        %v2407 = vpop.f32.mrb[0].mxu0
        %v2408 = vadd.f32 0.0, %v2407
        %2409 = vmatprep.mubr.f32.mxu0 0.0
        %2410 = vmatmul.mubr.f32.gmra.mrb[0].mxu0 %v2202
        %v2411 = vpop.f32.mrb[0].mxu0
        %v2412 = vadd.f32 0.0, %v2411
        %v2413 = vpop.f32.mrb[0].mxu0
        %v2414 = vadd.f32 0.0, %v2413
        %2415 = vmatprep.mubr.f32.mxu0 0.0
        %2416 = vmatmul.mubr.f32.gmra.mrb[0].mxu0 %v2205
        %v2417 = vpop.f32.mrb[0].mxu0
        %v2418 = vadd.f32 0.0, %v2417
        %v2419 = vpop.f32.mrb[0].mxu0
        %v2420 = vadd.f32 0.0, %v2419
        %2421 = vmatprep.mubr.f32.mxu0 0.0
        %2422 = vmatmul.mubr.f32.gmra.mrb[0].mxu0 %v2208
        %v2423 = vpop.f32.mrb[0].mxu0
        %v2424 = vadd.f32 0.0, %v2423
        %v2425 = vpop.f32.mrb[0].mxu0
        %v2426 = vadd.f32 0.0, %v2425
        %2427 = vmatprep.mubr.f32.mxu0 0.0
        %2428 = vmatmul.mubr.f32.gmra.mrb[0].mxu0 %v2211
        %v2429 = vpop.f32.mrb[0].mxu0
        %v2430 = vadd.f32 0.0, %v2429
        %v2431 = vpop.f32.mrb[0].mxu0
        %v2432 = vadd.f32 0.0, %v2431
        %2433 = vmatprep.mubr.f32.mxu0 0.0
        %2434 = vmatmul.mubr.f32.gmra.mrb[0].mxu0 %v2214
        %v2435 = vpop.f32.mrb[0].mxu0
        %v2436 = vadd.f32 0.0, %v2435
        %v2437 = vpop.f32.mrb[0].mxu0
        %v2438 = vadd.f32 0.0, %v2437
        %2439 = vmatprep.mubr.f32.mxu0 0.0
        %2440 = vmatmul.mubr.f32.gmra.mrb[0].mxu0 %v2217
        %v2441 = vpop.f32.mrb[0].mxu0
        %v2442 = vadd.f32 0.0, %v2441
        %v2443 = vpop.f32.mrb[0].mxu0
        %v2444 = vadd.f32 0.0, %v2443
        %2445 = vmatprep.mubr.f32.mxu0 0.0
        %2446 = vmatmul.mubr.f32.gmra.mrb[0].mxu0 %v2220
        %v2447 = vpop.f32.mrb[0].mxu0
        %v2448 = vadd.f32 0.0, %v2447
        %v2449 = vpop.f32.mrb[0].mxu0
        %v2450 = vadd.f32 0.0, %v2449
        %2451 = vmatprep.mubr.f32.mxu0 0.0
        %2452 = vmatmul.mubr.f32.gmra.mrb[0].mxu0 %v2223
        %v2453 = vpop.f32.mrb[0].mxu0
        %v2454 = vadd.f32 0.0, %v2453
        %v2455 = vpop.f32.mrb[0].mxu0
        %v2456 = vadd.f32 0.0, %v2455
        %2457 = vmatprep.mubr.f32.mxu0 0.0
        %2458 = vmatmul.mubr.f32.gmra.mrb[0].mxu0 %v2226
        %v2459 = vpop.f32.mrb[0].mxu0
        %v2460 = vadd.f32 0.0, %v2459
        %v2461 = vpop.f32.mrb[0].mxu0
        %v2462 = vadd.f32 0.0, %v2461
        %2463 = vmatprep.mubr.f32.mxu0 0.0
        %2464 = vmatmul.mubr.f32.gmra.mrb[0].mxu0 %v2229
        %v2465 = vpop.f32.mrb[0].mxu0
        %v2466 = vadd.f32 0.0, %v2465
        %v2467 = vpop.f32.mrb[0].mxu0
        %v2468 = vadd.f32 0.0, %v2467
        %2469 = vmatprep.mubr.f32.mxu0 0.0
        %2470 = vmatmul.mubr.f32.gmra.mrb[0].mxu0 %v2232
        %v2471 = vpop.f32.mrb[0].mxu0
        %v2472 = vadd.f32 0.0, %v2471
        %v2473 = vpop.f32.mrb[0].mxu0
        %v2474 = vadd.f32 0.0, %v2473
        %2475 = vmatprep.mubr.f32.mxu0 0.0
        %2476 = vmatmul.mubr.f32.gmra.mrb[0].mxu0 %v2235
        %v2477 = vpop.f32.mrb[0].mxu0
        %v2478 = vadd.f32 0.0, %v2477
        %v2479 = vpop.f32.mrb[0].mxu0
        %v2480 = vadd.f32 0.0, %v2479
        %2481 = vmatprep.mubr.f32.mxu0 0.0
        %2482 = vmatmul.mubr.f32.gmra.mrb[0].mxu0 %v2238
        %v2483 = vpop.f32.mrb[0].mxu0
        %v2484 = vadd.f32 0.0, %v2483
        %v2485 = vpop.f32.mrb[0].mxu0
        %v2486 = vadd.f32 0.0, %v2485
        %2487 = vmatprep.mubr.f32.mxu0 0.0
        %2488 = vmatmul.mubr.f32.gmra.mrb[0].mxu0 %v2241
        %v2489 = vpop.f32.mrb[0].mxu0
        %v2490 = vadd.f32 0.0, %v2489
        %v2491 = vpop.f32.mrb[0].mxu0
        %v2492 = vadd.f32 0.0, %v2491
        %2493 = vmatprep.mubr.f32.mxu0 0.0
        %2494 = vmatmul.mubr.f32.gmra.mrb[0].mxu0 %v2244
        %v2495 = vpop.f32.mrb[0].mxu0
        %v2496 = vadd.f32 0.0, %v2495
        %v2497 = vpop.f32.mrb[0].mxu0
        %v2498 = vadd.f32 0.0, %v2497
        %2499 = vmatprep.mubr.f32.mxu0 0.0
        %2500 = vmatmul.mubr.f32.gmra.mrb[0].mxu0 %v2247
        %v2501 = vpop.f32.mrb[0].mxu0
        %v2502 = vadd.f32 0.0, %v2501
        %v2503 = vpop.f32.mrb[0].mxu0
        %v2504 = vadd.f32 0.0, %v2503
        %2505 = vdwg.mxu0
        %2506 = vxpose.xlu0.b32.start [1/16] %v1079, 128
        %2507 = vxpose.xlu0.b32.cont [2/16] %v1085, 128
        %2508 = vxpose.xlu0.b32.cont [3/16] %v1091, 128
        %2509 = vxpose.xlu0.b32.cont [4/16] %v1097, 128
        %2510 = vxpose.xlu0.b32.cont [5/16] 0.0, 128
        %2511 = vxpose.xlu0.b32.cont [6/16] 0.0, 128
        %2512 = vxpose.xlu0.b32.cont [7/16] 0.0, 128
        %2513 = vxpose.xlu0.b32.cont [8/16] 0.0, 128
        %2514 = vxpose.xlu0.b32.cont [9/16] 0.0, 128
        %2515 = vxpose.xlu0.b32.cont [10/16] 0.0, 128
        %2516 = vxpose.xlu0.b32.cont [11/16] 0.0, 128
        %2517 = vxpose.xlu0.b32.cont [12/16] 0.0, 128
        %2518 = vxpose.xlu0.b32.cont [13/16] 0.0, 128
        %2519 = vxpose.xlu0.b32.cont [14/16] 0.0, 128
        %2520 = vxpose.xlu0.b32.cont [15/16] 0.0, 128
        %2521 = vxpose.xlu0.b32.end [16/16] 0.0, 128
        %v2522 = vpop.trf.xlu0
        %v2523 = vpop.trf.xlu0
        %v2524 = vpop.trf.xlu0
        %v2525 = vpop.trf.xlu0
        %v2526 = vpop.trf.xlu0
        %v2527 = vpop.trf.xlu0
        %v2528 = vpop.trf.xlu0
        %v2529 = vpop.trf.xlu0
        %v2530 = vpop.trf.xlu0
        %v2531 = vpop.trf.xlu0
        %v2532 = vpop.trf.xlu0
        %v2533 = vpop.trf.xlu0
        %v2534 = vpop.trf.xlu0
        %v2535 = vpop.trf.xlu0
        %v2536 = vpop.trf.xlu0
        %v2537 = vpop.trf.xlu0
        %2538 = vxpose.xlu0.b32.start [1/16] %v1081, 128
        %2539 = vxpose.xlu0.b32.cont [2/16] %v1087, 128
        %2540 = vxpose.xlu0.b32.cont [3/16] %v1093, 128
        %2541 = vxpose.xlu0.b32.cont [4/16] %v1099, 128
        %2542 = vxpose.xlu0.b32.cont [5/16] 0.0, 128
        %2543 = vxpose.xlu0.b32.cont [6/16] 0.0, 128
        %2544 = vxpose.xlu0.b32.cont [7/16] 0.0, 128
        %2545 = vxpose.xlu0.b32.cont [8/16] 0.0, 128
        %2546 = vxpose.xlu0.b32.cont [9/16] 0.0, 128
        %2547 = vxpose.xlu0.b32.cont [10/16] 0.0, 128
        %2548 = vxpose.xlu0.b32.cont [11/16] 0.0, 128
        %2549 = vxpose.xlu0.b32.cont [12/16] 0.0, 128
        %2550 = vxpose.xlu0.b32.cont [13/16] 0.0, 128
        %2551 = vxpose.xlu0.b32.cont [14/16] 0.0, 128
        %2552 = vxpose.xlu0.b32.cont [15/16] 0.0, 128
        %2553 = vxpose.xlu0.b32.end [16/16] 0.0, 128
        %v2554 = vpop.trf.xlu0
        %v2555 = vpop.trf.xlu0
        %v2556 = vpop.trf.xlu0
        %v2557 = vpop.trf.xlu0
        %v2558 = vpop.trf.xlu0
        %v2559 = vpop.trf.xlu0
        %v2560 = vpop.trf.xlu0
        %v2561 = vpop.trf.xlu0
        %v2562 = vpop.trf.xlu0
        %v2563 = vpop.trf.xlu0
        %v2564 = vpop.trf.xlu0
        %v2565 = vpop.trf.xlu0
        %v2566 = vpop.trf.xlu0
        %v2567 = vpop.trf.xlu0
        %v2568 = vpop.trf.xlu0
        %v2569 = vpop.trf.xlu0
        %v2571 = vsel %vm1735, %v2522, 0
        %v2574 = vsel %vm1735, %v2523, 0
        %v2577 = vsel %vm1735, %v2524, 0
        %v2580 = vsel %vm1735, %v2525, 0
        %v2583 = vsel %vm1735, %v2526, 0
        %v2586 = vsel %vm1735, %v2527, 0
        %v2589 = vsel %vm1735, %v2528, 0
        %v2592 = vsel %vm1735, %v2529, 0
        %v2595 = vsel %vm1735, %v2530, 0
        %v2598 = vsel %vm1735, %v2531, 0
        %v2601 = vsel %vm1735, %v2532, 0
        %v2604 = vsel %vm1735, %v2533, 0
        %v2607 = vsel %vm1735, %v2534, 0
        %v2610 = vsel %vm1735, %v2535, 0
        %v2613 = vsel %vm1735, %v2536, 0
        %v2616 = vsel %vm1735, %v2537, 0
        %v2619 = vsel %vm1735, %v2554, 0
        %v2622 = vsel %vm1735, %v2555, 0
        %v2625 = vsel %vm1735, %v2556, 0
        %v2628 = vsel %vm1735, %v2557, 0
        %v2631 = vsel %vm1735, %v2558, 0
        %v2634 = vsel %vm1735, %v2559, 0
        %v2637 = vsel %vm1735, %v2560, 0
        %v2640 = vsel %vm1735, %v2561, 0
        %v2643 = vsel %vm1735, %v2562, 0
        %v2646 = vsel %vm1735, %v2563, 0
        %v2649 = vsel %vm1735, %v2564, 0
        %v2652 = vsel %vm1735, %v2565, 0
        %v2655 = vsel %vm1735, %v2566, 0
        %v2658 = vsel %vm1735, %v2567, 0
        %v2661 = vsel %vm1735, %v2568, 0
        %v2664 = vsel %vm1735, %v2569, 0
        %2666 = vmatprep.subr.mxu0 %v1354
        %2667 = vmatpush1.msra.mxu0 %v1352
        %2668 = vmatprep.subr.mxu0 %v1360
        %2669 = vmatpush1.msra.mxu0 %v1358
        %2670 = vmatprep.subr.mxu0 %v1366
        %2671 = vmatpush1.msra.mxu0 %v1364
        %2672 = vmatprep.subr.mxu0 %v1372
        %2673 = vmatpush1.msra.mxu0 %v1370
        %2674 = vmatprep.subr.mxu0 0.0
        %2675 = vmatpush1.msra.mxu0 0.0
        %2676 = vmatprep.subr.mxu0 0.0
        %2677 = vmatpush1.msra.mxu0 0.0
        %2678 = vmatprep.subr.mxu0 0.0
        %2679 = vmatpush1.msra.mxu0 0.0
        %2680 = vmatprep.subr.mxu0 0.0
        %2681 = vmatpush1.msra.mxu0 0.0
        %2682 = vmatprep.subr.mxu0 0.0
        %2683 = vmatpush1.msra.mxu0 0.0
        %2684 = vmatprep.subr.mxu0 0.0
        %2685 = vmatpush1.msra.mxu0 0.0
        %2686 = vmatprep.subr.mxu0 0.0
        %2687 = vmatpush1.msra.mxu0 0.0
        %2688 = vmatprep.subr.mxu0 0.0
        %2689 = vmatpush1.msra.mxu0 0.0
        %2690 = vmatprep.subr.mxu0 0.0
        %2691 = vmatpush1.msra.mxu0 0.0
        %2692 = vmatprep.subr.mxu0 0.0
        %2693 = vmatpush1.msra.mxu0 0.0
        %2694 = vmatprep.subr.mxu0 0.0
        %2695 = vmatpush1.msra.mxu0 0.0
        %2696 = vmatprep.subr.mxu0 0.0
        %2697 = vmatpush1.msra.mxu0 0.0
        %2698 = vmatprep.subr.mxu0 0.0
        %2699 = vmatpush1.msra.mxu0 0.0
        %2700 = vmatprep.subr.mxu0 0.0
        %2701 = vmatpush1.msra.mxu0 0.0
        %2702 = vmatprep.subr.mxu0 0.0
        %2703 = vmatpush1.msra.mxu0 0.0
        %2704 = vmatprep.subr.mxu0 0.0
        %2705 = vmatpush1.msra.mxu0 0.0
        %2706 = vmatprep.subr.mxu0 0.0
        %2707 = vmatpush1.msra.mxu0 0.0
        %2708 = vmatprep.subr.mxu0 0.0
        %2709 = vmatpush1.msra.mxu0 0.0
        %2710 = vmatprep.subr.mxu0 0.0
        %2711 = vmatpush1.msra.mxu0 0.0
        %2712 = vmatprep.subr.mxu0 0.0
        %2713 = vmatpush1.msra.mxu0 0.0
        %2714 = vmatprep.subr.mxu0 0.0
        %2715 = vmatpush1.msra.mxu0 0.0
        %2716 = vmatprep.subr.mxu0 0.0
        %2717 = vmatpush1.msra.mxu0 0.0
        %2718 = vmatprep.subr.mxu0 0.0
        %2719 = vmatpush1.msra.mxu0 0.0
        %2720 = vmatprep.subr.mxu0 0.0
        %2721 = vmatpush1.msra.mxu0 0.0
        %2722 = vmatprep.subr.mxu0 0.0
        %2723 = vmatpush1.msra.mxu0 0.0
        %2724 = vmatprep.subr.mxu0 0.0
        %2725 = vmatpush1.msra.mxu0 0.0
        %2726 = vmatprep.subr.mxu0 0.0
        %2727 = vmatpush1.msra.mxu0 0.0
        %2728 = vmatprep.subr.mxu0 0.0
        %2729 = vmatpush1.msra.mxu0 0.0
        %2730 = vmatprep.mubr.f32.mxu0 0.0
        %2731 = vmatmul.mubr.f32.gmra.mrb[0].mxu0 %v2571
        %v2732 = vpop.f32.mrb[0].mxu0
        %v2733 = vadd.f32 0.0, %v2732
        %v2734 = vpop.f32.mrb[0].mxu0
        %v2735 = vadd.f32 0.0, %v2734
        %2736 = vmatprep.mubr.f32.mxu0 0.0
        %2737 = vmatmul.mubr.f32.gmra.mrb[0].mxu0 %v2574
        %v2738 = vpop.f32.mrb[0].mxu0
        %v2739 = vadd.f32 0.0, %v2738
        %v2740 = vpop.f32.mrb[0].mxu0
        %v2741 = vadd.f32 0.0, %v2740
        %2742 = vmatprep.mubr.f32.mxu0 0.0
        %2743 = vmatmul.mubr.f32.gmra.mrb[0].mxu0 %v2577
        %v2744 = vpop.f32.mrb[0].mxu0
        %v2745 = vadd.f32 0.0, %v2744
        %v2746 = vpop.f32.mrb[0].mxu0
        %v2747 = vadd.f32 0.0, %v2746
        %2748 = vmatprep.mubr.f32.mxu0 0.0
        %2749 = vmatmul.mubr.f32.gmra.mrb[0].mxu0 %v2580
        %v2750 = vpop.f32.mrb[0].mxu0
        %v2751 = vadd.f32 0.0, %v2750
        %v2752 = vpop.f32.mrb[0].mxu0
        %v2753 = vadd.f32 0.0, %v2752
        %2754 = vmatprep.mubr.f32.mxu0 0.0
        %2755 = vmatmul.mubr.f32.gmra.mrb[0].mxu0 %v2583
        %v2756 = vpop.f32.mrb[0].mxu0
        %v2757 = vadd.f32 0.0, %v2756
        %v2758 = vpop.f32.mrb[0].mxu0
        %v2759 = vadd.f32 0.0, %v2758
        %2760 = vmatprep.mubr.f32.mxu0 0.0
        %2761 = vmatmul.mubr.f32.gmra.mrb[0].mxu0 %v2586
        %v2762 = vpop.f32.mrb[0].mxu0
        %v2763 = vadd.f32 0.0, %v2762
        %v2764 = vpop.f32.mrb[0].mxu0
        %v2765 = vadd.f32 0.0, %v2764
        %2766 = vmatprep.mubr.f32.mxu0 0.0
        %2767 = vmatmul.mubr.f32.gmra.mrb[0].mxu0 %v2589
        %v2768 = vpop.f32.mrb[0].mxu0
        %v2769 = vadd.f32 0.0, %v2768
        %v2770 = vpop.f32.mrb[0].mxu0
        %v2771 = vadd.f32 0.0, %v2770
        %2772 = vmatprep.mubr.f32.mxu0 0.0
        %2773 = vmatmul.mubr.f32.gmra.mrb[0].mxu0 %v2592
        %v2774 = vpop.f32.mrb[0].mxu0
        %v2775 = vadd.f32 0.0, %v2774
        %v2776 = vpop.f32.mrb[0].mxu0
        %v2777 = vadd.f32 0.0, %v2776
        %2778 = vmatprep.mubr.f32.mxu0 0.0
        %2779 = vmatmul.mubr.f32.gmra.mrb[0].mxu0 %v2595
        %v2780 = vpop.f32.mrb[0].mxu0
        %v2781 = vadd.f32 0.0, %v2780
        %v2782 = vpop.f32.mrb[0].mxu0
        %v2783 = vadd.f32 0.0, %v2782
        %2784 = vmatprep.mubr.f32.mxu0 0.0
        %2785 = vmatmul.mubr.f32.gmra.mrb[0].mxu0 %v2598
        %v2786 = vpop.f32.mrb[0].mxu0
        %v2787 = vadd.f32 0.0, %v2786
        %v2788 = vpop.f32.mrb[0].mxu0
        %v2789 = vadd.f32 0.0, %v2788
        %2790 = vmatprep.mubr.f32.mxu0 0.0
        %2791 = vmatmul.mubr.f32.gmra.mrb[0].mxu0 %v2601
        %v2792 = vpop.f32.mrb[0].mxu0
        %v2793 = vadd.f32 0.0, %v2792
        %v2794 = vpop.f32.mrb[0].mxu0
        %v2795 = vadd.f32 0.0, %v2794
        %2796 = vmatprep.mubr.f32.mxu0 0.0
        %2797 = vmatmul.mubr.f32.gmra.mrb[0].mxu0 %v2604
        %v2798 = vpop.f32.mrb[0].mxu0
        %v2799 = vadd.f32 0.0, %v2798
        %v2800 = vpop.f32.mrb[0].mxu0
        %v2801 = vadd.f32 0.0, %v2800
        %2802 = vmatprep.mubr.f32.mxu0 0.0
        %2803 = vmatmul.mubr.f32.gmra.mrb[0].mxu0 %v2607
        %v2804 = vpop.f32.mrb[0].mxu0
        %v2805 = vadd.f32 0.0, %v2804
        %v2806 = vpop.f32.mrb[0].mxu0
        %v2807 = vadd.f32 0.0, %v2806
        %2808 = vmatprep.mubr.f32.mxu0 0.0
        %2809 = vmatmul.mubr.f32.gmra.mrb[0].mxu0 %v2610
        %v2810 = vpop.f32.mrb[0].mxu0
        %v2811 = vadd.f32 0.0, %v2810
        %v2812 = vpop.f32.mrb[0].mxu0
        %v2813 = vadd.f32 0.0, %v2812
        %2814 = vmatprep.mubr.f32.mxu0 0.0
        %2815 = vmatmul.mubr.f32.gmra.mrb[0].mxu0 %v2613
        %v2816 = vpop.f32.mrb[0].mxu0
        %v2817 = vadd.f32 0.0, %v2816
        %v2818 = vpop.f32.mrb[0].mxu0
        %v2819 = vadd.f32 0.0, %v2818
        %2820 = vmatprep.mubr.f32.mxu0 0.0
        %2821 = vmatmul.mubr.f32.gmra.mrb[0].mxu0 %v2616
        %v2822 = vpop.f32.mrb[0].mxu0
        %v2823 = vadd.f32 0.0, %v2822
        %v2824 = vpop.f32.mrb[0].mxu0
        %v2825 = vadd.f32 0.0, %v2824
        %2826 = vmatprep.mubr.f32.mxu0 0.0
        %2827 = vmatmul.mubr.f32.gmra.mrb[0].mxu0 %v2619
        %v2828 = vpop.f32.mrb[0].mxu0
        %v2829 = vadd.f32 0.0, %v2828
        %v2830 = vpop.f32.mrb[0].mxu0
        %v2831 = vadd.f32 0.0, %v2830
        %2832 = vmatprep.mubr.f32.mxu0 0.0
        %2833 = vmatmul.mubr.f32.gmra.mrb[0].mxu0 %v2622
        %v2834 = vpop.f32.mrb[0].mxu0
        %v2835 = vadd.f32 0.0, %v2834
        %v2836 = vpop.f32.mrb[0].mxu0
        %v2837 = vadd.f32 0.0, %v2836
        %2838 = vmatprep.mubr.f32.mxu0 0.0
        %2839 = vmatmul.mubr.f32.gmra.mrb[0].mxu0 %v2625
        %v2840 = vpop.f32.mrb[0].mxu0
        %v2841 = vadd.f32 0.0, %v2840
        %v2842 = vpop.f32.mrb[0].mxu0
        %v2843 = vadd.f32 0.0, %v2842
        %2844 = vmatprep.mubr.f32.mxu0 0.0
        %2845 = vmatmul.mubr.f32.gmra.mrb[0].mxu0 %v2628
        %v2846 = vpop.f32.mrb[0].mxu0
        %v2847 = vadd.f32 0.0, %v2846
        %v2848 = vpop.f32.mrb[0].mxu0
        %v2849 = vadd.f32 0.0, %v2848
        %2850 = vmatprep.mubr.f32.mxu0 0.0
        %2851 = vmatmul.mubr.f32.gmra.mrb[0].mxu0 %v2631
        %v2852 = vpop.f32.mrb[0].mxu0
        %v2853 = vadd.f32 0.0, %v2852
        %v2854 = vpop.f32.mrb[0].mxu0
        %v2855 = vadd.f32 0.0, %v2854
        %2856 = vmatprep.mubr.f32.mxu0 0.0
        %2857 = vmatmul.mubr.f32.gmra.mrb[0].mxu0 %v2634
        %v2858 = vpop.f32.mrb[0].mxu0
        %v2859 = vadd.f32 0.0, %v2858
        %v2860 = vpop.f32.mrb[0].mxu0
        %v2861 = vadd.f32 0.0, %v2860
        %2862 = vmatprep.mubr.f32.mxu0 0.0
        %2863 = vmatmul.mubr.f32.gmra.mrb[0].mxu0 %v2637
        %v2864 = vpop.f32.mrb[0].mxu0
        %v2865 = vadd.f32 0.0, %v2864
        %v2866 = vpop.f32.mrb[0].mxu0
        %v2867 = vadd.f32 0.0, %v2866
        %2868 = vmatprep.mubr.f32.mxu0 0.0
        %2869 = vmatmul.mubr.f32.gmra.mrb[0].mxu0 %v2640
        %v2870 = vpop.f32.mrb[0].mxu0
        %v2871 = vadd.f32 0.0, %v2870
        %v2872 = vpop.f32.mrb[0].mxu0
        %v2873 = vadd.f32 0.0, %v2872
        %2874 = vmatprep.mubr.f32.mxu0 0.0
        %2875 = vmatmul.mubr.f32.gmra.mrb[0].mxu0 %v2643
        %v2876 = vpop.f32.mrb[0].mxu0
        %v2877 = vadd.f32 0.0, %v2876
        %v2878 = vpop.f32.mrb[0].mxu0
        %v2879 = vadd.f32 0.0, %v2878
        %2880 = vmatprep.mubr.f32.mxu0 0.0
        %2881 = vmatmul.mubr.f32.gmra.mrb[0].mxu0 %v2646
        %v2882 = vpop.f32.mrb[0].mxu0
        %v2883 = vadd.f32 0.0, %v2882
        %v2884 = vpop.f32.mrb[0].mxu0
        %v2885 = vadd.f32 0.0, %v2884
        %2886 = vmatprep.mubr.f32.mxu0 0.0
        %2887 = vmatmul.mubr.f32.gmra.mrb[0].mxu0 %v2649
        %v2888 = vpop.f32.mrb[0].mxu0
        %v2889 = vadd.f32 0.0, %v2888
        %v2890 = vpop.f32.mrb[0].mxu0
        %v2891 = vadd.f32 0.0, %v2890
        %2892 = vmatprep.mubr.f32.mxu0 0.0
        %2893 = vmatmul.mubr.f32.gmra.mrb[0].mxu0 %v2652
        %v2894 = vpop.f32.mrb[0].mxu0
        %v2895 = vadd.f32 0.0, %v2894
        %v2896 = vpop.f32.mrb[0].mxu0
        %v2897 = vadd.f32 0.0, %v2896
        %2898 = vmatprep.mubr.f32.mxu0 0.0
        %2899 = vmatmul.mubr.f32.gmra.mrb[0].mxu0 %v2655
        %v2900 = vpop.f32.mrb[0].mxu0
        %v2901 = vadd.f32 0.0, %v2900
        %v2902 = vpop.f32.mrb[0].mxu0
        %v2903 = vadd.f32 0.0, %v2902
        %2904 = vmatprep.mubr.f32.mxu0 0.0
        %2905 = vmatmul.mubr.f32.gmra.mrb[0].mxu0 %v2658
        %v2906 = vpop.f32.mrb[0].mxu0
        %v2907 = vadd.f32 0.0, %v2906
        %v2908 = vpop.f32.mrb[0].mxu0
        %v2909 = vadd.f32 0.0, %v2908
        %2910 = vmatprep.mubr.f32.mxu0 0.0
        %2911 = vmatmul.mubr.f32.gmra.mrb[0].mxu0 %v2661
        %v2912 = vpop.f32.mrb[0].mxu0
        %v2913 = vadd.f32 0.0, %v2912
        %v2914 = vpop.f32.mrb[0].mxu0
        %v2915 = vadd.f32 0.0, %v2914
        %2916 = vmatprep.mubr.f32.mxu0 0.0
        %2917 = vmatmul.mubr.f32.gmra.mrb[0].mxu0 %v2664
        %v2918 = vpop.f32.mrb[0].mxu0
        %v2919 = vadd.f32 0.0, %v2918
        %v2920 = vpop.f32.mrb[0].mxu0
        %v2921 = vadd.f32 0.0, %v2920
        %2922 = vdwg.mxu0
        %2923 = vxpose.xlu0.b32.start [1/16] %v1103, 128
        %2924 = vxpose.xlu0.b32.cont [2/16] %v1109, 128
        %2925 = vxpose.xlu0.b32.cont [3/16] %v1115, 128
        %2926 = vxpose.xlu0.b32.cont [4/16] %v1121, 128
        %2927 = vxpose.xlu0.b32.cont [5/16] 0.0, 128
        %2928 = vxpose.xlu0.b32.cont [6/16] 0.0, 128
        %2929 = vxpose.xlu0.b32.cont [7/16] 0.0, 128
        %2930 = vxpose.xlu0.b32.cont [8/16] 0.0, 128
        %2931 = vxpose.xlu0.b32.cont [9/16] 0.0, 128
        %2932 = vxpose.xlu0.b32.cont [10/16] 0.0, 128
        %2933 = vxpose.xlu0.b32.cont [11/16] 0.0, 128
        %2934 = vxpose.xlu0.b32.cont [12/16] 0.0, 128
        %2935 = vxpose.xlu0.b32.cont [13/16] 0.0, 128
        %2936 = vxpose.xlu0.b32.cont [14/16] 0.0, 128
        %2937 = vxpose.xlu0.b32.cont [15/16] 0.0, 128
        %2938 = vxpose.xlu0.b32.end [16/16] 0.0, 128
        %v2939 = vpop.trf.xlu0
        %v2940 = vpop.trf.xlu0
        %v2941 = vpop.trf.xlu0
        %v2942 = vpop.trf.xlu0
        %v2943 = vpop.trf.xlu0
        %v2944 = vpop.trf.xlu0
        %v2945 = vpop.trf.xlu0
        %v2946 = vpop.trf.xlu0
        %v2947 = vpop.trf.xlu0
        %v2948 = vpop.trf.xlu0
        %v2949 = vpop.trf.xlu0
        %v2950 = vpop.trf.xlu0
        %v2951 = vpop.trf.xlu0
        %v2952 = vpop.trf.xlu0
        %v2953 = vpop.trf.xlu0
        %v2954 = vpop.trf.xlu0
        %2955 = vxpose.xlu0.b32.start [1/16] %v1105, 128
        %2956 = vxpose.xlu0.b32.cont [2/16] %v1111, 128
        %2957 = vxpose.xlu0.b32.cont [3/16] %v1117, 128
        %2958 = vxpose.xlu0.b32.cont [4/16] %v1123, 128
        %2959 = vxpose.xlu0.b32.cont [5/16] 0.0, 128
        %2960 = vxpose.xlu0.b32.cont [6/16] 0.0, 128
        %2961 = vxpose.xlu0.b32.cont [7/16] 0.0, 128
        %2962 = vxpose.xlu0.b32.cont [8/16] 0.0, 128
        %2963 = vxpose.xlu0.b32.cont [9/16] 0.0, 128
        %2964 = vxpose.xlu0.b32.cont [10/16] 0.0, 128
        %2965 = vxpose.xlu0.b32.cont [11/16] 0.0, 128
        %2966 = vxpose.xlu0.b32.cont [12/16] 0.0, 128
        %2967 = vxpose.xlu0.b32.cont [13/16] 0.0, 128
        %2968 = vxpose.xlu0.b32.cont [14/16] 0.0, 128
        %2969 = vxpose.xlu0.b32.cont [15/16] 0.0, 128
        %2970 = vxpose.xlu0.b32.end [16/16] 0.0, 128
        %v2971 = vpop.trf.xlu0
        %v2972 = vpop.trf.xlu0
        %v2973 = vpop.trf.xlu0
        %v2974 = vpop.trf.xlu0
        %v2975 = vpop.trf.xlu0
        %v2976 = vpop.trf.xlu0
        %v2977 = vpop.trf.xlu0
        %v2978 = vpop.trf.xlu0
        %v2979 = vpop.trf.xlu0
        %v2980 = vpop.trf.xlu0
        %v2981 = vpop.trf.xlu0
        %v2982 = vpop.trf.xlu0
        %v2983 = vpop.trf.xlu0
        %v2984 = vpop.trf.xlu0
        %v2985 = vpop.trf.xlu0
        %v2986 = vpop.trf.xlu0
        %v2988 = vsel %vm1735, %v2939, 0
        %v2991 = vsel %vm1735, %v2940, 0
        %v2994 = vsel %vm1735, %v2941, 0
        %v2997 = vsel %vm1735, %v2942, 0
        %v3000 = vsel %vm1735, %v2943, 0
        %v3003 = vsel %vm1735, %v2944, 0
        %v3006 = vsel %vm1735, %v2945, 0
        %v3009 = vsel %vm1735, %v2946, 0
        %v3012 = vsel %vm1735, %v2947, 0
        %v3015 = vsel %vm1735, %v2948, 0
        %v3018 = vsel %vm1735, %v2949, 0
        %v3021 = vsel %vm1735, %v2950, 0
        %v3024 = vsel %vm1735, %v2951, 0
        %v3027 = vsel %vm1735, %v2952, 0
        %v3030 = vsel %vm1735, %v2953, 0
        %v3033 = vsel %vm1735, %v2954, 0
        %v3036 = vsel %vm1735, %v2971, 0
        %v3039 = vsel %vm1735, %v2972, 0
        %v3042 = vsel %vm1735, %v2973, 0
        %v3045 = vsel %vm1735, %v2974, 0
        %v3048 = vsel %vm1735, %v2975, 0
        %v3051 = vsel %vm1735, %v2976, 0
        %v3054 = vsel %vm1735, %v2977, 0
        %v3057 = vsel %vm1735, %v2978, 0
        %v3060 = vsel %vm1735, %v2979, 0
        %v3063 = vsel %vm1735, %v2980, 0
        %v3066 = vsel %vm1735, %v2981, 0
        %v3069 = vsel %vm1735, %v2982, 0
        %v3072 = vsel %vm1735, %v2983, 0
        %v3075 = vsel %vm1735, %v2984, 0
        %v3078 = vsel %vm1735, %v2985, 0
        %v3081 = vsel %vm1735, %v2986, 0
        %3083 = vmatprep.subr.mxu0 %v1378
        %3084 = vmatpush1.msra.mxu0 %v1376
        %3085 = vmatprep.subr.mxu0 %v1384
        %3086 = vmatpush1.msra.mxu0 %v1382
        %3087 = vmatprep.subr.mxu0 %v1390
        %3088 = vmatpush1.msra.mxu0 %v1388
        %3089 = vmatprep.subr.mxu0 %v1396
        %3090 = vmatpush1.msra.mxu0 %v1394
        %3091 = vmatprep.subr.mxu0 0.0
        %3092 = vmatpush1.msra.mxu0 0.0
        %3093 = vmatprep.subr.mxu0 0.0
        %3094 = vmatpush1.msra.mxu0 0.0
        %3095 = vmatprep.subr.mxu0 0.0
        %3096 = vmatpush1.msra.mxu0 0.0
        %3097 = vmatprep.subr.mxu0 0.0
        %3098 = vmatpush1.msra.mxu0 0.0
        %3099 = vmatprep.subr.mxu0 0.0
        %3100 = vmatpush1.msra.mxu0 0.0
        %3101 = vmatprep.subr.mxu0 0.0
        %3102 = vmatpush1.msra.mxu0 0.0
        %3103 = vmatprep.subr.mxu0 0.0
        %3104 = vmatpush1.msra.mxu0 0.0
        %3105 = vmatprep.subr.mxu0 0.0
        %3106 = vmatpush1.msra.mxu0 0.0
        %3107 = vmatprep.subr.mxu0 0.0
        %3108 = vmatpush1.msra.mxu0 0.0
        %3109 = vmatprep.subr.mxu0 0.0
        %3110 = vmatpush1.msra.mxu0 0.0
        %3111 = vmatprep.subr.mxu0 0.0
        %3112 = vmatpush1.msra.mxu0 0.0
        %3113 = vmatprep.subr.mxu0 0.0
        %3114 = vmatpush1.msra.mxu0 0.0
        %3115 = vmatprep.subr.mxu0 0.0
        %3116 = vmatpush1.msra.mxu0 0.0
        %3117 = vmatprep.subr.mxu0 0.0
        %3118 = vmatpush1.msra.mxu0 0.0
        %3119 = vmatprep.subr.mxu0 0.0
        %3120 = vmatpush1.msra.mxu0 0.0
        %3121 = vmatprep.subr.mxu0 0.0
        %3122 = vmatpush1.msra.mxu0 0.0
        %3123 = vmatprep.subr.mxu0 0.0
        %3124 = vmatpush1.msra.mxu0 0.0
        %3125 = vmatprep.subr.mxu0 0.0
        %3126 = vmatpush1.msra.mxu0 0.0
        %3127 = vmatprep.subr.mxu0 0.0
        %3128 = vmatpush1.msra.mxu0 0.0
        %3129 = vmatprep.subr.mxu0 0.0
        %3130 = vmatpush1.msra.mxu0 0.0
        %3131 = vmatprep.subr.mxu0 0.0
        %3132 = vmatpush1.msra.mxu0 0.0
        %3133 = vmatprep.subr.mxu0 0.0
        %3134 = vmatpush1.msra.mxu0 0.0
        %3135 = vmatprep.subr.mxu0 0.0
        %3136 = vmatpush1.msra.mxu0 0.0
        %3137 = vmatprep.subr.mxu0 0.0
        %3138 = vmatpush1.msra.mxu0 0.0
        %3139 = vmatprep.subr.mxu0 0.0
        %3140 = vmatpush1.msra.mxu0 0.0
        %3141 = vmatprep.subr.mxu0 0.0
        %3142 = vmatpush1.msra.mxu0 0.0
        %3143 = vmatprep.subr.mxu0 0.0
        %3144 = vmatpush1.msra.mxu0 0.0
        %3145 = vmatprep.subr.mxu0 0.0
        %3146 = vmatpush1.msra.mxu0 0.0
        %3147 = vmatprep.mubr.f32.mxu0 0.0
        %3148 = vmatmul.mubr.f32.gmra.mrb[0].mxu0 %v2988
        %v3149 = vpop.f32.mrb[0].mxu0
        %v3150 = vadd.f32 0.0, %v3149
        %v3151 = vpop.f32.mrb[0].mxu0
        %v3152 = vadd.f32 0.0, %v3151
        %3153 = vmatprep.mubr.f32.mxu0 0.0
        %3154 = vmatmul.mubr.f32.gmra.mrb[0].mxu0 %v2991
        %v3155 = vpop.f32.mrb[0].mxu0
        %v3156 = vadd.f32 0.0, %v3155
        %v3157 = vpop.f32.mrb[0].mxu0
        %v3158 = vadd.f32 0.0, %v3157
        %3159 = vmatprep.mubr.f32.mxu0 0.0
        %3160 = vmatmul.mubr.f32.gmra.mrb[0].mxu0 %v2994
        %v3161 = vpop.f32.mrb[0].mxu0
        %v3162 = vadd.f32 0.0, %v3161
        %v3163 = vpop.f32.mrb[0].mxu0
        %v3164 = vadd.f32 0.0, %v3163
        %3165 = vmatprep.mubr.f32.mxu0 0.0
        %3166 = vmatmul.mubr.f32.gmra.mrb[0].mxu0 %v2997
        %v3167 = vpop.f32.mrb[0].mxu0
        %v3168 = vadd.f32 0.0, %v3167
        %v3169 = vpop.f32.mrb[0].mxu0
        %v3170 = vadd.f32 0.0, %v3169
        %3171 = vmatprep.mubr.f32.mxu0 0.0
        %3172 = vmatmul.mubr.f32.gmra.mrb[0].mxu0 %v3000
        %v3173 = vpop.f32.mrb[0].mxu0
        %v3174 = vadd.f32 0.0, %v3173
        %v3175 = vpop.f32.mrb[0].mxu0
        %v3176 = vadd.f32 0.0, %v3175
        %3177 = vmatprep.mubr.f32.mxu0 0.0
        %3178 = vmatmul.mubr.f32.gmra.mrb[0].mxu0 %v3003
        %v3179 = vpop.f32.mrb[0].mxu0
        %v3180 = vadd.f32 0.0, %v3179
        %v3181 = vpop.f32.mrb[0].mxu0
        %v3182 = vadd.f32 0.0, %v3181
        %3183 = vmatprep.mubr.f32.mxu0 0.0
        %3184 = vmatmul.mubr.f32.gmra.mrb[0].mxu0 %v3006
        %v3185 = vpop.f32.mrb[0].mxu0
        %v3186 = vadd.f32 0.0, %v3185
        %v3187 = vpop.f32.mrb[0].mxu0
        %v3188 = vadd.f32 0.0, %v3187
        %3189 = vmatprep.mubr.f32.mxu0 0.0
        %3190 = vmatmul.mubr.f32.gmra.mrb[0].mxu0 %v3009
        %v3191 = vpop.f32.mrb[0].mxu0
        %v3192 = vadd.f32 0.0, %v3191
        %v3193 = vpop.f32.mrb[0].mxu0
        %v3194 = vadd.f32 0.0, %v3193
        %3195 = vmatprep.mubr.f32.mxu0 0.0
        %3196 = vmatmul.mubr.f32.gmra.mrb[0].mxu0 %v3012
        %v3197 = vpop.f32.mrb[0].mxu0
        %v3198 = vadd.f32 0.0, %v3197
        %v3199 = vpop.f32.mrb[0].mxu0
        %v3200 = vadd.f32 0.0, %v3199
        %3201 = vmatprep.mubr.f32.mxu0 0.0
        %3202 = vmatmul.mubr.f32.gmra.mrb[0].mxu0 %v3015
        %v3203 = vpop.f32.mrb[0].mxu0
        %v3204 = vadd.f32 0.0, %v3203
        %v3205 = vpop.f32.mrb[0].mxu0
        %v3206 = vadd.f32 0.0, %v3205
        %3207 = vmatprep.mubr.f32.mxu0 0.0
        %3208 = vmatmul.mubr.f32.gmra.mrb[0].mxu0 %v3018
        %v3209 = vpop.f32.mrb[0].mxu0
        %v3210 = vadd.f32 0.0, %v3209
        %v3211 = vpop.f32.mrb[0].mxu0
        %v3212 = vadd.f32 0.0, %v3211
        %3213 = vmatprep.mubr.f32.mxu0 0.0
        %3214 = vmatmul.mubr.f32.gmra.mrb[0].mxu0 %v3021
        %v3215 = vpop.f32.mrb[0].mxu0
        %v3216 = vadd.f32 0.0, %v3215
        %v3217 = vpop.f32.mrb[0].mxu0
        %v3218 = vadd.f32 0.0, %v3217
        %3219 = vmatprep.mubr.f32.mxu0 0.0
        %3220 = vmatmul.mubr.f32.gmra.mrb[0].mxu0 %v3024
        %v3221 = vpop.f32.mrb[0].mxu0
        %v3222 = vadd.f32 0.0, %v3221
        %v3223 = vpop.f32.mrb[0].mxu0
        %v3224 = vadd.f32 0.0, %v3223
        %3225 = vmatprep.mubr.f32.mxu0 0.0
        %3226 = vmatmul.mubr.f32.gmra.mrb[0].mxu0 %v3027
        %v3227 = vpop.f32.mrb[0].mxu0
        %v3228 = vadd.f32 0.0, %v3227
        %v3229 = vpop.f32.mrb[0].mxu0
        %v3230 = vadd.f32 0.0, %v3229
        %3231 = vmatprep.mubr.f32.mxu0 0.0
        %3232 = vmatmul.mubr.f32.gmra.mrb[0].mxu0 %v3030
        %v3233 = vpop.f32.mrb[0].mxu0
        %v3234 = vadd.f32 0.0, %v3233
        %v3235 = vpop.f32.mrb[0].mxu0
        %v3236 = vadd.f32 0.0, %v3235
        %3237 = vmatprep.mubr.f32.mxu0 0.0
        %3238 = vmatmul.mubr.f32.gmra.mrb[0].mxu0 %v3033
        %v3239 = vpop.f32.mrb[0].mxu0
        %v3240 = vadd.f32 0.0, %v3239
        %v3241 = vpop.f32.mrb[0].mxu0
        %v3242 = vadd.f32 0.0, %v3241
        %3243 = vmatprep.mubr.f32.mxu0 0.0
        %3244 = vmatmul.mubr.f32.gmra.mrb[0].mxu0 %v3036
        %v3245 = vpop.f32.mrb[0].mxu0
        %v3246 = vadd.f32 0.0, %v3245
        %v3247 = vpop.f32.mrb[0].mxu0
        %v3248 = vadd.f32 0.0, %v3247
        %3249 = vmatprep.mubr.f32.mxu0 0.0
        %3250 = vmatmul.mubr.f32.gmra.mrb[0].mxu0 %v3039
        %v3251 = vpop.f32.mrb[0].mxu0
        %v3252 = vadd.f32 0.0, %v3251
        %v3253 = vpop.f32.mrb[0].mxu0
        %v3254 = vadd.f32 0.0, %v3253
        %3255 = vmatprep.mubr.f32.mxu0 0.0
        %3256 = vmatmul.mubr.f32.gmra.mrb[0].mxu0 %v3042
        %v3257 = vpop.f32.mrb[0].mxu0
        %v3258 = vadd.f32 0.0, %v3257
        %v3259 = vpop.f32.mrb[0].mxu0
        %v3260 = vadd.f32 0.0, %v3259
        %3261 = vmatprep.mubr.f32.mxu0 0.0
        %3262 = vmatmul.mubr.f32.gmra.mrb[0].mxu0 %v3045
        %v3263 = vpop.f32.mrb[0].mxu0
        %v3264 = vadd.f32 0.0, %v3263
        %v3265 = vpop.f32.mrb[0].mxu0
        %v3266 = vadd.f32 0.0, %v3265
        %3267 = vmatprep.mubr.f32.mxu0 0.0
        %3268 = vmatmul.mubr.f32.gmra.mrb[0].mxu0 %v3048
        %v3269 = vpop.f32.mrb[0].mxu0
        %v3270 = vadd.f32 0.0, %v3269
        %v3271 = vpop.f32.mrb[0].mxu0
        %v3272 = vadd.f32 0.0, %v3271
        %3273 = vmatprep.mubr.f32.mxu0 0.0
        %3274 = vmatmul.mubr.f32.gmra.mrb[0].mxu0 %v3051
        %v3275 = vpop.f32.mrb[0].mxu0
        %v3276 = vadd.f32 0.0, %v3275
        %v3277 = vpop.f32.mrb[0].mxu0
        %v3278 = vadd.f32 0.0, %v3277
        %3279 = vmatprep.mubr.f32.mxu0 0.0
        %3280 = vmatmul.mubr.f32.gmra.mrb[0].mxu0 %v3054
        %v3281 = vpop.f32.mrb[0].mxu0
        %v3282 = vadd.f32 0.0, %v3281
        %v3283 = vpop.f32.mrb[0].mxu0
        %v3284 = vadd.f32 0.0, %v3283
        %3285 = vmatprep.mubr.f32.mxu0 0.0
        %3286 = vmatmul.mubr.f32.gmra.mrb[0].mxu0 %v3057
        %v3287 = vpop.f32.mrb[0].mxu0
        %v3288 = vadd.f32 0.0, %v3287
        %v3289 = vpop.f32.mrb[0].mxu0
        %v3290 = vadd.f32 0.0, %v3289
        %3291 = vmatprep.mubr.f32.mxu0 0.0
        %3292 = vmatmul.mubr.f32.gmra.mrb[0].mxu0 %v3060
        %v3293 = vpop.f32.mrb[0].mxu0
        %v3294 = vadd.f32 0.0, %v3293
        %v3295 = vpop.f32.mrb[0].mxu0
        %v3296 = vadd.f32 0.0, %v3295
        %3297 = vmatprep.mubr.f32.mxu0 0.0
        %3298 = vmatmul.mubr.f32.gmra.mrb[0].mxu0 %v3063
        %v3299 = vpop.f32.mrb[0].mxu0
        %v3300 = vadd.f32 0.0, %v3299
        %v3301 = vpop.f32.mrb[0].mxu0
        %v3302 = vadd.f32 0.0, %v3301
        %3303 = vmatprep.mubr.f32.mxu0 0.0
        %3304 = vmatmul.mubr.f32.gmra.mrb[0].mxu0 %v3066
        %v3305 = vpop.f32.mrb[0].mxu0
        %v3306 = vadd.f32 0.0, %v3305
        %v3307 = vpop.f32.mrb[0].mxu0
        %v3308 = vadd.f32 0.0, %v3307
        %3309 = vmatprep.mubr.f32.mxu0 0.0
        %3310 = vmatmul.mubr.f32.gmra.mrb[0].mxu0 %v3069
        %v3311 = vpop.f32.mrb[0].mxu0
        %v3312 = vadd.f32 0.0, %v3311
        %v3313 = vpop.f32.mrb[0].mxu0
        %v3314 = vadd.f32 0.0, %v3313
        %3315 = vmatprep.mubr.f32.mxu0 0.0
        %3316 = vmatmul.mubr.f32.gmra.mrb[0].mxu0 %v3072
        %v3317 = vpop.f32.mrb[0].mxu0
        %v3318 = vadd.f32 0.0, %v3317
        %v3319 = vpop.f32.mrb[0].mxu0
        %v3320 = vadd.f32 0.0, %v3319
        %3321 = vmatprep.mubr.f32.mxu0 0.0
        %3322 = vmatmul.mubr.f32.gmra.mrb[0].mxu0 %v3075
        %v3323 = vpop.f32.mrb[0].mxu0
        %v3324 = vadd.f32 0.0, %v3323
        %v3325 = vpop.f32.mrb[0].mxu0
        %v3326 = vadd.f32 0.0, %v3325
        %3327 = vmatprep.mubr.f32.mxu0 0.0
        %3328 = vmatmul.mubr.f32.gmra.mrb[0].mxu0 %v3078
        %v3329 = vpop.f32.mrb[0].mxu0
        %v3330 = vadd.f32 0.0, %v3329
        %v3331 = vpop.f32.mrb[0].mxu0
        %v3332 = vadd.f32 0.0, %v3331
        %3333 = vmatprep.mubr.f32.mxu0 0.0
        %3334 = vmatmul.mubr.f32.gmra.mrb[0].mxu0 %v3081
        %v3335 = vpop.f32.mrb[0].mxu0
        %v3336 = vadd.f32 0.0, %v3335
        %v3337 = vpop.f32.mrb[0].mxu0
        %v3338 = vadd.f32 0.0, %v3337
        %3339 = vdwg.mxu0
        %v3340 = vmax.f32 %v1899, %v1901
        %3341 = vmax.xlane.f32.xlu0 %v3340
        %v3342 = vpop.xlane.xlu0 %3341
        %v3343 = vmax.f32 %v1905, %v1907
        %3344 = vmax.xlane.f32.xlu0 %v3343
        %v3345 = vpop.xlane.xlu0 %3344
        %v3346 = vmax.f32 %v1911, %v1913
        %3347 = vmax.xlane.f32.xlu0 %v3346
        %v3348 = vpop.xlane.xlu0 %3347
        %v3349 = vmax.f32 %v1917, %v1919
        %3350 = vmax.xlane.f32.xlu0 %v3349
        %v3351 = vpop.xlane.xlu0 %3350
        %v3352 = vmax.f32 %v1923, %v1925
        %3353 = vmax.xlane.f32.xlu0 %v3352
        %v3354 = vpop.xlane.xlu0 %3353
        %v3355 = vmax.f32 %v1929, %v1931
        %3356 = vmax.xlane.f32.xlu0 %v3355
        %v3357 = vpop.xlane.xlu0 %3356
        %v3358 = vmax.f32 %v1935, %v1937
        %3359 = vmax.xlane.f32.xlu0 %v3358
        %v3360 = vpop.xlane.xlu0 %3359
        %v3361 = vmax.f32 %v1941, %v1943
        %3362 = vmax.xlane.f32.xlu0 %v3361
        %v3363 = vpop.xlane.xlu0 %3362
        %v3364 = vmax.f32 %v1947, %v1949
        %3365 = vmax.xlane.f32.xlu0 %v3364
        %v3366 = vpop.xlane.xlu0 %3365
        %v3367 = vmax.f32 %v1953, %v1955
        %3368 = vmax.xlane.f32.xlu0 %v3367
        %v3369 = vpop.xlane.xlu0 %3368
        %v3370 = vmax.f32 %v1959, %v1961
        %3371 = vmax.xlane.f32.xlu0 %v3370
        %v3372 = vpop.xlane.xlu0 %3371
        %v3373 = vmax.f32 %v1965, %v1967
        %3374 = vmax.xlane.f32.xlu0 %v3373
        %v3375 = vpop.xlane.xlu0 %3374
        %v3376 = vmax.f32 %v1971, %v1973
        %3377 = vmax.xlane.f32.xlu0 %v3376
        %v3378 = vpop.xlane.xlu0 %3377
        %v3379 = vmax.f32 %v1977, %v1979
        %3380 = vmax.xlane.f32.xlu0 %v3379
        %v3381 = vpop.xlane.xlu0 %3380
        %v3382 = vmax.f32 %v1983, %v1985
        %3383 = vmax.xlane.f32.xlu0 %v3382
        %v3384 = vpop.xlane.xlu0 %3383
        %v3385 = vmax.f32 %v1989, %v1991
        %3386 = vmax.xlane.f32.xlu0 %v3385
        %v3387 = vpop.xlane.xlu0 %3386
        %v3388 = vmax.f32 %v1995, %v1997
        %3389 = vmax.xlane.f32.xlu0 %v3388
        %v3390 = vpop.xlane.xlu0 %3389
        %v3391 = vmax.f32 %v2001, %v2003
        %3392 = vmax.xlane.f32.xlu0 %v3391
        %v3393 = vpop.xlane.xlu0 %3392
        %v3394 = vmax.f32 %v2007, %v2009
        %3395 = vmax.xlane.f32.xlu0 %v3394
        %v3396 = vpop.xlane.xlu0 %3395
        %v3397 = vmax.f32 %v2013, %v2015
        %3398 = vmax.xlane.f32.xlu0 %v3397
        %v3399 = vpop.xlane.xlu0 %3398
        %v3400 = vmax.f32 %v2019, %v2021
        %3401 = vmax.xlane.f32.xlu0 %v3400
        %v3402 = vpop.xlane.xlu0 %3401
        %v3403 = vmax.f32 %v2025, %v2027
        %3404 = vmax.xlane.f32.xlu0 %v3403
        %v3405 = vpop.xlane.xlu0 %3404
        %v3406 = vmax.f32 %v2031, %v2033
        %3407 = vmax.xlane.f32.xlu0 %v3406
        %v3408 = vpop.xlane.xlu0 %3407
        %v3409 = vmax.f32 %v2037, %v2039
        %3410 = vmax.xlane.f32.xlu0 %v3409
        %v3411 = vpop.xlane.xlu0 %3410
        %v3412 = vmax.f32 %v2043, %v2045
        %3413 = vmax.xlane.f32.xlu0 %v3412
        %v3414 = vpop.xlane.xlu0 %3413
        %v3415 = vmax.f32 %v2049, %v2051
        %3416 = vmax.xlane.f32.xlu0 %v3415
        %v3417 = vpop.xlane.xlu0 %3416
        %v3418 = vmax.f32 %v2055, %v2057
        %3419 = vmax.xlane.f32.xlu0 %v3418
        %v3420 = vpop.xlane.xlu0 %3419
        %v3421 = vmax.f32 %v2061, %v2063
        %3422 = vmax.xlane.f32.xlu0 %v3421
        %v3423 = vpop.xlane.xlu0 %3422
        %v3424 = vmax.f32 %v2067, %v2069
        %3425 = vmax.xlane.f32.xlu0 %v3424
        %v3426 = vpop.xlane.xlu0 %3425
        %v3427 = vmax.f32 %v2073, %v2075
        %3428 = vmax.xlane.f32.xlu0 %v3427
        %v3429 = vpop.xlane.xlu0 %3428
        %v3430 = vmax.f32 %v2079, %v2081
        %3431 = vmax.xlane.f32.xlu0 %v3430
        %v3432 = vpop.xlane.xlu0 %3431
        %v3433 = vmax.f32 %v2085, %v2087
        %3434 = vmax.xlane.f32.xlu0 %v3433
        %v3435 = vpop.xlane.xlu0 %3434
        %v3436 = vmax.f32 %v2316, %v2318
        %3437 = vmax.xlane.f32.xlu0 %v3436
        %v3438 = vpop.xlane.xlu0 %3437
        %v3439 = vmax.f32 %v2322, %v2324
        %3440 = vmax.xlane.f32.xlu0 %v3439
        %v3441 = vpop.xlane.xlu0 %3440
        %v3442 = vmax.f32 %v2328, %v2330
        %3443 = vmax.xlane.f32.xlu0 %v3442
        %v3444 = vpop.xlane.xlu0 %3443
        %v3445 = vmax.f32 %v2334, %v2336
        %3446 = vmax.xlane.f32.xlu0 %v3445
        %v3447 = vpop.xlane.xlu0 %3446
        %v3448 = vmax.f32 %v2340, %v2342
        %3449 = vmax.xlane.f32.xlu0 %v3448
        %v3450 = vpop.xlane.xlu0 %3449
        %v3451 = vmax.f32 %v2346, %v2348
        %3452 = vmax.xlane.f32.xlu0 %v3451
        %v3453 = vpop.xlane.xlu0 %3452
        %v3454 = vmax.f32 %v2352, %v2354
        %3455 = vmax.xlane.f32.xlu0 %v3454
        %v3456 = vpop.xlane.xlu0 %3455
        %v3457 = vmax.f32 %v2358, %v2360
        %3458 = vmax.xlane.f32.xlu0 %v3457
        %v3459 = vpop.xlane.xlu0 %3458
        %v3460 = vmax.f32 %v2364, %v2366
        %3461 = vmax.xlane.f32.xlu0 %v3460
        %v3462 = vpop.xlane.xlu0 %3461
        %v3463 = vmax.f32 %v2370, %v2372
        %3464 = vmax.xlane.f32.xlu0 %v3463
        %v3465 = vpop.xlane.xlu0 %3464
        %v3466 = vmax.f32 %v2376, %v2378
        %3467 = vmax.xlane.f32.xlu0 %v3466
        %v3468 = vpop.xlane.xlu0 %3467
        %v3469 = vmax.f32 %v2382, %v2384
        %3470 = vmax.xlane.f32.xlu0 %v3469
        %v3471 = vpop.xlane.xlu0 %3470
        %v3472 = vmax.f32 %v2388, %v2390
        %3473 = vmax.xlane.f32.xlu0 %v3472
        %v3474 = vpop.xlane.xlu0 %3473
        %v3475 = vmax.f32 %v2394, %v2396
        %3476 = vmax.xlane.f32.xlu0 %v3475
        %v3477 = vpop.xlane.xlu0 %3476
        %v3478 = vmax.f32 %v2400, %v2402
        %3479 = vmax.xlane.f32.xlu0 %v3478
        %v3480 = vpop.xlane.xlu0 %3479
        %v3481 = vmax.f32 %v2406, %v2408
        %3482 = vmax.xlane.f32.xlu0 %v3481
        %v3483 = vpop.xlane.xlu0 %3482
        %v3484 = vmax.f32 %v2412, %v2414
        %3485 = vmax.xlane.f32.xlu0 %v3484
        %v3486 = vpop.xlane.xlu0 %3485
        %v3487 = vmax.f32 %v2418, %v2420
        %3488 = vmax.xlane.f32.xlu0 %v3487
        %v3489 = vpop.xlane.xlu0 %3488
        %v3490 = vmax.f32 %v2424, %v2426
        %3491 = vmax.xlane.f32.xlu0 %v3490
        %v3492 = vpop.xlane.xlu0 %3491
        %v3493 = vmax.f32 %v2430, %v2432
        %3494 = vmax.xlane.f32.xlu0 %v3493
        %v3495 = vpop.xlane.xlu0 %3494
        %v3496 = vmax.f32 %v2436, %v2438
        %3497 = vmax.xlane.f32.xlu0 %v3496
        %v3498 = vpop.xlane.xlu0 %3497
        %v3499 = vmax.f32 %v2442, %v2444
        %3500 = vmax.xlane.f32.xlu0 %v3499
        %v3501 = vpop.xlane.xlu0 %3500
        %v3502 = vmax.f32 %v2448, %v2450
        %3503 = vmax.xlane.f32.xlu0 %v3502
        %v3504 = vpop.xlane.xlu0 %3503
        %v3505 = vmax.f32 %v2454, %v2456
        %3506 = vmax.xlane.f32.xlu0 %v3505
        %v3507 = vpop.xlane.xlu0 %3506
        %v3508 = vmax.f32 %v2460, %v2462
        %3509 = vmax.xlane.f32.xlu0 %v3508
        %v3510 = vpop.xlane.xlu0 %3509
        %v3511 = vmax.f32 %v2466, %v2468
        %3512 = vmax.xlane.f32.xlu0 %v3511
        %v3513 = vpop.xlane.xlu0 %3512
        %v3514 = vmax.f32 %v2472, %v2474
        %3515 = vmax.xlane.f32.xlu0 %v3514
        %v3516 = vpop.xlane.xlu0 %3515
        %v3517 = vmax.f32 %v2478, %v2480
        %3518 = vmax.xlane.f32.xlu0 %v3517
        %v3519 = vpop.xlane.xlu0 %3518
        %v3520 = vmax.f32 %v2484, %v2486
        %3521 = vmax.xlane.f32.xlu0 %v3520
        %v3522 = vpop.xlane.xlu0 %3521
        %v3523 = vmax.f32 %v2490, %v2492
        %3524 = vmax.xlane.f32.xlu0 %v3523
        %v3525 = vpop.xlane.xlu0 %3524
        %v3526 = vmax.f32 %v2496, %v2498
        %3527 = vmax.xlane.f32.xlu0 %v3526
        %v3528 = vpop.xlane.xlu0 %3527
        %v3529 = vmax.f32 %v2502, %v2504
        %3530 = vmax.xlane.f32.xlu0 %v3529
        %v3531 = vpop.xlane.xlu0 %3530
        %v3532 = vmax.f32 %v2733, %v2735
        %3533 = vmax.xlane.f32.xlu0 %v3532
        %v3534 = vpop.xlane.xlu0 %3533
        %v3535 = vmax.f32 %v2739, %v2741
        %3536 = vmax.xlane.f32.xlu0 %v3535
        %v3537 = vpop.xlane.xlu0 %3536
        %v3538 = vmax.f32 %v2745, %v2747
        %3539 = vmax.xlane.f32.xlu0 %v3538
        %v3540 = vpop.xlane.xlu0 %3539
        %v3541 = vmax.f32 %v2751, %v2753
        %3542 = vmax.xlane.f32.xlu0 %v3541
        %v3543 = vpop.xlane.xlu0 %3542
        %v3544 = vmax.f32 %v2757, %v2759
        %3545 = vmax.xlane.f32.xlu0 %v3544
        %v3546 = vpop.xlane.xlu0 %3545
        %v3547 = vmax.f32 %v2763, %v2765
        %3548 = vmax.xlane.f32.xlu0 %v3547
        %v3549 = vpop.xlane.xlu0 %3548
        %v3550 = vmax.f32 %v2769, %v2771
        %3551 = vmax.xlane.f32.xlu0 %v3550
        %v3552 = vpop.xlane.xlu0 %3551
        %v3553 = vmax.f32 %v2775, %v2777
        %3554 = vmax.xlane.f32.xlu0 %v3553
        %v3555 = vpop.xlane.xlu0 %3554
        %v3556 = vmax.f32 %v2781, %v2783
        %3557 = vmax.xlane.f32.xlu0 %v3556
        %v3558 = vpop.xlane.xlu0 %3557
        %v3559 = vmax.f32 %v2787, %v2789
        %3560 = vmax.xlane.f32.xlu0 %v3559
        %v3561 = vpop.xlane.xlu0 %3560
        %v3562 = vmax.f32 %v2793, %v2795
        %3563 = vmax.xlane.f32.xlu0 %v3562
        %v3564 = vpop.xlane.xlu0 %3563
        %v3565 = vmax.f32 %v2799, %v2801
        %3566 = vmax.xlane.f32.xlu0 %v3565
        %v3567 = vpop.xlane.xlu0 %3566
        %v3568 = vmax.f32 %v2805, %v2807
        %3569 = vmax.xlane.f32.xlu0 %v3568
        %v3570 = vpop.xlane.xlu0 %3569
        %v3571 = vmax.f32 %v2811, %v2813
        %3572 = vmax.xlane.f32.xlu0 %v3571
        %v3573 = vpop.xlane.xlu0 %3572
        %v3574 = vmax.f32 %v2817, %v2819
        %3575 = vmax.xlane.f32.xlu0 %v3574
        %v3576 = vpop.xlane.xlu0 %3575
        %v3577 = vmax.f32 %v2823, %v2825
        %3578 = vmax.xlane.f32.xlu0 %v3577
        %v3579 = vpop.xlane.xlu0 %3578
        %v3580 = vmax.f32 %v2829, %v2831
        %3581 = vmax.xlane.f32.xlu0 %v3580
        %v3582 = vpop.xlane.xlu0 %3581
        %v3583 = vmax.f32 %v2835, %v2837
        %3584 = vmax.xlane.f32.xlu0 %v3583
        %v3585 = vpop.xlane.xlu0 %3584
        %v3586 = vmax.f32 %v2841, %v2843
        %3587 = vmax.xlane.f32.xlu0 %v3586
        %v3588 = vpop.xlane.xlu0 %3587
        %v3589 = vmax.f32 %v2847, %v2849
        %3590 = vmax.xlane.f32.xlu0 %v3589
        %v3591 = vpop.xlane.xlu0 %3590
        %v3592 = vmax.f32 %v2853, %v2855
        %3593 = vmax.xlane.f32.xlu0 %v3592
        %v3594 = vpop.xlane.xlu0 %3593
        %v3595 = vmax.f32 %v2859, %v2861
        %3596 = vmax.xlane.f32.xlu0 %v3595
        %v3597 = vpop.xlane.xlu0 %3596
        %v3598 = vmax.f32 %v2865, %v2867
        %3599 = vmax.xlane.f32.xlu0 %v3598
        %v3600 = vpop.xlane.xlu0 %3599
        %v3601 = vmax.f32 %v2871, %v2873
        %3602 = vmax.xlane.f32.xlu0 %v3601
        %v3603 = vpop.xlane.xlu0 %3602
        %v3604 = vmax.f32 %v2877, %v2879
        %3605 = vmax.xlane.f32.xlu0 %v3604
        %v3606 = vpop.xlane.xlu0 %3605
        %v3607 = vmax.f32 %v2883, %v2885
        %3608 = vmax.xlane.f32.xlu0 %v3607
        %v3609 = vpop.xlane.xlu0 %3608
        %v3610 = vmax.f32 %v2889, %v2891
        %3611 = vmax.xlane.f32.xlu0 %v3610
        %v3612 = vpop.xlane.xlu0 %3611
        %v3613 = vmax.f32 %v2895, %v2897
        %3614 = vmax.xlane.f32.xlu0 %v3613
        %v3615 = vpop.xlane.xlu0 %3614
        %v3616 = vmax.f32 %v2901, %v2903
        %3617 = vmax.xlane.f32.xlu0 %v3616
        %v3618 = vpop.xlane.xlu0 %3617
        %v3619 = vmax.f32 %v2907, %v2909
        %3620 = vmax.xlane.f32.xlu0 %v3619
        %v3621 = vpop.xlane.xlu0 %3620
        %v3622 = vmax.f32 %v2913, %v2915
        %3623 = vmax.xlane.f32.xlu0 %v3622
        %v3624 = vpop.xlane.xlu0 %3623
        %v3625 = vmax.f32 %v2919, %v2921
        %3626 = vmax.xlane.f32.xlu0 %v3625
        %v3627 = vpop.xlane.xlu0 %3626
        %v3628 = vmax.f32 %v3150, %v3152
        %3629 = vmax.xlane.f32.xlu0 %v3628
        %v3630 = vpop.xlane.xlu0 %3629
        %v3631 = vmax.f32 %v3156, %v3158
        %3632 = vmax.xlane.f32.xlu0 %v3631
        %v3633 = vpop.xlane.xlu0 %3632
        %v3634 = vmax.f32 %v3162, %v3164
        %3635 = vmax.xlane.f32.xlu0 %v3634
        %v3636 = vpop.xlane.xlu0 %3635
        %v3637 = vmax.f32 %v3168, %v3170
        %3638 = vmax.xlane.f32.xlu0 %v3637
        %v3639 = vpop.xlane.xlu0 %3638
        %v3640 = vmax.f32 %v3174, %v3176
        %3641 = vmax.xlane.f32.xlu0 %v3640
        %v3642 = vpop.xlane.xlu0 %3641
        %v3643 = vmax.f32 %v3180, %v3182
        %3644 = vmax.xlane.f32.xlu0 %v3643
        %v3645 = vpop.xlane.xlu0 %3644
        %v3646 = vmax.f32 %v3186, %v3188
        %3647 = vmax.xlane.f32.xlu0 %v3646
        %v3648 = vpop.xlane.xlu0 %3647
        %v3649 = vmax.f32 %v3192, %v3194
        %3650 = vmax.xlane.f32.xlu0 %v3649
        %v3651 = vpop.xlane.xlu0 %3650
        %v3652 = vmax.f32 %v3198, %v3200
        %3653 = vmax.xlane.f32.xlu0 %v3652
        %v3654 = vpop.xlane.xlu0 %3653
        %v3655 = vmax.f32 %v3204, %v3206
        %3656 = vmax.xlane.f32.xlu0 %v3655
        %v3657 = vpop.xlane.xlu0 %3656
        %v3658 = vmax.f32 %v3210, %v3212
        %3659 = vmax.xlane.f32.xlu0 %v3658
        %v3660 = vpop.xlane.xlu0 %3659
        %v3661 = vmax.f32 %v3216, %v3218
        %3662 = vmax.xlane.f32.xlu0 %v3661
        %v3663 = vpop.xlane.xlu0 %3662
        %v3664 = vmax.f32 %v3222, %v3224
        %3665 = vmax.xlane.f32.xlu0 %v3664
        %v3666 = vpop.xlane.xlu0 %3665
        %v3667 = vmax.f32 %v3228, %v3230
        %3668 = vmax.xlane.f32.xlu0 %v3667
        %v3669 = vpop.xlane.xlu0 %3668
        %v3670 = vmax.f32 %v3234, %v3236
        %3671 = vmax.xlane.f32.xlu0 %v3670
        %v3672 = vpop.xlane.xlu0 %3671
        %v3673 = vmax.f32 %v3240, %v3242
        %3674 = vmax.xlane.f32.xlu0 %v3673
        %v3675 = vpop.xlane.xlu0 %3674
        %v3676 = vmax.f32 %v3246, %v3248
        %3677 = vmax.xlane.f32.xlu0 %v3676
        %v3678 = vpop.xlane.xlu0 %3677
        %v3679 = vmax.f32 %v3252, %v3254
        %3680 = vmax.xlane.f32.xlu0 %v3679
        %v3681 = vpop.xlane.xlu0 %3680
        %v3682 = vmax.f32 %v3258, %v3260
        %3683 = vmax.xlane.f32.xlu0 %v3682
        %v3684 = vpop.xlane.xlu0 %3683
        %v3685 = vmax.f32 %v3264, %v3266
        %3686 = vmax.xlane.f32.xlu0 %v3685
        %v3687 = vpop.xlane.xlu0 %3686
        %v3688 = vmax.f32 %v3270, %v3272
        %3689 = vmax.xlane.f32.xlu0 %v3688
        %v3690 = vpop.xlane.xlu0 %3689
        %v3691 = vmax.f32 %v3276, %v3278
        %3692 = vmax.xlane.f32.xlu0 %v3691
        %v3693 = vpop.xlane.xlu0 %3692
        %v3694 = vmax.f32 %v3282, %v3284
        %3695 = vmax.xlane.f32.xlu0 %v3694
        %v3696 = vpop.xlane.xlu0 %3695
        %v3697 = vmax.f32 %v3288, %v3290
        %3698 = vmax.xlane.f32.xlu0 %v3697
        %v3699 = vpop.xlane.xlu0 %3698
        %v3700 = vmax.f32 %v3294, %v3296
        %3701 = vmax.xlane.f32.xlu0 %v3700
        %v3702 = vpop.xlane.xlu0 %3701
        %v3703 = vmax.f32 %v3300, %v3302
        %3704 = vmax.xlane.f32.xlu0 %v3703
        %v3705 = vpop.xlane.xlu0 %3704
        %v3706 = vmax.f32 %v3306, %v3308
        %3707 = vmax.xlane.f32.xlu0 %v3706
        %v3708 = vpop.xlane.xlu0 %3707
        %v3709 = vmax.f32 %v3312, %v3314
        %3710 = vmax.xlane.f32.xlu0 %v3709
        %v3711 = vpop.xlane.xlu0 %3710
        %v3712 = vmax.f32 %v3318, %v3320
        %3713 = vmax.xlane.f32.xlu0 %v3712
        %v3714 = vpop.xlane.xlu0 %3713
        %v3715 = vmax.f32 %v3324, %v3326
        %3716 = vmax.xlane.f32.xlu0 %v3715
        %v3717 = vpop.xlane.xlu0 %3716
        %v3718 = vmax.f32 %v3330, %v3332
        %3719 = vmax.xlane.f32.xlu0 %v3718
        %v3720 = vpop.xlane.xlu0 %3719
        %v3721 = vmax.f32 %v3336, %v3338
        %3722 = vmax.xlane.f32.xlu0 %v3721
        %v3723 = vpop.xlane.xlu0 %3722
        %v3724 = vsub.f32 %v1899, %v3342
        %v3725 = vsub.f32 %v1901, %v3342
        %v3726 = vsub.f32 %v1905, %v3345
        %v3727 = vsub.f32 %v1907, %v3345
        %v3728 = vsub.f32 %v1911, %v3348
        %v3729 = vsub.f32 %v1913, %v3348
        %v3730 = vsub.f32 %v1917, %v3351
        %v3731 = vsub.f32 %v1919, %v3351
        %v3732 = vsub.f32 %v1923, %v3354
        %v3733 = vsub.f32 %v1925, %v3354
        %v3734 = vsub.f32 %v1929, %v3357
        %v3735 = vsub.f32 %v1931, %v3357
        %v3736 = vsub.f32 %v1935, %v3360
        %v3737 = vsub.f32 %v1937, %v3360
        %v3738 = vsub.f32 %v1941, %v3363
        %v3739 = vsub.f32 %v1943, %v3363
        %v3740 = vsub.f32 %v1947, %v3366
        %v3741 = vsub.f32 %v1949, %v3366
        %v3742 = vsub.f32 %v1953, %v3369
        %v3743 = vsub.f32 %v1955, %v3369
        %v3744 = vsub.f32 %v1959, %v3372
        %v3745 = vsub.f32 %v1961, %v3372
        %v3746 = vsub.f32 %v1965, %v3375
        %v3747 = vsub.f32 %v1967, %v3375
        %v3748 = vsub.f32 %v1971, %v3378
        %v3749 = vsub.f32 %v1973, %v3378
        %v3750 = vsub.f32 %v1977, %v3381
        %v3751 = vsub.f32 %v1979, %v3381
        %v3752 = vsub.f32 %v1983, %v3384
        %v3753 = vsub.f32 %v1985, %v3384
        %v3754 = vsub.f32 %v1989, %v3387
        %v3755 = vsub.f32 %v1991, %v3387
        %v3756 = vsub.f32 %v1995, %v3390
        %v3757 = vsub.f32 %v1997, %v3390
        %v3758 = vsub.f32 %v2001, %v3393
        %v3759 = vsub.f32 %v2003, %v3393
        %v3760 = vsub.f32 %v2007, %v3396
        %v3761 = vsub.f32 %v2009, %v3396
        %v3762 = vsub.f32 %v2013, %v3399
        %v3763 = vsub.f32 %v2015, %v3399
        %v3764 = vsub.f32 %v2019, %v3402
        %v3765 = vsub.f32 %v2021, %v3402
        %v3766 = vsub.f32 %v2025, %v3405
        %v3767 = vsub.f32 %v2027, %v3405
        %v3768 = vsub.f32 %v2031, %v3408
        %v3769 = vsub.f32 %v2033, %v3408
        %v3770 = vsub.f32 %v2037, %v3411
        %v3771 = vsub.f32 %v2039, %v3411
        %v3772 = vsub.f32 %v2043, %v3414
        %v3773 = vsub.f32 %v2045, %v3414
        %v3774 = vsub.f32 %v2049, %v3417
        %v3775 = vsub.f32 %v2051, %v3417
        %v3776 = vsub.f32 %v2055, %v3420
        %v3777 = vsub.f32 %v2057, %v3420
        %v3778 = vsub.f32 %v2061, %v3423
        %v3779 = vsub.f32 %v2063, %v3423
        %v3780 = vsub.f32 %v2067, %v3426
        %v3781 = vsub.f32 %v2069, %v3426
        %v3782 = vsub.f32 %v2073, %v3429
        %v3783 = vsub.f32 %v2075, %v3429
        %v3784 = vsub.f32 %v2079, %v3432
        %v3785 = vsub.f32 %v2081, %v3432
        %v3786 = vsub.f32 %v2085, %v3435
        %v3787 = vsub.f32 %v2087, %v3435
        %v3788 = vsub.f32 %v2316, %v3438
        %v3789 = vsub.f32 %v2318, %v3438
        %v3790 = vsub.f32 %v2322, %v3441
        %v3791 = vsub.f32 %v2324, %v3441
        %v3792 = vsub.f32 %v2328, %v3444
        %v3793 = vsub.f32 %v2330, %v3444
        %v3794 = vsub.f32 %v2334, %v3447
        %v3795 = vsub.f32 %v2336, %v3447
        %v3796 = vsub.f32 %v2340, %v3450
        %v3797 = vsub.f32 %v2342, %v3450
        %v3798 = vsub.f32 %v2346, %v3453
        %v3799 = vsub.f32 %v2348, %v3453
        %v3800 = vsub.f32 %v2352, %v3456
        %v3801 = vsub.f32 %v2354, %v3456
        %v3802 = vsub.f32 %v2358, %v3459
        %v3803 = vsub.f32 %v2360, %v3459
        %v3804 = vsub.f32 %v2364, %v3462
        %v3805 = vsub.f32 %v2366, %v3462
        %v3806 = vsub.f32 %v2370, %v3465
        %v3807 = vsub.f32 %v2372, %v3465
        %v3808 = vsub.f32 %v2376, %v3468
        %v3809 = vsub.f32 %v2378, %v3468
        %v3810 = vsub.f32 %v2382, %v3471
        %v3811 = vsub.f32 %v2384, %v3471
        %v3812 = vsub.f32 %v2388, %v3474
        %v3813 = vsub.f32 %v2390, %v3474
        %v3814 = vsub.f32 %v2394, %v3477
        %v3815 = vsub.f32 %v2396, %v3477
        %v3816 = vsub.f32 %v2400, %v3480
        %v3817 = vsub.f32 %v2402, %v3480
        %v3818 = vsub.f32 %v2406, %v3483
        %v3819 = vsub.f32 %v2408, %v3483
        %v3820 = vsub.f32 %v2412, %v3486
        %v3821 = vsub.f32 %v2414, %v3486
        %v3822 = vsub.f32 %v2418, %v3489
        %v3823 = vsub.f32 %v2420, %v3489
        %v3824 = vsub.f32 %v2424, %v3492
        %v3825 = vsub.f32 %v2426, %v3492
        %v3826 = vsub.f32 %v2430, %v3495
        %v3827 = vsub.f32 %v2432, %v3495
        %v3828 = vsub.f32 %v2436, %v3498
        %v3829 = vsub.f32 %v2438, %v3498
        %v3830 = vsub.f32 %v2442, %v3501
        %v3831 = vsub.f32 %v2444, %v3501
        %v3832 = vsub.f32 %v2448, %v3504
        %v3833 = vsub.f32 %v2450, %v3504
        %v3834 = vsub.f32 %v2454, %v3507
        %v3835 = vsub.f32 %v2456, %v3507
        %v3836 = vsub.f32 %v2460, %v3510
        %v3837 = vsub.f32 %v2462, %v3510
        %v3838 = vsub.f32 %v2466, %v3513
        %v3839 = vsub.f32 %v2468, %v3513
        %v3840 = vsub.f32 %v2472, %v3516
        %v3841 = vsub.f32 %v2474, %v3516
        %v3842 = vsub.f32 %v2478, %v3519
        %v3843 = vsub.f32 %v2480, %v3519
        %v3844 = vsub.f32 %v2484, %v3522
        %v3845 = vsub.f32 %v2486, %v3522
        %v3846 = vsub.f32 %v2490, %v3525
        %v3847 = vsub.f32 %v2492, %v3525
        %v3848 = vsub.f32 %v2496, %v3528
        %v3849 = vsub.f32 %v2498, %v3528
        %v3850 = vsub.f32 %v2502, %v3531
        %v3851 = vsub.f32 %v2504, %v3531
        %v3852 = vsub.f32 %v2733, %v3534
        %v3853 = vsub.f32 %v2735, %v3534
        %v3854 = vsub.f32 %v2739, %v3537
        %v3855 = vsub.f32 %v2741, %v3537
        %v3856 = vsub.f32 %v2745, %v3540
        %v3857 = vsub.f32 %v2747, %v3540
        %v3858 = vsub.f32 %v2751, %v3543
        %v3859 = vsub.f32 %v2753, %v3543
        %v3860 = vsub.f32 %v2757, %v3546
        %v3861 = vsub.f32 %v2759, %v3546
        %v3862 = vsub.f32 %v2763, %v3549
        %v3863 = vsub.f32 %v2765, %v3549
        %v3864 = vsub.f32 %v2769, %v3552
        %v3865 = vsub.f32 %v2771, %v3552
        %v3866 = vsub.f32 %v2775, %v3555
        %v3867 = vsub.f32 %v2777, %v3555
        %v3868 = vsub.f32 %v2781, %v3558
        %v3869 = vsub.f32 %v2783, %v3558
        %v3870 = vsub.f32 %v2787, %v3561
        %v3871 = vsub.f32 %v2789, %v3561
        %v3872 = vsub.f32 %v2793, %v3564
        %v3873 = vsub.f32 %v2795, %v3564
        %v3874 = vsub.f32 %v2799, %v3567
        %v3875 = vsub.f32 %v2801, %v3567
        %v3876 = vsub.f32 %v2805, %v3570
        %v3877 = vsub.f32 %v2807, %v3570
        %v3878 = vsub.f32 %v2811, %v3573
        %v3879 = vsub.f32 %v2813, %v3573
        %v3880 = vsub.f32 %v2817, %v3576
        %v3881 = vsub.f32 %v2819, %v3576
        %v3882 = vsub.f32 %v2823, %v3579
        %v3883 = vsub.f32 %v2825, %v3579
        %v3884 = vsub.f32 %v2829, %v3582
        %v3885 = vsub.f32 %v2831, %v3582
        %v3886 = vsub.f32 %v2835, %v3585
        %v3887 = vsub.f32 %v2837, %v3585
        %v3888 = vsub.f32 %v2841, %v3588
        %v3889 = vsub.f32 %v2843, %v3588
        %v3890 = vsub.f32 %v2847, %v3591
        %v3891 = vsub.f32 %v2849, %v3591
        %v3892 = vsub.f32 %v2853, %v3594
        %v3893 = vsub.f32 %v2855, %v3594
        %v3894 = vsub.f32 %v2859, %v3597
        %v3895 = vsub.f32 %v2861, %v3597
        %v3896 = vsub.f32 %v2865, %v3600
        %v3897 = vsub.f32 %v2867, %v3600
        %v3898 = vsub.f32 %v2871, %v3603
        %v3899 = vsub.f32 %v2873, %v3603
        %v3900 = vsub.f32 %v2877, %v3606
        %v3901 = vsub.f32 %v2879, %v3606
        %v3902 = vsub.f32 %v2883, %v3609
        %v3903 = vsub.f32 %v2885, %v3609
        %v3904 = vsub.f32 %v2889, %v3612
        %v3905 = vsub.f32 %v2891, %v3612
        %v3906 = vsub.f32 %v2895, %v3615
        %v3907 = vsub.f32 %v2897, %v3615
        %v3908 = vsub.f32 %v2901, %v3618
        %v3909 = vsub.f32 %v2903, %v3618
        %v3910 = vsub.f32 %v2907, %v3621
        %v3911 = vsub.f32 %v2909, %v3621
        %v3912 = vsub.f32 %v2913, %v3624
        %v3913 = vsub.f32 %v2915, %v3624
        %v3914 = vsub.f32 %v2919, %v3627
        %v3915 = vsub.f32 %v2921, %v3627
        %v3916 = vsub.f32 %v3150, %v3630
        %v3917 = vsub.f32 %v3152, %v3630
        %v3918 = vsub.f32 %v3156, %v3633
        %v3919 = vsub.f32 %v3158, %v3633
        %v3920 = vsub.f32 %v3162, %v3636
        %v3921 = vsub.f32 %v3164, %v3636
        %v3922 = vsub.f32 %v3168, %v3639
        %v3923 = vsub.f32 %v3170, %v3639
        %v3924 = vsub.f32 %v3174, %v3642
        %v3925 = vsub.f32 %v3176, %v3642
        %v3926 = vsub.f32 %v3180, %v3645
        %v3927 = vsub.f32 %v3182, %v3645
        %v3928 = vsub.f32 %v3186, %v3648
        %v3929 = vsub.f32 %v3188, %v3648
        %v3930 = vsub.f32 %v3192, %v3651
        %v3931 = vsub.f32 %v3194, %v3651
        %v3932 = vsub.f32 %v3198, %v3654
        %v3933 = vsub.f32 %v3200, %v3654
        %v3934 = vsub.f32 %v3204, %v3657
        %v3935 = vsub.f32 %v3206, %v3657
        %v3936 = vsub.f32 %v3210, %v3660
        %v3937 = vsub.f32 %v3212, %v3660
        %v3938 = vsub.f32 %v3216, %v3663
        %v3939 = vsub.f32 %v3218, %v3663
        %v3940 = vsub.f32 %v3222, %v3666
        %v3941 = vsub.f32 %v3224, %v3666
        %v3942 = vsub.f32 %v3228, %v3669
        %v3943 = vsub.f32 %v3230, %v3669
        %v3944 = vsub.f32 %v3234, %v3672
        %v3945 = vsub.f32 %v3236, %v3672
        %v3946 = vsub.f32 %v3240, %v3675
        %v3947 = vsub.f32 %v3242, %v3675
        %v3948 = vsub.f32 %v3246, %v3678
        %v3949 = vsub.f32 %v3248, %v3678
        %v3950 = vsub.f32 %v3252, %v3681
        %v3951 = vsub.f32 %v3254, %v3681
        %v3952 = vsub.f32 %v3258, %v3684
        %v3953 = vsub.f32 %v3260, %v3684
        %v3954 = vsub.f32 %v3264, %v3687
        %v3955 = vsub.f32 %v3266, %v3687
        %v3956 = vsub.f32 %v3270, %v3690
        %v3957 = vsub.f32 %v3272, %v3690
        %v3958 = vsub.f32 %v3276, %v3693
        %v3959 = vsub.f32 %v3278, %v3693
        %v3960 = vsub.f32 %v3282, %v3696
        %v3961 = vsub.f32 %v3284, %v3696
        %v3962 = vsub.f32 %v3288, %v3699
        %v3963 = vsub.f32 %v3290, %v3699
        %v3964 = vsub.f32 %v3294, %v3702
        %v3965 = vsub.f32 %v3296, %v3702
        %v3966 = vsub.f32 %v3300, %v3705
        %v3967 = vsub.f32 %v3302, %v3705
        %v3968 = vsub.f32 %v3306, %v3708
        %v3969 = vsub.f32 %v3308, %v3708
        %v3970 = vsub.f32 %v3312, %v3711
        %v3971 = vsub.f32 %v3314, %v3711
        %v3972 = vsub.f32 %v3318, %v3714
        %v3973 = vsub.f32 %v3320, %v3714
        %v3974 = vsub.f32 %v3324, %v3717
        %v3975 = vsub.f32 %v3326, %v3717
        %v3976 = vsub.f32 %v3330, %v3720
        %v3977 = vsub.f32 %v3332, %v3720
        %v3978 = vsub.f32 %v3336, %v3723
        %v3979 = vsub.f32 %v3338, %v3723
        %v3980 = vmul.f32 %v3724, 1.442695
        %v3981 = vpow.pop %v3980
        %v3982 = vmul.f32 %v3725, 1.442695
        %v3983 = vpow.pop %v3982
        %v3984 = vmul.f32 %v3726, 1.442695
        %v3985 = vpow.pop %v3984
        %v3986 = vmul.f32 %v3727, 1.442695
        %v3987 = vpow.pop %v3986
        %v3988 = vmul.f32 %v3728, 1.442695
        %v3989 = vpow.pop %v3988
        %v3990 = vmul.f32 %v3729, 1.442695
        %v3991 = vpow.pop %v3990
        %v3992 = vmul.f32 %v3730, 1.442695
        %v3993 = vpow.pop %v3992
        %v3994 = vmul.f32 %v3731, 1.442695
        %v3995 = vpow.pop %v3994
        %v3996 = vmul.f32 %v3732, 1.442695
        %v3997 = vpow.pop %v3996
        %v3998 = vmul.f32 %v3733, 1.442695
        %v3999 = vpow.pop %v3998
        %v4000 = vmul.f32 %v3734, 1.442695
        %v4001 = vpow.pop %v4000
        %v4002 = vmul.f32 %v3735, 1.442695
        %v4003 = vpow.pop %v4002
        %v4004 = vmul.f32 %v3736, 1.442695
        %v4005 = vpow.pop %v4004
        %v4006 = vmul.f32 %v3737, 1.442695
        %v4007 = vpow.pop %v4006
        %v4008 = vmul.f32 %v3738, 1.442695
        %v4009 = vpow.pop %v4008
        %v4010 = vmul.f32 %v3739, 1.442695
        %v4011 = vpow.pop %v4010
        %v4012 = vmul.f32 %v3740, 1.442695
        %v4013 = vpow.pop %v4012
        %v4014 = vmul.f32 %v3741, 1.442695
        %v4015 = vpow.pop %v4014
        %v4016 = vmul.f32 %v3742, 1.442695
        %v4017 = vpow.pop %v4016
        %v4018 = vmul.f32 %v3743, 1.442695
        %v4019 = vpow.pop %v4018
        %v4020 = vmul.f32 %v3744, 1.442695
        %v4021 = vpow.pop %v4020
        %v4022 = vmul.f32 %v3745, 1.442695
        %v4023 = vpow.pop %v4022
        %v4024 = vmul.f32 %v3746, 1.442695
        %v4025 = vpow.pop %v4024
        %v4026 = vmul.f32 %v3747, 1.442695
        %v4027 = vpow.pop %v4026
        %v4028 = vmul.f32 %v3748, 1.442695
        %v4029 = vpow.pop %v4028
        %v4030 = vmul.f32 %v3749, 1.442695
        %v4031 = vpow.pop %v4030
        %v4032 = vmul.f32 %v3750, 1.442695
        %v4033 = vpow.pop %v4032
        %v4034 = vmul.f32 %v3751, 1.442695
        %v4035 = vpow.pop %v4034
        %v4036 = vmul.f32 %v3752, 1.442695
        %v4037 = vpow.pop %v4036
        %v4038 = vmul.f32 %v3753, 1.442695
        %v4039 = vpow.pop %v4038
        %v4040 = vmul.f32 %v3754, 1.442695
        %v4041 = vpow.pop %v4040
        %v4042 = vmul.f32 %v3755, 1.442695
        %v4043 = vpow.pop %v4042
        %v4044 = vmul.f32 %v3756, 1.442695
        %v4045 = vpow.pop %v4044
        %v4046 = vmul.f32 %v3757, 1.442695
        %v4047 = vpow.pop %v4046
        %v4048 = vmul.f32 %v3758, 1.442695
        %v4049 = vpow.pop %v4048
        %v4050 = vmul.f32 %v3759, 1.442695
        %v4051 = vpow.pop %v4050
        %v4052 = vmul.f32 %v3760, 1.442695
        %v4053 = vpow.pop %v4052
        %v4054 = vmul.f32 %v3761, 1.442695
        %v4055 = vpow.pop %v4054
        %v4056 = vmul.f32 %v3762, 1.442695
        %v4057 = vpow.pop %v4056
        %v4058 = vmul.f32 %v3763, 1.442695
        %v4059 = vpow.pop %v4058
        %v4060 = vmul.f32 %v3764, 1.442695
        %v4061 = vpow.pop %v4060
        %v4062 = vmul.f32 %v3765, 1.442695
        %v4063 = vpow.pop %v4062
        %v4064 = vmul.f32 %v3766, 1.442695
        %v4065 = vpow.pop %v4064
        %v4066 = vmul.f32 %v3767, 1.442695
        %v4067 = vpow.pop %v4066
        %v4068 = vmul.f32 %v3768, 1.442695
        %v4069 = vpow.pop %v4068
        %v4070 = vmul.f32 %v3769, 1.442695
        %v4071 = vpow.pop %v4070
        %v4072 = vmul.f32 %v3770, 1.442695
        %v4073 = vpow.pop %v4072
        %v4074 = vmul.f32 %v3771, 1.442695
        %v4075 = vpow.pop %v4074
        %v4076 = vmul.f32 %v3772, 1.442695
        %v4077 = vpow.pop %v4076
        %v4078 = vmul.f32 %v3773, 1.442695
        %v4079 = vpow.pop %v4078
        %v4080 = vmul.f32 %v3774, 1.442695
        %v4081 = vpow.pop %v4080
        %v4082 = vmul.f32 %v3775, 1.442695
        %v4083 = vpow.pop %v4082
        %v4084 = vmul.f32 %v3776, 1.442695
        %v4085 = vpow.pop %v4084
        %v4086 = vmul.f32 %v3777, 1.442695
        %v4087 = vpow.pop %v4086
        %v4088 = vmul.f32 %v3778, 1.442695
        %v4089 = vpow.pop %v4088
        %v4090 = vmul.f32 %v3779, 1.442695
        %v4091 = vpow.pop %v4090
        %v4092 = vmul.f32 %v3780, 1.442695
        %v4093 = vpow.pop %v4092
        %v4094 = vmul.f32 %v3781, 1.442695
        %v4095 = vpow.pop %v4094
        %v4096 = vmul.f32 %v3782, 1.442695
        %v4097 = vpow.pop %v4096
        %v4098 = vmul.f32 %v3783, 1.442695
        %v4099 = vpow.pop %v4098
        %v4100 = vmul.f32 %v3784, 1.442695
        %v4101 = vpow.pop %v4100
        %v4102 = vmul.f32 %v3785, 1.442695
        %v4103 = vpow.pop %v4102
        %v4104 = vmul.f32 %v3786, 1.442695
        %v4105 = vpow.pop %v4104
        %v4106 = vmul.f32 %v3787, 1.442695
        %v4107 = vpow.pop %v4106
        %v4108 = vmul.f32 %v3788, 1.442695
        %v4109 = vpow.pop %v4108
        %v4110 = vmul.f32 %v3789, 1.442695
        %v4111 = vpow.pop %v4110
        %v4112 = vmul.f32 %v3790, 1.442695
        %v4113 = vpow.pop %v4112
        %v4114 = vmul.f32 %v3791, 1.442695
        %v4115 = vpow.pop %v4114
        %v4116 = vmul.f32 %v3792, 1.442695
        %v4117 = vpow.pop %v4116
        %v4118 = vmul.f32 %v3793, 1.442695
        %v4119 = vpow.pop %v4118
        %v4120 = vmul.f32 %v3794, 1.442695
        %v4121 = vpow.pop %v4120
        %v4122 = vmul.f32 %v3795, 1.442695
        %v4123 = vpow.pop %v4122
        %v4124 = vmul.f32 %v3796, 1.442695
        %v4125 = vpow.pop %v4124
        %v4126 = vmul.f32 %v3797, 1.442695
        %v4127 = vpow.pop %v4126
        %v4128 = vmul.f32 %v3798, 1.442695
        %v4129 = vpow.pop %v4128
        %v4130 = vmul.f32 %v3799, 1.442695
        %v4131 = vpow.pop %v4130
        %v4132 = vmul.f32 %v3800, 1.442695
        %v4133 = vpow.pop %v4132
        %v4134 = vmul.f32 %v3801, 1.442695
        %v4135 = vpow.pop %v4134
        %v4136 = vmul.f32 %v3802, 1.442695
        %v4137 = vpow.pop %v4136
        %v4138 = vmul.f32 %v3803, 1.442695
        %v4139 = vpow.pop %v4138
        %v4140 = vmul.f32 %v3804, 1.442695
        %v4141 = vpow.pop %v4140
        %v4142 = vmul.f32 %v3805, 1.442695
        %v4143 = vpow.pop %v4142
        %v4144 = vmul.f32 %v3806, 1.442695
        %v4145 = vpow.pop %v4144
        %v4146 = vmul.f32 %v3807, 1.442695
        %v4147 = vpow.pop %v4146
        %v4148 = vmul.f32 %v3808, 1.442695
        %v4149 = vpow.pop %v4148
        %v4150 = vmul.f32 %v3809, 1.442695
        %v4151 = vpow.pop %v4150
        %v4152 = vmul.f32 %v3810, 1.442695
        %v4153 = vpow.pop %v4152
        %v4154 = vmul.f32 %v3811, 1.442695
        %v4155 = vpow.pop %v4154
        %v4156 = vmul.f32 %v3812, 1.442695
        %v4157 = vpow.pop %v4156
        %v4158 = vmul.f32 %v3813, 1.442695
        %v4159 = vpow.pop %v4158
        %v4160 = vmul.f32 %v3814, 1.442695
        %v4161 = vpow.pop %v4160
        %v4162 = vmul.f32 %v3815, 1.442695
        %v4163 = vpow.pop %v4162
        %v4164 = vmul.f32 %v3816, 1.442695
        %v4165 = vpow.pop %v4164
        %v4166 = vmul.f32 %v3817, 1.442695
        %v4167 = vpow.pop %v4166
        %v4168 = vmul.f32 %v3818, 1.442695
        %v4169 = vpow.pop %v4168
        %v4170 = vmul.f32 %v3819, 1.442695
        %v4171 = vpow.pop %v4170
        %v4172 = vmul.f32 %v3820, 1.442695
        %v4173 = vpow.pop %v4172
        %v4174 = vmul.f32 %v3821, 1.442695
        %v4175 = vpow.pop %v4174
        %v4176 = vmul.f32 %v3822, 1.442695
        %v4177 = vpow.pop %v4176
        %v4178 = vmul.f32 %v3823, 1.442695
        %v4179 = vpow.pop %v4178
        %v4180 = vmul.f32 %v3824, 1.442695
        %v4181 = vpow.pop %v4180
        %v4182 = vmul.f32 %v3825, 1.442695
        %v4183 = vpow.pop %v4182
        %v4184 = vmul.f32 %v3826, 1.442695
        %v4185 = vpow.pop %v4184
        %v4186 = vmul.f32 %v3827, 1.442695
        %v4187 = vpow.pop %v4186
        %v4188 = vmul.f32 %v3828, 1.442695
        %v4189 = vpow.pop %v4188
        %v4190 = vmul.f32 %v3829, 1.442695
        %v4191 = vpow.pop %v4190
        %v4192 = vmul.f32 %v3830, 1.442695
        %v4193 = vpow.pop %v4192
        %v4194 = vmul.f32 %v3831, 1.442695
        %v4195 = vpow.pop %v4194
        %v4196 = vmul.f32 %v3832, 1.442695
        %v4197 = vpow.pop %v4196
        %v4198 = vmul.f32 %v3833, 1.442695
        %v4199 = vpow.pop %v4198
        %v4200 = vmul.f32 %v3834, 1.442695
        %v4201 = vpow.pop %v4200
        %v4202 = vmul.f32 %v3835, 1.442695
        %v4203 = vpow.pop %v4202
        %v4204 = vmul.f32 %v3836, 1.442695
        %v4205 = vpow.pop %v4204
        %v4206 = vmul.f32 %v3837, 1.442695
        %v4207 = vpow.pop %v4206
        %v4208 = vmul.f32 %v3838, 1.442695
        %v4209 = vpow.pop %v4208
        %v4210 = vmul.f32 %v3839, 1.442695
        %v4211 = vpow.pop %v4210
        %v4212 = vmul.f32 %v3840, 1.442695
        %v4213 = vpow.pop %v4212
        %v4214 = vmul.f32 %v3841, 1.442695
        %v4215 = vpow.pop %v4214
        %v4216 = vmul.f32 %v3842, 1.442695
        %v4217 = vpow.pop %v4216
        %v4218 = vmul.f32 %v3843, 1.442695
        %v4219 = vpow.pop %v4218
        %v4220 = vmul.f32 %v3844, 1.442695
        %v4221 = vpow.pop %v4220
        %v4222 = vmul.f32 %v3845, 1.442695
        %v4223 = vpow.pop %v4222
        %v4224 = vmul.f32 %v3846, 1.442695
        %v4225 = vpow.pop %v4224
        %v4226 = vmul.f32 %v3847, 1.442695
        %v4227 = vpow.pop %v4226
        %v4228 = vmul.f32 %v3848, 1.442695
        %v4229 = vpow.pop %v4228
        %v4230 = vmul.f32 %v3849, 1.442695
        %v4231 = vpow.pop %v4230
        %v4232 = vmul.f32 %v3850, 1.442695
        %v4233 = vpow.pop %v4232
        %v4234 = vmul.f32 %v3851, 1.442695
        %v4235 = vpow.pop %v4234
        %v4236 = vmul.f32 %v3852, 1.442695
        %v4237 = vpow.pop %v4236
        %v4238 = vmul.f32 %v3853, 1.442695
        %v4239 = vpow.pop %v4238
        %v4240 = vmul.f32 %v3854, 1.442695
        %v4241 = vpow.pop %v4240
        %v4242 = vmul.f32 %v3855, 1.442695
        %v4243 = vpow.pop %v4242
        %v4244 = vmul.f32 %v3856, 1.442695
        %v4245 = vpow.pop %v4244
        %v4246 = vmul.f32 %v3857, 1.442695
        %v4247 = vpow.pop %v4246
        %v4248 = vmul.f32 %v3858, 1.442695
        %v4249 = vpow.pop %v4248
        %v4250 = vmul.f32 %v3859, 1.442695
        %v4251 = vpow.pop %v4250
        %v4252 = vmul.f32 %v3860, 1.442695
        %v4253 = vpow.pop %v4252
        %v4254 = vmul.f32 %v3861, 1.442695
        %v4255 = vpow.pop %v4254
        %v4256 = vmul.f32 %v3862, 1.442695
        %v4257 = vpow.pop %v4256
        %v4258 = vmul.f32 %v3863, 1.442695
        %v4259 = vpow.pop %v4258
        %v4260 = vmul.f32 %v3864, 1.442695
        %v4261 = vpow.pop %v4260
        %v4262 = vmul.f32 %v3865, 1.442695
        %v4263 = vpow.pop %v4262
        %v4264 = vmul.f32 %v3866, 1.442695
        %v4265 = vpow.pop %v4264
        %v4266 = vmul.f32 %v3867, 1.442695
        %v4267 = vpow.pop %v4266
        %v4268 = vmul.f32 %v3868, 1.442695
        %v4269 = vpow.pop %v4268
        %v4270 = vmul.f32 %v3869, 1.442695
        %v4271 = vpow.pop %v4270
        %v4272 = vmul.f32 %v3870, 1.442695
        %v4273 = vpow.pop %v4272
        %v4274 = vmul.f32 %v3871, 1.442695
        %v4275 = vpow.pop %v4274
        %v4276 = vmul.f32 %v3872, 1.442695
        %v4277 = vpow.pop %v4276
        %v4278 = vmul.f32 %v3873, 1.442695
        %v4279 = vpow.pop %v4278
        %v4280 = vmul.f32 %v3874, 1.442695
        %v4281 = vpow.pop %v4280
        %v4282 = vmul.f32 %v3875, 1.442695
        %v4283 = vpow.pop %v4282
        %v4284 = vmul.f32 %v3876, 1.442695
        %v4285 = vpow.pop %v4284
        %v4286 = vmul.f32 %v3877, 1.442695
        %v4287 = vpow.pop %v4286
        %v4288 = vmul.f32 %v3878, 1.442695
        %v4289 = vpow.pop %v4288
        %v4290 = vmul.f32 %v3879, 1.442695
        %v4291 = vpow.pop %v4290
        %v4292 = vmul.f32 %v3880, 1.442695
        %v4293 = vpow.pop %v4292
        %v4294 = vmul.f32 %v3881, 1.442695
        %v4295 = vpow.pop %v4294
        %v4296 = vmul.f32 %v3882, 1.442695
        %v4297 = vpow.pop %v4296
        %v4298 = vmul.f32 %v3883, 1.442695
        %v4299 = vpow.pop %v4298
        %v4300 = vmul.f32 %v3884, 1.442695
        %v4301 = vpow.pop %v4300
        %v4302 = vmul.f32 %v3885, 1.442695
        %v4303 = vpow.pop %v4302
        %v4304 = vmul.f32 %v3886, 1.442695
        %v4305 = vpow.pop %v4304
        %v4306 = vmul.f32 %v3887, 1.442695
        %v4307 = vpow.pop %v4306
        %v4308 = vmul.f32 %v3888, 1.442695
        %v4309 = vpow.pop %v4308
        %v4310 = vmul.f32 %v3889, 1.442695
        %v4311 = vpow.pop %v4310
        %v4312 = vmul.f32 %v3890, 1.442695
        %v4313 = vpow.pop %v4312
        %v4314 = vmul.f32 %v3891, 1.442695
        %v4315 = vpow.pop %v4314
        %v4316 = vmul.f32 %v3892, 1.442695
        %v4317 = vpow.pop %v4316
        %v4318 = vmul.f32 %v3893, 1.442695
        %v4319 = vpow.pop %v4318
        %v4320 = vmul.f32 %v3894, 1.442695
        %v4321 = vpow.pop %v4320
        %v4322 = vmul.f32 %v3895, 1.442695
        %v4323 = vpow.pop %v4322
        %v4324 = vmul.f32 %v3896, 1.442695
        %v4325 = vpow.pop %v4324
        %v4326 = vmul.f32 %v3897, 1.442695
        %v4327 = vpow.pop %v4326
        %v4328 = vmul.f32 %v3898, 1.442695
        %v4329 = vpow.pop %v4328
        %v4330 = vmul.f32 %v3899, 1.442695
        %v4331 = vpow.pop %v4330
        %v4332 = vmul.f32 %v3900, 1.442695
        %v4333 = vpow.pop %v4332
        %v4334 = vmul.f32 %v3901, 1.442695
        %v4335 = vpow.pop %v4334
        %v4336 = vmul.f32 %v3902, 1.442695
        %v4337 = vpow.pop %v4336
        %v4338 = vmul.f32 %v3903, 1.442695
        %v4339 = vpow.pop %v4338
        %v4340 = vmul.f32 %v3904, 1.442695
        %v4341 = vpow.pop %v4340
        %v4342 = vmul.f32 %v3905, 1.442695
        %v4343 = vpow.pop %v4342
        %v4344 = vmul.f32 %v3906, 1.442695
        %v4345 = vpow.pop %v4344
        %v4346 = vmul.f32 %v3907, 1.442695
        %v4347 = vpow.pop %v4346
        %v4348 = vmul.f32 %v3908, 1.442695
        %v4349 = vpow.pop %v4348
        %v4350 = vmul.f32 %v3909, 1.442695
        %v4351 = vpow.pop %v4350
        %v4352 = vmul.f32 %v3910, 1.442695
        %v4353 = vpow.pop %v4352
        %v4354 = vmul.f32 %v3911, 1.442695
        %v4355 = vpow.pop %v4354
        %v4356 = vmul.f32 %v3912, 1.442695
        %v4357 = vpow.pop %v4356
        %v4358 = vmul.f32 %v3913, 1.442695
        %v4359 = vpow.pop %v4358
        %v4360 = vmul.f32 %v3914, 1.442695
        %v4361 = vpow.pop %v4360
        %v4362 = vmul.f32 %v3915, 1.442695
        %v4363 = vpow.pop %v4362
        %v4364 = vmul.f32 %v3916, 1.442695
        %v4365 = vpow.pop %v4364
        %v4366 = vmul.f32 %v3917, 1.442695
        %v4367 = vpow.pop %v4366
        %v4368 = vmul.f32 %v3918, 1.442695
        %v4369 = vpow.pop %v4368
        %v4370 = vmul.f32 %v3919, 1.442695
        %v4371 = vpow.pop %v4370
        %v4372 = vmul.f32 %v3920, 1.442695
        %v4373 = vpow.pop %v4372
        %v4374 = vmul.f32 %v3921, 1.442695
        %v4375 = vpow.pop %v4374
        %v4376 = vmul.f32 %v3922, 1.442695
        %v4377 = vpow.pop %v4376
        %v4378 = vmul.f32 %v3923, 1.442695
        %v4379 = vpow.pop %v4378
        %v4380 = vmul.f32 %v3924, 1.442695
        %v4381 = vpow.pop %v4380
        %v4382 = vmul.f32 %v3925, 1.442695
        %v4383 = vpow.pop %v4382
        %v4384 = vmul.f32 %v3926, 1.442695
        %v4385 = vpow.pop %v4384
        %v4386 = vmul.f32 %v3927, 1.442695
        %v4387 = vpow.pop %v4386
        %v4388 = vmul.f32 %v3928, 1.442695
        %v4389 = vpow.pop %v4388
        %v4390 = vmul.f32 %v3929, 1.442695
        %v4391 = vpow.pop %v4390
        %v4392 = vmul.f32 %v3930, 1.442695
        %v4393 = vpow.pop %v4392
        %v4394 = vmul.f32 %v3931, 1.442695
        %v4395 = vpow.pop %v4394
        %v4396 = vmul.f32 %v3932, 1.442695
        %v4397 = vpow.pop %v4396
        %v4398 = vmul.f32 %v3933, 1.442695
        %v4399 = vpow.pop %v4398
        %v4400 = vmul.f32 %v3934, 1.442695
        %v4401 = vpow.pop %v4400
        %v4402 = vmul.f32 %v3935, 1.442695
        %v4403 = vpow.pop %v4402
        %v4404 = vmul.f32 %v3936, 1.442695
        %v4405 = vpow.pop %v4404
        %v4406 = vmul.f32 %v3937, 1.442695
        %v4407 = vpow.pop %v4406
        %v4408 = vmul.f32 %v3938, 1.442695
        %v4409 = vpow.pop %v4408
        %v4410 = vmul.f32 %v3939, 1.442695
        %v4411 = vpow.pop %v4410
        %v4412 = vmul.f32 %v3940, 1.442695
        %v4413 = vpow.pop %v4412
        %v4414 = vmul.f32 %v3941, 1.442695
        %v4415 = vpow.pop %v4414
        %v4416 = vmul.f32 %v3942, 1.442695
        %v4417 = vpow.pop %v4416
        %v4418 = vmul.f32 %v3943, 1.442695
        %v4419 = vpow.pop %v4418
        %v4420 = vmul.f32 %v3944, 1.442695
        %v4421 = vpow.pop %v4420
        %v4422 = vmul.f32 %v3945, 1.442695
        %v4423 = vpow.pop %v4422
        %v4424 = vmul.f32 %v3946, 1.442695
        %v4425 = vpow.pop %v4424
        %v4426 = vmul.f32 %v3947, 1.442695
        %v4427 = vpow.pop %v4426
        %v4428 = vmul.f32 %v3948, 1.442695
        %v4429 = vpow.pop %v4428
        %v4430 = vmul.f32 %v3949, 1.442695
        %v4431 = vpow.pop %v4430
        %v4432 = vmul.f32 %v3950, 1.442695
        %v4433 = vpow.pop %v4432
        %v4434 = vmul.f32 %v3951, 1.442695
        %v4435 = vpow.pop %v4434
        %v4436 = vmul.f32 %v3952, 1.442695
        %v4437 = vpow.pop %v4436
        %v4438 = vmul.f32 %v3953, 1.442695
        %v4439 = vpow.pop %v4438
        %v4440 = vmul.f32 %v3954, 1.442695
        %v4441 = vpow.pop %v4440
        %v4442 = vmul.f32 %v3955, 1.442695
        %v4443 = vpow.pop %v4442
        %v4444 = vmul.f32 %v3956, 1.442695
        %v4445 = vpow.pop %v4444
        %v4446 = vmul.f32 %v3957, 1.442695
        %v4447 = vpow.pop %v4446
        %v4448 = vmul.f32 %v3958, 1.442695
        %v4449 = vpow.pop %v4448
        %v4450 = vmul.f32 %v3959, 1.442695
        %v4451 = vpow.pop %v4450
        %v4452 = vmul.f32 %v3960, 1.442695
        %v4453 = vpow.pop %v4452
        %v4454 = vmul.f32 %v3961, 1.442695
        %v4455 = vpow.pop %v4454
        %v4456 = vmul.f32 %v3962, 1.442695
        %v4457 = vpow.pop %v4456
        %v4458 = vmul.f32 %v3963, 1.442695
        %v4459 = vpow.pop %v4458
        %v4460 = vmul.f32 %v3964, 1.442695
        %v4461 = vpow.pop %v4460
        %v4462 = vmul.f32 %v3965, 1.442695
        %v4463 = vpow.pop %v4462
        %v4464 = vmul.f32 %v3966, 1.442695
        %v4465 = vpow.pop %v4464
        %v4466 = vmul.f32 %v3967, 1.442695
        %v4467 = vpow.pop %v4466
        %v4468 = vmul.f32 %v3968, 1.442695
        %v4469 = vpow.pop %v4468
        %v4470 = vmul.f32 %v3969, 1.442695
        %v4471 = vpow.pop %v4470
        %v4472 = vmul.f32 %v3970, 1.442695
        %v4473 = vpow.pop %v4472
        %v4474 = vmul.f32 %v3971, 1.442695
        %v4475 = vpow.pop %v4474
        %v4476 = vmul.f32 %v3972, 1.442695
        %v4477 = vpow.pop %v4476
        %v4478 = vmul.f32 %v3973, 1.442695
        %v4479 = vpow.pop %v4478
        %v4480 = vmul.f32 %v3974, 1.442695
        %v4481 = vpow.pop %v4480
        %v4482 = vmul.f32 %v3975, 1.442695
        %v4483 = vpow.pop %v4482
        %v4484 = vmul.f32 %v3976, 1.442695
        %v4485 = vpow.pop %v4484
        %v4486 = vmul.f32 %v3977, 1.442695
        %v4487 = vpow.pop %v4486
        %v4488 = vmul.f32 %v3978, 1.442695
        %v4489 = vpow.pop %v4488
        %v4490 = vmul.f32 %v3979, 1.442695
        %v4491 = vpow.pop %v4490
        %v4492 = vadd.f32 %v3981, %v3983
        %4493 = vadd.xlane.f32.xlu0 %v4492
        %v4494 = vpop.xlane.xlu0 %4493
        %v4495 = vadd.f32 %v3985, %v3987
        %4496 = vadd.xlane.f32.xlu0 %v4495
        %v4497 = vpop.xlane.xlu0 %4496
        %v4498 = vadd.f32 %v3989, %v3991
        %4499 = vadd.xlane.f32.xlu0 %v4498
        %v4500 = vpop.xlane.xlu0 %4499
        %v4501 = vadd.f32 %v3993, %v3995
        %4502 = vadd.xlane.f32.xlu0 %v4501
        %v4503 = vpop.xlane.xlu0 %4502
        %v4504 = vadd.f32 %v3997, %v3999
        %4505 = vadd.xlane.f32.xlu0 %v4504
        %v4506 = vpop.xlane.xlu0 %4505
        %v4507 = vadd.f32 %v4001, %v4003
        %4508 = vadd.xlane.f32.xlu0 %v4507
        %v4509 = vpop.xlane.xlu0 %4508
        %v4510 = vadd.f32 %v4005, %v4007
        %4511 = vadd.xlane.f32.xlu0 %v4510
        %v4512 = vpop.xlane.xlu0 %4511
        %v4513 = vadd.f32 %v4009, %v4011
        %4514 = vadd.xlane.f32.xlu0 %v4513
        %v4515 = vpop.xlane.xlu0 %4514
        %v4516 = vadd.f32 %v4013, %v4015
        %4517 = vadd.xlane.f32.xlu0 %v4516
        %v4518 = vpop.xlane.xlu0 %4517
        %v4519 = vadd.f32 %v4017, %v4019
        %4520 = vadd.xlane.f32.xlu0 %v4519
        %v4521 = vpop.xlane.xlu0 %4520
        %v4522 = vadd.f32 %v4021, %v4023
        %4523 = vadd.xlane.f32.xlu0 %v4522
        %v4524 = vpop.xlane.xlu0 %4523
        %v4525 = vadd.f32 %v4025, %v4027
        %4526 = vadd.xlane.f32.xlu0 %v4525
        %v4527 = vpop.xlane.xlu0 %4526
        %v4528 = vadd.f32 %v4029, %v4031
        %4529 = vadd.xlane.f32.xlu0 %v4528
        %v4530 = vpop.xlane.xlu0 %4529
        %v4531 = vadd.f32 %v4033, %v4035
        %4532 = vadd.xlane.f32.xlu0 %v4531
        %v4533 = vpop.xlane.xlu0 %4532
        %v4534 = vadd.f32 %v4037, %v4039
        %4535 = vadd.xlane.f32.xlu0 %v4534
        %v4536 = vpop.xlane.xlu0 %4535
        %v4537 = vadd.f32 %v4041, %v4043
        %4538 = vadd.xlane.f32.xlu0 %v4537
        %v4539 = vpop.xlane.xlu0 %4538
        %v4540 = vadd.f32 %v4045, %v4047
        %4541 = vadd.xlane.f32.xlu0 %v4540
        %v4542 = vpop.xlane.xlu0 %4541
        %v4543 = vadd.f32 %v4049, %v4051
        %4544 = vadd.xlane.f32.xlu0 %v4543
        %v4545 = vpop.xlane.xlu0 %4544
        %v4546 = vadd.f32 %v4053, %v4055
        %4547 = vadd.xlane.f32.xlu0 %v4546
        %v4548 = vpop.xlane.xlu0 %4547
        %v4549 = vadd.f32 %v4057, %v4059
        %4550 = vadd.xlane.f32.xlu0 %v4549
        %v4551 = vpop.xlane.xlu0 %4550
        %v4552 = vadd.f32 %v4061, %v4063
        %4553 = vadd.xlane.f32.xlu0 %v4552
        %v4554 = vpop.xlane.xlu0 %4553
        %v4555 = vadd.f32 %v4065, %v4067
        %4556 = vadd.xlane.f32.xlu0 %v4555
        %v4557 = vpop.xlane.xlu0 %4556
        %v4558 = vadd.f32 %v4069, %v4071
        %4559 = vadd.xlane.f32.xlu0 %v4558
        %v4560 = vpop.xlane.xlu0 %4559
        %v4561 = vadd.f32 %v4073, %v4075
        %4562 = vadd.xlane.f32.xlu0 %v4561
        %v4563 = vpop.xlane.xlu0 %4562
        %v4564 = vadd.f32 %v4077, %v4079
        %4565 = vadd.xlane.f32.xlu0 %v4564
        %v4566 = vpop.xlane.xlu0 %4565
        %v4567 = vadd.f32 %v4081, %v4083
        %4568 = vadd.xlane.f32.xlu0 %v4567
        %v4569 = vpop.xlane.xlu0 %4568
        %v4570 = vadd.f32 %v4085, %v4087
        %4571 = vadd.xlane.f32.xlu0 %v4570
        %v4572 = vpop.xlane.xlu0 %4571
        %v4573 = vadd.f32 %v4089, %v4091
        %4574 = vadd.xlane.f32.xlu0 %v4573
        %v4575 = vpop.xlane.xlu0 %4574
        %v4576 = vadd.f32 %v4093, %v4095
        %4577 = vadd.xlane.f32.xlu0 %v4576
        %v4578 = vpop.xlane.xlu0 %4577
        %v4579 = vadd.f32 %v4097, %v4099
        %4580 = vadd.xlane.f32.xlu0 %v4579
        %v4581 = vpop.xlane.xlu0 %4580
        %v4582 = vadd.f32 %v4101, %v4103
        %4583 = vadd.xlane.f32.xlu0 %v4582
        %v4584 = vpop.xlane.xlu0 %4583
        %v4585 = vadd.f32 %v4105, %v4107
        %4586 = vadd.xlane.f32.xlu0 %v4585
        %v4587 = vpop.xlane.xlu0 %4586
        %v4588 = vadd.f32 %v4109, %v4111
        %4589 = vadd.xlane.f32.xlu0 %v4588
        %v4590 = vpop.xlane.xlu0 %4589
        %v4591 = vadd.f32 %v4113, %v4115
        %4592 = vadd.xlane.f32.xlu0 %v4591
        %v4593 = vpop.xlane.xlu0 %4592
        %v4594 = vadd.f32 %v4117, %v4119
        %4595 = vadd.xlane.f32.xlu0 %v4594
        %v4596 = vpop.xlane.xlu0 %4595
        %v4597 = vadd.f32 %v4121, %v4123
        %4598 = vadd.xlane.f32.xlu0 %v4597
        %v4599 = vpop.xlane.xlu0 %4598
        %v4600 = vadd.f32 %v4125, %v4127
        %4601 = vadd.xlane.f32.xlu0 %v4600
        %v4602 = vpop.xlane.xlu0 %4601
        %v4603 = vadd.f32 %v4129, %v4131
        %4604 = vadd.xlane.f32.xlu0 %v4603
        %v4605 = vpop.xlane.xlu0 %4604
        %v4606 = vadd.f32 %v4133, %v4135
        %4607 = vadd.xlane.f32.xlu0 %v4606
        %v4608 = vpop.xlane.xlu0 %4607
        %v4609 = vadd.f32 %v4137, %v4139
        %4610 = vadd.xlane.f32.xlu0 %v4609
        %v4611 = vpop.xlane.xlu0 %4610
        %v4612 = vadd.f32 %v4141, %v4143
        %4613 = vadd.xlane.f32.xlu0 %v4612
        %v4614 = vpop.xlane.xlu0 %4613
        %v4615 = vadd.f32 %v4145, %v4147
        %4616 = vadd.xlane.f32.xlu0 %v4615
        %v4617 = vpop.xlane.xlu0 %4616
        %v4618 = vadd.f32 %v4149, %v4151
        %4619 = vadd.xlane.f32.xlu0 %v4618
        %v4620 = vpop.xlane.xlu0 %4619
        %v4621 = vadd.f32 %v4153, %v4155
        %4622 = vadd.xlane.f32.xlu0 %v4621
        %v4623 = vpop.xlane.xlu0 %4622
        %v4624 = vadd.f32 %v4157, %v4159
        %4625 = vadd.xlane.f32.xlu0 %v4624
        %v4626 = vpop.xlane.xlu0 %4625
        %v4627 = vadd.f32 %v4161, %v4163
        %4628 = vadd.xlane.f32.xlu0 %v4627
        %v4629 = vpop.xlane.xlu0 %4628
        %v4630 = vadd.f32 %v4165, %v4167
        %4631 = vadd.xlane.f32.xlu0 %v4630
        %v4632 = vpop.xlane.xlu0 %4631
        %v4633 = vadd.f32 %v4169, %v4171
        %4634 = vadd.xlane.f32.xlu0 %v4633
        %v4635 = vpop.xlane.xlu0 %4634
        %v4636 = vadd.f32 %v4173, %v4175
        %4637 = vadd.xlane.f32.xlu0 %v4636
        %v4638 = vpop.xlane.xlu0 %4637
        %v4639 = vadd.f32 %v4177, %v4179
        %4640 = vadd.xlane.f32.xlu0 %v4639
        %v4641 = vpop.xlane.xlu0 %4640
        %v4642 = vadd.f32 %v4181, %v4183
        %4643 = vadd.xlane.f32.xlu0 %v4642
        %v4644 = vpop.xlane.xlu0 %4643
        %v4645 = vadd.f32 %v4185, %v4187
        %4646 = vadd.xlane.f32.xlu0 %v4645
        %v4647 = vpop.xlane.xlu0 %4646
        %v4648 = vadd.f32 %v4189, %v4191
        %4649 = vadd.xlane.f32.xlu0 %v4648
        %v4650 = vpop.xlane.xlu0 %4649
        %v4651 = vadd.f32 %v4193, %v4195
        %4652 = vadd.xlane.f32.xlu0 %v4651
        %v4653 = vpop.xlane.xlu0 %4652
        %v4654 = vadd.f32 %v4197, %v4199
        %4655 = vadd.xlane.f32.xlu0 %v4654
        %v4656 = vpop.xlane.xlu0 %4655
        %v4657 = vadd.f32 %v4201, %v4203
        %4658 = vadd.xlane.f32.xlu0 %v4657
        %v4659 = vpop.xlane.xlu0 %4658
        %v4660 = vadd.f32 %v4205, %v4207
        %4661 = vadd.xlane.f32.xlu0 %v4660
        %v4662 = vpop.xlane.xlu0 %4661
        %v4663 = vadd.f32 %v4209, %v4211
        %4664 = vadd.xlane.f32.xlu0 %v4663
        %v4665 = vpop.xlane.xlu0 %4664
        %v4666 = vadd.f32 %v4213, %v4215
        %4667 = vadd.xlane.f32.xlu0 %v4666
        %v4668 = vpop.xlane.xlu0 %4667
        %v4669 = vadd.f32 %v4217, %v4219
        %4670 = vadd.xlane.f32.xlu0 %v4669
        %v4671 = vpop.xlane.xlu0 %4670
        %v4672 = vadd.f32 %v4221, %v4223
        %4673 = vadd.xlane.f32.xlu0 %v4672
        %v4674 = vpop.xlane.xlu0 %4673
        %v4675 = vadd.f32 %v4225, %v4227
        %4676 = vadd.xlane.f32.xlu0 %v4675
        %v4677 = vpop.xlane.xlu0 %4676
        %v4678 = vadd.f32 %v4229, %v4231
        %4679 = vadd.xlane.f32.xlu0 %v4678
        %v4680 = vpop.xlane.xlu0 %4679
        %v4681 = vadd.f32 %v4233, %v4235
        %4682 = vadd.xlane.f32.xlu0 %v4681
        %v4683 = vpop.xlane.xlu0 %4682
        %v4684 = vadd.f32 %v4237, %v4239
        %4685 = vadd.xlane.f32.xlu0 %v4684
        %v4686 = vpop.xlane.xlu0 %4685
        %v4687 = vadd.f32 %v4241, %v4243
        %4688 = vadd.xlane.f32.xlu0 %v4687
        %v4689 = vpop.xlane.xlu0 %4688
        %v4690 = vadd.f32 %v4245, %v4247
        %4691 = vadd.xlane.f32.xlu0 %v4690
        %v4692 = vpop.xlane.xlu0 %4691
        %v4693 = vadd.f32 %v4249, %v4251
        %4694 = vadd.xlane.f32.xlu0 %v4693
        %v4695 = vpop.xlane.xlu0 %4694
        %v4696 = vadd.f32 %v4253, %v4255
        %4697 = vadd.xlane.f32.xlu0 %v4696
        %v4698 = vpop.xlane.xlu0 %4697
        %v4699 = vadd.f32 %v4257, %v4259
        %4700 = vadd.xlane.f32.xlu0 %v4699
        %v4701 = vpop.xlane.xlu0 %4700
        %v4702 = vadd.f32 %v4261, %v4263
        %4703 = vadd.xlane.f32.xlu0 %v4702
        %v4704 = vpop.xlane.xlu0 %4703
        %v4705 = vadd.f32 %v4265, %v4267
        %4706 = vadd.xlane.f32.xlu0 %v4705
        %v4707 = vpop.xlane.xlu0 %4706
        %v4708 = vadd.f32 %v4269, %v4271
        %4709 = vadd.xlane.f32.xlu0 %v4708
        %v4710 = vpop.xlane.xlu0 %4709
        %v4711 = vadd.f32 %v4273, %v4275
        %4712 = vadd.xlane.f32.xlu0 %v4711
        %v4713 = vpop.xlane.xlu0 %4712
        %v4714 = vadd.f32 %v4277, %v4279
        %4715 = vadd.xlane.f32.xlu0 %v4714
        %v4716 = vpop.xlane.xlu0 %4715
        %v4717 = vadd.f32 %v4281, %v4283
        %4718 = vadd.xlane.f32.xlu0 %v4717
        %v4719 = vpop.xlane.xlu0 %4718
        %v4720 = vadd.f32 %v4285, %v4287
        %4721 = vadd.xlane.f32.xlu0 %v4720
        %v4722 = vpop.xlane.xlu0 %4721
        %v4723 = vadd.f32 %v4289, %v4291
        %4724 = vadd.xlane.f32.xlu0 %v4723
        %v4725 = vpop.xlane.xlu0 %4724
        %v4726 = vadd.f32 %v4293, %v4295
        %4727 = vadd.xlane.f32.xlu0 %v4726
        %v4728 = vpop.xlane.xlu0 %4727
        %v4729 = vadd.f32 %v4297, %v4299
        %4730 = vadd.xlane.f32.xlu0 %v4729
        %v4731 = vpop.xlane.xlu0 %4730
        %v4732 = vadd.f32 %v4301, %v4303
        %4733 = vadd.xlane.f32.xlu0 %v4732
        %v4734 = vpop.xlane.xlu0 %4733
        %v4735 = vadd.f32 %v4305, %v4307
        %4736 = vadd.xlane.f32.xlu0 %v4735
        %v4737 = vpop.xlane.xlu0 %4736
        %v4738 = vadd.f32 %v4309, %v4311
        %4739 = vadd.xlane.f32.xlu0 %v4738
        %v4740 = vpop.xlane.xlu0 %4739
        %v4741 = vadd.f32 %v4313, %v4315
        %4742 = vadd.xlane.f32.xlu0 %v4741
        %v4743 = vpop.xlane.xlu0 %4742
        %v4744 = vadd.f32 %v4317, %v4319
        %4745 = vadd.xlane.f32.xlu0 %v4744
        %v4746 = vpop.xlane.xlu0 %4745
        %v4747 = vadd.f32 %v4321, %v4323
        %4748 = vadd.xlane.f32.xlu0 %v4747
        %v4749 = vpop.xlane.xlu0 %4748
        %v4750 = vadd.f32 %v4325, %v4327
        %4751 = vadd.xlane.f32.xlu0 %v4750
        %v4752 = vpop.xlane.xlu0 %4751
        %v4753 = vadd.f32 %v4329, %v4331
        %4754 = vadd.xlane.f32.xlu0 %v4753
        %v4755 = vpop.xlane.xlu0 %4754
        %v4756 = vadd.f32 %v4333, %v4335
        %4757 = vadd.xlane.f32.xlu0 %v4756
        %v4758 = vpop.xlane.xlu0 %4757
        %v4759 = vadd.f32 %v4337, %v4339
        %4760 = vadd.xlane.f32.xlu0 %v4759
        %v4761 = vpop.xlane.xlu0 %4760
        %v4762 = vadd.f32 %v4341, %v4343
        %4763 = vadd.xlane.f32.xlu0 %v4762
        %v4764 = vpop.xlane.xlu0 %4763
        %v4765 = vadd.f32 %v4345, %v4347
        %4766 = vadd.xlane.f32.xlu0 %v4765
        %v4767 = vpop.xlane.xlu0 %4766
        %v4768 = vadd.f32 %v4349, %v4351
        %4769 = vadd.xlane.f32.xlu0 %v4768
        %v4770 = vpop.xlane.xlu0 %4769
        %v4771 = vadd.f32 %v4353, %v4355
        %4772 = vadd.xlane.f32.xlu0 %v4771
        %v4773 = vpop.xlane.xlu0 %4772
        %v4774 = vadd.f32 %v4357, %v4359
        %4775 = vadd.xlane.f32.xlu0 %v4774
        %v4776 = vpop.xlane.xlu0 %4775
        %v4777 = vadd.f32 %v4361, %v4363
        %4778 = vadd.xlane.f32.xlu0 %v4777
        %v4779 = vpop.xlane.xlu0 %4778
        %v4780 = vadd.f32 %v4365, %v4367
        %4781 = vadd.xlane.f32.xlu0 %v4780
        %v4782 = vpop.xlane.xlu0 %4781
        %v4783 = vadd.f32 %v4369, %v4371
        %4784 = vadd.xlane.f32.xlu0 %v4783
        %v4785 = vpop.xlane.xlu0 %4784
        %v4786 = vadd.f32 %v4373, %v4375
        %4787 = vadd.xlane.f32.xlu0 %v4786
        %v4788 = vpop.xlane.xlu0 %4787
        %v4789 = vadd.f32 %v4377, %v4379
        %4790 = vadd.xlane.f32.xlu0 %v4789
        %v4791 = vpop.xlane.xlu0 %4790
        %v4792 = vadd.f32 %v4381, %v4383
        %4793 = vadd.xlane.f32.xlu0 %v4792
        %v4794 = vpop.xlane.xlu0 %4793
        %v4795 = vadd.f32 %v4385, %v4387
        %4796 = vadd.xlane.f32.xlu0 %v4795
        %v4797 = vpop.xlane.xlu0 %4796
        %v4798 = vadd.f32 %v4389, %v4391
        %4799 = vadd.xlane.f32.xlu0 %v4798
        %v4800 = vpop.xlane.xlu0 %4799
        %v4801 = vadd.f32 %v4393, %v4395
        %4802 = vadd.xlane.f32.xlu0 %v4801
        %v4803 = vpop.xlane.xlu0 %4802
        %v4804 = vadd.f32 %v4397, %v4399
        %4805 = vadd.xlane.f32.xlu0 %v4804
        %v4806 = vpop.xlane.xlu0 %4805
        %v4807 = vadd.f32 %v4401, %v4403
        %4808 = vadd.xlane.f32.xlu0 %v4807
        %v4809 = vpop.xlane.xlu0 %4808
        %v4810 = vadd.f32 %v4405, %v4407
        %4811 = vadd.xlane.f32.xlu0 %v4810
        %v4812 = vpop.xlane.xlu0 %4811
        %v4813 = vadd.f32 %v4409, %v4411
        %4814 = vadd.xlane.f32.xlu0 %v4813
        %v4815 = vpop.xlane.xlu0 %4814
        %v4816 = vadd.f32 %v4413, %v4415
        %4817 = vadd.xlane.f32.xlu0 %v4816
        %v4818 = vpop.xlane.xlu0 %4817
        %v4819 = vadd.f32 %v4417, %v4419
        %4820 = vadd.xlane.f32.xlu0 %v4819
        %v4821 = vpop.xlane.xlu0 %4820
        %v4822 = vadd.f32 %v4421, %v4423
        %4823 = vadd.xlane.f32.xlu0 %v4822
        %v4824 = vpop.xlane.xlu0 %4823
        %v4825 = vadd.f32 %v4425, %v4427
        %4826 = vadd.xlane.f32.xlu0 %v4825
        %v4827 = vpop.xlane.xlu0 %4826
        %v4828 = vadd.f32 %v4429, %v4431
        %4829 = vadd.xlane.f32.xlu0 %v4828
        %v4830 = vpop.xlane.xlu0 %4829
        %v4831 = vadd.f32 %v4433, %v4435
        %4832 = vadd.xlane.f32.xlu0 %v4831
        %v4833 = vpop.xlane.xlu0 %4832
        %v4834 = vadd.f32 %v4437, %v4439
        %4835 = vadd.xlane.f32.xlu0 %v4834
        %v4836 = vpop.xlane.xlu0 %4835
        %v4837 = vadd.f32 %v4441, %v4443
        %4838 = vadd.xlane.f32.xlu0 %v4837
        %v4839 = vpop.xlane.xlu0 %4838
        %v4840 = vadd.f32 %v4445, %v4447
        %4841 = vadd.xlane.f32.xlu0 %v4840
        %v4842 = vpop.xlane.xlu0 %4841
        %v4843 = vadd.f32 %v4449, %v4451
        %4844 = vadd.xlane.f32.xlu0 %v4843
        %v4845 = vpop.xlane.xlu0 %4844
        %v4846 = vadd.f32 %v4453, %v4455
        %4847 = vadd.xlane.f32.xlu0 %v4846
        %v4848 = vpop.xlane.xlu0 %4847
        %v4849 = vadd.f32 %v4457, %v4459
        %4850 = vadd.xlane.f32.xlu0 %v4849
        %v4851 = vpop.xlane.xlu0 %4850
        %v4852 = vadd.f32 %v4461, %v4463
        %4853 = vadd.xlane.f32.xlu0 %v4852
        %v4854 = vpop.xlane.xlu0 %4853
        %v4855 = vadd.f32 %v4465, %v4467
        %4856 = vadd.xlane.f32.xlu0 %v4855
        %v4857 = vpop.xlane.xlu0 %4856
        %v4858 = vadd.f32 %v4469, %v4471
        %4859 = vadd.xlane.f32.xlu0 %v4858
        %v4860 = vpop.xlane.xlu0 %4859
        %v4861 = vadd.f32 %v4473, %v4475
        %4862 = vadd.xlane.f32.xlu0 %v4861
        %v4863 = vpop.xlane.xlu0 %4862
        %v4864 = vadd.f32 %v4477, %v4479
        %4865 = vadd.xlane.f32.xlu0 %v4864
        %v4866 = vpop.xlane.xlu0 %4865
        %v4867 = vadd.f32 %v4481, %v4483
        %4868 = vadd.xlane.f32.xlu0 %v4867
        %v4869 = vpop.xlane.xlu0 %4868
        %v4870 = vadd.f32 %v4485, %v4487
        %4871 = vadd.xlane.f32.xlu0 %v4870
        %v4872 = vpop.xlane.xlu0 %4871
        %v4873 = vadd.f32 %v4489, %v4491
        %4874 = vadd.xlane.f32.xlu0 %v4873
        %v4875 = vpop.xlane.xlu0 %4874
        %v4876 = vrcp.pop %v4494
        %v4877 = vrcp.pop %v4497
        %v4878 = vrcp.pop %v4500
        %v4879 = vrcp.pop %v4503
        %v4880 = vrcp.pop %v4506
        %v4881 = vrcp.pop %v4509
        %v4882 = vrcp.pop %v4512
        %v4883 = vrcp.pop %v4515
        %v4884 = vrcp.pop %v4518
        %v4885 = vrcp.pop %v4521
        %v4886 = vrcp.pop %v4524
        %v4887 = vrcp.pop %v4527
        %v4888 = vrcp.pop %v4530
        %v4889 = vrcp.pop %v4533
        %v4890 = vrcp.pop %v4536
        %v4891 = vrcp.pop %v4539
        %v4892 = vrcp.pop %v4542
        %v4893 = vrcp.pop %v4545
        %v4894 = vrcp.pop %v4548
        %v4895 = vrcp.pop %v4551
        %v4896 = vrcp.pop %v4554
        %v4897 = vrcp.pop %v4557
        %v4898 = vrcp.pop %v4560
        %v4899 = vrcp.pop %v4563
        %v4900 = vrcp.pop %v4566
        %v4901 = vrcp.pop %v4569
        %v4902 = vrcp.pop %v4572
        %v4903 = vrcp.pop %v4575
        %v4904 = vrcp.pop %v4578
        %v4905 = vrcp.pop %v4581
        %v4906 = vrcp.pop %v4584
        %v4907 = vrcp.pop %v4587
        %v4908 = vrcp.pop %v4590
        %v4909 = vrcp.pop %v4593
        %v4910 = vrcp.pop %v4596
        %v4911 = vrcp.pop %v4599
        %v4912 = vrcp.pop %v4602
        %v4913 = vrcp.pop %v4605
        %v4914 = vrcp.pop %v4608
        %v4915 = vrcp.pop %v4611
        %v4916 = vrcp.pop %v4614
        %v4917 = vrcp.pop %v4617
        %v4918 = vrcp.pop %v4620
        %v4919 = vrcp.pop %v4623
        %v4920 = vrcp.pop %v4626
        %v4921 = vrcp.pop %v4629
        %v4922 = vrcp.pop %v4632
        %v4923 = vrcp.pop %v4635
        %v4924 = vrcp.pop %v4638
        %v4925 = vrcp.pop %v4641
        %v4926 = vrcp.pop %v4644
        %v4927 = vrcp.pop %v4647
        %v4928 = vrcp.pop %v4650
        %v4929 = vrcp.pop %v4653
        %v4930 = vrcp.pop %v4656
        %v4931 = vrcp.pop %v4659
        %v4932 = vrcp.pop %v4662
        %v4933 = vrcp.pop %v4665
        %v4934 = vrcp.pop %v4668
        %v4935 = vrcp.pop %v4671
        %v4936 = vrcp.pop %v4674
        %v4937 = vrcp.pop %v4677
        %v4938 = vrcp.pop %v4680
        %v4939 = vrcp.pop %v4683
        %v4940 = vrcp.pop %v4686
        %v4941 = vrcp.pop %v4689
        %v4942 = vrcp.pop %v4692
        %v4943 = vrcp.pop %v4695
        %v4944 = vrcp.pop %v4698
        %v4945 = vrcp.pop %v4701
        %v4946 = vrcp.pop %v4704
        %v4947 = vrcp.pop %v4707
        %v4948 = vrcp.pop %v4710
        %v4949 = vrcp.pop %v4713
        %v4950 = vrcp.pop %v4716
        %v4951 = vrcp.pop %v4719
        %v4952 = vrcp.pop %v4722
        %v4953 = vrcp.pop %v4725
        %v4954 = vrcp.pop %v4728
        %v4955 = vrcp.pop %v4731
        %v4956 = vrcp.pop %v4734
        %v4957 = vrcp.pop %v4737
        %v4958 = vrcp.pop %v4740
        %v4959 = vrcp.pop %v4743
        %v4960 = vrcp.pop %v4746
        %v4961 = vrcp.pop %v4749
        %v4962 = vrcp.pop %v4752
        %v4963 = vrcp.pop %v4755
        %v4964 = vrcp.pop %v4758
        %v4965 = vrcp.pop %v4761
        %v4966 = vrcp.pop %v4764
        %v4967 = vrcp.pop %v4767
        %v4968 = vrcp.pop %v4770
        %v4969 = vrcp.pop %v4773
        %v4970 = vrcp.pop %v4776
        %v4971 = vrcp.pop %v4779
        %v4972 = vrcp.pop %v4782
        %v4973 = vrcp.pop %v4785
        %v4974 = vrcp.pop %v4788
        %v4975 = vrcp.pop %v4791
        %v4976 = vrcp.pop %v4794
        %v4977 = vrcp.pop %v4797
        %v4978 = vrcp.pop %v4800
        %v4979 = vrcp.pop %v4803
        %v4980 = vrcp.pop %v4806
        %v4981 = vrcp.pop %v4809
        %v4982 = vrcp.pop %v4812
        %v4983 = vrcp.pop %v4815
        %v4984 = vrcp.pop %v4818
        %v4985 = vrcp.pop %v4821
        %v4986 = vrcp.pop %v4824
        %v4987 = vrcp.pop %v4827
        %v4988 = vrcp.pop %v4830
        %v4989 = vrcp.pop %v4833
        %v4990 = vrcp.pop %v4836
        %v4991 = vrcp.pop %v4839
        %v4992 = vrcp.pop %v4842
        %v4993 = vrcp.pop %v4845
        %v4994 = vrcp.pop %v4848
        %v4995 = vrcp.pop %v4851
        %v4996 = vrcp.pop %v4854
        %v4997 = vrcp.pop %v4857
        %v4998 = vrcp.pop %v4860
        %v4999 = vrcp.pop %v4863
        %v5000 = vrcp.pop %v4866
        %v5001 = vrcp.pop %v4869
        %v5002 = vrcp.pop %v4872
        %v5003 = vrcp.pop %v4875
        %v5004 = vmul.f32 %v3981, %v4876
        %v5005 = vmul.f32 %v3983, %v4876
        %v5006 = vmul.f32 %v3985, %v4877
        %v5007 = vmul.f32 %v3987, %v4877
        %v5008 = vmul.f32 %v3989, %v4878
        %v5009 = vmul.f32 %v3991, %v4878
        %v5010 = vmul.f32 %v3993, %v4879
        %v5011 = vmul.f32 %v3995, %v4879
        %v5012 = vmul.f32 %v3997, %v4880
        %v5013 = vmul.f32 %v3999, %v4880
        %v5014 = vmul.f32 %v4001, %v4881
        %v5015 = vmul.f32 %v4003, %v4881
        %v5016 = vmul.f32 %v4005, %v4882
        %v5017 = vmul.f32 %v4007, %v4882
        %v5018 = vmul.f32 %v4009, %v4883
        %v5019 = vmul.f32 %v4011, %v4883
        %v5020 = vmul.f32 %v4013, %v4884
        %v5021 = vmul.f32 %v4015, %v4884
        %v5022 = vmul.f32 %v4017, %v4885
        %v5023 = vmul.f32 %v4019, %v4885
        %v5024 = vmul.f32 %v4021, %v4886
        %v5025 = vmul.f32 %v4023, %v4886
        %v5026 = vmul.f32 %v4025, %v4887
        %v5027 = vmul.f32 %v4027, %v4887
        %v5028 = vmul.f32 %v4029, %v4888
        %v5029 = vmul.f32 %v4031, %v4888
        %v5030 = vmul.f32 %v4033, %v4889
        %v5031 = vmul.f32 %v4035, %v4889
        %v5032 = vmul.f32 %v4037, %v4890
        %v5033 = vmul.f32 %v4039, %v4890
        %v5034 = vmul.f32 %v4041, %v4891
        %v5035 = vmul.f32 %v4043, %v4891
        %v5036 = vmul.f32 %v4045, %v4892
        %v5037 = vmul.f32 %v4047, %v4892
        %v5038 = vmul.f32 %v4049, %v4893
        %v5039 = vmul.f32 %v4051, %v4893
        %v5040 = vmul.f32 %v4053, %v4894
        %v5041 = vmul.f32 %v4055, %v4894
        %v5042 = vmul.f32 %v4057, %v4895
        %v5043 = vmul.f32 %v4059, %v4895
        %v5044 = vmul.f32 %v4061, %v4896
        %v5045 = vmul.f32 %v4063, %v4896
        %v5046 = vmul.f32 %v4065, %v4897
        %v5047 = vmul.f32 %v4067, %v4897
        %v5048 = vmul.f32 %v4069, %v4898
        %v5049 = vmul.f32 %v4071, %v4898
        %v5050 = vmul.f32 %v4073, %v4899
        %v5051 = vmul.f32 %v4075, %v4899
        %v5052 = vmul.f32 %v4077, %v4900
        %v5053 = vmul.f32 %v4079, %v4900
        %v5054 = vmul.f32 %v4081, %v4901
        %v5055 = vmul.f32 %v4083, %v4901
        %v5056 = vmul.f32 %v4085, %v4902
        %v5057 = vmul.f32 %v4087, %v4902
        %v5058 = vmul.f32 %v4089, %v4903
        %v5059 = vmul.f32 %v4091, %v4903
        %v5060 = vmul.f32 %v4093, %v4904
        %v5061 = vmul.f32 %v4095, %v4904
        %v5062 = vmul.f32 %v4097, %v4905
        %v5063 = vmul.f32 %v4099, %v4905
        %v5064 = vmul.f32 %v4101, %v4906
        %v5065 = vmul.f32 %v4103, %v4906
        %v5066 = vmul.f32 %v4105, %v4907
        %v5067 = vmul.f32 %v4107, %v4907
        %v5068 = vmul.f32 %v4109, %v4908
        %v5069 = vmul.f32 %v4111, %v4908
        %v5070 = vmul.f32 %v4113, %v4909
        %v5071 = vmul.f32 %v4115, %v4909
        %v5072 = vmul.f32 %v4117, %v4910
        %v5073 = vmul.f32 %v4119, %v4910
        %v5074 = vmul.f32 %v4121, %v4911
        %v5075 = vmul.f32 %v4123, %v4911
        %v5076 = vmul.f32 %v4125, %v4912
        %v5077 = vmul.f32 %v4127, %v4912
        %v5078 = vmul.f32 %v4129, %v4913
        %v5079 = vmul.f32 %v4131, %v4913
        %v5080 = vmul.f32 %v4133, %v4914
        %v5081 = vmul.f32 %v4135, %v4914
        %v5082 = vmul.f32 %v4137, %v4915
        %v5083 = vmul.f32 %v4139, %v4915
        %v5084 = vmul.f32 %v4141, %v4916
        %v5085 = vmul.f32 %v4143, %v4916
        %v5086 = vmul.f32 %v4145, %v4917
        %v5087 = vmul.f32 %v4147, %v4917
        %v5088 = vmul.f32 %v4149, %v4918
        %v5089 = vmul.f32 %v4151, %v4918
        %v5090 = vmul.f32 %v4153, %v4919
        %v5091 = vmul.f32 %v4155, %v4919
        %v5092 = vmul.f32 %v4157, %v4920
        %v5093 = vmul.f32 %v4159, %v4920
        %v5094 = vmul.f32 %v4161, %v4921
        %v5095 = vmul.f32 %v4163, %v4921
        %v5096 = vmul.f32 %v4165, %v4922
        %v5097 = vmul.f32 %v4167, %v4922
        %v5098 = vmul.f32 %v4169, %v4923
        %v5099 = vmul.f32 %v4171, %v4923
        %v5100 = vmul.f32 %v4173, %v4924
        %v5101 = vmul.f32 %v4175, %v4924
        %v5102 = vmul.f32 %v4177, %v4925
        %v5103 = vmul.f32 %v4179, %v4925
        %v5104 = vmul.f32 %v4181, %v4926
        %v5105 = vmul.f32 %v4183, %v4926
        %v5106 = vmul.f32 %v4185, %v4927
        %v5107 = vmul.f32 %v4187, %v4927
        %v5108 = vmul.f32 %v4189, %v4928
        %v5109 = vmul.f32 %v4191, %v4928
        %v5110 = vmul.f32 %v4193, %v4929
        %v5111 = vmul.f32 %v4195, %v4929
        %v5112 = vmul.f32 %v4197, %v4930
        %v5113 = vmul.f32 %v4199, %v4930
        %v5114 = vmul.f32 %v4201, %v4931
        %v5115 = vmul.f32 %v4203, %v4931
        %v5116 = vmul.f32 %v4205, %v4932
        %v5117 = vmul.f32 %v4207, %v4932
        %v5118 = vmul.f32 %v4209, %v4933
        %v5119 = vmul.f32 %v4211, %v4933
        %v5120 = vmul.f32 %v4213, %v4934
        %v5121 = vmul.f32 %v4215, %v4934
        %v5122 = vmul.f32 %v4217, %v4935
        %v5123 = vmul.f32 %v4219, %v4935
        %v5124 = vmul.f32 %v4221, %v4936
        %v5125 = vmul.f32 %v4223, %v4936
        %v5126 = vmul.f32 %v4225, %v4937
        %v5127 = vmul.f32 %v4227, %v4937
        %v5128 = vmul.f32 %v4229, %v4938
        %v5129 = vmul.f32 %v4231, %v4938
        %v5130 = vmul.f32 %v4233, %v4939
        %v5131 = vmul.f32 %v4235, %v4939
        %v5132 = vmul.f32 %v4237, %v4940
        %v5133 = vmul.f32 %v4239, %v4940
        %v5134 = vmul.f32 %v4241, %v4941
        %v5135 = vmul.f32 %v4243, %v4941
        %v5136 = vmul.f32 %v4245, %v4942
        %v5137 = vmul.f32 %v4247, %v4942
        %v5138 = vmul.f32 %v4249, %v4943
        %v5139 = vmul.f32 %v4251, %v4943
        %v5140 = vmul.f32 %v4253, %v4944
        %v5141 = vmul.f32 %v4255, %v4944
        %v5142 = vmul.f32 %v4257, %v4945
        %v5143 = vmul.f32 %v4259, %v4945
        %v5144 = vmul.f32 %v4261, %v4946
        %v5145 = vmul.f32 %v4263, %v4946
        %v5146 = vmul.f32 %v4265, %v4947
        %v5147 = vmul.f32 %v4267, %v4947
        %v5148 = vmul.f32 %v4269, %v4948
        %v5149 = vmul.f32 %v4271, %v4948
        %v5150 = vmul.f32 %v4273, %v4949
        %v5151 = vmul.f32 %v4275, %v4949
        %v5152 = vmul.f32 %v4277, %v4950
        %v5153 = vmul.f32 %v4279, %v4950
        %v5154 = vmul.f32 %v4281, %v4951
        %v5155 = vmul.f32 %v4283, %v4951
        %v5156 = vmul.f32 %v4285, %v4952
        %v5157 = vmul.f32 %v4287, %v4952
        %v5158 = vmul.f32 %v4289, %v4953
        %v5159 = vmul.f32 %v4291, %v4953
        %v5160 = vmul.f32 %v4293, %v4954
        %v5161 = vmul.f32 %v4295, %v4954
        %v5162 = vmul.f32 %v4297, %v4955
        %v5163 = vmul.f32 %v4299, %v4955
        %v5164 = vmul.f32 %v4301, %v4956
        %v5165 = vmul.f32 %v4303, %v4956
        %v5166 = vmul.f32 %v4305, %v4957
        %v5167 = vmul.f32 %v4307, %v4957
        %v5168 = vmul.f32 %v4309, %v4958
        %v5169 = vmul.f32 %v4311, %v4958
        %v5170 = vmul.f32 %v4313, %v4959
        %v5171 = vmul.f32 %v4315, %v4959
        %v5172 = vmul.f32 %v4317, %v4960
        %v5173 = vmul.f32 %v4319, %v4960
        %v5174 = vmul.f32 %v4321, %v4961
        %v5175 = vmul.f32 %v4323, %v4961
        %v5176 = vmul.f32 %v4325, %v4962
        %v5177 = vmul.f32 %v4327, %v4962
        %v5178 = vmul.f32 %v4329, %v4963
        %v5179 = vmul.f32 %v4331, %v4963
        %v5180 = vmul.f32 %v4333, %v4964
        %v5181 = vmul.f32 %v4335, %v4964
        %v5182 = vmul.f32 %v4337, %v4965
        %v5183 = vmul.f32 %v4339, %v4965
        %v5184 = vmul.f32 %v4341, %v4966
        %v5185 = vmul.f32 %v4343, %v4966
        %v5186 = vmul.f32 %v4345, %v4967
        %v5187 = vmul.f32 %v4347, %v4967
        %v5188 = vmul.f32 %v4349, %v4968
        %v5189 = vmul.f32 %v4351, %v4968
        %v5190 = vmul.f32 %v4353, %v4969
        %v5191 = vmul.f32 %v4355, %v4969
        %v5192 = vmul.f32 %v4357, %v4970
        %v5193 = vmul.f32 %v4359, %v4970
        %v5194 = vmul.f32 %v4361, %v4971
        %v5195 = vmul.f32 %v4363, %v4971
        %v5196 = vmul.f32 %v4365, %v4972
        %v5197 = vmul.f32 %v4367, %v4972
        %v5198 = vmul.f32 %v4369, %v4973
        %v5199 = vmul.f32 %v4371, %v4973
        %v5200 = vmul.f32 %v4373, %v4974
        %v5201 = vmul.f32 %v4375, %v4974
        %v5202 = vmul.f32 %v4377, %v4975
        %v5203 = vmul.f32 %v4379, %v4975
        %v5204 = vmul.f32 %v4381, %v4976
        %v5205 = vmul.f32 %v4383, %v4976
        %v5206 = vmul.f32 %v4385, %v4977
        %v5207 = vmul.f32 %v4387, %v4977
        %v5208 = vmul.f32 %v4389, %v4978
        %v5209 = vmul.f32 %v4391, %v4978
        %v5210 = vmul.f32 %v4393, %v4979
        %v5211 = vmul.f32 %v4395, %v4979
        %v5212 = vmul.f32 %v4397, %v4980
        %v5213 = vmul.f32 %v4399, %v4980
        %v5214 = vmul.f32 %v4401, %v4981
        %v5215 = vmul.f32 %v4403, %v4981
        %v5216 = vmul.f32 %v4405, %v4982
        %v5217 = vmul.f32 %v4407, %v4982
        %v5218 = vmul.f32 %v4409, %v4983
        %v5219 = vmul.f32 %v4411, %v4983
        %v5220 = vmul.f32 %v4413, %v4984
        %v5221 = vmul.f32 %v4415, %v4984
        %v5222 = vmul.f32 %v4417, %v4985
        %v5223 = vmul.f32 %v4419, %v4985
        %v5224 = vmul.f32 %v4421, %v4986
        %v5225 = vmul.f32 %v4423, %v4986
        %v5226 = vmul.f32 %v4425, %v4987
        %v5227 = vmul.f32 %v4427, %v4987
        %v5228 = vmul.f32 %v4429, %v4988
        %v5229 = vmul.f32 %v4431, %v4988
        %v5230 = vmul.f32 %v4433, %v4989
        %v5231 = vmul.f32 %v4435, %v4989
        %v5232 = vmul.f32 %v4437, %v4990
        %v5233 = vmul.f32 %v4439, %v4990
        %v5234 = vmul.f32 %v4441, %v4991
        %v5235 = vmul.f32 %v4443, %v4991
        %v5236 = vmul.f32 %v4445, %v4992
        %v5237 = vmul.f32 %v4447, %v4992
        %v5238 = vmul.f32 %v4449, %v4993
        %v5239 = vmul.f32 %v4451, %v4993
        %v5240 = vmul.f32 %v4453, %v4994
        %v5241 = vmul.f32 %v4455, %v4994
        %v5242 = vmul.f32 %v4457, %v4995
        %v5243 = vmul.f32 %v4459, %v4995
        %v5244 = vmul.f32 %v4461, %v4996
        %v5245 = vmul.f32 %v4463, %v4996
        %v5246 = vmul.f32 %v4465, %v4997
        %v5247 = vmul.f32 %v4467, %v4997
        %v5248 = vmul.f32 %v4469, %v4998
        %v5249 = vmul.f32 %v4471, %v4998
        %v5250 = vmul.f32 %v4473, %v4999
        %v5251 = vmul.f32 %v4475, %v4999
        %v5252 = vmul.f32 %v4477, %v5000
        %v5253 = vmul.f32 %v4479, %v5000
        %v5254 = vmul.f32 %v4481, %v5001
        %v5255 = vmul.f32 %v4483, %v5001
        %v5256 = vmul.f32 %v4485, %v5002
        %v5257 = vmul.f32 %v4487, %v5002
        %v5258 = vmul.f32 %v4489, %v5003
        %v5259 = vmul.f32 %v4491, %v5003
        %5260 = vmatprep.subr.mxu0 %v5005
        %5261 = vmatpush1.xpose.msra.mxu0 %v5004
        %5262 = vmatprep.subr.mxu0 %v5007
        %5263 = vmatpush1.xpose.msra.mxu0 %v5006
        %5264 = vmatprep.subr.mxu0 %v5009
        %5265 = vmatpush1.xpose.msra.mxu0 %v5008
        %5266 = vmatprep.subr.mxu0 %v5011
        %5267 = vmatpush1.xpose.msra.mxu0 %v5010
        %5268 = vmatprep.subr.mxu0 %v5013
        %5269 = vmatpush1.xpose.msra.mxu0 %v5012
        %5270 = vmatprep.subr.mxu0 %v5015
        %5271 = vmatpush1.xpose.msra.mxu0 %v5014
        %5272 = vmatprep.subr.mxu0 %v5017
        %5273 = vmatpush1.xpose.msra.mxu0 %v5016
        %5274 = vmatprep.subr.mxu0 %v5019
        %5275 = vmatpush1.xpose.msra.mxu0 %v5018
        %5276 = vmatprep.subr.mxu0 %v5021
        %5277 = vmatpush1.xpose.msra.mxu0 %v5020
        %5278 = vmatprep.subr.mxu0 %v5023
        %5279 = vmatpush1.xpose.msra.mxu0 %v5022
        %5280 = vmatprep.subr.mxu0 %v5025
        %5281 = vmatpush1.xpose.msra.mxu0 %v5024
        %5282 = vmatprep.subr.mxu0 %v5027
        %5283 = vmatpush1.xpose.msra.mxu0 %v5026
        %5284 = vmatprep.subr.mxu0 %v5029
        %5285 = vmatpush1.xpose.msra.mxu0 %v5028
        %5286 = vmatprep.subr.mxu0 %v5031
        %5287 = vmatpush1.xpose.msra.mxu0 %v5030
        %5288 = vmatprep.subr.mxu0 %v5033
        %5289 = vmatpush1.xpose.msra.mxu0 %v5032
        %5290 = vmatprep.subr.mxu0 %v5035
        %5291 = vmatpush1.xpose.msra.mxu0 %v5034
        %5292 = vmatprep.subr.mxu0 %v5037
        %5293 = vmatpush1.xpose.msra.mxu0 %v5036
        %5294 = vmatprep.subr.mxu0 %v5039
        %5295 = vmatpush1.xpose.msra.mxu0 %v5038
        %5296 = vmatprep.subr.mxu0 %v5041
        %5297 = vmatpush1.xpose.msra.mxu0 %v5040
        %5298 = vmatprep.subr.mxu0 %v5043
        %5299 = vmatpush1.xpose.msra.mxu0 %v5042
        %5300 = vmatprep.subr.mxu0 %v5045
        %5301 = vmatpush1.xpose.msra.mxu0 %v5044
        %5302 = vmatprep.subr.mxu0 %v5047
        %5303 = vmatpush1.xpose.msra.mxu0 %v5046
        %5304 = vmatprep.subr.mxu0 %v5049
        %5305 = vmatpush1.xpose.msra.mxu0 %v5048
        %5306 = vmatprep.subr.mxu0 %v5051
        %5307 = vmatpush1.xpose.msra.mxu0 %v5050
        %5308 = vmatprep.subr.mxu0 %v5053
        %5309 = vmatpush1.xpose.msra.mxu0 %v5052
        %5310 = vmatprep.subr.mxu0 %v5055
        %5311 = vmatpush1.xpose.msra.mxu0 %v5054
        %5312 = vmatprep.subr.mxu0 %v5057
        %5313 = vmatpush1.xpose.msra.mxu0 %v5056
        %5314 = vmatprep.subr.mxu0 %v5059
        %5315 = vmatpush1.xpose.msra.mxu0 %v5058
        %5316 = vmatprep.subr.mxu0 %v5061
        %5317 = vmatpush1.xpose.msra.mxu0 %v5060
        %5318 = vmatprep.subr.mxu0 %v5063
        %5319 = vmatpush1.xpose.msra.mxu0 %v5062
        %5320 = vmatprep.subr.mxu0 %v5065
        %5321 = vmatpush1.xpose.msra.mxu0 %v5064
        %5322 = vmatprep.subr.mxu0 %v5067
        %5323 = vmatpush1.xpose.msra.mxu0 %v5066
        %5324 = vmatprep.mubr.f32.mxu0 %v1579
        %5325 = vmatmul.mubr.f32.gmra.mrb[0].mxu0 %v1577
        %v5326 = vpop.f32.mrb[0].mxu0
        %v5327 = vadd.f32 0.0, %v5326
        %v5328 = vpop.f32.mrb[0].mxu0
        %v5329 = vadd.f32 0.0, %v5328
        %5330 = vmatprep.mubr.f32.mxu0 %v1585
        %5331 = vmatmul.mubr.f32.gmra.mrb[0].mxu0 %v1583
        %v5332 = vpop.f32.mrb[0].mxu0
        %v5333 = vadd.f32 0.0, %v5332
        %v5334 = vpop.f32.mrb[0].mxu0
        %v5335 = vadd.f32 0.0, %v5334
        %5336 = vmatprep.mubr.f32.mxu0 %v1591
        %5337 = vmatmul.mubr.f32.gmra.mrb[0].mxu0 %v1589
        %v5338 = vpop.f32.mrb[0].mxu0
        %v5339 = vadd.f32 0.0, %v5338
        %v5340 = vpop.f32.mrb[0].mxu0
        %v5341 = vadd.f32 0.0, %v5340
        %5342 = vmatprep.mubr.f32.mxu0 %v1597
        %5343 = vmatmul.mubr.f32.gmra.mrb[0].mxu0 %v1595
        %v5344 = vpop.f32.mrb[0].mxu0
        %v5345 = vadd.f32 0.0, %v5344
        %v5346 = vpop.f32.mrb[0].mxu0
        %v5347 = vadd.f32 0.0, %v5346
        %5348 = vdwg.mxu0
        %5349 = vmatprep.subr.mxu0 %v5069
        %5350 = vmatpush1.xpose.msra.mxu0 %v5068
        %5351 = vmatprep.subr.mxu0 %v5071
        %5352 = vmatpush1.xpose.msra.mxu0 %v5070
        %5353 = vmatprep.subr.mxu0 %v5073
        %5354 = vmatpush1.xpose.msra.mxu0 %v5072
        %5355 = vmatprep.subr.mxu0 %v5075
        %5356 = vmatpush1.xpose.msra.mxu0 %v5074
        %5357 = vmatprep.subr.mxu0 %v5077
        %5358 = vmatpush1.xpose.msra.mxu0 %v5076
        %5359 = vmatprep.subr.mxu0 %v5079
        %5360 = vmatpush1.xpose.msra.mxu0 %v5078
        %5361 = vmatprep.subr.mxu0 %v5081
        %5362 = vmatpush1.xpose.msra.mxu0 %v5080
        %5363 = vmatprep.subr.mxu0 %v5083
        %5364 = vmatpush1.xpose.msra.mxu0 %v5082
        %5365 = vmatprep.subr.mxu0 %v5085
        %5366 = vmatpush1.xpose.msra.mxu0 %v5084
        %5367 = vmatprep.subr.mxu0 %v5087
        %5368 = vmatpush1.xpose.msra.mxu0 %v5086
        %5369 = vmatprep.subr.mxu0 %v5089
        %5370 = vmatpush1.xpose.msra.mxu0 %v5088
        %5371 = vmatprep.subr.mxu0 %v5091
        %5372 = vmatpush1.xpose.msra.mxu0 %v5090
        %5373 = vmatprep.subr.mxu0 %v5093
        %5374 = vmatpush1.xpose.msra.mxu0 %v5092
        %5375 = vmatprep.subr.mxu0 %v5095
        %5376 = vmatpush1.xpose.msra.mxu0 %v5094
        %5377 = vmatprep.subr.mxu0 %v5097
        %5378 = vmatpush1.xpose.msra.mxu0 %v5096
        %5379 = vmatprep.subr.mxu0 %v5099
        %5380 = vmatpush1.xpose.msra.mxu0 %v5098
        %5381 = vmatprep.subr.mxu0 %v5101
        %5382 = vmatpush1.xpose.msra.mxu0 %v5100
        %5383 = vmatprep.subr.mxu0 %v5103
        %5384 = vmatpush1.xpose.msra.mxu0 %v5102
        %5385 = vmatprep.subr.mxu0 %v5105
        %5386 = vmatpush1.xpose.msra.mxu0 %v5104
        %5387 = vmatprep.subr.mxu0 %v5107
        %5388 = vmatpush1.xpose.msra.mxu0 %v5106
        %5389 = vmatprep.subr.mxu0 %v5109
        %5390 = vmatpush1.xpose.msra.mxu0 %v5108
        %5391 = vmatprep.subr.mxu0 %v5111
        %5392 = vmatpush1.xpose.msra.mxu0 %v5110
        %5393 = vmatprep.subr.mxu0 %v5113
        %5394 = vmatpush1.xpose.msra.mxu0 %v5112
        %5395 = vmatprep.subr.mxu0 %v5115
        %5396 = vmatpush1.xpose.msra.mxu0 %v5114
        %5397 = vmatprep.subr.mxu0 %v5117
        %5398 = vmatpush1.xpose.msra.mxu0 %v5116
        %5399 = vmatprep.subr.mxu0 %v5119
        %5400 = vmatpush1.xpose.msra.mxu0 %v5118
        %5401 = vmatprep.subr.mxu0 %v5121
        %5402 = vmatpush1.xpose.msra.mxu0 %v5120
        %5403 = vmatprep.subr.mxu0 %v5123
        %5404 = vmatpush1.xpose.msra.mxu0 %v5122
        %5405 = vmatprep.subr.mxu0 %v5125
        %5406 = vmatpush1.xpose.msra.mxu0 %v5124
        %5407 = vmatprep.subr.mxu0 %v5127
        %5408 = vmatpush1.xpose.msra.mxu0 %v5126
        %5409 = vmatprep.subr.mxu0 %v5129
        %5410 = vmatpush1.xpose.msra.mxu0 %v5128
        %5411 = vmatprep.subr.mxu0 %v5131
        %5412 = vmatpush1.xpose.msra.mxu0 %v5130
        %5413 = vmatprep.mubr.f32.mxu0 %v1603
        %5414 = vmatmul.mubr.f32.gmra.mrb[0].mxu0 %v1601
        %v5415 = vpop.f32.mrb[0].mxu0
        %v5416 = vadd.f32 0.0, %v5415
        %v5417 = vpop.f32.mrb[0].mxu0
        %v5418 = vadd.f32 0.0, %v5417
        %5419 = vmatprep.mubr.f32.mxu0 %v1609
        %5420 = vmatmul.mubr.f32.gmra.mrb[0].mxu0 %v1607
        %v5421 = vpop.f32.mrb[0].mxu0
        %v5422 = vadd.f32 0.0, %v5421
        %v5423 = vpop.f32.mrb[0].mxu0
        %v5424 = vadd.f32 0.0, %v5423
        %5425 = vmatprep.mubr.f32.mxu0 %v1615
        %5426 = vmatmul.mubr.f32.gmra.mrb[0].mxu0 %v1613
        %v5427 = vpop.f32.mrb[0].mxu0
        %v5428 = vadd.f32 0.0, %v5427
        %v5429 = vpop.f32.mrb[0].mxu0
        %v5430 = vadd.f32 0.0, %v5429
        %5431 = vmatprep.mubr.f32.mxu0 %v1621
        %5432 = vmatmul.mubr.f32.gmra.mrb[0].mxu0 %v1619
        %v5433 = vpop.f32.mrb[0].mxu0
        %v5434 = vadd.f32 0.0, %v5433
        %v5435 = vpop.f32.mrb[0].mxu0
        %v5436 = vadd.f32 0.0, %v5435
        %5437 = vdwg.mxu0
        %5438 = vmatprep.subr.mxu0 %v5133
        %5439 = vmatpush1.xpose.msra.mxu0 %v5132
        %5440 = vmatprep.subr.mxu0 %v5135
        %5441 = vmatpush1.xpose.msra.mxu0 %v5134
        %5442 = vmatprep.subr.mxu0 %v5137
        %5443 = vmatpush1.xpose.msra.mxu0 %v5136
        %5444 = vmatprep.subr.mxu0 %v5139
        %5445 = vmatpush1.xpose.msra.mxu0 %v5138
        %5446 = vmatprep.subr.mxu0 %v5141
        %5447 = vmatpush1.xpose.msra.mxu0 %v5140
        %5448 = vmatprep.subr.mxu0 %v5143
        %5449 = vmatpush1.xpose.msra.mxu0 %v5142
        %5450 = vmatprep.subr.mxu0 %v5145
        %5451 = vmatpush1.xpose.msra.mxu0 %v5144
        %5452 = vmatprep.subr.mxu0 %v5147
        %5453 = vmatpush1.xpose.msra.mxu0 %v5146
        %5454 = vmatprep.subr.mxu0 %v5149
        %5455 = vmatpush1.xpose.msra.mxu0 %v5148
        %5456 = vmatprep.subr.mxu0 %v5151
        %5457 = vmatpush1.xpose.msra.mxu0 %v5150
        %5458 = vmatprep.subr.mxu0 %v5153
        %5459 = vmatpush1.xpose.msra.mxu0 %v5152
        %5460 = vmatprep.subr.mxu0 %v5155
        %5461 = vmatpush1.xpose.msra.mxu0 %v5154
        %5462 = vmatprep.subr.mxu0 %v5157
        %5463 = vmatpush1.xpose.msra.mxu0 %v5156
        %5464 = vmatprep.subr.mxu0 %v5159
        %5465 = vmatpush1.xpose.msra.mxu0 %v5158
        %5466 = vmatprep.subr.mxu0 %v5161
        %5467 = vmatpush1.xpose.msra.mxu0 %v5160
        %5468 = vmatprep.subr.mxu0 %v5163
        %5469 = vmatpush1.xpose.msra.mxu0 %v5162
        %5470 = vmatprep.subr.mxu0 %v5165
        %5471 = vmatpush1.xpose.msra.mxu0 %v5164
        %5472 = vmatprep.subr.mxu0 %v5167
        %5473 = vmatpush1.xpose.msra.mxu0 %v5166
        %5474 = vmatprep.subr.mxu0 %v5169
        %5475 = vmatpush1.xpose.msra.mxu0 %v5168
        %5476 = vmatprep.subr.mxu0 %v5171
        %5477 = vmatpush1.xpose.msra.mxu0 %v5170
        %5478 = vmatprep.subr.mxu0 %v5173
        %5479 = vmatpush1.xpose.msra.mxu0 %v5172
        %5480 = vmatprep.subr.mxu0 %v5175
        %5481 = vmatpush1.xpose.msra.mxu0 %v5174
        %5482 = vmatprep.subr.mxu0 %v5177
        %5483 = vmatpush1.xpose.msra.mxu0 %v5176
        %5484 = vmatprep.subr.mxu0 %v5179
        %5485 = vmatpush1.xpose.msra.mxu0 %v5178
        %5486 = vmatprep.subr.mxu0 %v5181
        %5487 = vmatpush1.xpose.msra.mxu0 %v5180
        %5488 = vmatprep.subr.mxu0 %v5183
        %5489 = vmatpush1.xpose.msra.mxu0 %v5182
        %5490 = vmatprep.subr.mxu0 %v5185
        %5491 = vmatpush1.xpose.msra.mxu0 %v5184
        %5492 = vmatprep.subr.mxu0 %v5187
        %5493 = vmatpush1.xpose.msra.mxu0 %v5186
        %5494 = vmatprep.subr.mxu0 %v5189
        %5495 = vmatpush1.xpose.msra.mxu0 %v5188
        %5496 = vmatprep.subr.mxu0 %v5191
        %5497 = vmatpush1.xpose.msra.mxu0 %v5190
        %5498 = vmatprep.subr.mxu0 %v5193
        %5499 = vmatpush1.xpose.msra.mxu0 %v5192
        %5500 = vmatprep.subr.mxu0 %v5195
        %5501 = vmatpush1.xpose.msra.mxu0 %v5194
        %5502 = vmatprep.mubr.f32.mxu0 %v1627
        %5503 = vmatmul.mubr.f32.gmra.mrb[0].mxu0 %v1625
        %v5504 = vpop.f32.mrb[0].mxu0
        %v5505 = vadd.f32 0.0, %v5504
        %v5506 = vpop.f32.mrb[0].mxu0
        %v5507 = vadd.f32 0.0, %v5506
        %5508 = vmatprep.mubr.f32.mxu0 %v1633
        %5509 = vmatmul.mubr.f32.gmra.mrb[0].mxu0 %v1631
        %v5510 = vpop.f32.mrb[0].mxu0
        %v5511 = vadd.f32 0.0, %v5510
        %v5512 = vpop.f32.mrb[0].mxu0
        %v5513 = vadd.f32 0.0, %v5512
        %5514 = vmatprep.mubr.f32.mxu0 %v1639
        %5515 = vmatmul.mubr.f32.gmra.mrb[0].mxu0 %v1637
        %v5516 = vpop.f32.mrb[0].mxu0
        %v5517 = vadd.f32 0.0, %v5516
        %v5518 = vpop.f32.mrb[0].mxu0
        %v5519 = vadd.f32 0.0, %v5518
        %5520 = vmatprep.mubr.f32.mxu0 %v1645
        %5521 = vmatmul.mubr.f32.gmra.mrb[0].mxu0 %v1643
        %v5522 = vpop.f32.mrb[0].mxu0
        %v5523 = vadd.f32 0.0, %v5522
        %v5524 = vpop.f32.mrb[0].mxu0
        %v5525 = vadd.f32 0.0, %v5524
        %5526 = vdwg.mxu0
        %5527 = vmatprep.subr.mxu0 %v5197
        %5528 = vmatpush1.xpose.msra.mxu0 %v5196
        %5529 = vmatprep.subr.mxu0 %v5199
        %5530 = vmatpush1.xpose.msra.mxu0 %v5198
        %5531 = vmatprep.subr.mxu0 %v5201
        %5532 = vmatpush1.xpose.msra.mxu0 %v5200
        %5533 = vmatprep.subr.mxu0 %v5203
        %5534 = vmatpush1.xpose.msra.mxu0 %v5202
        %5535 = vmatprep.subr.mxu0 %v5205
        %5536 = vmatpush1.xpose.msra.mxu0 %v5204
        %5537 = vmatprep.subr.mxu0 %v5207
        %5538 = vmatpush1.xpose.msra.mxu0 %v5206
        %5539 = vmatprep.subr.mxu0 %v5209
        %5540 = vmatpush1.xpose.msra.mxu0 %v5208
        %5541 = vmatprep.subr.mxu0 %v5211
        %5542 = vmatpush1.xpose.msra.mxu0 %v5210
        %5543 = vmatprep.subr.mxu0 %v5213
        %5544 = vmatpush1.xpose.msra.mxu0 %v5212
        %5545 = vmatprep.subr.mxu0 %v5215
        %5546 = vmatpush1.xpose.msra.mxu0 %v5214
        %5547 = vmatprep.subr.mxu0 %v5217
        %5548 = vmatpush1.xpose.msra.mxu0 %v5216
        %5549 = vmatprep.subr.mxu0 %v5219
        %5550 = vmatpush1.xpose.msra.mxu0 %v5218
        %5551 = vmatprep.subr.mxu0 %v5221
        %5552 = vmatpush1.xpose.msra.mxu0 %v5220
        %5553 = vmatprep.subr.mxu0 %v5223
        %5554 = vmatpush1.xpose.msra.mxu0 %v5222
        %5555 = vmatprep.subr.mxu0 %v5225
        %5556 = vmatpush1.xpose.msra.mxu0 %v5224
        %5557 = vmatprep.subr.mxu0 %v5227
        %5558 = vmatpush1.xpose.msra.mxu0 %v5226
        %5559 = vmatprep.subr.mxu0 %v5229
        %5560 = vmatpush1.xpose.msra.mxu0 %v5228
        %5561 = vmatprep.subr.mxu0 %v5231
        %5562 = vmatpush1.xpose.msra.mxu0 %v5230
        %5563 = vmatprep.subr.mxu0 %v5233
        %5564 = vmatpush1.xpose.msra.mxu0 %v5232
        %5565 = vmatprep.subr.mxu0 %v5235
        %5566 = vmatpush1.xpose.msra.mxu0 %v5234
        %5567 = vmatprep.subr.mxu0 %v5237
        %5568 = vmatpush1.xpose.msra.mxu0 %v5236
        %5569 = vmatprep.subr.mxu0 %v5239
        %5570 = vmatpush1.xpose.msra.mxu0 %v5238
        %5571 = vmatprep.subr.mxu0 %v5241
        %5572 = vmatpush1.xpose.msra.mxu0 %v5240
        %5573 = vmatprep.subr.mxu0 %v5243
        %5574 = vmatpush1.xpose.msra.mxu0 %v5242
        %5575 = vmatprep.subr.mxu0 %v5245
        %5576 = vmatpush1.xpose.msra.mxu0 %v5244
        %5577 = vmatprep.subr.mxu0 %v5247
        %5578 = vmatpush1.xpose.msra.mxu0 %v5246
        %5579 = vmatprep.subr.mxu0 %v5249
        %5580 = vmatpush1.xpose.msra.mxu0 %v5248
        %5581 = vmatprep.subr.mxu0 %v5251
        %5582 = vmatpush1.xpose.msra.mxu0 %v5250
        %5583 = vmatprep.subr.mxu0 %v5253
        %5584 = vmatpush1.xpose.msra.mxu0 %v5252
        %5585 = vmatprep.subr.mxu0 %v5255
        %5586 = vmatpush1.xpose.msra.mxu0 %v5254
        %5587 = vmatprep.subr.mxu0 %v5257
        %5588 = vmatpush1.xpose.msra.mxu0 %v5256
        %5589 = vmatprep.subr.mxu0 %v5259
        %5590 = vmatpush1.xpose.msra.mxu0 %v5258
        %5591 = vmatprep.mubr.f32.mxu0 %v1651
        %5592 = vmatmul.mubr.f32.gmra.mrb[0].mxu0 %v1649
        %v5593 = vpop.f32.mrb[0].mxu0
        %v5594 = vadd.f32 0.0, %v5593
        %v5595 = vpop.f32.mrb[0].mxu0
        %v5596 = vadd.f32 0.0, %v5595
        %5597 = vmatprep.mubr.f32.mxu0 %v1657
        %5598 = vmatmul.mubr.f32.gmra.mrb[0].mxu0 %v1655
        %v5599 = vpop.f32.mrb[0].mxu0
        %v5600 = vadd.f32 0.0, %v5599
        %v5601 = vpop.f32.mrb[0].mxu0
        %v5602 = vadd.f32 0.0, %v5601
        %5603 = vmatprep.mubr.f32.mxu0 %v1663
        %5604 = vmatmul.mubr.f32.gmra.mrb[0].mxu0 %v1661
        %v5605 = vpop.f32.mrb[0].mxu0
        %v5606 = vadd.f32 0.0, %v5605
        %v5607 = vpop.f32.mrb[0].mxu0
        %v5608 = vadd.f32 0.0, %v5607
        %5609 = vmatprep.mubr.f32.mxu0 %v1669
        %5610 = vmatmul.mubr.f32.gmra.mrb[0].mxu0 %v1667
        %v5611 = vpop.f32.mrb[0].mxu0
        %v5612 = vadd.f32 0.0, %v5611
        %v5613 = vpop.f32.mrb[0].mxu0
        %v5614 = vadd.f32 0.0, %v5613
        %5615 = vdwg.mxu0
        %v5616 = vld [vmem:[%s9] sm:$0xff]
        %v5617 = vld [vmem:[%s9 + $0x8] sm:$0xff]
        %v5618 = vld [vmem:[%s9 + $0x10] sm:$0xff]
        %v5619 = vld [vmem:[%s9 + $0x18] sm:$0xff]
        %v5620 = vld [vmem:[%s9 + $0x20] sm:$0xff]
        %v5621 = vld [vmem:[%s9 + $0x28] sm:$0xff]
        %v5622 = vld [vmem:[%s9 + $0x30] sm:$0xff]
        %v5623 = vld [vmem:[%s9 + $0x38] sm:$0xff]
        %v5624 = vld [vmem:[%s9 + $0x40] sm:$0xff]
        %v5625 = vld [vmem:[%s9 + $0x48] sm:$0xff]
        %v5626 = vld [vmem:[%s9 + $0x50] sm:$0xff]
        %v5627 = vld [vmem:[%s9 + $0x58] sm:$0xff]
        %v5628 = vld [vmem:[%s9 + $0x60] sm:$0xff]
        %v5629 = vld [vmem:[%s9 + $0x68] sm:$0xff]
        %v5630 = vld [vmem:[%s9 + $0x70] sm:$0xff]
        %v5631 = vld [vmem:[%s9 + $0x78] sm:$0xff]
        %v5632 = vld [vmem:[%s10] sm:$0xff]
        %v5633 = vld [vmem:[%s10 + $0x8] sm:$0xff]
        %v5634 = vld [vmem:[%s10 + $0x10] sm:$0xff]
        %v5635 = vld [vmem:[%s10 + $0x18] sm:$0xff]
        %v5636 = vld [vmem:[%s10 + $0x20] sm:$0xff]
        %v5637 = vld [vmem:[%s10 + $0x28] sm:$0xff]
        %v5638 = vld [vmem:[%s10 + $0x30] sm:$0xff]
        %v5639 = vld [vmem:[%s10 + $0x38] sm:$0xff]
        %v5640 = vld [vmem:[%s10 + $0x40] sm:$0xff]
        %v5641 = vld [vmem:[%s10 + $0x48] sm:$0xff]
        %v5642 = vld [vmem:[%s10 + $0x50] sm:$0xff]
        %v5643 = vld [vmem:[%s10 + $0x58] sm:$0xff]
        %v5644 = vld [vmem:[%s10 + $0x60] sm:$0xff]
        %v5645 = vld [vmem:[%s10 + $0x68] sm:$0xff]
        %v5646 = vld [vmem:[%s10 + $0x70] sm:$0xff]
        %v5647 = vld [vmem:[%s10 + $0x78] sm:$0xff]
        %5649 = vset.pattern.permute.xlu0 0
        %5650 = vperm.xlu0 %5649, %v5632
        %v5651 = vpop.permute.xlu0 %5650
        %5654 = vset.pattern.permute.xlu0 0
        %5655 = vperm.xlu0 %5654, %v5633
        %v5656 = vpop.permute.xlu0 %5655
        %5659 = vset.pattern.permute.xlu0 0
        %5660 = vperm.xlu0 %5659, %v5634
        %v5661 = vpop.permute.xlu0 %5660
        %5664 = vset.pattern.permute.xlu0 0
        %5665 = vperm.xlu0 %5664, %v5635
        %v5666 = vpop.permute.xlu0 %5665
        %5669 = vset.pattern.permute.xlu0 0
        %5670 = vperm.xlu0 %5669, %v5636
        %v5671 = vpop.permute.xlu0 %5670
        %5674 = vset.pattern.permute.xlu0 0
        %5675 = vperm.xlu0 %5674, %v5637
        %v5676 = vpop.permute.xlu0 %5675
        %5679 = vset.pattern.permute.xlu0 0
        %5680 = vperm.xlu0 %5679, %v5638
        %v5681 = vpop.permute.xlu0 %5680
        %5684 = vset.pattern.permute.xlu0 0
        %5685 = vperm.xlu0 %5684, %v5639
        %v5686 = vpop.permute.xlu0 %5685
        %5689 = vset.pattern.permute.xlu0 0
        %5690 = vperm.xlu0 %5689, %v5640
        %v5691 = vpop.permute.xlu0 %5690
        %5694 = vset.pattern.permute.xlu0 0
        %5695 = vperm.xlu0 %5694, %v5641
        %v5696 = vpop.permute.xlu0 %5695
        %5699 = vset.pattern.permute.xlu0 0
        %5700 = vperm.xlu0 %5699, %v5642
        %v5701 = vpop.permute.xlu0 %5700
        %5704 = vset.pattern.permute.xlu0 0
        %5705 = vperm.xlu0 %5704, %v5643
        %v5706 = vpop.permute.xlu0 %5705
        %5709 = vset.pattern.permute.xlu0 0
        %5710 = vperm.xlu0 %5709, %v5644
        %v5711 = vpop.permute.xlu0 %5710
        %5714 = vset.pattern.permute.xlu0 0
        %5715 = vperm.xlu0 %5714, %v5645
        %v5716 = vpop.permute.xlu0 %5715
        %5719 = vset.pattern.permute.xlu0 0
        %5720 = vperm.xlu0 %5719, %v5646
        %v5721 = vpop.permute.xlu0 %5720
        %5724 = vset.pattern.permute.xlu0 0
        %5725 = vperm.xlu0 %5724, %v5647
        %v5726 = vpop.permute.xlu0 %5725
        %5728 = vmatprep.subr.mxu0 %v5329
        %5729 = vmatpush1.msra.mxu0 %v5327
        %5730 = vmatprep.subr.mxu0 %v5335
        %5731 = vmatpush1.msra.mxu0 %v5333
        %5732 = vmatprep.subr.mxu0 %v5341
        %5733 = vmatpush1.msra.mxu0 %v5339
        %5734 = vmatprep.subr.mxu0 %v5347
        %5735 = vmatpush1.msra.mxu0 %v5345
        %5736 = vmatprep.subr.mxu0 %v5418
        %5737 = vmatpush1.msra.mxu0 %v5416
        %5738 = vmatprep.subr.mxu0 %v5424
        %5739 = vmatpush1.msra.mxu0 %v5422
        %5740 = vmatprep.subr.mxu0 %v5430
        %5741 = vmatpush1.msra.mxu0 %v5428
        %5742 = vmatprep.subr.mxu0 %v5436
        %5743 = vmatpush1.msra.mxu0 %v5434
        %5744 = vmatprep.subr.mxu0 %v5507
        %5745 = vmatpush1.msra.mxu0 %v5505
        %5746 = vmatprep.subr.mxu0 %v5513
        %5747 = vmatpush1.msra.mxu0 %v5511
        %5748 = vmatprep.subr.mxu0 %v5519
        %5749 = vmatpush1.msra.mxu0 %v5517
        %5750 = vmatprep.subr.mxu0 %v5525
        %5751 = vmatpush1.msra.mxu0 %v5523
        %5752 = vmatprep.subr.mxu0 %v5596
        %5753 = vmatpush1.msra.mxu0 %v5594
        %5754 = vmatprep.subr.mxu0 %v5602
        %5755 = vmatpush1.msra.mxu0 %v5600
        %5756 = vmatprep.subr.mxu0 %v5608
        %5757 = vmatpush1.msra.mxu0 %v5606
        %5758 = vmatprep.subr.mxu0 %v5614
        %5759 = vmatpush1.msra.mxu0 %v5612
        %5760 = vmatprep.subr.mxu0 0.0
        %5761 = vmatpush1.msra.mxu0 0.0
        %5762 = vmatprep.subr.mxu0 0.0
        %5763 = vmatpush1.msra.mxu0 0.0
        %5764 = vmatprep.subr.mxu0 0.0
        %5765 = vmatpush1.msra.mxu0 0.0
        %5766 = vmatprep.subr.mxu0 0.0
        %5767 = vmatpush1.msra.mxu0 0.0
        %5768 = vmatprep.subr.mxu0 0.0
        %5769 = vmatpush1.msra.mxu0 0.0
        %5770 = vmatprep.subr.mxu0 0.0
        %5771 = vmatpush1.msra.mxu0 0.0
        %5772 = vmatprep.subr.mxu0 0.0
        %5773 = vmatpush1.msra.mxu0 0.0
        %5774 = vmatprep.subr.mxu0 0.0
        %5775 = vmatpush1.msra.mxu0 0.0
        %5776 = vmatprep.subr.mxu0 0.0
        %5777 = vmatpush1.msra.mxu0 0.0
        %5778 = vmatprep.subr.mxu0 0.0
        %5779 = vmatpush1.msra.mxu0 0.0
        %5780 = vmatprep.subr.mxu0 0.0
        %5781 = vmatpush1.msra.mxu0 0.0
        %5782 = vmatprep.subr.mxu0 0.0
        %5783 = vmatpush1.msra.mxu0 0.0
        %5784 = vmatprep.subr.mxu0 0.0
        %5785 = vmatpush1.msra.mxu0 0.0
        %5786 = vmatprep.subr.mxu0 0.0
        %5787 = vmatpush1.msra.mxu0 0.0
        %5788 = vmatprep.subr.mxu0 0.0
        %5789 = vmatpush1.msra.mxu0 0.0
        %5790 = vmatprep.subr.mxu0 0.0
        %5791 = vmatpush1.msra.mxu0 0.0
        %5792 = vmatprep.mubr.f32.mxu0 0.0
        %5793 = vmatmul.mubr.f32.gmra.mrb[0].mxu0 %v5616
        %v5794 = vpop.f32.mrb[0].mxu0
        %v5795 = vadd.f32 %v5651, %v5794
        %v5796 = vpop.f32.mrb[0].mxu0
        %v5797 = vadd.f32 %v5651, %v5796
        %5798 = vmatprep.mubr.f32.mxu0 0.0
        %5799 = vmatmul.mubr.f32.gmra.mrb[0].mxu0 %v5617
        %v5800 = vpop.f32.mrb[0].mxu0
        %v5801 = vadd.f32 %v5656, %v5800
        %v5802 = vpop.f32.mrb[0].mxu0
        %v5803 = vadd.f32 %v5656, %v5802
        %5804 = vmatprep.mubr.f32.mxu0 0.0
        %5805 = vmatmul.mubr.f32.gmra.mrb[0].mxu0 %v5618
        %v5806 = vpop.f32.mrb[0].mxu0
        %v5807 = vadd.f32 %v5661, %v5806
        %v5808 = vpop.f32.mrb[0].mxu0
        %v5809 = vadd.f32 %v5661, %v5808
        %5810 = vmatprep.mubr.f32.mxu0 0.0
        %5811 = vmatmul.mubr.f32.gmra.mrb[0].mxu0 %v5619
        %v5812 = vpop.f32.mrb[0].mxu0
        %v5813 = vadd.f32 %v5666, %v5812
        %v5814 = vpop.f32.mrb[0].mxu0
        %v5815 = vadd.f32 %v5666, %v5814
        %5816 = vmatprep.mubr.f32.mxu0 0.0
        %5817 = vmatmul.mubr.f32.gmra.mrb[0].mxu0 %v5620
        %v5818 = vpop.f32.mrb[0].mxu0
        %v5819 = vadd.f32 %v5671, %v5818
        %v5820 = vpop.f32.mrb[0].mxu0
        %v5821 = vadd.f32 %v5671, %v5820
        %5822 = vmatprep.mubr.f32.mxu0 0.0
        %5823 = vmatmul.mubr.f32.gmra.mrb[0].mxu0 %v5621
        %v5824 = vpop.f32.mrb[0].mxu0
        %v5825 = vadd.f32 %v5676, %v5824
        %v5826 = vpop.f32.mrb[0].mxu0
        %v5827 = vadd.f32 %v5676, %v5826
        %5828 = vmatprep.mubr.f32.mxu0 0.0
        %5829 = vmatmul.mubr.f32.gmra.mrb[0].mxu0 %v5622
        %v5830 = vpop.f32.mrb[0].mxu0
        %v5831 = vadd.f32 %v5681, %v5830
        %v5832 = vpop.f32.mrb[0].mxu0
        %v5833 = vadd.f32 %v5681, %v5832
        %5834 = vmatprep.mubr.f32.mxu0 0.0
        %5835 = vmatmul.mubr.f32.gmra.mrb[0].mxu0 %v5623
        %v5836 = vpop.f32.mrb[0].mxu0
        %v5837 = vadd.f32 %v5686, %v5836
        %v5838 = vpop.f32.mrb[0].mxu0
        %v5839 = vadd.f32 %v5686, %v5838
        %5840 = vmatprep.mubr.f32.mxu0 0.0
        %5841 = vmatmul.mubr.f32.gmra.mrb[0].mxu0 %v5624
        %v5842 = vpop.f32.mrb[0].mxu0
        %v5843 = vadd.f32 %v5691, %v5842
        %v5844 = vpop.f32.mrb[0].mxu0
        %v5845 = vadd.f32 %v5691, %v5844
        %5846 = vmatprep.mubr.f32.mxu0 0.0
        %5847 = vmatmul.mubr.f32.gmra.mrb[0].mxu0 %v5625
        %v5848 = vpop.f32.mrb[0].mxu0
        %v5849 = vadd.f32 %v5696, %v5848
        %v5850 = vpop.f32.mrb[0].mxu0
        %v5851 = vadd.f32 %v5696, %v5850
        %5852 = vmatprep.mubr.f32.mxu0 0.0
        %5853 = vmatmul.mubr.f32.gmra.mrb[0].mxu0 %v5626
        %v5854 = vpop.f32.mrb[0].mxu0
        %v5855 = vadd.f32 %v5701, %v5854
        %v5856 = vpop.f32.mrb[0].mxu0
        %v5857 = vadd.f32 %v5701, %v5856
        %5858 = vmatprep.mubr.f32.mxu0 0.0
        %5859 = vmatmul.mubr.f32.gmra.mrb[0].mxu0 %v5627
        %v5860 = vpop.f32.mrb[0].mxu0
        %v5861 = vadd.f32 %v5706, %v5860
        %v5862 = vpop.f32.mrb[0].mxu0
        %v5863 = vadd.f32 %v5706, %v5862
        %5864 = vmatprep.mubr.f32.mxu0 0.0
        %5865 = vmatmul.mubr.f32.gmra.mrb[0].mxu0 %v5628
        %v5866 = vpop.f32.mrb[0].mxu0
        %v5867 = vadd.f32 %v5711, %v5866
        %v5868 = vpop.f32.mrb[0].mxu0
        %v5869 = vadd.f32 %v5711, %v5868
        %5870 = vmatprep.mubr.f32.mxu0 0.0
        %5871 = vmatmul.mubr.f32.gmra.mrb[0].mxu0 %v5629
        %v5872 = vpop.f32.mrb[0].mxu0
        %v5873 = vadd.f32 %v5716, %v5872
        %v5874 = vpop.f32.mrb[0].mxu0
        %v5875 = vadd.f32 %v5716, %v5874
        %5876 = vmatprep.mubr.f32.mxu0 0.0
        %5877 = vmatmul.mubr.f32.gmra.mrb[0].mxu0 %v5630
        %v5878 = vpop.f32.mrb[0].mxu0
        %v5879 = vadd.f32 %v5721, %v5878
        %v5880 = vpop.f32.mrb[0].mxu0
        %v5881 = vadd.f32 %v5721, %v5880
        %5882 = vmatprep.mubr.f32.mxu0 0.0
        %5883 = vmatmul.mubr.f32.gmra.mrb[0].mxu0 %v5631
        %v5884 = vpop.f32.mrb[0].mxu0
        %v5885 = vadd.f32 %v5726, %v5884
        %v5886 = vpop.f32.mrb[0].mxu0
        %v5887 = vadd.f32 %v5726, %v5886
        %5888 = vdwg.mxu0
        %v5889 = vadd.f32 %v758, %v5795
        %v5890 = vadd.f32 %v760, %v5797
        %v5891 = vadd.f32 %v764, %v5801
        %v5892 = vadd.f32 %v766, %v5803
        %v5893 = vadd.f32 %v770, %v5807
        %v5894 = vadd.f32 %v772, %v5809
        %v5895 = vadd.f32 %v776, %v5813
        %v5896 = vadd.f32 %v778, %v5815
        %v5897 = vadd.f32 %v782, %v5819
        %v5898 = vadd.f32 %v784, %v5821
        %v5899 = vadd.f32 %v788, %v5825
        %v5900 = vadd.f32 %v790, %v5827
        %v5901 = vadd.f32 %v794, %v5831
        %v5902 = vadd.f32 %v796, %v5833
        %v5903 = vadd.f32 %v800, %v5837
        %v5904 = vadd.f32 %v802, %v5839
        %v5905 = vadd.f32 %v806, %v5843
        %v5906 = vadd.f32 %v808, %v5845
        %v5907 = vadd.f32 %v812, %v5849
        %v5908 = vadd.f32 %v814, %v5851
        %v5909 = vadd.f32 %v818, %v5855
        %v5910 = vadd.f32 %v820, %v5857
        %v5911 = vadd.f32 %v824, %v5861
        %v5912 = vadd.f32 %v826, %v5863
        %v5913 = vadd.f32 %v830, %v5867
        %v5914 = vadd.f32 %v832, %v5869
        %v5915 = vadd.f32 %v836, %v5873
        %v5916 = vadd.f32 %v838, %v5875
        %v5917 = vadd.f32 %v842, %v5879
        %v5918 = vadd.f32 %v844, %v5881
        %v5919 = vadd.f32 %v848, %v5885
        %v5920 = vadd.f32 %v850, %v5887
        %v5921 = vld [vmem:[%s11] sm:$0xff]
        %v5922 = vld [vmem:[%s11 + $0x8] sm:$0xff]
        %v5923 = vld [vmem:[%s11 + $0x10] sm:$0xff]
        %v5924 = vld [vmem:[%s11 + $0x18] sm:$0xff]
        %v5925 = vld [vmem:[%s11 + $0x20] sm:$0xff]
        %v5926 = vld [vmem:[%s11 + $0x28] sm:$0xff]
        %v5927 = vld [vmem:[%s11 + $0x30] sm:$0xff]
        %v5928 = vld [vmem:[%s11 + $0x38] sm:$0xff]
        %v5929 = vld [vmem:[%s11 + $0x40] sm:$0xff]
        %v5930 = vld [vmem:[%s11 + $0x48] sm:$0xff]
        %v5931 = vld [vmem:[%s11 + $0x50] sm:$0xff]
        %v5932 = vld [vmem:[%s11 + $0x58] sm:$0xff]
        %v5933 = vld [vmem:[%s11 + $0x60] sm:$0xff]
        %v5934 = vld [vmem:[%s11 + $0x68] sm:$0xff]
        %v5935 = vld [vmem:[%s11 + $0x70] sm:$0xff]
        %v5936 = vld [vmem:[%s11 + $0x78] sm:$0xff]
        %v5937 = vld [vmem:[%s12] sm:$0xff]
        %v5938 = vld [vmem:[%s12 + $0x8] sm:$0xff]
        %v5939 = vld [vmem:[%s12 + $0x10] sm:$0xff]
        %v5940 = vld [vmem:[%s12 + $0x18] sm:$0xff]
        %v5941 = vld [vmem:[%s12 + $0x20] sm:$0xff]
        %v5942 = vld [vmem:[%s12 + $0x28] sm:$0xff]
        %v5943 = vld [vmem:[%s12 + $0x30] sm:$0xff]
        %v5944 = vld [vmem:[%s12 + $0x38] sm:$0xff]
        %v5945 = vld [vmem:[%s12 + $0x40] sm:$0xff]
        %v5946 = vld [vmem:[%s12 + $0x48] sm:$0xff]
        %v5947 = vld [vmem:[%s12 + $0x50] sm:$0xff]
        %v5948 = vld [vmem:[%s12 + $0x58] sm:$0xff]
        %v5949 = vld [vmem:[%s12 + $0x60] sm:$0xff]
        %v5950 = vld [vmem:[%s12 + $0x68] sm:$0xff]
        %v5951 = vld [vmem:[%s12 + $0x70] sm:$0xff]
        %v5952 = vld [vmem:[%s12 + $0x78] sm:$0xff]
        %v5953 = vadd.f32 %v5889, %v5891
        %v5954 = vadd.f32 %v5953, %v5893
        %v5955 = vadd.f32 %v5954, %v5895
        %v5956 = vadd.f32 %v5955, %v5897
        %v5957 = vadd.f32 %v5956, %v5899
        %v5958 = vadd.f32 %v5957, %v5901
        %v5959 = vadd.f32 %v5958, %v5903
        %v5960 = vadd.f32 %v5959, %v5905
        %v5961 = vadd.f32 %v5960, %v5907
        %v5962 = vadd.f32 %v5961, %v5909
        %v5963 = vadd.f32 %v5962, %v5911
        %v5964 = vadd.f32 %v5963, %v5913
        %v5965 = vadd.f32 %v5964, %v5915
        %v5966 = vadd.f32 %v5965, %v5917
        %v5967 = vadd.f32 %v5966, %v5919
        %v5968 = vrot.slane %v5967, 4
        %v5969 = vadd.f32 %v5967, %v5968
        %v5970 = vrot.slane %v5969, 2
        %v5971 = vadd.f32 %v5969, %v5970
        %v5972 = vrot.slane %v5971, 1
        %v5973 = vadd.f32 %v5971, %v5972
        %v5974 = vadd.f32 %v5890, %v5892
        %v5975 = vadd.f32 %v5974, %v5894
        %v5976 = vadd.f32 %v5975, %v5896
        %v5977 = vadd.f32 %v5976, %v5898
        %v5978 = vadd.f32 %v5977, %v5900
        %v5979 = vadd.f32 %v5978, %v5902
        %v5980 = vadd.f32 %v5979, %v5904
        %v5981 = vadd.f32 %v5980, %v5906
        %v5982 = vadd.f32 %v5981, %v5908
        %v5983 = vadd.f32 %v5982, %v5910
        %v5984 = vadd.f32 %v5983, %v5912
        %v5985 = vadd.f32 %v5984, %v5914
        %v5986 = vadd.f32 %v5985, %v5916
        %v5987 = vadd.f32 %v5986, %v5918
        %v5988 = vadd.f32 %v5987, %v5920
        %v5989 = vrot.slane %v5988, 4
        %v5990 = vadd.f32 %v5988, %v5989
        %v5991 = vrot.slane %v5990, 2
        %v5992 = vadd.f32 %v5990, %v5991
        %v5993 = vrot.slane %v5992, 1
        %v5994 = vadd.f32 %v5992, %v5993
        %v5995 = vrcp.pop 128.0
        %v5996 = vmul.f32 %v5973, %v5995
        %v5997 = vmul.f32 %v5994, %v5995
        %v5998 = vsub.f32 %v5889, %v5996
        %v5999 = vsub.f32 %v5890, %v5997
        %v6000 = vsub.f32 %v5891, %v5996
        %v6001 = vsub.f32 %v5892, %v5997
        %v6002 = vsub.f32 %v5893, %v5996
        %v6003 = vsub.f32 %v5894, %v5997
        %v6004 = vsub.f32 %v5895, %v5996
        %v6005 = vsub.f32 %v5896, %v5997
        %v6006 = vsub.f32 %v5897, %v5996
        %v6007 = vsub.f32 %v5898, %v5997
        %v6008 = vsub.f32 %v5899, %v5996
        %v6009 = vsub.f32 %v5900, %v5997
        %v6010 = vsub.f32 %v5901, %v5996
        %v6011 = vsub.f32 %v5902, %v5997
        %v6012 = vsub.f32 %v5903, %v5996
        %v6013 = vsub.f32 %v5904, %v5997
        %v6014 = vsub.f32 %v5905, %v5996
        %v6015 = vsub.f32 %v5906, %v5997
        %v6016 = vsub.f32 %v5907, %v5996
        %v6017 = vsub.f32 %v5908, %v5997
        %v6018 = vsub.f32 %v5909, %v5996
        %v6019 = vsub.f32 %v5910, %v5997
        %v6020 = vsub.f32 %v5911, %v5996
        %v6021 = vsub.f32 %v5912, %v5997
        %v6022 = vsub.f32 %v5913, %v5996
        %v6023 = vsub.f32 %v5914, %v5997
        %v6024 = vsub.f32 %v5915, %v5996
        %v6025 = vsub.f32 %v5916, %v5997
        %v6026 = vsub.f32 %v5917, %v5996
        %v6027 = vsub.f32 %v5918, %v5997
        %v6028 = vsub.f32 %v5919, %v5996
        %v6029 = vsub.f32 %v5920, %v5997
        %v6030 = vmul.f32 %v5998, %v5998
        %v6031 = vmul.f32 %v5999, %v5999
        %v6032 = vmul.f32 %v6000, %v6000
        %v6033 = vmul.f32 %v6001, %v6001
        %v6034 = vmul.f32 %v6002, %v6002
        %v6035 = vmul.f32 %v6003, %v6003
        %v6036 = vmul.f32 %v6004, %v6004
        %v6037 = vmul.f32 %v6005, %v6005
        %v6038 = vmul.f32 %v6006, %v6006
        %v6039 = vmul.f32 %v6007, %v6007
        %v6040 = vmul.f32 %v6008, %v6008
        %v6041 = vmul.f32 %v6009, %v6009
        %v6042 = vmul.f32 %v6010, %v6010
        %v6043 = vmul.f32 %v6011, %v6011
        %v6044 = vmul.f32 %v6012, %v6012
        %v6045 = vmul.f32 %v6013, %v6013
        %v6046 = vmul.f32 %v6014, %v6014
        %v6047 = vmul.f32 %v6015, %v6015
        %v6048 = vmul.f32 %v6016, %v6016
        %v6049 = vmul.f32 %v6017, %v6017
        %v6050 = vmul.f32 %v6018, %v6018
        %v6051 = vmul.f32 %v6019, %v6019
        %v6052 = vmul.f32 %v6020, %v6020
        %v6053 = vmul.f32 %v6021, %v6021
        %v6054 = vmul.f32 %v6022, %v6022
        %v6055 = vmul.f32 %v6023, %v6023
        %v6056 = vmul.f32 %v6024, %v6024
        %v6057 = vmul.f32 %v6025, %v6025
        %v6058 = vmul.f32 %v6026, %v6026
        %v6059 = vmul.f32 %v6027, %v6027
        %v6060 = vmul.f32 %v6028, %v6028
        %v6061 = vmul.f32 %v6029, %v6029
        %v6062 = vadd.f32 %v6030, %v6032
        %v6063 = vadd.f32 %v6062, %v6034
        %v6064 = vadd.f32 %v6063, %v6036
        %v6065 = vadd.f32 %v6064, %v6038
        %v6066 = vadd.f32 %v6065, %v6040
        %v6067 = vadd.f32 %v6066, %v6042
        %v6068 = vadd.f32 %v6067, %v6044
        %v6069 = vadd.f32 %v6068, %v6046
        %v6070 = vadd.f32 %v6069, %v6048
        %v6071 = vadd.f32 %v6070, %v6050
        %v6072 = vadd.f32 %v6071, %v6052
        %v6073 = vadd.f32 %v6072, %v6054
        %v6074 = vadd.f32 %v6073, %v6056
        %v6075 = vadd.f32 %v6074, %v6058
        %v6076 = vadd.f32 %v6075, %v6060
        %v6077 = vrot.slane %v6076, 4
        %v6078 = vadd.f32 %v6076, %v6077
        %v6079 = vrot.slane %v6078, 2
        %v6080 = vadd.f32 %v6078, %v6079
        %v6081 = vrot.slane %v6080, 1
        %v6082 = vadd.f32 %v6080, %v6081
        %v6083 = vadd.f32 %v6031, %v6033
        %v6084 = vadd.f32 %v6083, %v6035
        %v6085 = vadd.f32 %v6084, %v6037
        %v6086 = vadd.f32 %v6085, %v6039
        %v6087 = vadd.f32 %v6086, %v6041
        %v6088 = vadd.f32 %v6087, %v6043
        %v6089 = vadd.f32 %v6088, %v6045
        %v6090 = vadd.f32 %v6089, %v6047
        %v6091 = vadd.f32 %v6090, %v6049
        %v6092 = vadd.f32 %v6091, %v6051
        %v6093 = vadd.f32 %v6092, %v6053
        %v6094 = vadd.f32 %v6093, %v6055
        %v6095 = vadd.f32 %v6094, %v6057
        %v6096 = vadd.f32 %v6095, %v6059
        %v6097 = vadd.f32 %v6096, %v6061
        %v6098 = vrot.slane %v6097, 4
        %v6099 = vadd.f32 %v6097, %v6098
        %v6100 = vrot.slane %v6099, 2
        %v6101 = vadd.f32 %v6099, %v6100
        %v6102 = vrot.slane %v6101, 1
        %v6103 = vadd.f32 %v6101, %v6102
        %v6104 = vmul.f32 %v6082, %v5995
        %v6105 = vmul.f32 %v6103, %v5995
        %v6106 = vadd.f32 %v6104, 1e-05
        %v6107 = vadd.f32 %v6105, 1e-05
        %v6108 = vrsqrt.pop %v6106
        %v6109 = vrsqrt.pop %v6107
        %v6110 = vmul.f32 %v5998, %v6108
        %v6111 = vmul.f32 %v5999, %v6109
        %v6112 = vmul.f32 %v6000, %v6108
        %v6113 = vmul.f32 %v6001, %v6109
        %v6114 = vmul.f32 %v6002, %v6108
        %v6115 = vmul.f32 %v6003, %v6109
        %v6116 = vmul.f32 %v6004, %v6108
        %v6117 = vmul.f32 %v6005, %v6109
        %v6118 = vmul.f32 %v6006, %v6108
        %v6119 = vmul.f32 %v6007, %v6109
        %v6120 = vmul.f32 %v6008, %v6108
        %v6121 = vmul.f32 %v6009, %v6109
        %v6122 = vmul.f32 %v6010, %v6108
        %v6123 = vmul.f32 %v6011, %v6109
        %v6124 = vmul.f32 %v6012, %v6108
        %v6125 = vmul.f32 %v6013, %v6109
        %v6126 = vmul.f32 %v6014, %v6108
        %v6127 = vmul.f32 %v6015, %v6109
        %v6128 = vmul.f32 %v6016, %v6108
        %v6129 = vmul.f32 %v6017, %v6109
        %v6130 = vmul.f32 %v6018, %v6108
        %v6131 = vmul.f32 %v6019, %v6109
        %v6132 = vmul.f32 %v6020, %v6108
        %v6133 = vmul.f32 %v6021, %v6109
        %v6134 = vmul.f32 %v6022, %v6108
        %v6135 = vmul.f32 %v6023, %v6109
        %v6136 = vmul.f32 %v6024, %v6108
        %v6137 = vmul.f32 %v6025, %v6109
        %v6138 = vmul.f32 %v6026, %v6108
        %v6139 = vmul.f32 %v6027, %v6109
        %v6140 = vmul.f32 %v6028, %v6108
        %v6141 = vmul.f32 %v6029, %v6109
        %6143 = vset.pattern.permute.xlu0 0
        %6144 = vperm.xlu0 %6143, %v5921
        %v6145 = vpop.permute.xlu0 %6144
        %6148 = vset.pattern.permute.xlu0 0
        %6149 = vperm.xlu0 %6148, %v5922
        %v6150 = vpop.permute.xlu0 %6149
        %6153 = vset.pattern.permute.xlu0 0
        %6154 = vperm.xlu0 %6153, %v5923
        %v6155 = vpop.permute.xlu0 %6154
        %6158 = vset.pattern.permute.xlu0 0
        %6159 = vperm.xlu0 %6158, %v5924
        %v6160 = vpop.permute.xlu0 %6159
        %6163 = vset.pattern.permute.xlu0 0
        %6164 = vperm.xlu0 %6163, %v5925
        %v6165 = vpop.permute.xlu0 %6164
        %6168 = vset.pattern.permute.xlu0 0
        %6169 = vperm.xlu0 %6168, %v5926
        %v6170 = vpop.permute.xlu0 %6169
        %6173 = vset.pattern.permute.xlu0 0
        %6174 = vperm.xlu0 %6173, %v5927
        %v6175 = vpop.permute.xlu0 %6174
        %6178 = vset.pattern.permute.xlu0 0
        %6179 = vperm.xlu0 %6178, %v5928
        %v6180 = vpop.permute.xlu0 %6179
        %6183 = vset.pattern.permute.xlu0 0
        %6184 = vperm.xlu0 %6183, %v5929
        %v6185 = vpop.permute.xlu0 %6184
        %6188 = vset.pattern.permute.xlu0 0
        %6189 = vperm.xlu0 %6188, %v5930
        %v6190 = vpop.permute.xlu0 %6189
        %6193 = vset.pattern.permute.xlu0 0
        %6194 = vperm.xlu0 %6193, %v5931
        %v6195 = vpop.permute.xlu0 %6194
        %6198 = vset.pattern.permute.xlu0 0
        %6199 = vperm.xlu0 %6198, %v5932
        %v6200 = vpop.permute.xlu0 %6199
        %6203 = vset.pattern.permute.xlu0 0
        %6204 = vperm.xlu0 %6203, %v5933
        %v6205 = vpop.permute.xlu0 %6204
        %6208 = vset.pattern.permute.xlu0 0
        %6209 = vperm.xlu0 %6208, %v5934
        %v6210 = vpop.permute.xlu0 %6209
        %6213 = vset.pattern.permute.xlu0 0
        %6214 = vperm.xlu0 %6213, %v5935
        %v6215 = vpop.permute.xlu0 %6214
        %6218 = vset.pattern.permute.xlu0 0
        %6219 = vperm.xlu0 %6218, %v5936
        %v6220 = vpop.permute.xlu0 %6219
        %v6222 = vmul.f32 %v6110, %v6145
        %v6223 = vmul.f32 %v6111, %v6145
        %v6224 = vmul.f32 %v6112, %v6150
        %v6225 = vmul.f32 %v6113, %v6150
        %v6226 = vmul.f32 %v6114, %v6155
        %v6227 = vmul.f32 %v6115, %v6155
        %v6228 = vmul.f32 %v6116, %v6160
        %v6229 = vmul.f32 %v6117, %v6160
        %v6230 = vmul.f32 %v6118, %v6165
        %v6231 = vmul.f32 %v6119, %v6165
        %v6232 = vmul.f32 %v6120, %v6170
        %v6233 = vmul.f32 %v6121, %v6170
        %v6234 = vmul.f32 %v6122, %v6175
        %v6235 = vmul.f32 %v6123, %v6175
        %v6236 = vmul.f32 %v6124, %v6180
        %v6237 = vmul.f32 %v6125, %v6180
        %v6238 = vmul.f32 %v6126, %v6185
        %v6239 = vmul.f32 %v6127, %v6185
        %v6240 = vmul.f32 %v6128, %v6190
        %v6241 = vmul.f32 %v6129, %v6190
        %v6242 = vmul.f32 %v6130, %v6195
        %v6243 = vmul.f32 %v6131, %v6195
        %v6244 = vmul.f32 %v6132, %v6200
        %v6245 = vmul.f32 %v6133, %v6200
        %v6246 = vmul.f32 %v6134, %v6205
        %v6247 = vmul.f32 %v6135, %v6205
        %v6248 = vmul.f32 %v6136, %v6210
        %v6249 = vmul.f32 %v6137, %v6210
        %v6250 = vmul.f32 %v6138, %v6215
        %v6251 = vmul.f32 %v6139, %v6215
        %v6252 = vmul.f32 %v6140, %v6220
        %v6253 = vmul.f32 %v6141, %v6220
        %6255 = vset.pattern.permute.xlu0 0
        %6256 = vperm.xlu0 %6255, %v5937
        %v6257 = vpop.permute.xlu0 %6256
        %6260 = vset.pattern.permute.xlu0 0
        %6261 = vperm.xlu0 %6260, %v5938
        %v6262 = vpop.permute.xlu0 %6261
        %6265 = vset.pattern.permute.xlu0 0
        %6266 = vperm.xlu0 %6265, %v5939
        %v6267 = vpop.permute.xlu0 %6266
        %6270 = vset.pattern.permute.xlu0 0
        %6271 = vperm.xlu0 %6270, %v5940
        %v6272 = vpop.permute.xlu0 %6271
        %6275 = vset.pattern.permute.xlu0 0
        %6276 = vperm.xlu0 %6275, %v5941
        %v6277 = vpop.permute.xlu0 %6276
        %6280 = vset.pattern.permute.xlu0 0
        %6281 = vperm.xlu0 %6280, %v5942
        %v6282 = vpop.permute.xlu0 %6281
        %6285 = vset.pattern.permute.xlu0 0
        %6286 = vperm.xlu0 %6285, %v5943
        %v6287 = vpop.permute.xlu0 %6286
        %6290 = vset.pattern.permute.xlu0 0
        %6291 = vperm.xlu0 %6290, %v5944
        %v6292 = vpop.permute.xlu0 %6291
        %6295 = vset.pattern.permute.xlu0 0
        %6296 = vperm.xlu0 %6295, %v5945
        %v6297 = vpop.permute.xlu0 %6296
        %6300 = vset.pattern.permute.xlu0 0
        %6301 = vperm.xlu0 %6300, %v5946
        %v6302 = vpop.permute.xlu0 %6301
        %6305 = vset.pattern.permute.xlu0 0
        %6306 = vperm.xlu0 %6305, %v5947
        %v6307 = vpop.permute.xlu0 %6306
        %6310 = vset.pattern.permute.xlu0 0
        %6311 = vperm.xlu0 %6310, %v5948
        %v6312 = vpop.permute.xlu0 %6311
        %6315 = vset.pattern.permute.xlu0 0
        %6316 = vperm.xlu0 %6315, %v5949
        %v6317 = vpop.permute.xlu0 %6316
        %6320 = vset.pattern.permute.xlu0 0
        %6321 = vperm.xlu0 %6320, %v5950
        %v6322 = vpop.permute.xlu0 %6321
        %6325 = vset.pattern.permute.xlu0 0
        %6326 = vperm.xlu0 %6325, %v5951
        %v6327 = vpop.permute.xlu0 %6326
        %6330 = vset.pattern.permute.xlu0 0
        %6331 = vperm.xlu0 %6330, %v5952
        %v6332 = vpop.permute.xlu0 %6331
        %v6334 = vadd.f32 %v6222, %v6257
        %v6335 = vadd.f32 %v6223, %v6257
        %v6336 = vadd.f32 %v6224, %v6262
        %v6337 = vadd.f32 %v6225, %v6262
        %v6338 = vadd.f32 %v6226, %v6267
        %v6339 = vadd.f32 %v6227, %v6267
        %v6340 = vadd.f32 %v6228, %v6272
        %v6341 = vadd.f32 %v6229, %v6272
        %v6342 = vadd.f32 %v6230, %v6277
        %v6343 = vadd.f32 %v6231, %v6277
        %v6344 = vadd.f32 %v6232, %v6282
        %v6345 = vadd.f32 %v6233, %v6282
        %v6346 = vadd.f32 %v6234, %v6287
        %v6347 = vadd.f32 %v6235, %v6287
        %v6348 = vadd.f32 %v6236, %v6292
        %v6349 = vadd.f32 %v6237, %v6292
        %v6350 = vadd.f32 %v6238, %v6297
        %v6351 = vadd.f32 %v6239, %v6297
        %v6352 = vadd.f32 %v6240, %v6302
        %v6353 = vadd.f32 %v6241, %v6302
        %v6354 = vadd.f32 %v6242, %v6307
        %v6355 = vadd.f32 %v6243, %v6307
        %v6356 = vadd.f32 %v6244, %v6312
        %v6357 = vadd.f32 %v6245, %v6312
        %v6358 = vadd.f32 %v6246, %v6317
        %v6359 = vadd.f32 %v6247, %v6317
        %v6360 = vadd.f32 %v6248, %v6322
        %v6361 = vadd.f32 %v6249, %v6322
        %v6362 = vadd.f32 %v6250, %v6327
        %v6363 = vadd.f32 %v6251, %v6327
        %v6364 = vadd.f32 %v6252, %v6332
        %v6365 = vadd.f32 %v6253, %v6332
        %v6366 = vld [vmem:[%s13] sm:$0xff]
        %v6367 = vld [vmem:[%s13 + $0x8] sm:$0xff]
        %v6368 = vld [vmem:[%s13 + $0x10] sm:$0xff]
        %v6369 = vld [vmem:[%s13 + $0x18] sm:$0xff]
        %v6370 = vld [vmem:[%s13 + $0x20] sm:$0xff]
        %v6371 = vld [vmem:[%s13 + $0x28] sm:$0xff]
        %v6372 = vld [vmem:[%s13 + $0x30] sm:$0xff]
        %v6373 = vld [vmem:[%s13 + $0x38] sm:$0xff]
        %v6374 = vld [vmem:[%s13 + $0x40] sm:$0xff]
        %v6375 = vld [vmem:[%s13 + $0x48] sm:$0xff]
        %v6376 = vld [vmem:[%s13 + $0x50] sm:$0xff]
        %v6377 = vld [vmem:[%s13 + $0x58] sm:$0xff]
        %v6378 = vld [vmem:[%s13 + $0x60] sm:$0xff]
        %v6379 = vld [vmem:[%s13 + $0x68] sm:$0xff]
        %v6380 = vld [vmem:[%s13 + $0x70] sm:$0xff]
        %v6381 = vld [vmem:[%s13 + $0x78] sm:$0xff]
        %v6382 = vld [vmem:[%s14] sm:$0xff]
        %v6383 = vld [vmem:[%s14 + $0x8] sm:$0xff]
        %v6384 = vld [vmem:[%s14 + $0x10] sm:$0xff]
        %v6385 = vld [vmem:[%s14 + $0x18] sm:$0xff]
        %v6386 = vld [vmem:[%s14 + $0x20] sm:$0xff]
        %v6387 = vld [vmem:[%s14 + $0x28] sm:$0xff]
        %v6388 = vld [vmem:[%s14 + $0x30] sm:$0xff]
        %v6389 = vld [vmem:[%s14 + $0x38] sm:$0xff]
        %v6390 = vld [vmem:[%s14 + $0x40] sm:$0xff]
        %v6391 = vld [vmem:[%s14 + $0x48] sm:$0xff]
        %v6392 = vld [vmem:[%s14 + $0x50] sm:$0xff]
        %v6393 = vld [vmem:[%s14 + $0x58] sm:$0xff]
        %v6394 = vld [vmem:[%s14 + $0x60] sm:$0xff]
        %v6395 = vld [vmem:[%s14 + $0x68] sm:$0xff]
        %v6396 = vld [vmem:[%s14 + $0x70] sm:$0xff]
        %v6397 = vld [vmem:[%s14 + $0x78] sm:$0xff]
        %6399 = vset.pattern.permute.xlu0 0
        %6400 = vperm.xlu0 %6399, %v6382
        %v6401 = vpop.permute.xlu0 %6400
        %6404 = vset.pattern.permute.xlu0 0
        %6405 = vperm.xlu0 %6404, %v6383
        %v6406 = vpop.permute.xlu0 %6405
        %6409 = vset.pattern.permute.xlu0 0
        %6410 = vperm.xlu0 %6409, %v6384
        %v6411 = vpop.permute.xlu0 %6410
        %6414 = vset.pattern.permute.xlu0 0
        %6415 = vperm.xlu0 %6414, %v6385
        %v6416 = vpop.permute.xlu0 %6415
        %6419 = vset.pattern.permute.xlu0 0
        %6420 = vperm.xlu0 %6419, %v6386
        %v6421 = vpop.permute.xlu0 %6420
        %6424 = vset.pattern.permute.xlu0 0
        %6425 = vperm.xlu0 %6424, %v6387
        %v6426 = vpop.permute.xlu0 %6425
        %6429 = vset.pattern.permute.xlu0 0
        %6430 = vperm.xlu0 %6429, %v6388
        %v6431 = vpop.permute.xlu0 %6430
        %6434 = vset.pattern.permute.xlu0 0
        %6435 = vperm.xlu0 %6434, %v6389
        %v6436 = vpop.permute.xlu0 %6435
        %6439 = vset.pattern.permute.xlu0 0
        %6440 = vperm.xlu0 %6439, %v6390
        %v6441 = vpop.permute.xlu0 %6440
        %6444 = vset.pattern.permute.xlu0 0
        %6445 = vperm.xlu0 %6444, %v6391
        %v6446 = vpop.permute.xlu0 %6445
        %6449 = vset.pattern.permute.xlu0 0
        %6450 = vperm.xlu0 %6449, %v6392
        %v6451 = vpop.permute.xlu0 %6450
        %6454 = vset.pattern.permute.xlu0 0
        %6455 = vperm.xlu0 %6454, %v6393
        %v6456 = vpop.permute.xlu0 %6455
        %6459 = vset.pattern.permute.xlu0 0
        %6460 = vperm.xlu0 %6459, %v6394
        %v6461 = vpop.permute.xlu0 %6460
        %6464 = vset.pattern.permute.xlu0 0
        %6465 = vperm.xlu0 %6464, %v6395
        %v6466 = vpop.permute.xlu0 %6465
        %6469 = vset.pattern.permute.xlu0 0
        %6470 = vperm.xlu0 %6469, %v6396
        %v6471 = vpop.permute.xlu0 %6470
        %6474 = vset.pattern.permute.xlu0 0
        %6475 = vperm.xlu0 %6474, %v6397
        %v6476 = vpop.permute.xlu0 %6475
        %6478 = vmatprep.subr.mxu0 %v6335
        %6479 = vmatpush1.msra.mxu0 %v6334
        %6480 = vmatprep.subr.mxu0 %v6337
        %6481 = vmatpush1.msra.mxu0 %v6336
        %6482 = vmatprep.subr.mxu0 %v6339
        %6483 = vmatpush1.msra.mxu0 %v6338
        %6484 = vmatprep.subr.mxu0 %v6341
        %6485 = vmatpush1.msra.mxu0 %v6340
        %6486 = vmatprep.subr.mxu0 %v6343
        %6487 = vmatpush1.msra.mxu0 %v6342
        %6488 = vmatprep.subr.mxu0 %v6345
        %6489 = vmatpush1.msra.mxu0 %v6344
        %6490 = vmatprep.subr.mxu0 %v6347
        %6491 = vmatpush1.msra.mxu0 %v6346
        %6492 = vmatprep.subr.mxu0 %v6349
        %6493 = vmatpush1.msra.mxu0 %v6348
        %6494 = vmatprep.subr.mxu0 %v6351
        %6495 = vmatpush1.msra.mxu0 %v6350
        %6496 = vmatprep.subr.mxu0 %v6353
        %6497 = vmatpush1.msra.mxu0 %v6352
        %6498 = vmatprep.subr.mxu0 %v6355
        %6499 = vmatpush1.msra.mxu0 %v6354
        %6500 = vmatprep.subr.mxu0 %v6357
        %6501 = vmatpush1.msra.mxu0 %v6356
        %6502 = vmatprep.subr.mxu0 %v6359
        %6503 = vmatpush1.msra.mxu0 %v6358
        %6504 = vmatprep.subr.mxu0 %v6361
        %6505 = vmatpush1.msra.mxu0 %v6360
        %6506 = vmatprep.subr.mxu0 %v6363
        %6507 = vmatpush1.msra.mxu0 %v6362
        %6508 = vmatprep.subr.mxu0 %v6365
        %6509 = vmatpush1.msra.mxu0 %v6364
        %6510 = vmatprep.subr.mxu0 0.0
        %6511 = vmatpush1.msra.mxu0 0.0
        %6512 = vmatprep.subr.mxu0 0.0
        %6513 = vmatpush1.msra.mxu0 0.0
        %6514 = vmatprep.subr.mxu0 0.0
        %6515 = vmatpush1.msra.mxu0 0.0
        %6516 = vmatprep.subr.mxu0 0.0
        %6517 = vmatpush1.msra.mxu0 0.0
        %6518 = vmatprep.subr.mxu0 0.0
        %6519 = vmatpush1.msra.mxu0 0.0
        %6520 = vmatprep.subr.mxu0 0.0
        %6521 = vmatpush1.msra.mxu0 0.0
        %6522 = vmatprep.subr.mxu0 0.0
        %6523 = vmatpush1.msra.mxu0 0.0
        %6524 = vmatprep.subr.mxu0 0.0
        %6525 = vmatpush1.msra.mxu0 0.0
        %6526 = vmatprep.subr.mxu0 0.0
        %6527 = vmatpush1.msra.mxu0 0.0
        %6528 = vmatprep.subr.mxu0 0.0
        %6529 = vmatpush1.msra.mxu0 0.0
        %6530 = vmatprep.subr.mxu0 0.0
        %6531 = vmatpush1.msra.mxu0 0.0
        %6532 = vmatprep.subr.mxu0 0.0
        %6533 = vmatpush1.msra.mxu0 0.0
        %6534 = vmatprep.subr.mxu0 0.0
        %6535 = vmatpush1.msra.mxu0 0.0
        %6536 = vmatprep.subr.mxu0 0.0
        %6537 = vmatpush1.msra.mxu0 0.0
        %6538 = vmatprep.subr.mxu0 0.0
        %6539 = vmatpush1.msra.mxu0 0.0
        %6540 = vmatprep.subr.mxu0 0.0
        %6541 = vmatpush1.msra.mxu0 0.0
        %6542 = vmatprep.mubr.f32.mxu0 0.0
        %6543 = vmatmul.mubr.f32.gmra.mrb[0].mxu0 %v6366
        %v6544 = vpop.f32.mrb[0].mxu0
        %v6545 = vadd.f32 %v6401, %v6544
        %v6546 = vpop.f32.mrb[0].mxu0
        %v6547 = vadd.f32 %v6401, %v6546
        %6548 = vmatprep.mubr.f32.mxu0 0.0
        %6549 = vmatmul.mubr.f32.gmra.mrb[0].mxu0 %v6367
        %v6550 = vpop.f32.mrb[0].mxu0
        %v6551 = vadd.f32 %v6406, %v6550
        %v6552 = vpop.f32.mrb[0].mxu0
        %v6553 = vadd.f32 %v6406, %v6552
        %6554 = vmatprep.mubr.f32.mxu0 0.0
        %6555 = vmatmul.mubr.f32.gmra.mrb[0].mxu0 %v6368
        %v6556 = vpop.f32.mrb[0].mxu0
        %v6557 = vadd.f32 %v6411, %v6556
        %v6558 = vpop.f32.mrb[0].mxu0
        %v6559 = vadd.f32 %v6411, %v6558
        %6560 = vmatprep.mubr.f32.mxu0 0.0
        %6561 = vmatmul.mubr.f32.gmra.mrb[0].mxu0 %v6369
        %v6562 = vpop.f32.mrb[0].mxu0
        %v6563 = vadd.f32 %v6416, %v6562
        %v6564 = vpop.f32.mrb[0].mxu0
        %v6565 = vadd.f32 %v6416, %v6564
        %6566 = vmatprep.mubr.f32.mxu0 0.0
        %6567 = vmatmul.mubr.f32.gmra.mrb[0].mxu0 %v6370
        %v6568 = vpop.f32.mrb[0].mxu0
        %v6569 = vadd.f32 %v6421, %v6568
        %v6570 = vpop.f32.mrb[0].mxu0
        %v6571 = vadd.f32 %v6421, %v6570
        %6572 = vmatprep.mubr.f32.mxu0 0.0
        %6573 = vmatmul.mubr.f32.gmra.mrb[0].mxu0 %v6371
        %v6574 = vpop.f32.mrb[0].mxu0
        %v6575 = vadd.f32 %v6426, %v6574
        %v6576 = vpop.f32.mrb[0].mxu0
        %v6577 = vadd.f32 %v6426, %v6576
        %6578 = vmatprep.mubr.f32.mxu0 0.0
        %6579 = vmatmul.mubr.f32.gmra.mrb[0].mxu0 %v6372
        %v6580 = vpop.f32.mrb[0].mxu0
        %v6581 = vadd.f32 %v6431, %v6580
        %v6582 = vpop.f32.mrb[0].mxu0
        %v6583 = vadd.f32 %v6431, %v6582
        %6584 = vmatprep.mubr.f32.mxu0 0.0
        %6585 = vmatmul.mubr.f32.gmra.mrb[0].mxu0 %v6373
        %v6586 = vpop.f32.mrb[0].mxu0
        %v6587 = vadd.f32 %v6436, %v6586
        %v6588 = vpop.f32.mrb[0].mxu0
        %v6589 = vadd.f32 %v6436, %v6588
        %6590 = vmatprep.mubr.f32.mxu0 0.0
        %6591 = vmatmul.mubr.f32.gmra.mrb[0].mxu0 %v6374
        %v6592 = vpop.f32.mrb[0].mxu0
        %v6593 = vadd.f32 %v6441, %v6592
        %v6594 = vpop.f32.mrb[0].mxu0
        %v6595 = vadd.f32 %v6441, %v6594
        %6596 = vmatprep.mubr.f32.mxu0 0.0
        %6597 = vmatmul.mubr.f32.gmra.mrb[0].mxu0 %v6375
        %v6598 = vpop.f32.mrb[0].mxu0
        %v6599 = vadd.f32 %v6446, %v6598
        %v6600 = vpop.f32.mrb[0].mxu0
        %v6601 = vadd.f32 %v6446, %v6600
        %6602 = vmatprep.mubr.f32.mxu0 0.0
        %6603 = vmatmul.mubr.f32.gmra.mrb[0].mxu0 %v6376
        %v6604 = vpop.f32.mrb[0].mxu0
        %v6605 = vadd.f32 %v6451, %v6604
        %v6606 = vpop.f32.mrb[0].mxu0
        %v6607 = vadd.f32 %v6451, %v6606
        %6608 = vmatprep.mubr.f32.mxu0 0.0
        %6609 = vmatmul.mubr.f32.gmra.mrb[0].mxu0 %v6377
        %v6610 = vpop.f32.mrb[0].mxu0
        %v6611 = vadd.f32 %v6456, %v6610
        %v6612 = vpop.f32.mrb[0].mxu0
        %v6613 = vadd.f32 %v6456, %v6612
        %6614 = vmatprep.mubr.f32.mxu0 0.0
        %6615 = vmatmul.mubr.f32.gmra.mrb[0].mxu0 %v6378
        %v6616 = vpop.f32.mrb[0].mxu0
        %v6617 = vadd.f32 %v6461, %v6616
        %v6618 = vpop.f32.mrb[0].mxu0
        %v6619 = vadd.f32 %v6461, %v6618
        %6620 = vmatprep.mubr.f32.mxu0 0.0
        %6621 = vmatmul.mubr.f32.gmra.mrb[0].mxu0 %v6379
        %v6622 = vpop.f32.mrb[0].mxu0
        %v6623 = vadd.f32 %v6466, %v6622
        %v6624 = vpop.f32.mrb[0].mxu0
        %v6625 = vadd.f32 %v6466, %v6624
        %6626 = vmatprep.mubr.f32.mxu0 0.0
        %6627 = vmatmul.mubr.f32.gmra.mrb[0].mxu0 %v6380
        %v6628 = vpop.f32.mrb[0].mxu0
        %v6629 = vadd.f32 %v6471, %v6628
        %v6630 = vpop.f32.mrb[0].mxu0
        %v6631 = vadd.f32 %v6471, %v6630
        %6632 = vmatprep.mubr.f32.mxu0 0.0
        %6633 = vmatmul.mubr.f32.gmra.mrb[0].mxu0 %v6381
        %v6634 = vpop.f32.mrb[0].mxu0
        %v6635 = vadd.f32 %v6476, %v6634
        %v6636 = vpop.f32.mrb[0].mxu0
        %v6637 = vadd.f32 %v6476, %v6636
        %6638 = vdwg.mxu0
        %v6639 = vadd.f32 %v6334, %v6545
        %v6640 = vadd.f32 %v6335, %v6547
        %v6641 = vadd.f32 %v6336, %v6551
        %v6642 = vadd.f32 %v6337, %v6553
        %v6643 = vadd.f32 %v6338, %v6557
        %v6644 = vadd.f32 %v6339, %v6559
        %v6645 = vadd.f32 %v6340, %v6563
        %v6646 = vadd.f32 %v6341, %v6565
        %v6647 = vadd.f32 %v6342, %v6569
        %v6648 = vadd.f32 %v6343, %v6571
        %v6649 = vadd.f32 %v6344, %v6575
        %v6650 = vadd.f32 %v6345, %v6577
        %v6651 = vadd.f32 %v6346, %v6581
        %v6652 = vadd.f32 %v6347, %v6583
        %v6653 = vadd.f32 %v6348, %v6587
        %v6654 = vadd.f32 %v6349, %v6589
        %v6655 = vadd.f32 %v6350, %v6593
        %v6656 = vadd.f32 %v6351, %v6595
        %v6657 = vadd.f32 %v6352, %v6599
        %v6658 = vadd.f32 %v6353, %v6601
        %v6659 = vadd.f32 %v6354, %v6605
        %v6660 = vadd.f32 %v6355, %v6607
        %v6661 = vadd.f32 %v6356, %v6611
        %v6662 = vadd.f32 %v6357, %v6613
        %v6663 = vadd.f32 %v6358, %v6617
        %v6664 = vadd.f32 %v6359, %v6619
        %v6665 = vadd.f32 %v6360, %v6623
        %v6666 = vadd.f32 %v6361, %v6625
        %v6667 = vadd.f32 %v6362, %v6629
        %v6668 = vadd.f32 %v6363, %v6631
        %v6669 = vadd.f32 %v6364, %v6635
        %v6670 = vadd.f32 %v6365, %v6637
        %v6671 = vld [vmem:[%s15] sm:$0xff]
        %v6672 = vld [vmem:[%s15 + $0x8] sm:$0xff]
        %v6673 = vld [vmem:[%s15 + $0x10] sm:$0xff]
        %v6674 = vld [vmem:[%s15 + $0x18] sm:$0xff]
        %v6675 = vld [vmem:[%s15 + $0x20] sm:$0xff]
        %v6676 = vld [vmem:[%s15 + $0x28] sm:$0xff]
        %v6677 = vld [vmem:[%s15 + $0x30] sm:$0xff]
        %v6678 = vld [vmem:[%s15 + $0x38] sm:$0xff]
        %v6679 = vld [vmem:[%s15 + $0x40] sm:$0xff]
        %v6680 = vld [vmem:[%s15 + $0x48] sm:$0xff]
        %v6681 = vld [vmem:[%s15 + $0x50] sm:$0xff]
        %v6682 = vld [vmem:[%s15 + $0x58] sm:$0xff]
        %v6683 = vld [vmem:[%s15 + $0x60] sm:$0xff]
        %v6684 = vld [vmem:[%s15 + $0x68] sm:$0xff]
        %v6685 = vld [vmem:[%s15 + $0x70] sm:$0xff]
        %v6686 = vld [vmem:[%s15 + $0x78] sm:$0xff]
        %v6687 = vld [vmem:[%s16] sm:$0xff]
        %v6688 = vld [vmem:[%s16 + $0x8] sm:$0xff]
        %v6689 = vld [vmem:[%s16 + $0x10] sm:$0xff]
        %v6690 = vld [vmem:[%s16 + $0x18] sm:$0xff]
        %v6691 = vld [vmem:[%s16 + $0x20] sm:$0xff]
        %v6692 = vld [vmem:[%s16 + $0x28] sm:$0xff]
        %v6693 = vld [vmem:[%s16 + $0x30] sm:$0xff]
        %v6694 = vld [vmem:[%s16 + $0x38] sm:$0xff]
        %v6695 = vld [vmem:[%s16 + $0x40] sm:$0xff]
        %v6696 = vld [vmem:[%s16 + $0x48] sm:$0xff]
        %v6697 = vld [vmem:[%s16 + $0x50] sm:$0xff]
        %v6698 = vld [vmem:[%s16 + $0x58] sm:$0xff]
        %v6699 = vld [vmem:[%s16 + $0x60] sm:$0xff]
        %v6700 = vld [vmem:[%s16 + $0x68] sm:$0xff]
        %v6701 = vld [vmem:[%s16 + $0x70] sm:$0xff]
        %v6702 = vld [vmem:[%s16 + $0x78] sm:$0xff]
        %v6703 = vadd.f32 %v6639, %v6641
        %v6704 = vadd.f32 %v6703, %v6643
        %v6705 = vadd.f32 %v6704, %v6645
        %v6706 = vadd.f32 %v6705, %v6647
        %v6707 = vadd.f32 %v6706, %v6649
        %v6708 = vadd.f32 %v6707, %v6651
        %v6709 = vadd.f32 %v6708, %v6653
        %v6710 = vadd.f32 %v6709, %v6655
        %v6711 = vadd.f32 %v6710, %v6657
        %v6712 = vadd.f32 %v6711, %v6659
        %v6713 = vadd.f32 %v6712, %v6661
        %v6714 = vadd.f32 %v6713, %v6663
        %v6715 = vadd.f32 %v6714, %v6665
        %v6716 = vadd.f32 %v6715, %v6667
        %v6717 = vadd.f32 %v6716, %v6669
        %v6718 = vrot.slane %v6717, 4
        %v6719 = vadd.f32 %v6717, %v6718
        %v6720 = vrot.slane %v6719, 2
        %v6721 = vadd.f32 %v6719, %v6720
        %v6722 = vrot.slane %v6721, 1
        %v6723 = vadd.f32 %v6721, %v6722
        %v6724 = vadd.f32 %v6640, %v6642
        %v6725 = vadd.f32 %v6724, %v6644
        %v6726 = vadd.f32 %v6725, %v6646
        %v6727 = vadd.f32 %v6726, %v6648
        %v6728 = vadd.f32 %v6727, %v6650
        %v6729 = vadd.f32 %v6728, %v6652
        %v6730 = vadd.f32 %v6729, %v6654
        %v6731 = vadd.f32 %v6730, %v6656
        %v6732 = vadd.f32 %v6731, %v6658
        %v6733 = vadd.f32 %v6732, %v6660
        %v6734 = vadd.f32 %v6733, %v6662
        %v6735 = vadd.f32 %v6734, %v6664
        %v6736 = vadd.f32 %v6735, %v6666
        %v6737 = vadd.f32 %v6736, %v6668
        %v6738 = vadd.f32 %v6737, %v6670
        %v6739 = vrot.slane %v6738, 4
        %v6740 = vadd.f32 %v6738, %v6739
        %v6741 = vrot.slane %v6740, 2
        %v6742 = vadd.f32 %v6740, %v6741
        %v6743 = vrot.slane %v6742, 1
        %v6744 = vadd.f32 %v6742, %v6743
        %v6745 = vmul.f32 %v6723, %v5995
        %v6746 = vmul.f32 %v6744, %v5995
        %v6747 = vsub.f32 %v6639, %v6745
        %v6748 = vsub.f32 %v6640, %v6746
        %v6749 = vsub.f32 %v6641, %v6745
        %v6750 = vsub.f32 %v6642, %v6746
        %v6751 = vsub.f32 %v6643, %v6745
        %v6752 = vsub.f32 %v6644, %v6746
        %v6753 = vsub.f32 %v6645, %v6745
        %v6754 = vsub.f32 %v6646, %v6746
        %v6755 = vsub.f32 %v6647, %v6745
        %v6756 = vsub.f32 %v6648, %v6746
        %v6757 = vsub.f32 %v6649, %v6745
        %v6758 = vsub.f32 %v6650, %v6746
        %v6759 = vsub.f32 %v6651, %v6745
        %v6760 = vsub.f32 %v6652, %v6746
        %v6761 = vsub.f32 %v6653, %v6745
        %v6762 = vsub.f32 %v6654, %v6746
        %v6763 = vsub.f32 %v6655, %v6745
        %v6764 = vsub.f32 %v6656, %v6746
        %v6765 = vsub.f32 %v6657, %v6745
        %v6766 = vsub.f32 %v6658, %v6746
        %v6767 = vsub.f32 %v6659, %v6745
        %v6768 = vsub.f32 %v6660, %v6746
        %v6769 = vsub.f32 %v6661, %v6745
        %v6770 = vsub.f32 %v6662, %v6746
        %v6771 = vsub.f32 %v6663, %v6745
        %v6772 = vsub.f32 %v6664, %v6746
        %v6773 = vsub.f32 %v6665, %v6745
        %v6774 = vsub.f32 %v6666, %v6746
        %v6775 = vsub.f32 %v6667, %v6745
        %v6776 = vsub.f32 %v6668, %v6746
        %v6777 = vsub.f32 %v6669, %v6745
        %v6778 = vsub.f32 %v6670, %v6746
        %v6779 = vmul.f32 %v6747, %v6747
        %v6780 = vmul.f32 %v6748, %v6748
        %v6781 = vmul.f32 %v6749, %v6749
        %v6782 = vmul.f32 %v6750, %v6750
        %v6783 = vmul.f32 %v6751, %v6751
        %v6784 = vmul.f32 %v6752, %v6752
        %v6785 = vmul.f32 %v6753, %v6753
        %v6786 = vmul.f32 %v6754, %v6754
        %v6787 = vmul.f32 %v6755, %v6755
        %v6788 = vmul.f32 %v6756, %v6756
        %v6789 = vmul.f32 %v6757, %v6757
        %v6790 = vmul.f32 %v6758, %v6758
        %v6791 = vmul.f32 %v6759, %v6759
        %v6792 = vmul.f32 %v6760, %v6760
        %v6793 = vmul.f32 %v6761, %v6761
        %v6794 = vmul.f32 %v6762, %v6762
        %v6795 = vmul.f32 %v6763, %v6763
        %v6796 = vmul.f32 %v6764, %v6764
        %v6797 = vmul.f32 %v6765, %v6765
        %v6798 = vmul.f32 %v6766, %v6766
        %v6799 = vmul.f32 %v6767, %v6767
        %v6800 = vmul.f32 %v6768, %v6768
        %v6801 = vmul.f32 %v6769, %v6769
        %v6802 = vmul.f32 %v6770, %v6770
        %v6803 = vmul.f32 %v6771, %v6771
        %v6804 = vmul.f32 %v6772, %v6772
        %v6805 = vmul.f32 %v6773, %v6773
        %v6806 = vmul.f32 %v6774, %v6774
        %v6807 = vmul.f32 %v6775, %v6775
        %v6808 = vmul.f32 %v6776, %v6776
        %v6809 = vmul.f32 %v6777, %v6777
        %v6810 = vmul.f32 %v6778, %v6778
        %v6811 = vadd.f32 %v6779, %v6781
        %v6812 = vadd.f32 %v6811, %v6783
        %v6813 = vadd.f32 %v6812, %v6785
        %v6814 = vadd.f32 %v6813, %v6787
        %v6815 = vadd.f32 %v6814, %v6789
        %v6816 = vadd.f32 %v6815, %v6791
        %v6817 = vadd.f32 %v6816, %v6793
        %v6818 = vadd.f32 %v6817, %v6795
        %v6819 = vadd.f32 %v6818, %v6797
        %v6820 = vadd.f32 %v6819, %v6799
        %v6821 = vadd.f32 %v6820, %v6801
        %v6822 = vadd.f32 %v6821, %v6803
        %v6823 = vadd.f32 %v6822, %v6805
        %v6824 = vadd.f32 %v6823, %v6807
        %v6825 = vadd.f32 %v6824, %v6809
        %v6826 = vrot.slane %v6825, 4
        %v6827 = vadd.f32 %v6825, %v6826
        %v6828 = vrot.slane %v6827, 2
        %v6829 = vadd.f32 %v6827, %v6828
        %v6830 = vrot.slane %v6829, 1
        %v6831 = vadd.f32 %v6829, %v6830
        %v6832 = vadd.f32 %v6780, %v6782
        %v6833 = vadd.f32 %v6832, %v6784
        %v6834 = vadd.f32 %v6833, %v6786
        %v6835 = vadd.f32 %v6834, %v6788
        %v6836 = vadd.f32 %v6835, %v6790
        %v6837 = vadd.f32 %v6836, %v6792
        %v6838 = vadd.f32 %v6837, %v6794
        %v6839 = vadd.f32 %v6838, %v6796
        %v6840 = vadd.f32 %v6839, %v6798
        %v6841 = vadd.f32 %v6840, %v6800
        %v6842 = vadd.f32 %v6841, %v6802
        %v6843 = vadd.f32 %v6842, %v6804
        %v6844 = vadd.f32 %v6843, %v6806
        %v6845 = vadd.f32 %v6844, %v6808
        %v6846 = vadd.f32 %v6845, %v6810
        %v6847 = vrot.slane %v6846, 4
        %v6848 = vadd.f32 %v6846, %v6847
        %v6849 = vrot.slane %v6848, 2
        %v6850 = vadd.f32 %v6848, %v6849
        %v6851 = vrot.slane %v6850, 1
        %v6852 = vadd.f32 %v6850, %v6851
        %v6853 = vmul.f32 %v6831, %v5995
        %v6854 = vmul.f32 %v6852, %v5995
        %v6855 = vadd.f32 %v6853, 1e-05
        %v6856 = vadd.f32 %v6854, 1e-05
        %v6857 = vrsqrt.pop %v6855
        %v6858 = vrsqrt.pop %v6856
        %v6859 = vmul.f32 %v6747, %v6857
        %v6860 = vmul.f32 %v6748, %v6858
        %v6861 = vmul.f32 %v6749, %v6857
        %v6862 = vmul.f32 %v6750, %v6858
        %v6863 = vmul.f32 %v6751, %v6857
        %v6864 = vmul.f32 %v6752, %v6858
        %v6865 = vmul.f32 %v6753, %v6857
        %v6866 = vmul.f32 %v6754, %v6858
        %v6867 = vmul.f32 %v6755, %v6857
        %v6868 = vmul.f32 %v6756, %v6858
        %v6869 = vmul.f32 %v6757, %v6857
        %v6870 = vmul.f32 %v6758, %v6858
        %v6871 = vmul.f32 %v6759, %v6857
        %v6872 = vmul.f32 %v6760, %v6858
        %v6873 = vmul.f32 %v6761, %v6857
        %v6874 = vmul.f32 %v6762, %v6858
        %v6875 = vmul.f32 %v6763, %v6857
        %v6876 = vmul.f32 %v6764, %v6858
        %v6877 = vmul.f32 %v6765, %v6857
        %v6878 = vmul.f32 %v6766, %v6858
        %v6879 = vmul.f32 %v6767, %v6857
        %v6880 = vmul.f32 %v6768, %v6858
        %v6881 = vmul.f32 %v6769, %v6857
        %v6882 = vmul.f32 %v6770, %v6858
        %v6883 = vmul.f32 %v6771, %v6857
        %v6884 = vmul.f32 %v6772, %v6858
        %v6885 = vmul.f32 %v6773, %v6857
        %v6886 = vmul.f32 %v6774, %v6858
        %v6887 = vmul.f32 %v6775, %v6857
        %v6888 = vmul.f32 %v6776, %v6858
        %v6889 = vmul.f32 %v6777, %v6857
        %v6890 = vmul.f32 %v6778, %v6858
        %6892 = vset.pattern.permute.xlu0 0
        %6893 = vperm.xlu0 %6892, %v6671
        %v6894 = vpop.permute.xlu0 %6893
        %6897 = vset.pattern.permute.xlu0 0
        %6898 = vperm.xlu0 %6897, %v6672
        %v6899 = vpop.permute.xlu0 %6898
        %6902 = vset.pattern.permute.xlu0 0
        %6903 = vperm.xlu0 %6902, %v6673
        %v6904 = vpop.permute.xlu0 %6903
        %6907 = vset.pattern.permute.xlu0 0
        %6908 = vperm.xlu0 %6907, %v6674
        %v6909 = vpop.permute.xlu0 %6908
        %6912 = vset.pattern.permute.xlu0 0
        %6913 = vperm.xlu0 %6912, %v6675
        %v6914 = vpop.permute.xlu0 %6913
        %6917 = vset.pattern.permute.xlu0 0
        %6918 = vperm.xlu0 %6917, %v6676
        %v6919 = vpop.permute.xlu0 %6918
        %6922 = vset.pattern.permute.xlu0 0
        %6923 = vperm.xlu0 %6922, %v6677
        %v6924 = vpop.permute.xlu0 %6923
        %6927 = vset.pattern.permute.xlu0 0
        %6928 = vperm.xlu0 %6927, %v6678
        %v6929 = vpop.permute.xlu0 %6928
        %6932 = vset.pattern.permute.xlu0 0
        %6933 = vperm.xlu0 %6932, %v6679
        %v6934 = vpop.permute.xlu0 %6933
        %6937 = vset.pattern.permute.xlu0 0
        %6938 = vperm.xlu0 %6937, %v6680
        %v6939 = vpop.permute.xlu0 %6938
        %6942 = vset.pattern.permute.xlu0 0
        %6943 = vperm.xlu0 %6942, %v6681
        %v6944 = vpop.permute.xlu0 %6943
        %6947 = vset.pattern.permute.xlu0 0
        %6948 = vperm.xlu0 %6947, %v6682
        %v6949 = vpop.permute.xlu0 %6948
        %6952 = vset.pattern.permute.xlu0 0
        %6953 = vperm.xlu0 %6952, %v6683
        %v6954 = vpop.permute.xlu0 %6953
        %6957 = vset.pattern.permute.xlu0 0
        %6958 = vperm.xlu0 %6957, %v6684
        %v6959 = vpop.permute.xlu0 %6958
        %6962 = vset.pattern.permute.xlu0 0
        %6963 = vperm.xlu0 %6962, %v6685
        %v6964 = vpop.permute.xlu0 %6963
        %6967 = vset.pattern.permute.xlu0 0
        %6968 = vperm.xlu0 %6967, %v6686
        %v6969 = vpop.permute.xlu0 %6968
        %v6971 = vmul.f32 %v6859, %v6894
        %v6972 = vmul.f32 %v6860, %v6894
        %v6973 = vmul.f32 %v6861, %v6899
        %v6974 = vmul.f32 %v6862, %v6899
        %v6975 = vmul.f32 %v6863, %v6904
        %v6976 = vmul.f32 %v6864, %v6904
        %v6977 = vmul.f32 %v6865, %v6909
        %v6978 = vmul.f32 %v6866, %v6909
        %v6979 = vmul.f32 %v6867, %v6914
        %v6980 = vmul.f32 %v6868, %v6914
        %v6981 = vmul.f32 %v6869, %v6919
        %v6982 = vmul.f32 %v6870, %v6919
        %v6983 = vmul.f32 %v6871, %v6924
        %v6984 = vmul.f32 %v6872, %v6924
        %v6985 = vmul.f32 %v6873, %v6929
        %v6986 = vmul.f32 %v6874, %v6929
        %v6987 = vmul.f32 %v6875, %v6934
        %v6988 = vmul.f32 %v6876, %v6934
        %v6989 = vmul.f32 %v6877, %v6939
        %v6990 = vmul.f32 %v6878, %v6939
        %v6991 = vmul.f32 %v6879, %v6944
        %v6992 = vmul.f32 %v6880, %v6944
        %v6993 = vmul.f32 %v6881, %v6949
        %v6994 = vmul.f32 %v6882, %v6949
        %v6995 = vmul.f32 %v6883, %v6954
        %v6996 = vmul.f32 %v6884, %v6954
        %v6997 = vmul.f32 %v6885, %v6959
        %v6998 = vmul.f32 %v6886, %v6959
        %v6999 = vmul.f32 %v6887, %v6964
        %v7000 = vmul.f32 %v6888, %v6964
        %v7001 = vmul.f32 %v6889, %v6969
        %v7002 = vmul.f32 %v6890, %v6969
        %7004 = vset.pattern.permute.xlu0 0
        %7005 = vperm.xlu0 %7004, %v6687
        %v7006 = vpop.permute.xlu0 %7005
        %7009 = vset.pattern.permute.xlu0 0
        %7010 = vperm.xlu0 %7009, %v6688
        %v7011 = vpop.permute.xlu0 %7010
        %7014 = vset.pattern.permute.xlu0 0
        %7015 = vperm.xlu0 %7014, %v6689
        %v7016 = vpop.permute.xlu0 %7015
        %7019 = vset.pattern.permute.xlu0 0
        %7020 = vperm.xlu0 %7019, %v6690
        %v7021 = vpop.permute.xlu0 %7020
        %7024 = vset.pattern.permute.xlu0 0
        %7025 = vperm.xlu0 %7024, %v6691
        %v7026 = vpop.permute.xlu0 %7025
        %7029 = vset.pattern.permute.xlu0 0
        %7030 = vperm.xlu0 %7029, %v6692
        %v7031 = vpop.permute.xlu0 %7030
        %7034 = vset.pattern.permute.xlu0 0
        %7035 = vperm.xlu0 %7034, %v6693
        %v7036 = vpop.permute.xlu0 %7035
        %7039 = vset.pattern.permute.xlu0 0
        %7040 = vperm.xlu0 %7039, %v6694
        %v7041 = vpop.permute.xlu0 %7040
        %7044 = vset.pattern.permute.xlu0 0
        %7045 = vperm.xlu0 %7044, %v6695
        %v7046 = vpop.permute.xlu0 %7045
        %7049 = vset.pattern.permute.xlu0 0
        %7050 = vperm.xlu0 %7049, %v6696
        %v7051 = vpop.permute.xlu0 %7050
        %7054 = vset.pattern.permute.xlu0 0
        %7055 = vperm.xlu0 %7054, %v6697
        %v7056 = vpop.permute.xlu0 %7055
        %7059 = vset.pattern.permute.xlu0 0
        %7060 = vperm.xlu0 %7059, %v6698
        %v7061 = vpop.permute.xlu0 %7060
        %7064 = vset.pattern.permute.xlu0 0
        %7065 = vperm.xlu0 %7064, %v6699
        %v7066 = vpop.permute.xlu0 %7065
        %7069 = vset.pattern.permute.xlu0 0
        %7070 = vperm.xlu0 %7069, %v6700
        %v7071 = vpop.permute.xlu0 %7070
        %7074 = vset.pattern.permute.xlu0 0
        %7075 = vperm.xlu0 %7074, %v6701
        %v7076 = vpop.permute.xlu0 %7075
        %7079 = vset.pattern.permute.xlu0 0
        %7080 = vperm.xlu0 %7079, %v6702
        %v7081 = vpop.permute.xlu0 %7080
        %v7083 = vadd.f32 %v6971, %v7006
        %v7084 = vadd.f32 %v6972, %v7006
        %v7085 = vadd.f32 %v6973, %v7011
        %v7086 = vadd.f32 %v6974, %v7011
        %v7087 = vadd.f32 %v6975, %v7016
        %v7088 = vadd.f32 %v6976, %v7016
        %v7089 = vadd.f32 %v6977, %v7021
        %v7090 = vadd.f32 %v6978, %v7021
        %v7091 = vadd.f32 %v6979, %v7026
        %v7092 = vadd.f32 %v6980, %v7026
        %v7093 = vadd.f32 %v6981, %v7031
        %v7094 = vadd.f32 %v6982, %v7031
        %v7095 = vadd.f32 %v6983, %v7036
        %v7096 = vadd.f32 %v6984, %v7036
        %v7097 = vadd.f32 %v6985, %v7041
        %v7098 = vadd.f32 %v6986, %v7041
        %v7099 = vadd.f32 %v6987, %v7046
        %v7100 = vadd.f32 %v6988, %v7046
        %v7101 = vadd.f32 %v6989, %v7051
        %v7102 = vadd.f32 %v6990, %v7051
        %v7103 = vadd.f32 %v6991, %v7056
        %v7104 = vadd.f32 %v6992, %v7056
        %v7105 = vadd.f32 %v6993, %v7061
        %v7106 = vadd.f32 %v6994, %v7061
        %v7107 = vadd.f32 %v6995, %v7066
        %v7108 = vadd.f32 %v6996, %v7066
        %v7109 = vadd.f32 %v6997, %v7071
        %v7110 = vadd.f32 %v6998, %v7071
        %v7111 = vadd.f32 %v6999, %v7076
        %v7112 = vadd.f32 %v7000, %v7076
        %v7113 = vadd.f32 %v7001, %v7081
        %v7114 = vadd.f32 %v7002, %v7081
        %7115 = vst [vmem:[%s541] sm:$0xff] %v7083
        %7116 = vst [vmem:[%s541 + $0x8] sm:$0xff] %v7084
        %7117 = vst [vmem:[%s541 + $0x10] sm:$0xff] %v7085
        %7118 = vst [vmem:[%s541 + $0x18] sm:$0xff] %v7086
        %7119 = vst [vmem:[%s541 + $0x20] sm:$0xff] %v7087
        %7120 = vst [vmem:[%s541 + $0x28] sm:$0xff] %v7088
        %7121 = vst [vmem:[%s541 + $0x30] sm:$0xff] %v7089
        %7122 = vst [vmem:[%s541 + $0x38] sm:$0xff] %v7090
        %7123 = vst [vmem:[%s541 + $0x40] sm:$0xff] %v7091
        %7124 = vst [vmem:[%s541 + $0x48] sm:$0xff] %v7092
        %7125 = vst [vmem:[%s541 + $0x50] sm:$0xff] %v7093
        %7126 = vst [vmem:[%s541 + $0x58] sm:$0xff] %v7094
        %7127 = vst [vmem:[%s541 + $0x60] sm:$0xff] %v7095
        %7128 = vst [vmem:[%s541 + $0x68] sm:$0xff] %v7096
        %7129 = vst [vmem:[%s541 + $0x70] sm:$0xff] %v7097
        %7130 = vst [vmem:[%s541 + $0x78] sm:$0xff] %v7098
        %7131 = vst [vmem:[%s541 + $0x80] sm:$0xff] %v7099
        %7132 = vst [vmem:[%s541 + $0x88] sm:$0xff] %v7100
        %7133 = vst [vmem:[%s541 + $0x90] sm:$0xff] %v7101
        %7134 = vst [vmem:[%s541 + $0x98] sm:$0xff] %v7102
        %7135 = vst [vmem:[%s541 + $0xa0] sm:$0xff] %v7103
        %7136 = vst [vmem:[%s541 + $0xa8] sm:$0xff] %v7104
        %7137 = vst [vmem:[%s541 + $0xb0] sm:$0xff] %v7105
        %7138 = vst [vmem:[%s541 + $0xb8] sm:$0xff] %v7106
        %7139 = vst [vmem:[%s541 + $0xc0] sm:$0xff] %v7107
        %7140 = vst [vmem:[%s541 + $0xc8] sm:$0xff] %v7108
        %7141 = vst [vmem:[%s541 + $0xd0] sm:$0xff] %v7109
        %7142 = vst [vmem:[%s541 + $0xd8] sm:$0xff] %v7110
        %7143 = vst [vmem:[%s541 + $0xe0] sm:$0xff] %v7111
        %7144 = vst [vmem:[%s541 + $0xe8] sm:$0xff] %v7112
        %7145 = vst [vmem:[%s541 + $0xf0] sm:$0xff] %v7113
        %7146 = vst [vmem:[%s541 + $0xf8] sm:$0xff] %v7114
        %s7147 = sand.u32 %s401, 1
        %s7148 = scalar_lea.sflag [#allocation3], %s7147
        %s7149 = sand.u32 %s401, 1
        %s7150 = smul.addr %s7149, 256
        %s7151 = scalar_lea.vmem [#allocation2], %s7150
        // Predicated region
        $region89: #{tpu_custom_call.1} parent=87 // pred_check
          %p7152 = pneg %p411
        $region90: #{tpu_custom_call.1} parent=87 // pred_check_branch
          %7154 = sbr.rel (%p7152) target = $region92
        $region91: #{tpu_custom_call.1} parent=87 // pred_region
          %s7156 = ssub.s32 4096, 4096
          %7157 = vsyncadd %s7148, %s7156
          %s7158 = smul.addr %s31, 32
          %s7159 = smul.addr %s7158, 128
          %s7160 = scalar_lea.hbm %s17, %s7159
          %s7161 = sshll.u32 %s7151, 4
          %s7162 = int_to_ptr.vmem [resolvable:$true] %s7161
          %7167 = dma.vmem_to_hbm [thread:$0]  %s7162, 4096, %s7160, %s7148, 256, 256, 16
        $region92: #{tpu_custom_call.1} parent=87 // pred_fallthru
          _
      $region88: #{tpu_custom_call.1} parent=5 // pred_fallthru
        _
      %p7168 = scmp.le.s32.totalorder 2, %s26
      // Predicated region
      $region93: #{tpu_custom_call.1} parent=5 // pred_check
        %p7169 = pneg %p7168
      $region94: #{tpu_custom_call.1} parent=5 // pred_check_branch
        %7171 = sbr.rel (%p7169) target = $region96
      $region95: #{tpu_custom_call.1} parent=5 // pred_region
        %s7172 = ssub.s32 %s26, 2
        // Predicated region
        $region97: #{tpu_custom_call.1} parent=95 // pred_check
          %p7173 = pneg %p417
        $region98: #{tpu_custom_call.1} parent=95 // pred_check_branch
          %7175 = sbr.rel (%p7173) target = $region100
        $region99: #{tpu_custom_call.1} parent=95 // pred_region
          %s7176 = sand.u32 %s402, 1
          %s7177 = scalar_lea.sflag [#allocation3], %s7176
          %s7178 = sand.u32 %s402, 1
          %s7179 = smul.addr %s7178, 256
          %s7180 = scalar_lea.vmem [#allocation2], %s7179
          %7181 = dma.done %s7177, 4096
        $region100: #{tpu_custom_call.1} parent=95 // pred_fallthru
          _
      $region96: #{tpu_custom_call.1} parent=5 // pred_fallthru
        _
    $region6: #{tpu_custom_call.1} parent=1 // loop_footer
      %s30 = sadd.s32 1, %s26
    $region7: #{tpu_custom_call.1} parent=1 // loop_footer_branch
      %25 = sbr.rel target = $region3
    $region8: #{tpu_custom_call.1} parent=1 // loop_exit
      _
    %7182 = vsyncpa [#allocation3], 1
    %s7183 = scalar_lea.sflag [#allocation3], 1
    %7184 = vsyncpa %s7183, 1

</llo_original>
